<compile_context>
chip_gen: v5e
topology: v5e:2x2
jax: 0.10.0
libtpu: 0.0.40
codegen_flags: <defaults>
</compile_context>

<pallas_src>
import functools

import jax
import jax.numpy as jnp
from jax.experimental import pallas as pl
from jax.experimental.pallas import tpu as pltpu


def _sigmoid(x):
    # sigmoid(x) == 0.5 * (tanh(x/2) + 1): single EUP op instead of exp+recip.
    return 0.5 * (jnp.tanh(0.5 * x) + 1.0)


def _input_projection(x_parts, w_ih, b):
    """Hoisted input projection for both directions, emitted in bf16.

    x_parts: tuple of (S, B, I_k) arrays whose feature dims concat to I
             (lets layer>=2 consume the previous layer's fwd/bwd halves
             without an explicit concat).
    w_ih:    (2, I, 4H) bf16
    b:       (2, 4H)    f32   (b_ih + b_hh per direction)
    returns  (2, S, B, 4H) bf16
    """
    acc = None
    off = 0
    for xp in x_parts:
        ik = xp.shape[-1]
        g = jnp.einsum(
            "sbi,dio->dsbo",
            xp.astype(jnp.bfloat16),
            w_ih[:, off:off + ik, :],
            preferred_element_type=jnp.float32,
        )
        acc = g if acc is None else acc + g
        off += ik
    return (acc + b[:, None, None, :]).astype(jnp.bfloat16)


def _lstm_chunk_kernel(gf_ref, gb_ref, whh_ref, of_ref, ob_ref,
                       hf_s, cf_s, hb_s, cb_s, *, tc_len, hidden):
    """Process one chunk of `tc_len` timesteps for BOTH directions.

    gf_ref: (1, Tc, B, 4H) bf16  forward gates, chunk t (time ascending)
    gb_ref: (1, Tc, B, 4H) bf16  backward gates, chunk n-1-t (time ascending)
    whh_ref:(2, H, 4H)     bf16  recurrent weights (both directions, resident)
    of_ref: (Tc, B, H)           forward output chunk t
    ob_ref: (Tc, B, H)           backward output chunk n-1-t
    hf_s/hb_s: (B, H) bf16       recurrent h state (fwd/bwd)
    cf_s/cb_s: (B, H) f32        recurrent c state (fwd/bwd)
    """
    H = hidden

    @pl.when(pl.program_id(0) == 0)
    def _():
        # nn.LSTM default: zero-initialized (h0, c0).
        hf_s[...] = jnp.zeros_like(hf_s)
        cf_s[...] = jnp.zeros_like(cf_s)
        hb_s[...] = jnp.zeros_like(hb_s)
        cb_s[...] = jnp.zeros_like(cb_s)

    wf = whh_ref[0]  # (H, 4H) bf16, VMEM-resident across the whole grid
    wb = whh_ref[1]

    def cell(g, c):
        i_g = _sigmoid(g[:, 0 * H:1 * H])
        f_g = _sigmoid(g[:, 1 * H:2 * H])
        g_g = jnp.tanh(g[:, 2 * H:3 * H])
        o_g = _sigmoid(g[:, 3 * H:4 * H])
        c_new = f_g * c + i_g * g_g
        h_new = o_g * jnp.tanh(c_new)
        return h_new, c_new

    def step(s, carry):
        # Forward walks s = 0..Tc-1 inside its chunk; backward walks the
        # mirrored local index of its (already end-anchored) chunk.
        sb = tc_len - 1 - s

        # Two independent dependence chains — the scheduler interleaves the
        # matmuls / EUP / VPU work of both directions.
        gf = gf_ref[0, s].astype(jnp.float32) + jnp.dot(
            hf_s[...], wf, preferred_element_type=jnp.float32)
        gb = gb_ref[0, sb].astype(jnp.float32) + jnp.dot(
            hb_s[...], wb, preferred_element_type=jnp.float32)

        hf, cf = cell(gf, cf_s[...])
        hb, cb = cell(gb, cb_s[...])

        hf_s[...] = hf.astype(jnp.bfloat16)
        cf_s[...] = cf
        hb_s[...] = hb.astype(jnp.bfloat16)
        cb_s[...] = cb

        of_ref[s] = hf.astype(of_ref.dtype)
        ob_ref[sb] = hb.astype(ob_ref.dtype)
        return carry

    # Full unroll for short chunks; partial unroll keeps scheduler visibility
    # without instruction-stream bloat for long chunks.
    unroll = True if tc_len <= 16 else 8
    jax.lax.fori_loop(0, tc_len, step, 0, unroll=unroll)


def lstm_layer_pallas(x_parts, w_ih, w_hh, b, *, chunk=None,
                      out_dtype=jnp.bfloat16):
    """Fused bidirectional LSTM layer.

    x_parts: tuple of (S, B, I_k) arrays (feature dims concat to I)
    w_ih:    (2, I, 4H) bf16    [dir 0 = fwd, dir 1 = bwd]
    w_hh:    (2, H, 4H) bf16
    b:       (2, 4H)    f32     (b_ih + b_hh per direction)
    returns  (out_fwd, out_bwd), each (S, B, H) in out_dtype
    """
    S, B, _ = x_parts[0].shape
    H = w_hh.shape[1]
    if chunk is None:
        chunk = min(32, S)
    assert S % chunk == 0, (S, chunk)
    n_chunks = S // chunk

    # One big matmul for the input projection (both directions), outside the
    # serial recurrence; streamed to/from HBM in bf16.
    gates = _input_projection(x_parts, w_ih, b)  # (2, S, B, 4H) bf16

    kernel = functools.partial(_lstm_chunk_kernel, tc_len=chunk, hidden=H)

    # VMEM budget from the actual block sizes (x2 for double buffering),
    # capped at 64 MiB so the same request is legal on v7x.
    out_bytes = jnp.dtype(out_dtype).itemsize
    gate_blk = chunk * B * 4 * H * 2          # bf16
    out_blk = chunk * B * H * out_bytes
    whh_bytes = 2 * H * 4 * H * 2
    state_bytes = 2 * B * H * (2 + 4)
    need = 2 * 2 * gate_blk + 2 * 2 * out_blk + 2 * whh_bytes + state_bytes
    vmem_limit = int(min(max(2 * need + (4 << 20), 32 << 20), 64 << 20))

    out_fwd, out_bwd = pl.pallas_call(
        kernel,
        out_shape=(jax.ShapeDtypeStruct((S, B, H), out_dtype),
                   jax.ShapeDtypeStruct((S, B, H), out_dtype)),
        grid_spec=pltpu.PrefetchScalarGridSpec(
            num_scalar_prefetch=0,
            grid=(n_chunks,),
            in_specs=[
                # Forward gate chunk t.
                pl.BlockSpec((1, chunk, B, 4 * H), lambda t: (0, t, 0, 0)),
                # Backward gate chunk n-1-t (same array, second direction).
                pl.BlockSpec((1, chunk, B, 4 * H),
                             lambda t: (1, n_chunks - 1 - t, 0, 0)),
                # Both recurrent weights, resident (constant index map).
                pl.BlockSpec((2, H, 4 * H), lambda t: (0, 0, 0)),
            ],
            out_specs=[
                pl.BlockSpec((chunk, B, H), lambda t: (t, 0, 0)),
                pl.BlockSpec((chunk, B, H),
                             lambda t: (n_chunks - 1 - t, 0, 0)),
            ],
            scratch_shapes=[
                pltpu.VMEM((B, H), jnp.bfloat16),  # h fwd (bf16: MXU operand)
                pltpu.VMEM((B, H), jnp.float32),   # c fwd
                pltpu.VMEM((B, H), jnp.bfloat16),  # h bwd
                pltpu.VMEM((B, H), jnp.float32),   # c bwd
            ],
        ),
        compiler_params=pltpu.CompilerParams(
            # Time chunks are a sequential recurrence.
            dimension_semantics=("arbitrary",),
            vmem_limit_bytes=vmem_limit,
        ),
    )(gates, gates, w_hh)
    return out_fwd, out_bwd


def rnn_decoder_forward(x, params, *, chunk=None):
    """Bidirectional multi-layer LSTM forward (eval mode).

    x: (S, B, input_size) f32. Returns (S, B, 2*hidden) f32.
    """
    parts = (x,)
    n_layers = len(params)
    for li, layer in enumerate(params):
        out_dtype = jnp.float32 if li == n_layers - 1 else jnp.bfloat16
        parts = lstm_layer_pallas(parts, layer["w_ih"], layer["w_hh"],
                                  layer["b"], chunk=chunk,
                                  out_dtype=out_dtype)
        # TODO(synk): inter-layer dropout (rnn_dropout=0.5) is identity in eval.
    return jnp.concatenate(parts, axis=-1)


# ----------------------------------------------------------------------------
# Pure-JAX reference (lax.scan) mirroring the same bf16-gates / bf16-h /
# f32-accumulation numerics, for correctness checking of the Pallas plumbing.
# ----------------------------------------------------------------------------
def _lstm_layer_ref(x_parts, w_ih, w_hh, b, out_dtype):
    S, B, _ = x_parts[0].shape
    H = w_hh.shape[1]
    gates_all = _input_projection(x_parts, w_ih, b)  # (2, S, B, 4H) bf16

    outs = []
    for d, reverse in ((0, False), (1, True)):
        g_seq = gates_all[d][::-1] if reverse else gates_all[d]
        whh = w_hh[d]

        def step(carry, g_t, whh=whh):
            h, c = carry
            gates = g_t.astype(jnp.float32) + jnp.dot(
                h, whh, preferred_element_type=jnp.float32)
            i_g = _sigmoid(gates[:, 0 * H:1 * H])
            f_g = _sigmoid(gates[:, 1 * H:2 * H])
            g_g = jnp.tanh(gates[:, 2 * H:3 * H])
            o_g = _sigmoid(gates[:, 3 * H:4 * H])
            c_new = f_g * c + i_g * g_g
            h_new = o_g * jnp.tanh(c_new)
            return (h_new.astype(jnp.bfloat16), c_new), h_new.astype(out_dtype)

        init = (jnp.zeros((B, H), jnp.bfloat16),
                jnp.zeros((B, H), jnp.float32))
        _, out = jax.lax.scan(step, init, g_seq)
        outs.append(out[::-1] if reverse else out)
    return outs[0], outs[1]


def rnn_decoder_ref(x, params):
    parts = (x,)
    n_layers = len(params)
    for li, layer in enumerate(params):
        out_dtype = jnp.float32 if li == n_layers - 1 else jnp.bfloat16
        parts = _lstm_layer_ref(parts, layer["w_ih"], layer["w_hh"],
                                layer["b"], out_dtype)
    return jnp.concatenate(parts, axis=-1)


# ----------------------------------------------------------------------------
# Deterministic parameter init (PyTorch-style U(-1/sqrt(H), 1/sqrt(H))).
# ----------------------------------------------------------------------------
def init_params(key, input_size, hidden, num_layers):
    params = []
    bound = 1.0 / (hidden ** 0.5)
    in_size = input_size
    for _ in range(num_layers):
        w_ih_list, w_hh_list, b_list = [], [], []
        for _dir in range(2):
            key, k1, k2, k3, k4 = jax.random.split(key, 5)
            w_ih = jax.random.uniform(k1, (4 * hidden, in_size), jnp.float32,
                                      -bound, bound)
            w_hh = jax.random.uniform(k2, (4 * hidden, hidden), jnp.float32,
                                      -bound, bound)
            b_ih = jax.random.uniform(k3, (4 * hidden,), jnp.float32,
                                      -bound, bound)
            b_hh = jax.random.uniform(k4, (4 * hidden,), jnp.float32,
                                      -bound, bound)
            w_ih_list.append(w_ih.T)        # (I, 4H)
            w_hh_list.append(w_hh.T)        # (H, 4H)
            b_list.append(b_ih + b_hh)      # (4H,)
        params.append({
            "w_ih": jnp.stack(w_ih_list).astype(jnp.bfloat16),  # (2, I, 4H)
            "w_hh": jnp.stack(w_hh_list).astype(jnp.bfloat16),  # (2, H, 4H)
            "b":    jnp.stack(b_list),                          # (2, 4H) f32
        })
        in_size = 2 * hidden  # next layer consumes bidirectional output
    return params


if __name__ == "__main__":
    # Small shapes consistent with the module (scaled-down input_size=2048,
    # hidden=512 -> input_size=256, hidden=128; 2 layers, bidirectional).
    # SEQ=16 with chunk=8 exercises state carry across time chunks.
    SEQ, BATCH, INPUT, HIDDEN, LAYERS = 16, 8, 256, 128, 2

    key = jax.random.PRNGKey(0)
    kx, kp = jax.random.split(key)
    x = jax.random.normal(kx, (SEQ, BATCH, INPUT), jnp.float32)
    params = init_params(kp, INPUT, HIDDEN, LAYERS)

    fwd = jax.jit(functools.partial(rnn_decoder_forward, chunk=8))
    out = jax.block_until_ready(fwd(x, params))

    ref = jax.block_until_ready(jax.jit(rnn_decoder_ref)(x, params))

    assert out.shape == (SEQ, BATCH, 2 * HIDDEN), out.shape
    err = float(jnp.max(jnp.abs(out - ref)))
    # Tolerance covers bf16 quantization of gates/h propagating through the
    # recurrence (both paths quantize at identical points).
    assert err < 1e-2, err

    print("KERNEL_OK")
</pallas_src>

<mosaic_0001>
module attributes {stable_mosaic.version = 11 : i64} {
  func.func @_lstm_chunk_kernel(%arg0: i32, %arg1: memref<1x8x8x512xbf16, #tpu.memory_space<vmem>>, %arg2: memref<1x8x8x512xbf16, #tpu.memory_space<vmem>>, %arg3: memref<2x128x512xbf16, #tpu.memory_space<vmem>>, %arg4: memref<8x8x128xbf16, #tpu.memory_space<vmem>>, %arg5: memref<8x8x128xbf16, #tpu.memory_space<vmem>>, %arg6: memref<8x128xbf16, #tpu.memory_space<vmem>>, %arg7: memref<8x128xf32, #tpu.memory_space<vmem>>, %arg8: memref<8x128xbf16, #tpu.memory_space<vmem>>, %arg9: memref<8x128xf32, #tpu.memory_space<vmem>>) attributes {dimension_semantics = [#tpu.dimension_semantics<arbitrary>], iteration_bounds = array<i64: 2>, scalar_prefetch = 0 : i64, scratch_operands = 4 : i64, tpu.core_type = #tpu.core_type<tc>, window_params = [{transform_indices = @transform_0, window_bounds = array<i64: 1, 8, 8, 512>}, {transform_indices = @transform_1, window_bounds = array<i64: 1, 8, 8, 512>}, {pipeline_mode = #tpu.pipeline_mode<synchronous>, transform_indices = @transform_2, window_bounds = array<i64: 2, 128, 512>}, {transform_indices = @transform_3, window_bounds = array<i64: 8, 8, 128>}, {transform_indices = @transform_4, window_bounds = array<i64: 8, 8, 128>}]} {
    %c0_i32 = arith.constant 0 : i32
    %0 = arith.cmpi eq, %arg0, %c0_i32 : i32
    %1 = arith.extui %0 : i1 to i32
    %c0_i32_0 = arith.constant 0 : i32
    %2 = arith.cmpi ne, %1, %c0_i32_0 : i32
    scf.if %2 {
      %cst_381 = arith.constant 0.000000e+00 : bf16
      %767 = vector.broadcast %cst_381 : bf16 to vector<8x128xbf16>
      %c0_382 = arith.constant 0 : index
      %c0_383 = arith.constant 0 : index
      %768 = vector.load %arg6[%c0_382, %c0_383] : memref<8x128xbf16, #tpu.memory_space<vmem>>, vector<8x128xbf16>
      tpu.vector_store %arg6[%c0_382, %c0_383], %767 {strides = array<i32>} : memref<8x128xbf16, #tpu.memory_space<vmem>>, vector<8x128xbf16>,
      %cst_384 = arith.constant 0.000000e+00 : f32
      %769 = vector.broadcast %cst_384 : f32 to vector<8x128xf32>
      %c0_385 = arith.constant 0 : index
      %c0_386 = arith.constant 0 : index
      %770 = vector.load %arg7[%c0_385, %c0_386] : memref<8x128xf32, #tpu.memory_space<vmem>>, vector<8x128xf32>
      tpu.vector_store %arg7[%c0_385, %c0_386], %769 {strides = array<i32>} : memref<8x128xf32, #tpu.memory_space<vmem>>, vector<8x128xf32>,
      %cst_387 = arith.constant 0.000000e+00 : bf16
      %771 = vector.broadcast %cst_387 : bf16 to vector<8x128xbf16>
      %c0_388 = arith.constant 0 : index
      %c0_389 = arith.constant 0 : index
      %772 = vector.load %arg8[%c0_388, %c0_389] : memref<8x128xbf16, #tpu.memory_space<vmem>>, vector<8x128xbf16>
      tpu.vector_store %arg8[%c0_388, %c0_389], %771 {strides = array<i32>} : memref<8x128xbf16, #tpu.memory_space<vmem>>, vector<8x128xbf16>,
      %cst_390 = arith.constant 0.000000e+00 : f32
      %773 = vector.broadcast %cst_390 : f32 to vector<8x128xf32>
      %c0_391 = arith.constant 0 : index
      %c0_392 = arith.constant 0 : index
      %774 = vector.load %arg9[%c0_391, %c0_392] : memref<8x128xf32, #tpu.memory_space<vmem>>, vector<8x128xf32>
      tpu.vector_store %arg9[%c0_391, %c0_392], %773 {strides = array<i32>} : memref<8x128xf32, #tpu.memory_space<vmem>>, vector<8x128xf32>,
    } else {
    }
    %c0 = arith.constant 0 : index
    %c0_1 = arith.constant 0 : index
    %c0_2 = arith.constant 0 : index
    %3 = vector.load %arg3[%c0, %c0_1, %c0_2] : memref<2x128x512xbf16, #tpu.memory_space<vmem>>, vector<1x128x512xbf16>
    %4 = vector.shape_cast %3 : vector<1x128x512xbf16> to vector<128x512xbf16>
    %c1 = arith.constant 1 : index
    %c0_3 = arith.constant 0 : index
    %c0_4 = arith.constant 0 : index
    %5 = vector.load %arg3[%c1, %c0_3, %c0_4] : memref<2x128x512xbf16, #tpu.memory_space<vmem>>, vector<1x128x512xbf16>
    %6 = vector.shape_cast %5 : vector<1x128x512xbf16> to vector<128x512xbf16>
    %c0_i32_5 = arith.constant 0 : i32
    %c7_i32 = arith.constant 7 : i32
    %7 = arith.subi %c7_i32, %c0_i32_5 : i32
    %c0_6 = arith.constant 0 : index
    %8 = arith.index_cast %c0_i32_5 : i32 to index
    %c0_7 = arith.constant 0 : index
    %c0_8 = arith.constant 0 : index
    %9 = vector.load %arg1[%c0_6, %8, %c0_7, %c0_8] : memref<1x8x8x512xbf16, #tpu.memory_space<vmem>>, vector<1x1x8x512xbf16>
    %10 = vector.shape_cast %9 : vector<1x1x8x512xbf16> to vector<8x512xbf16>
    %11 = arith.extf %10 : vector<8x512xbf16> to vector<8x512xf32>
    %c0_9 = arith.constant 0 : index
    %c0_10 = arith.constant 0 : index
    %12 = vector.load %arg6[%c0_9, %c0_10] : memref<8x128xbf16, #tpu.memory_space<vmem>>, vector<8x128xbf16>
    %cst = arith.constant dense<0.000000e+00> : vector<8x512xf32>
    %13 = tpu.matmul %12, %4, %cst {dimension_numbers = #tpu.dot_dimension_numbers<[1], [0], [0], [1], [0, 0, 1, 1], [], []>} : vector<8x128xbf16>, vector<128x512xbf16>, vector<8x512xf32> -> vector<8x512xf32>
    %14 = arith.addf %11, %13 : vector<8x512xf32>
    %c0_11 = arith.constant 0 : index
    %15 = arith.index_cast %7 : i32 to index
    %c0_12 = arith.constant 0 : index
    %c0_13 = arith.constant 0 : index
    %16 = vector.load %arg2[%c0_11, %15, %c0_12, %c0_13] : memref<1x8x8x512xbf16, #tpu.memory_space<vmem>>, vector<1x1x8x512xbf16>
    %17 = vector.shape_cast %16 : vector<1x1x8x512xbf16> to vector<8x512xbf16>
    %18 = arith.extf %17 : vector<8x512xbf16> to vector<8x512xf32>
    %c0_14 = arith.constant 0 : index
    %c0_15 = arith.constant 0 : index
    %19 = vector.load %arg8[%c0_14, %c0_15] : memref<8x128xbf16, #tpu.memory_space<vmem>>, vector<8x128xbf16>
    %cst_16 = arith.constant dense<0.000000e+00> : vector<8x512xf32>
    %20 = tpu.matmul %19, %6, %cst_16 {dimension_numbers = #tpu.dot_dimension_numbers<[1], [0], [0], [1], [0, 0, 1, 1], [], []>} : vector<8x128xbf16>, vector<128x512xbf16>, vector<8x512xf32> -> vector<8x512xf32>
    %21 = arith.addf %18, %20 : vector<8x512xf32>
    %c0_17 = arith.constant 0 : index
    %c0_18 = arith.constant 0 : index
    %22 = vector.load %arg7[%c0_17, %c0_18] : memref<8x128xf32, #tpu.memory_space<vmem>>, vector<8x128xf32>
    %23 = vector.extract_strided_slice %14 {offsets = [0, 0], sizes = [8, 128], strides = [1, 1]} : vector<8x512xf32> to vector<8x128xf32>
    %cst_19 = arith.constant 5.000000e-01 : f32
    %24 = vector.broadcast %cst_19 : f32 to vector<8x128xf32>
    %25 = arith.mulf %24, %23 : vector<8x128xf32>
    %26 = math.tanh %25 : vector<8x128xf32>
    %cst_20 = arith.constant 1.000000e+00 : f32
    %27 = vector.broadcast %cst_20 : f32 to vector<8x128xf32>
    %28 = arith.addf %26, %27 : vector<8x128xf32>
    %cst_21 = arith.constant 5.000000e-01 : f32
    %29 = vector.broadcast %cst_21 : f32 to vector<8x128xf32>
    %30 = arith.mulf %29, %28 : vector<8x128xf32>
    %31 = vector.extract_strided_slice %14 {offsets = [0, 128], sizes = [8, 128], strides = [1, 1]} : vector<8x512xf32> to vector<8x128xf32>
    %cst_22 = arith.constant 5.000000e-01 : f32
    %32 = vector.broadcast %cst_22 : f32 to vector<8x128xf32>
    %33 = arith.mulf %32, %31 : vector<8x128xf32>
    %34 = math.tanh %33 : vector<8x128xf32>
    %cst_23 = arith.constant 1.000000e+00 : f32
    %35 = vector.broadcast %cst_23 : f32 to vector<8x128xf32>
    %36 = arith.addf %34, %35 : vector<8x128xf32>
    %cst_24 = arith.constant 5.000000e-01 : f32
    %37 = vector.broadcast %cst_24 : f32 to vector<8x128xf32>
    %38 = arith.mulf %37, %36 : vector<8x128xf32>
    %39 = vector.extract_strided_slice %14 {offsets = [0, 256], sizes = [8, 128], strides = [1, 1]} : vector<8x512xf32> to vector<8x128xf32>
    %40 = math.tanh %39 : vector<8x128xf32>
    %41 = vector.extract_strided_slice %14 {offsets = [0, 384], sizes = [8, 128], strides = [1, 1]} : vector<8x512xf32> to vector<8x128xf32>
    %cst_25 = arith.constant 5.000000e-01 : f32
    %42 = vector.broadcast %cst_25 : f32 to vector<8x128xf32>
    %43 = arith.mulf %42, %41 : vector<8x128xf32>
    %44 = math.tanh %43 : vector<8x128xf32>
    %cst_26 = arith.constant 1.000000e+00 : f32
    %45 = vector.broadcast %cst_26 : f32 to vector<8x128xf32>
    %46 = arith.addf %44, %45 : vector<8x128xf32>
    %cst_27 = arith.constant 5.000000e-01 : f32
    %47 = vector.broadcast %cst_27 : f32 to vector<8x128xf32>
    %48 = arith.mulf %47, %46 : vector<8x128xf32>
    %49 = arith.mulf %38, %22 : vector<8x128xf32>
    %50 = arith.mulf %30, %40 : vector<8x128xf32>
    %51 = arith.addf %49, %50 : vector<8x128xf32>
    %52 = math.tanh %51 : vector<8x128xf32>
    %53 = arith.mulf %48, %52 : vector<8x128xf32>
    %c0_28 = arith.constant 0 : index
    %c0_29 = arith.constant 0 : index
    %54 = vector.load %arg9[%c0_28, %c0_29] : memref<8x128xf32, #tpu.memory_space<vmem>>, vector<8x128xf32>
    %55 = vector.extract_strided_slice %21 {offsets = [0, 0], sizes = [8, 128], strides = [1, 1]} : vector<8x512xf32> to vector<8x128xf32>
    %cst_30 = arith.constant 5.000000e-01 : f32
    %56 = vector.broadcast %cst_30 : f32 to vector<8x128xf32>
    %57 = arith.mulf %56, %55 : vector<8x128xf32>
    %58 = math.tanh %57 : vector<8x128xf32>
    %cst_31 = arith.constant 1.000000e+00 : f32
    %59 = vector.broadcast %cst_31 : f32 to vector<8x128xf32>
    %60 = arith.addf %58, %59 : vector<8x128xf32>
    %cst_32 = arith.constant 5.000000e-01 : f32
    %61 = vector.broadcast %cst_32 : f32 to vector<8x128xf32>
    %62 = arith.mulf %61, %60 : vector<8x128xf32>
    %63 = vector.extract_strided_slice %21 {offsets = [0, 128], sizes = [8, 128], strides = [1, 1]} : vector<8x512xf32> to vector<8x128xf32>
    %cst_33 = arith.constant 5.000000e-01 : f32
    %64 = vector.broadcast %cst_33 : f32 to vector<8x128xf32>
    %65 = arith.mulf %64, %63 : vector<8x128xf32>
    %66 = math.tanh %65 : vector<8x128xf32>
    %cst_34 = arith.constant 1.000000e+00 : f32
    %67 = vector.broadcast %cst_34 : f32 to vector<8x128xf32>
    %68 = arith.addf %66, %67 : vector<8x128xf32>
    %cst_35 = arith.constant 5.000000e-01 : f32
    %69 = vector.broadcast %cst_35 : f32 to vector<8x128xf32>
    %70 = arith.mulf %69, %68 : vector<8x128xf32>
    %71 = vector.extract_strided_slice %21 {offsets = [0, 256], sizes = [8, 128], strides = [1, 1]} : vector<8x512xf32> to vector<8x128xf32>
    %72 = math.tanh %71 : vector<8x128xf32>
    %73 = vector.extract_strided_slice %21 {offsets = [0, 384], sizes = [8, 128], strides = [1, 1]} : vector<8x512xf32> to vector<8x128xf32>
    %cst_36 = arith.constant 5.000000e-01 : f32
    %74 = vector.broadcast %cst_36 : f32 to vector<8x128xf32>
    %75 = arith.mulf %74, %73 : vector<8x128xf32>
    %76 = math.tanh %75 : vector<8x128xf32>
    %cst_37 = arith.constant 1.000000e+00 : f32
    %77 = vector.broadcast %cst_37 : f32 to vector<8x128xf32>
    %78 = arith.addf %76, %77 : vector<8x128xf32>
    %cst_38 = arith.constant 5.000000e-01 : f32
    %79 = vector.broadcast %cst_38 : f32 to vector<8x128xf32>
    %80 = arith.mulf %79, %78 : vector<8x128xf32>
    %81 = arith.mulf %70, %54 : vector<8x128xf32>
    %82 = arith.mulf %62, %72 : vector<8x128xf32>
    %83 = arith.addf %81, %82 : vector<8x128xf32>
    %84 = math.tanh %83 : vector<8x128xf32>
    %85 = arith.mulf %80, %84 : vector<8x128xf32>
    %86 = arith.truncf %53 : vector<8x128xf32> to vector<8x128xbf16>
    %c0_39 = arith.constant 0 : index
    %c0_40 = arith.constant 0 : index
    %87 = vector.load %arg6[%c0_39, %c0_40] : memref<8x128xbf16, #tpu.memory_space<vmem>>, vector<8x128xbf16>
    tpu.vector_store %arg6[%c0_39, %c0_40], %86 {strides = array<i32>} : memref<8x128xbf16, #tpu.memory_space<vmem>>, vector<8x128xbf16>,
    %c0_41 = arith.constant 0 : index
    %c0_42 = arith.constant 0 : index
    %88 = vector.load %arg7[%c0_41, %c0_42] : memref<8x128xf32, #tpu.memory_space<vmem>>, vector<8x128xf32>
    tpu.vector_store %arg7[%c0_41, %c0_42], %51 {strides = array<i32>} : memref<8x128xf32, #tpu.memory_space<vmem>>, vector<8x128xf32>,
    %89 = arith.truncf %85 : vector<8x128xf32> to vector<8x128xbf16>
    %c0_43 = arith.constant 0 : index
    %c0_44 = arith.constant 0 : index
    %90 = vector.load %arg8[%c0_43, %c0_44] : memref<8x128xbf16, #tpu.memory_space<vmem>>, vector<8x128xbf16>
    tpu.vector_store %arg8[%c0_43, %c0_44], %89 {strides = array<i32>} : memref<8x128xbf16, #tpu.memory_space<vmem>>, vector<8x128xbf16>,
    %c0_45 = arith.constant 0 : index
    %c0_46 = arith.constant 0 : index
    %91 = vector.load %arg9[%c0_45, %c0_46] : memref<8x128xf32, #tpu.memory_space<vmem>>, vector<8x128xf32>
    tpu.vector_store %arg9[%c0_45, %c0_46], %83 {strides = array<i32>} : memref<8x128xf32, #tpu.memory_space<vmem>>, vector<8x128xf32>,
    %92 = arith.truncf %53 : vector<8x128xf32> to vector<8x128xbf16>
    %93 = arith.index_cast %c0_i32_5 : i32 to index
    %c0_47 = arith.constant 0 : index
    %c0_48 = arith.constant 0 : index
    %94 = vector.load %arg4[%93, %c0_47, %c0_48] : memref<8x8x128xbf16, #tpu.memory_space<vmem>>, vector<1x8x128xbf16>
    %95 = vector.shape_cast %94 : vector<1x8x128xbf16> to vector<8x128xbf16>
    %96 = vector.shape_cast %92 : vector<8x128xbf16> to vector<1x8x128xbf16>
    tpu.vector_store %arg4[%93, %c0_47, %c0_48], %96 {strides = array<i32>} : memref<8x8x128xbf16, #tpu.memory_space<vmem>>, vector<1x8x128xbf16>,
    %97 = arith.truncf %85 : vector<8x128xf32> to vector<8x128xbf16>
    %98 = arith.index_cast %7 : i32 to index
    %c0_49 = arith.constant 0 : index
    %c0_50 = arith.constant 0 : index
    %99 = vector.load %arg5[%98, %c0_49, %c0_50] : memref<8x8x128xbf16, #tpu.memory_space<vmem>>, vector<1x8x128xbf16>
    %100 = vector.shape_cast %99 : vector<1x8x128xbf16> to vector<8x128xbf16>
    %101 = vector.shape_cast %97 : vector<8x128xbf16> to vector<1x8x128xbf16>
    tpu.vector_store %arg5[%98, %c0_49, %c0_50], %101 {strides = array<i32>} : memref<8x8x128xbf16, #tpu.memory_space<vmem>>, vector<1x8x128xbf16>,
    %c1_i32 = arith.constant 1 : i32
    %c7_i32_51 = arith.constant 7 : i32
    %102 = arith.subi %c7_i32_51, %c1_i32 : i32
    %c0_52 = arith.constant 0 : index
    %103 = arith.index_cast %c1_i32 : i32 to index
    %c0_53 = arith.constant 0 : index
    %c0_54 = arith.constant 0 : index
    %104 = vector.load %arg1[%c0_52, %103, %c0_53, %c0_54] : memref<1x8x8x512xbf16, #tpu.memory_space<vmem>>, vector<1x1x8x512xbf16>
    %105 = vector.shape_cast %104 : vector<1x1x8x512xbf16> to vector<8x512xbf16>
    %106 = arith.extf %105 : vector<8x512xbf16> to vector<8x512xf32>
    %c0_55 = arith.constant 0 : index
    %c0_56 = arith.constant 0 : index
    %107 = vector.load %arg6[%c0_55, %c0_56] : memref<8x128xbf16, #tpu.memory_space<vmem>>, vector<8x128xbf16>
    %cst_57 = arith.constant dense<0.000000e+00> : vector<8x512xf32>
    %108 = tpu.matmul %107, %4, %cst_57 {dimension_numbers = #tpu.dot_dimension_numbers<[1], [0], [0], [1], [0, 0, 1, 1], [], []>} : vector<8x128xbf16>, vector<128x512xbf16>, vector<8x512xf32> -> vector<8x512xf32>
    %109 = arith.addf %106, %108 : vector<8x512xf32>
    %c0_58 = arith.constant 0 : index
    %110 = arith.index_cast %102 : i32 to index
    %c0_59 = arith.constant 0 : index
    %c0_60 = arith.constant 0 : index
    %111 = vector.load %arg2[%c0_58, %110, %c0_59, %c0_60] : memref<1x8x8x512xbf16, #tpu.memory_space<vmem>>, vector<1x1x8x512xbf16>
    %112 = vector.shape_cast %111 : vector<1x1x8x512xbf16> to vector<8x512xbf16>
    %113 = arith.extf %112 : vector<8x512xbf16> to vector<8x512xf32>
    %c0_61 = arith.constant 0 : index
    %c0_62 = arith.constant 0 : index
    %114 = vector.load %arg8[%c0_61, %c0_62] : memref<8x128xbf16, #tpu.memory_space<vmem>>, vector<8x128xbf16>
    %cst_63 = arith.constant dense<0.000000e+00> : vector<8x512xf32>
    %115 = tpu.matmul %114, %6, %cst_63 {dimension_numbers = #tpu.dot_dimension_numbers<[1], [0], [0], [1], [0, 0, 1, 1], [], []>} : vector<8x128xbf16>, vector<128x512xbf16>, vector<8x512xf32> -> vector<8x512xf32>
    %116 = arith.addf %113, %115 : vector<8x512xf32>
    %c0_64 = arith.constant 0 : index
    %c0_65 = arith.constant 0 : index
    %117 = vector.load %arg7[%c0_64, %c0_65] : memref<8x128xf32, #tpu.memory_space<vmem>>, vector<8x128xf32>
    %118 = vector.extract_strided_slice %109 {offsets = [0, 0], sizes = [8, 128], strides = [1, 1]} : vector<8x512xf32> to vector<8x128xf32>
    %cst_66 = arith.constant 5.000000e-01 : f32
    %119 = vector.broadcast %cst_66 : f32 to vector<8x128xf32>
    %120 = arith.mulf %119, %118 : vector<8x128xf32>
    %121 = math.tanh %120 : vector<8x128xf32>
    %cst_67 = arith.constant 1.000000e+00 : f32
    %122 = vector.broadcast %cst_67 : f32 to vector<8x128xf32>
    %123 = arith.addf %121, %122 : vector<8x128xf32>
    %cst_68 = arith.constant 5.000000e-01 : f32
    %124 = vector.broadcast %cst_68 : f32 to vector<8x128xf32>
    %125 = arith.mulf %124, %123 : vector<8x128xf32>
    %126 = vector.extract_strided_slice %109 {offsets = [0, 128], sizes = [8, 128], strides = [1, 1]} : vector<8x512xf32> to vector<8x128xf32>
    %cst_69 = arith.constant 5.000000e-01 : f32
    %127 = vector.broadcast %cst_69 : f32 to vector<8x128xf32>
    %128 = arith.mulf %127, %126 : vector<8x128xf32>
    %129 = math.tanh %128 : vector<8x128xf32>
    %cst_70 = arith.constant 1.000000e+00 : f32
    %130 = vector.broadcast %cst_70 : f32 to vector<8x128xf32>
    %131 = arith.addf %129, %130 : vector<8x128xf32>
    %cst_71 = arith.constant 5.000000e-01 : f32
    %132 = vector.broadcast %cst_71 : f32 to vector<8x128xf32>
    %133 = arith.mulf %132, %131 : vector<8x128xf32>
    %134 = vector.extract_strided_slice %109 {offsets = [0, 256], sizes = [8, 128], strides = [1, 1]} : vector<8x512xf32> to vector<8x128xf32>
    %135 = math.tanh %134 : vector<8x128xf32>
    %136 = vector.extract_strided_slice %109 {offsets = [0, 384], sizes = [8, 128], strides = [1, 1]} : vector<8x512xf32> to vector<8x128xf32>
    %cst_72 = arith.constant 5.000000e-01 : f32
    %137 = vector.broadcast %cst_72 : f32 to vector<8x128xf32>
    %138 = arith.mulf %137, %136 : vector<8x128xf32>
    %139 = math.tanh %138 : vector<8x128xf32>
    %cst_73 = arith.constant 1.000000e+00 : f32
    %140 = vector.broadcast %cst_73 : f32 to vector<8x128xf32>
    %141 = arith.addf %139, %140 : vector<8x128xf32>
    %cst_74 = arith.constant 5.000000e-01 : f32
    %142 = vector.broadcast %cst_74 : f32 to vector<8x128xf32>
    %143 = arith.mulf %142, %141 : vector<8x128xf32>
    %144 = arith.mulf %133, %117 : vector<8x128xf32>
    %145 = arith.mulf %125, %135 : vector<8x128xf32>
    %146 = arith.addf %144, %145 : vector<8x128xf32>
    %147 = math.tanh %146 : vector<8x128xf32>
    %148 = arith.mulf %143, %147 : vector<8x128xf32>
    %c0_75 = arith.constant 0 : index
    %c0_76 = arith.constant 0 : index
    %149 = vector.load %arg9[%c0_75, %c0_76] : memref<8x128xf32, #tpu.memory_space<vmem>>, vector<8x128xf32>
    %150 = vector.extract_strided_slice %116 {offsets = [0, 0], sizes = [8, 128], strides = [1, 1]} : vector<8x512xf32> to vector<8x128xf32>
    %cst_77 = arith.constant 5.000000e-01 : f32
    %151 = vector.broadcast %cst_77 : f32 to vector<8x128xf32>
    %152 = arith.mulf %151, %150 : vector<8x128xf32>
    %153 = math.tanh %152 : vector<8x128xf32>
    %cst_78 = arith.constant 1.000000e+00 : f32
    %154 = vector.broadcast %cst_78 : f32 to vector<8x128xf32>
    %155 = arith.addf %153, %154 : vector<8x128xf32>
    %cst_79 = arith.constant 5.000000e-01 : f32
    %156 = vector.broadcast %cst_79 : f32 to vector<8x128xf32>
    %157 = arith.mulf %156, %155 : vector<8x128xf32>
    %158 = vector.extract_strided_slice %116 {offsets = [0, 128], sizes = [8, 128], strides = [1, 1]} : vector<8x512xf32> to vector<8x128xf32>
    %cst_80 = arith.constant 5.000000e-01 : f32
    %159 = vector.broadcast %cst_80 : f32 to vector<8x128xf32>
    %160 = arith.mulf %159, %158 : vector<8x128xf32>
    %161 = math.tanh %160 : vector<8x128xf32>
    %cst_81 = arith.constant 1.000000e+00 : f32
    %162 = vector.broadcast %cst_81 : f32 to vector<8x128xf32>
    %163 = arith.addf %161, %162 : vector<8x128xf32>
    %cst_82 = arith.constant 5.000000e-01 : f32
    %164 = vector.broadcast %cst_82 : f32 to vector<8x128xf32>
    %165 = arith.mulf %164, %163 : vector<8x128xf32>
    %166 = vector.extract_strided_slice %116 {offsets = [0, 256], sizes = [8, 128], strides = [1, 1]} : vector<8x512xf32> to vector<8x128xf32>
    %167 = math.tanh %166 : vector<8x128xf32>
    %168 = vector.extract_strided_slice %116 {offsets = [0, 384], sizes = [8, 128], strides = [1, 1]} : vector<8x512xf32> to vector<8x128xf32>
    %cst_83 = arith.constant 5.000000e-01 : f32
    %169 = vector.broadcast %cst_83 : f32 to vector<8x128xf32>
    %170 = arith.mulf %169, %168 : vector<8x128xf32>
    %171 = math.tanh %170 : vector<8x128xf32>
    %cst_84 = arith.constant 1.000000e+00 : f32
    %172 = vector.broadcast %cst_84 : f32 to vector<8x128xf32>
    %173 = arith.addf %171, %172 : vector<8x128xf32>
    %cst_85 = arith.constant 5.000000e-01 : f32
    %174 = vector.broadcast %cst_85 : f32 to vector<8x128xf32>
    %175 = arith.mulf %174, %173 : vector<8x128xf32>
    %176 = arith.mulf %165, %149 : vector<8x128xf32>
    %177 = arith.mulf %157, %167 : vector<8x128xf32>
    %178 = arith.addf %176, %177 : vector<8x128xf32>
    %179 = math.tanh %178 : vector<8x128xf32>
    %180 = arith.mulf %175, %179 : vector<8x128xf32>
    %181 = arith.truncf %148 : vector<8x128xf32> to vector<8x128xbf16>
    %c0_86 = arith.constant 0 : index
    %c0_87 = arith.constant 0 : index
    %182 = vector.load %arg6[%c0_86, %c0_87] : memref<8x128xbf16, #tpu.memory_space<vmem>>, vector<8x128xbf16>
    tpu.vector_store %arg6[%c0_86, %c0_87], %181 {strides = array<i32>} : memref<8x128xbf16, #tpu.memory_space<vmem>>, vector<8x128xbf16>,
    %c0_88 = arith.constant 0 : index
    %c0_89 = arith.constant 0 : index
    %183 = vector.load %arg7[%c0_88, %c0_89] : memref<8x128xf32, #tpu.memory_space<vmem>>, vector<8x128xf32>
    tpu.vector_store %arg7[%c0_88, %c0_89], %146 {strides = array<i32>} : memref<8x128xf32, #tpu.memory_space<vmem>>, vector<8x128xf32>,
    %184 = arith.truncf %180 : vector<8x128xf32> to vector<8x128xbf16>
    %c0_90 = arith.constant 0 : index
    %c0_91 = arith.constant 0 : index
    %185 = vector.load %arg8[%c0_90, %c0_91] : memref<8x128xbf16, #tpu.memory_space<vmem>>, vector<8x128xbf16>
    tpu.vector_store %arg8[%c0_90, %c0_91], %184 {strides = array<i32>} : memref<8x128xbf16, #tpu.memory_space<vmem>>, vector<8x128xbf16>,
    %c0_92 = arith.constant 0 : index
    %c0_93 = arith.constant 0 : index
    %186 = vector.load %arg9[%c0_92, %c0_93] : memref<8x128xf32, #tpu.memory_space<vmem>>, vector<8x128xf32>
    tpu.vector_store %arg9[%c0_92, %c0_93], %178 {strides = array<i32>} : memref<8x128xf32, #tpu.memory_space<vmem>>, vector<8x128xf32>,
    %187 = arith.truncf %148 : vector<8x128xf32> to vector<8x128xbf16>
    %188 = arith.index_cast %c1_i32 : i32 to index
    %c0_94 = arith.constant 0 : index
    %c0_95 = arith.constant 0 : index
    %189 = vector.load %arg4[%188, %c0_94, %c0_95] : memref<8x8x128xbf16, #tpu.memory_space<vmem>>, vector<1x8x128xbf16>
    %190 = vector.shape_cast %189 : vector<1x8x128xbf16> to vector<8x128xbf16>
    %191 = vector.shape_cast %187 : vector<8x128xbf16> to vector<1x8x128xbf16>
    tpu.vector_store %arg4[%188, %c0_94, %c0_95], %191 {strides = array<i32>} : memref<8x8x128xbf16, #tpu.memory_space<vmem>>, vector<1x8x128xbf16>,
    %192 = arith.truncf %180 : vector<8x128xf32> to vector<8x128xbf16>
    %193 = arith.index_cast %102 : i32 to index
    %c0_96 = arith.constant 0 : index
    %c0_97 = arith.constant 0 : index
    %194 = vector.load %arg5[%193, %c0_96, %c0_97] : memref<8x8x128xbf16, #tpu.memory_space<vmem>>, vector<1x8x128xbf16>
    %195 = vector.shape_cast %194 : vector<1x8x128xbf16> to vector<8x128xbf16>
    %196 = vector.shape_cast %192 : vector<8x128xbf16> to vector<1x8x128xbf16>
    tpu.vector_store %arg5[%193, %c0_96, %c0_97], %196 {strides = array<i32>} : memref<8x8x128xbf16, #tpu.memory_space<vmem>>, vector<1x8x128xbf16>,
    %c2_i32 = arith.constant 2 : i32
    %c7_i32_98 = arith.constant 7 : i32
    %197 = arith.subi %c7_i32_98, %c2_i32 : i32
    %c0_99 = arith.constant 0 : index
    %198 = arith.index_cast %c2_i32 : i32 to index
    %c0_100 = arith.constant 0 : index
    %c0_101 = arith.constant 0 : index
    %199 = vector.load %arg1[%c0_99, %198, %c0_100, %c0_101] : memref<1x8x8x512xbf16, #tpu.memory_space<vmem>>, vector<1x1x8x512xbf16>
    %200 = vector.shape_cast %199 : vector<1x1x8x512xbf16> to vector<8x512xbf16>
    %201 = arith.extf %200 : vector<8x512xbf16> to vector<8x512xf32>
    %c0_102 = arith.constant 0 : index
    %c0_103 = arith.constant 0 : index
    %202 = vector.load %arg6[%c0_102, %c0_103] : memref<8x128xbf16, #tpu.memory_space<vmem>>, vector<8x128xbf16>
    %cst_104 = arith.constant dense<0.000000e+00> : vector<8x512xf32>
    %203 = tpu.matmul %202, %4, %cst_104 {dimension_numbers = #tpu.dot_dimension_numbers<[1], [0], [0], [1], [0, 0, 1, 1], [], []>} : vector<8x128xbf16>, vector<128x512xbf16>, vector<8x512xf32> -> vector<8x512xf32>
    %204 = arith.addf %201, %203 : vector<8x512xf32>
    %c0_105 = arith.constant 0 : index
    %205 = arith.index_cast %197 : i32 to index
    %c0_106 = arith.constant 0 : index
    %c0_107 = arith.constant 0 : index
    %206 = vector.load %arg2[%c0_105, %205, %c0_106, %c0_107] : memref<1x8x8x512xbf16, #tpu.memory_space<vmem>>, vector<1x1x8x512xbf16>
    %207 = vector.shape_cast %206 : vector<1x1x8x512xbf16> to vector<8x512xbf16>
    %208 = arith.extf %207 : vector<8x512xbf16> to vector<8x512xf32>
    %c0_108 = arith.constant 0 : index
    %c0_109 = arith.constant 0 : index
    %209 = vector.load %arg8[%c0_108, %c0_109] : memref<8x128xbf16, #tpu.memory_space<vmem>>, vector<8x128xbf16>
    %cst_110 = arith.constant dense<0.000000e+00> : vector<8x512xf32>
    %210 = tpu.matmul %209, %6, %cst_110 {dimension_numbers = #tpu.dot_dimension_numbers<[1], [0], [0], [1], [0, 0, 1, 1], [], []>} : vector<8x128xbf16>, vector<128x512xbf16>, vector<8x512xf32> -> vector<8x512xf32>
    %211 = arith.addf %208, %210 : vector<8x512xf32>
    %c0_111 = arith.constant 0 : index
    %c0_112 = arith.constant 0 : index
    %212 = vector.load %arg7[%c0_111, %c0_112] : memref<8x128xf32, #tpu.memory_space<vmem>>, vector<8x128xf32>
    %213 = vector.extract_strided_slice %204 {offsets = [0, 0], sizes = [8, 128], strides = [1, 1]} : vector<8x512xf32> to vector<8x128xf32>
    %cst_113 = arith.constant 5.000000e-01 : f32
    %214 = vector.broadcast %cst_113 : f32 to vector<8x128xf32>
    %215 = arith.mulf %214, %213 : vector<8x128xf32>
    %216 = math.tanh %215 : vector<8x128xf32>
    %cst_114 = arith.constant 1.000000e+00 : f32
    %217 = vector.broadcast %cst_114 : f32 to vector<8x128xf32>
    %218 = arith.addf %216, %217 : vector<8x128xf32>
    %cst_115 = arith.constant 5.000000e-01 : f32
    %219 = vector.broadcast %cst_115 : f32 to vector<8x128xf32>
    %220 = arith.mulf %219, %218 : vector<8x128xf32>
    %221 = vector.extract_strided_slice %204 {offsets = [0, 128], sizes = [8, 128], strides = [1, 1]} : vector<8x512xf32> to vector<8x128xf32>
    %cst_116 = arith.constant 5.000000e-01 : f32
    %222 = vector.broadcast %cst_116 : f32 to vector<8x128xf32>
    %223 = arith.mulf %222, %221 : vector<8x128xf32>
    %224 = math.tanh %223 : vector<8x128xf32>
    %cst_117 = arith.constant 1.000000e+00 : f32
    %225 = vector.broadcast %cst_117 : f32 to vector<8x128xf32>
    %226 = arith.addf %224, %225 : vector<8x128xf32>
    %cst_118 = arith.constant 5.000000e-01 : f32
    %227 = vector.broadcast %cst_118 : f32 to vector<8x128xf32>
    %228 = arith.mulf %227, %226 : vector<8x128xf32>
    %229 = vector.extract_strided_slice %204 {offsets = [0, 256], sizes = [8, 128], strides = [1, 1]} : vector<8x512xf32> to vector<8x128xf32>
    %230 = math.tanh %229 : vector<8x128xf32>
    %231 = vector.extract_strided_slice %204 {offsets = [0, 384], sizes = [8, 128], strides = [1, 1]} : vector<8x512xf32> to vector<8x128xf32>
    %cst_119 = arith.constant 5.000000e-01 : f32
    %232 = vector.broadcast %cst_119 : f32 to vector<8x128xf32>
    %233 = arith.mulf %232, %231 : vector<8x128xf32>
    %234 = math.tanh %233 : vector<8x128xf32>
    %cst_120 = arith.constant 1.000000e+00 : f32
    %235 = vector.broadcast %cst_120 : f32 to vector<8x128xf32>
    %236 = arith.addf %234, %235 : vector<8x128xf32>
    %cst_121 = arith.constant 5.000000e-01 : f32
    %237 = vector.broadcast %cst_121 : f32 to vector<8x128xf32>
    %238 = arith.mulf %237, %236 : vector<8x128xf32>
    %239 = arith.mulf %228, %212 : vector<8x128xf32>
    %240 = arith.mulf %220, %230 : vector<8x128xf32>
    %241 = arith.addf %239, %240 : vector<8x128xf32>
    %242 = math.tanh %241 : vector<8x128xf32>
    %243 = arith.mulf %238, %242 : vector<8x128xf32>
    %c0_122 = arith.constant 0 : index
    %c0_123 = arith.constant 0 : index
    %244 = vector.load %arg9[%c0_122, %c0_123] : memref<8x128xf32, #tpu.memory_space<vmem>>, vector<8x128xf32>
    %245 = vector.extract_strided_slice %211 {offsets = [0, 0], sizes = [8, 128], strides = [1, 1]} : vector<8x512xf32> to vector<8x128xf32>
    %cst_124 = arith.constant 5.000000e-01 : f32
    %246 = vector.broadcast %cst_124 : f32 to vector<8x128xf32>
    %247 = arith.mulf %246, %245 : vector<8x128xf32>
    %248 = math.tanh %247 : vector<8x128xf32>
    %cst_125 = arith.constant 1.000000e+00 : f32
    %249 = vector.broadcast %cst_125 : f32 to vector<8x128xf32>
    %250 = arith.addf %248, %249 : vector<8x128xf32>
    %cst_126 = arith.constant 5.000000e-01 : f32
    %251 = vector.broadcast %cst_126 : f32 to vector<8x128xf32>
    %252 = arith.mulf %251, %250 : vector<8x128xf32>
    %253 = vector.extract_strided_slice %211 {offsets = [0, 128], sizes = [8, 128], strides = [1, 1]} : vector<8x512xf32> to vector<8x128xf32>
    %cst_127 = arith.constant 5.000000e-01 : f32
    %254 = vector.broadcast %cst_127 : f32 to vector<8x128xf32>
    %255 = arith.mulf %254, %253 : vector<8x128xf32>
    %256 = math.tanh %255 : vector<8x128xf32>
    %cst_128 = arith.constant 1.000000e+00 : f32
    %257 = vector.broadcast %cst_128 : f32 to vector<8x128xf32>
    %258 = arith.addf %256, %257 : vector<8x128xf32>
    %cst_129 = arith.constant 5.000000e-01 : f32
    %259 = vector.broadcast %cst_129 : f32 to vector<8x128xf32>
    %260 = arith.mulf %259, %258 : vector<8x128xf32>
    %261 = vector.extract_strided_slice %211 {offsets = [0, 256], sizes = [8, 128], strides = [1, 1]} : vector<8x512xf32> to vector<8x128xf32>
    %262 = math.tanh %261 : vector<8x128xf32>
    %263 = vector.extract_strided_slice %211 {offsets = [0, 384], sizes = [8, 128], strides = [1, 1]} : vector<8x512xf32> to vector<8x128xf32>
    %cst_130 = arith.constant 5.000000e-01 : f32
    %264 = vector.broadcast %cst_130 : f32 to vector<8x128xf32>
    %265 = arith.mulf %264, %263 : vector<8x128xf32>
    %266 = math.tanh %265 : vector<8x128xf32>
    %cst_131 = arith.constant 1.000000e+00 : f32
    %267 = vector.broadcast %cst_131 : f32 to vector<8x128xf32>
    %268 = arith.addf %266, %267 : vector<8x128xf32>
    %cst_132 = arith.constant 5.000000e-01 : f32
    %269 = vector.broadcast %cst_132 : f32 to vector<8x128xf32>
    %270 = arith.mulf %269, %268 : vector<8x128xf32>
    %271 = arith.mulf %260, %244 : vector<8x128xf32>
    %272 = arith.mulf %252, %262 : vector<8x128xf32>
    %273 = arith.addf %271, %272 : vector<8x128xf32>
    %274 = math.tanh %273 : vector<8x128xf32>
    %275 = arith.mulf %270, %274 : vector<8x128xf32>
    %276 = arith.truncf %243 : vector<8x128xf32> to vector<8x128xbf16>
    %c0_133 = arith.constant 0 : index
    %c0_134 = arith.constant 0 : index
    %277 = vector.load %arg6[%c0_133, %c0_134] : memref<8x128xbf16, #tpu.memory_space<vmem>>, vector<8x128xbf16>
    tpu.vector_store %arg6[%c0_133, %c0_134], %276 {strides = array<i32>} : memref<8x128xbf16, #tpu.memory_space<vmem>>, vector<8x128xbf16>,
    %c0_135 = arith.constant 0 : index
    %c0_136 = arith.constant 0 : index
    %278 = vector.load %arg7[%c0_135, %c0_136] : memref<8x128xf32, #tpu.memory_space<vmem>>, vector<8x128xf32>
    tpu.vector_store %arg7[%c0_135, %c0_136], %241 {strides = array<i32>} : memref<8x128xf32, #tpu.memory_space<vmem>>, vector<8x128xf32>,
    %279 = arith.truncf %275 : vector<8x128xf32> to vector<8x128xbf16>
    %c0_137 = arith.constant 0 : index
    %c0_138 = arith.constant 0 : index
    %280 = vector.load %arg8[%c0_137, %c0_138] : memref<8x128xbf16, #tpu.memory_space<vmem>>, vector<8x128xbf16>
    tpu.vector_store %arg8[%c0_137, %c0_138], %279 {strides = array<i32>} : memref<8x128xbf16, #tpu.memory_space<vmem>>, vector<8x128xbf16>,
    %c0_139 = arith.constant 0 : index
    %c0_140 = arith.constant 0 : index
    %281 = vector.load %arg9[%c0_139, %c0_140] : memref<8x128xf32, #tpu.memory_space<vmem>>, vector<8x128xf32>
    tpu.vector_store %arg9[%c0_139, %c0_140], %273 {strides = array<i32>} : memref<8x128xf32, #tpu.memory_space<vmem>>, vector<8x128xf32>,
    %282 = arith.truncf %243 : vector<8x128xf32> to vector<8x128xbf16>
    %283 = arith.index_cast %c2_i32 : i32 to index
    %c0_141 = arith.constant 0 : index
    %c0_142 = arith.constant 0 : index
    %284 = vector.load %arg4[%283, %c0_141, %c0_142] : memref<8x8x128xbf16, #tpu.memory_space<vmem>>, vector<1x8x128xbf16>
    %285 = vector.shape_cast %284 : vector<1x8x128xbf16> to vector<8x128xbf16>
    %286 = vector.shape_cast %282 : vector<8x128xbf16> to vector<1x8x128xbf16>
    tpu.vector_store %arg4[%283, %c0_141, %c0_142], %286 {strides = array<i32>} : memref<8x8x128xbf16, #tpu.memory_space<vmem>>, vector<1x8x128xbf16>,
    %287 = arith.truncf %275 : vector<8x128xf32> to vector<8x128xbf16>
    %288 = arith.index_cast %197 : i32 to index
    %c0_143 = arith.constant 0 : index
    %c0_144 = arith.constant 0 : index
    %289 = vector.load %arg5[%288, %c0_143, %c0_144] : memref<8x8x128xbf16, #tpu.memory_space<vmem>>, vector<1x8x128xbf16>
    %290 = vector.shape_cast %289 : vector<1x8x128xbf16> to vector<8x128xbf16>
    %291 = vector.shape_cast %287 : vector<8x128xbf16> to vector<1x8x128xbf16>
    tpu.vector_store %arg5[%288, %c0_143, %c0_144], %291 {strides = array<i32>} : memref<8x8x128xbf16, #tpu.memory_space<vmem>>, vector<1x8x128xbf16>,
    %c3_i32 = arith.constant 3 : i32
    %c7_i32_145 = arith.constant 7 : i32
    %292 = arith.subi %c7_i32_145, %c3_i32 : i32
    %c0_146 = arith.constant 0 : index
    %293 = arith.index_cast %c3_i32 : i32 to index
    %c0_147 = arith.constant 0 : index
    %c0_148 = arith.constant 0 : index
    %294 = vector.load %arg1[%c0_146, %293, %c0_147, %c0_148] : memref<1x8x8x512xbf16, #tpu.memory_space<vmem>>, vector<1x1x8x512xbf16>
    %295 = vector.shape_cast %294 : vector<1x1x8x512xbf16> to vector<8x512xbf16>
    %296 = arith.extf %295 : vector<8x512xbf16> to vector<8x512xf32>
    %c0_149 = arith.constant 0 : index
    %c0_150 = arith.constant 0 : index
    %297 = vector.load %arg6[%c0_149, %c0_150] : memref<8x128xbf16, #tpu.memory_space<vmem>>, vector<8x128xbf16>
    %cst_151 = arith.constant dense<0.000000e+00> : vector<8x512xf32>
    %298 = tpu.matmul %297, %4, %cst_151 {dimension_numbers = #tpu.dot_dimension_numbers<[1], [0], [0], [1], [0, 0, 1, 1], [], []>} : vector<8x128xbf16>, vector<128x512xbf16>, vector<8x512xf32> -> vector<8x512xf32>
    %299 = arith.addf %296, %298 : vector<8x512xf32>
    %c0_152 = arith.constant 0 : index
    %300 = arith.index_cast %292 : i32 to index
    %c0_153 = arith.constant 0 : index
    %c0_154 = arith.constant 0 : index
    %301 = vector.load %arg2[%c0_152, %300, %c0_153, %c0_154] : memref<1x8x8x512xbf16, #tpu.memory_space<vmem>>, vector<1x1x8x512xbf16>
    %302 = vector.shape_cast %301 : vector<1x1x8x512xbf16> to vector<8x512xbf16>
    %303 = arith.extf %302 : vector<8x512xbf16> to vector<8x512xf32>
    %c0_155 = arith.constant 0 : index
    %c0_156 = arith.constant 0 : index
    %304 = vector.load %arg8[%c0_155, %c0_156] : memref<8x128xbf16, #tpu.memory_space<vmem>>, vector<8x128xbf16>
    %cst_157 = arith.constant dense<0.000000e+00> : vector<8x512xf32>
    %305 = tpu.matmul %304, %6, %cst_157 {dimension_numbers = #tpu.dot_dimension_numbers<[1], [0], [0], [1], [0, 0, 1, 1], [], []>} : vector<8x128xbf16>, vector<128x512xbf16>, vector<8x512xf32> -> vector<8x512xf32>
    %306 = arith.addf %303, %305 : vector<8x512xf32>
    %c0_158 = arith.constant 0 : index
    %c0_159 = arith.constant 0 : index
    %307 = vector.load %arg7[%c0_158, %c0_159] : memref<8x128xf32, #tpu.memory_space<vmem>>, vector<8x128xf32>
    %308 = vector.extract_strided_slice %299 {offsets = [0, 0], sizes = [8, 128], strides = [1, 1]} : vector<8x512xf32> to vector<8x128xf32>
    %cst_160 = arith.constant 5.000000e-01 : f32
    %309 = vector.broadcast %cst_160 : f32 to vector<8x128xf32>
    %310 = arith.mulf %309, %308 : vector<8x128xf32>
    %311 = math.tanh %310 : vector<8x128xf32>
    %cst_161 = arith.constant 1.000000e+00 : f32
    %312 = vector.broadcast %cst_161 : f32 to vector<8x128xf32>
    %313 = arith.addf %311, %312 : vector<8x128xf32>
    %cst_162 = arith.constant 5.000000e-01 : f32
    %314 = vector.broadcast %cst_162 : f32 to vector<8x128xf32>
    %315 = arith.mulf %314, %313 : vector<8x128xf32>
    %316 = vector.extract_strided_slice %299 {offsets = [0, 128], sizes = [8, 128], strides = [1, 1]} : vector<8x512xf32> to vector<8x128xf32>
    %cst_163 = arith.constant 5.000000e-01 : f32
    %317 = vector.broadcast %cst_163 : f32 to vector<8x128xf32>
    %318 = arith.mulf %317, %316 : vector<8x128xf32>
    %319 = math.tanh %318 : vector<8x128xf32>
    %cst_164 = arith.constant 1.000000e+00 : f32
    %320 = vector.broadcast %cst_164 : f32 to vector<8x128xf32>
    %321 = arith.addf %319, %320 : vector<8x128xf32>
    %cst_165 = arith.constant 5.000000e-01 : f32
    %322 = vector.broadcast %cst_165 : f32 to vector<8x128xf32>
    %323 = arith.mulf %322, %321 : vector<8x128xf32>
    %324 = vector.extract_strided_slice %299 {offsets = [0, 256], sizes = [8, 128], strides = [1, 1]} : vector<8x512xf32> to vector<8x128xf32>
    %325 = math.tanh %324 : vector<8x128xf32>
    %326 = vector.extract_strided_slice %299 {offsets = [0, 384], sizes = [8, 128], strides = [1, 1]} : vector<8x512xf32> to vector<8x128xf32>
    %cst_166 = arith.constant 5.000000e-01 : f32
    %327 = vector.broadcast %cst_166 : f32 to vector<8x128xf32>
    %328 = arith.mulf %327, %326 : vector<8x128xf32>
    %329 = math.tanh %328 : vector<8x128xf32>
    %cst_167 = arith.constant 1.000000e+00 : f32
    %330 = vector.broadcast %cst_167 : f32 to vector<8x128xf32>
    %331 = arith.addf %329, %330 : vector<8x128xf32>
    %cst_168 = arith.constant 5.000000e-01 : f32
    %332 = vector.broadcast %cst_168 : f32 to vector<8x128xf32>
    %333 = arith.mulf %332, %331 : vector<8x128xf32>
    %334 = arith.mulf %323, %307 : vector<8x128xf32>
    %335 = arith.mulf %315, %325 : vector<8x128xf32>
    %336 = arith.addf %334, %335 : vector<8x128xf32>
    %337 = math.tanh %336 : vector<8x128xf32>
    %338 = arith.mulf %333, %337 : vector<8x128xf32>
    %c0_169 = arith.constant 0 : index
    %c0_170 = arith.constant 0 : index
    %339 = vector.load %arg9[%c0_169, %c0_170] : memref<8x128xf32, #tpu.memory_space<vmem>>, vector<8x128xf32>
    %340 = vector.extract_strided_slice %306 {offsets = [0, 0], sizes = [8, 128], strides = [1, 1]} : vector<8x512xf32> to vector<8x128xf32>
    %cst_171 = arith.constant 5.000000e-01 : f32
    %341 = vector.broadcast %cst_171 : f32 to vector<8x128xf32>
    %342 = arith.mulf %341, %340 : vector<8x128xf32>
    %343 = math.tanh %342 : vector<8x128xf32>
    %cst_172 = arith.constant 1.000000e+00 : f32
    %344 = vector.broadcast %cst_172 : f32 to vector<8x128xf32>
    %345 = arith.addf %343, %344 : vector<8x128xf32>
    %cst_173 = arith.constant 5.000000e-01 : f32
    %346 = vector.broadcast %cst_173 : f32 to vector<8x128xf32>
    %347 = arith.mulf %346, %345 : vector<8x128xf32>
    %348 = vector.extract_strided_slice %306 {offsets = [0, 128], sizes = [8, 128], strides = [1, 1]} : vector<8x512xf32> to vector<8x128xf32>
    %cst_174 = arith.constant 5.000000e-01 : f32
    %349 = vector.broadcast %cst_174 : f32 to vector<8x128xf32>
    %350 = arith.mulf %349, %348 : vector<8x128xf32>
    %351 = math.tanh %350 : vector<8x128xf32>
    %cst_175 = arith.constant 1.000000e+00 : f32
    %352 = vector.broadcast %cst_175 : f32 to vector<8x128xf32>
    %353 = arith.addf %351, %352 : vector<8x128xf32>
    %cst_176 = arith.constant 5.000000e-01 : f32
    %354 = vector.broadcast %cst_176 : f32 to vector<8x128xf32>
    %355 = arith.mulf %354, %353 : vector<8x128xf32>
    %356 = vector.extract_strided_slice %306 {offsets = [0, 256], sizes = [8, 128], strides = [1, 1]} : vector<8x512xf32> to vector<8x128xf32>
    %357 = math.tanh %356 : vector<8x128xf32>
    %358 = vector.extract_strided_slice %306 {offsets = [0, 384], sizes = [8, 128], strides = [1, 1]} : vector<8x512xf32> to vector<8x128xf32>
    %cst_177 = arith.constant 5.000000e-01 : f32
    %359 = vector.broadcast %cst_177 : f32 to vector<8x128xf32>
    %360 = arith.mulf %359, %358 : vector<8x128xf32>
    %361 = math.tanh %360 : vector<8x128xf32>
    %cst_178 = arith.constant 1.000000e+00 : f32
    %362 = vector.broadcast %cst_178 : f32 to vector<8x128xf32>
    %363 = arith.addf %361, %362 : vector<8x128xf32>
    %cst_179 = arith.constant 5.000000e-01 : f32
    %364 = vector.broadcast %cst_179 : f32 to vector<8x128xf32>
    %365 = arith.mulf %364, %363 : vector<8x128xf32>
    %366 = arith.mulf %355, %339 : vector<8x128xf32>
    %367 = arith.mulf %347, %357 : vector<8x128xf32>
    %368 = arith.addf %366, %367 : vector<8x128xf32>
    %369 = math.tanh %368 : vector<8x128xf32>
    %370 = arith.mulf %365, %369 : vector<8x128xf32>
    %371 = arith.truncf %338 : vector<8x128xf32> to vector<8x128xbf16>
    %c0_180 = arith.constant 0 : index
    %c0_181 = arith.constant 0 : index
    %372 = vector.load %arg6[%c0_180, %c0_181] : memref<8x128xbf16, #tpu.memory_space<vmem>>, vector<8x128xbf16>
    tpu.vector_store %arg6[%c0_180, %c0_181], %371 {strides = array<i32>} : memref<8x128xbf16, #tpu.memory_space<vmem>>, vector<8x128xbf16>,
    %c0_182 = arith.constant 0 : index
    %c0_183 = arith.constant 0 : index
    %373 = vector.load %arg7[%c0_182, %c0_183] : memref<8x128xf32, #tpu.memory_space<vmem>>, vector<8x128xf32>
    tpu.vector_store %arg7[%c0_182, %c0_183], %336 {strides = array<i32>} : memref<8x128xf32, #tpu.memory_space<vmem>>, vector<8x128xf32>,
    %374 = arith.truncf %370 : vector<8x128xf32> to vector<8x128xbf16>
    %c0_184 = arith.constant 0 : index
    %c0_185 = arith.constant 0 : index
    %375 = vector.load %arg8[%c0_184, %c0_185] : memref<8x128xbf16, #tpu.memory_space<vmem>>, vector<8x128xbf16>
    tpu.vector_store %arg8[%c0_184, %c0_185], %374 {strides = array<i32>} : memref<8x128xbf16, #tpu.memory_space<vmem>>, vector<8x128xbf16>,
    %c0_186 = arith.constant 0 : index
    %c0_187 = arith.constant 0 : index
    %376 = vector.load %arg9[%c0_186, %c0_187] : memref<8x128xf32, #tpu.memory_space<vmem>>, vector<8x128xf32>
    tpu.vector_store %arg9[%c0_186, %c0_187], %368 {strides = array<i32>} : memref<8x128xf32, #tpu.memory_space<vmem>>, vector<8x128xf32>,
    %377 = arith.truncf %338 : vector<8x128xf32> to vector<8x128xbf16>
    %378 = arith.index_cast %c3_i32 : i32 to index
    %c0_188 = arith.constant 0 : index
    %c0_189 = arith.constant 0 : index
    %379 = vector.load %arg4[%378, %c0_188, %c0_189] : memref<8x8x128xbf16, #tpu.memory_space<vmem>>, vector<1x8x128xbf16>
    %380 = vector.shape_cast %379 : vector<1x8x128xbf16> to vector<8x128xbf16>
    %381 = vector.shape_cast %377 : vector<8x128xbf16> to vector<1x8x128xbf16>
    tpu.vector_store %arg4[%378, %c0_188, %c0_189], %381 {strides = array<i32>} : memref<8x8x128xbf16, #tpu.memory_space<vmem>>, vector<1x8x128xbf16>,
    %382 = arith.truncf %370 : vector<8x128xf32> to vector<8x128xbf16>
    %383 = arith.index_cast %292 : i32 to index
    %c0_190 = arith.constant 0 : index
    %c0_191 = arith.constant 0 : index
    %384 = vector.load %arg5[%383, %c0_190, %c0_191] : memref<8x8x128xbf16, #tpu.memory_space<vmem>>, vector<1x8x128xbf16>
    %385 = vector.shape_cast %384 : vector<1x8x128xbf16> to vector<8x128xbf16>
    %386 = vector.shape_cast %382 : vector<8x128xbf16> to vector<1x8x128xbf16>
    tpu.vector_store %arg5[%383, %c0_190, %c0_191], %386 {strides = array<i32>} : memref<8x8x128xbf16, #tpu.memory_space<vmem>>, vector<1x8x128xbf16>,
    %c4_i32 = arith.constant 4 : i32
    %c7_i32_192 = arith.constant 7 : i32
    %387 = arith.subi %c7_i32_192, %c4_i32 : i32
    %c0_193 = arith.constant 0 : index
    %388 = arith.index_cast %c4_i32 : i32 to index
    %c0_194 = arith.constant 0 : index
    %c0_195 = arith.constant 0 : index
    %389 = vector.load %arg1[%c0_193, %388, %c0_194, %c0_195] : memref<1x8x8x512xbf16, #tpu.memory_space<vmem>>, vector<1x1x8x512xbf16>
    %390 = vector.shape_cast %389 : vector<1x1x8x512xbf16> to vector<8x512xbf16>
    %391 = arith.extf %390 : vector<8x512xbf16> to vector<8x512xf32>
    %c0_196 = arith.constant 0 : index
    %c0_197 = arith.constant 0 : index
    %392 = vector.load %arg6[%c0_196, %c0_197] : memref<8x128xbf16, #tpu.memory_space<vmem>>, vector<8x128xbf16>
    %cst_198 = arith.constant dense<0.000000e+00> : vector<8x512xf32>
    %393 = tpu.matmul %392, %4, %cst_198 {dimension_numbers = #tpu.dot_dimension_numbers<[1], [0], [0], [1], [0, 0, 1, 1], [], []>} : vector<8x128xbf16>, vector<128x512xbf16>, vector<8x512xf32> -> vector<8x512xf32>
    %394 = arith.addf %391, %393 : vector<8x512xf32>
    %c0_199 = arith.constant 0 : index
    %395 = arith.index_cast %387 : i32 to index
    %c0_200 = arith.constant 0 : index
    %c0_201 = arith.constant 0 : index
    %396 = vector.load %arg2[%c0_199, %395, %c0_200, %c0_201] : memref<1x8x8x512xbf16, #tpu.memory_space<vmem>>, vector<1x1x8x512xbf16>
    %397 = vector.shape_cast %396 : vector<1x1x8x512xbf16> to vector<8x512xbf16>
    %398 = arith.extf %397 : vector<8x512xbf16> to vector<8x512xf32>
    %c0_202 = arith.constant 0 : index
    %c0_203 = arith.constant 0 : index
    %399 = vector.load %arg8[%c0_202, %c0_203] : memref<8x128xbf16, #tpu.memory_space<vmem>>, vector<8x128xbf16>
    %cst_204 = arith.constant dense<0.000000e+00> : vector<8x512xf32>
    %400 = tpu.matmul %399, %6, %cst_204 {dimension_numbers = #tpu.dot_dimension_numbers<[1], [0], [0], [1], [0, 0, 1, 1], [], []>} : vector<8x128xbf16>, vector<128x512xbf16>, vector<8x512xf32> -> vector<8x512xf32>
    %401 = arith.addf %398, %400 : vector<8x512xf32>
    %c0_205 = arith.constant 0 : index
    %c0_206 = arith.constant 0 : index
    %402 = vector.load %arg7[%c0_205, %c0_206] : memref<8x128xf32, #tpu.memory_space<vmem>>, vector<8x128xf32>
    %403 = vector.extract_strided_slice %394 {offsets = [0, 0], sizes = [8, 128], strides = [1, 1]} : vector<8x512xf32> to vector<8x128xf32>
    %cst_207 = arith.constant 5.000000e-01 : f32
    %404 = vector.broadcast %cst_207 : f32 to vector<8x128xf32>
    %405 = arith.mulf %404, %403 : vector<8x128xf32>
    %406 = math.tanh %405 : vector<8x128xf32>
    %cst_208 = arith.constant 1.000000e+00 : f32
    %407 = vector.broadcast %cst_208 : f32 to vector<8x128xf32>
    %408 = arith.addf %406, %407 : vector<8x128xf32>
    %cst_209 = arith.constant 5.000000e-01 : f32
    %409 = vector.broadcast %cst_209 : f32 to vector<8x128xf32>
    %410 = arith.mulf %409, %408 : vector<8x128xf32>
    %411 = vector.extract_strided_slice %394 {offsets = [0, 128], sizes = [8, 128], strides = [1, 1]} : vector<8x512xf32> to vector<8x128xf32>
    %cst_210 = arith.constant 5.000000e-01 : f32
    %412 = vector.broadcast %cst_210 : f32 to vector<8x128xf32>
    %413 = arith.mulf %412, %411 : vector<8x128xf32>
    %414 = math.tanh %413 : vector<8x128xf32>
    %cst_211 = arith.constant 1.000000e+00 : f32
    %415 = vector.broadcast %cst_211 : f32 to vector<8x128xf32>
    %416 = arith.addf %414, %415 : vector<8x128xf32>
    %cst_212 = arith.constant 5.000000e-01 : f32
    %417 = vector.broadcast %cst_212 : f32 to vector<8x128xf32>
    %418 = arith.mulf %417, %416 : vector<8x128xf32>
    %419 = vector.extract_strided_slice %394 {offsets = [0, 256], sizes = [8, 128], strides = [1, 1]} : vector<8x512xf32> to vector<8x128xf32>
    %420 = math.tanh %419 : vector<8x128xf32>
    %421 = vector.extract_strided_slice %394 {offsets = [0, 384], sizes = [8, 128], strides = [1, 1]} : vector<8x512xf32> to vector<8x128xf32>
    %cst_213 = arith.constant 5.000000e-01 : f32
    %422 = vector.broadcast %cst_213 : f32 to vector<8x128xf32>
    %423 = arith.mulf %422, %421 : vector<8x128xf32>
    %424 = math.tanh %423 : vector<8x128xf32>
    %cst_214 = arith.constant 1.000000e+00 : f32
    %425 = vector.broadcast %cst_214 : f32 to vector<8x128xf32>
    %426 = arith.addf %424, %425 : vector<8x128xf32>
    %cst_215 = arith.constant 5.000000e-01 : f32
    %427 = vector.broadcast %cst_215 : f32 to vector<8x128xf32>
    %428 = arith.mulf %427, %426 : vector<8x128xf32>
    %429 = arith.mulf %418, %402 : vector<8x128xf32>
    %430 = arith.mulf %410, %420 : vector<8x128xf32>
    %431 = arith.addf %429, %430 : vector<8x128xf32>
    %432 = math.tanh %431 : vector<8x128xf32>
    %433 = arith.mulf %428, %432 : vector<8x128xf32>
    %c0_216 = arith.constant 0 : index
    %c0_217 = arith.constant 0 : index
    %434 = vector.load %arg9[%c0_216, %c0_217] : memref<8x128xf32, #tpu.memory_space<vmem>>, vector<8x128xf32>
    %435 = vector.extract_strided_slice %401 {offsets = [0, 0], sizes = [8, 128], strides = [1, 1]} : vector<8x512xf32> to vector<8x128xf32>
    %cst_218 = arith.constant 5.000000e-01 : f32
    %436 = vector.broadcast %cst_218 : f32 to vector<8x128xf32>
    %437 = arith.mulf %436, %435 : vector<8x128xf32>
    %438 = math.tanh %437 : vector<8x128xf32>
    %cst_219 = arith.constant 1.000000e+00 : f32
    %439 = vector.broadcast %cst_219 : f32 to vector<8x128xf32>
    %440 = arith.addf %438, %439 : vector<8x128xf32>
    %cst_220 = arith.constant 5.000000e-01 : f32
    %441 = vector.broadcast %cst_220 : f32 to vector<8x128xf32>
    %442 = arith.mulf %441, %440 : vector<8x128xf32>
    %443 = vector.extract_strided_slice %401 {offsets = [0, 128], sizes = [8, 128], strides = [1, 1]} : vector<8x512xf32> to vector<8x128xf32>
    %cst_221 = arith.constant 5.000000e-01 : f32
    %444 = vector.broadcast %cst_221 : f32 to vector<8x128xf32>
    %445 = arith.mulf %444, %443 : vector<8x128xf32>
    %446 = math.tanh %445 : vector<8x128xf32>
    %cst_222 = arith.constant 1.000000e+00 : f32
    %447 = vector.broadcast %cst_222 : f32 to vector<8x128xf32>
    %448 = arith.addf %446, %447 : vector<8x128xf32>
    %cst_223 = arith.constant 5.000000e-01 : f32
    %449 = vector.broadcast %cst_223 : f32 to vector<8x128xf32>
    %450 = arith.mulf %449, %448 : vector<8x128xf32>
    %451 = vector.extract_strided_slice %401 {offsets = [0, 256], sizes = [8, 128], strides = [1, 1]} : vector<8x512xf32> to vector<8x128xf32>
    %452 = math.tanh %451 : vector<8x128xf32>
    %453 = vector.extract_strided_slice %401 {offsets = [0, 384], sizes = [8, 128], strides = [1, 1]} : vector<8x512xf32> to vector<8x128xf32>
    %cst_224 = arith.constant 5.000000e-01 : f32
    %454 = vector.broadcast %cst_224 : f32 to vector<8x128xf32>
    %455 = arith.mulf %454, %453 : vector<8x128xf32>
    %456 = math.tanh %455 : vector<8x128xf32>
    %cst_225 = arith.constant 1.000000e+00 : f32
    %457 = vector.broadcast %cst_225 : f32 to vector<8x128xf32>
    %458 = arith.addf %456, %457 : vector<8x128xf32>
    %cst_226 = arith.constant 5.000000e-01 : f32
    %459 = vector.broadcast %cst_226 : f32 to vector<8x128xf32>
    %460 = arith.mulf %459, %458 : vector<8x128xf32>
    %461 = arith.mulf %450, %434 : vector<8x128xf32>
    %462 = arith.mulf %442, %452 : vector<8x128xf32>
    %463 = arith.addf %461, %462 : vector<8x128xf32>
    %464 = math.tanh %463 : vector<8x128xf32>
    %465 = arith.mulf %460, %464 : vector<8x128xf32>
    %466 = arith.truncf %433 : vector<8x128xf32> to vector<8x128xbf16>
    %c0_227 = arith.constant 0 : index
    %c0_228 = arith.constant 0 : index
    %467 = vector.load %arg6[%c0_227, %c0_228] : memref<8x128xbf16, #tpu.memory_space<vmem>>, vector<8x128xbf16>
    tpu.vector_store %arg6[%c0_227, %c0_228], %466 {strides = array<i32>} : memref<8x128xbf16, #tpu.memory_space<vmem>>, vector<8x128xbf16>,
    %c0_229 = arith.constant 0 : index
    %c0_230 = arith.constant 0 : index
    %468 = vector.load %arg7[%c0_229, %c0_230] : memref<8x128xf32, #tpu.memory_space<vmem>>, vector<8x128xf32>
    tpu.vector_store %arg7[%c0_229, %c0_230], %431 {strides = array<i32>} : memref<8x128xf32, #tpu.memory_space<vmem>>, vector<8x128xf32>,
    %469 = arith.truncf %465 : vector<8x128xf32> to vector<8x128xbf16>
    %c0_231 = arith.constant 0 : index
    %c0_232 = arith.constant 0 : index
    %470 = vector.load %arg8[%c0_231, %c0_232] : memref<8x128xbf16, #tpu.memory_space<vmem>>, vector<8x128xbf16>
    tpu.vector_store %arg8[%c0_231, %c0_232], %469 {strides = array<i32>} : memref<8x128xbf16, #tpu.memory_space<vmem>>, vector<8x128xbf16>,
    %c0_233 = arith.constant 0 : index
    %c0_234 = arith.constant 0 : index
    %471 = vector.load %arg9[%c0_233, %c0_234] : memref<8x128xf32, #tpu.memory_space<vmem>>, vector<8x128xf32>
    tpu.vector_store %arg9[%c0_233, %c0_234], %463 {strides = array<i32>} : memref<8x128xf32, #tpu.memory_space<vmem>>, vector<8x128xf32>,
    %472 = arith.truncf %433 : vector<8x128xf32> to vector<8x128xbf16>
    %473 = arith.index_cast %c4_i32 : i32 to index
    %c0_235 = arith.constant 0 : index
    %c0_236 = arith.constant 0 : index
    %474 = vector.load %arg4[%473, %c0_235, %c0_236] : memref<8x8x128xbf16, #tpu.memory_space<vmem>>, vector<1x8x128xbf16>
    %475 = vector.shape_cast %474 : vector<1x8x128xbf16> to vector<8x128xbf16>
    %476 = vector.shape_cast %472 : vector<8x128xbf16> to vector<1x8x128xbf16>
    tpu.vector_store %arg4[%473, %c0_235, %c0_236], %476 {strides = array<i32>} : memref<8x8x128xbf16, #tpu.memory_space<vmem>>, vector<1x8x128xbf16>,
    %477 = arith.truncf %465 : vector<8x128xf32> to vector<8x128xbf16>
    %478 = arith.index_cast %387 : i32 to index
    %c0_237 = arith.constant 0 : index
    %c0_238 = arith.constant 0 : index
    %479 = vector.load %arg5[%478, %c0_237, %c0_238] : memref<8x8x128xbf16, #tpu.memory_space<vmem>>, vector<1x8x128xbf16>
    %480 = vector.shape_cast %479 : vector<1x8x128xbf16> to vector<8x128xbf16>
    %481 = vector.shape_cast %477 : vector<8x128xbf16> to vector<1x8x128xbf16>
    tpu.vector_store %arg5[%478, %c0_237, %c0_238], %481 {strides = array<i32>} : memref<8x8x128xbf16, #tpu.memory_space<vmem>>, vector<1x8x128xbf16>,
    %c5_i32 = arith.constant 5 : i32
    %c7_i32_239 = arith.constant 7 : i32
    %482 = arith.subi %c7_i32_239, %c5_i32 : i32
    %c0_240 = arith.constant 0 : index
    %483 = arith.index_cast %c5_i32 : i32 to index
    %c0_241 = arith.constant 0 : index
    %c0_242 = arith.constant 0 : index
    %484 = vector.load %arg1[%c0_240, %483, %c0_241, %c0_242] : memref<1x8x8x512xbf16, #tpu.memory_space<vmem>>, vector<1x1x8x512xbf16>
    %485 = vector.shape_cast %484 : vector<1x1x8x512xbf16> to vector<8x512xbf16>
    %486 = arith.extf %485 : vector<8x512xbf16> to vector<8x512xf32>
    %c0_243 = arith.constant 0 : index
    %c0_244 = arith.constant 0 : index
    %487 = vector.load %arg6[%c0_243, %c0_244] : memref<8x128xbf16, #tpu.memory_space<vmem>>, vector<8x128xbf16>
    %cst_245 = arith.constant dense<0.000000e+00> : vector<8x512xf32>
    %488 = tpu.matmul %487, %4, %cst_245 {dimension_numbers = #tpu.dot_dimension_numbers<[1], [0], [0], [1], [0, 0, 1, 1], [], []>} : vector<8x128xbf16>, vector<128x512xbf16>, vector<8x512xf32> -> vector<8x512xf32>
    %489 = arith.addf %486, %488 : vector<8x512xf32>
    %c0_246 = arith.constant 0 : index
    %490 = arith.index_cast %482 : i32 to index
    %c0_247 = arith.constant 0 : index
    %c0_248 = arith.constant 0 : index
    %491 = vector.load %arg2[%c0_246, %490, %c0_247, %c0_248] : memref<1x8x8x512xbf16, #tpu.memory_space<vmem>>, vector<1x1x8x512xbf16>
    %492 = vector.shape_cast %491 : vector<1x1x8x512xbf16> to vector<8x512xbf16>
    %493 = arith.extf %492 : vector<8x512xbf16> to vector<8x512xf32>
    %c0_249 = arith.constant 0 : index
    %c0_250 = arith.constant 0 : index
    %494 = vector.load %arg8[%c0_249, %c0_250] : memref<8x128xbf16, #tpu.memory_space<vmem>>, vector<8x128xbf16>
    %cst_251 = arith.constant dense<0.000000e+00> : vector<8x512xf32>
    %495 = tpu.matmul %494, %6, %cst_251 {dimension_numbers = #tpu.dot_dimension_numbers<[1], [0], [0], [1], [0, 0, 1, 1], [], []>} : vector<8x128xbf16>, vector<128x512xbf16>, vector<8x512xf32> -> vector<8x512xf32>
    %496 = arith.addf %493, %495 : vector<8x512xf32>
    %c0_252 = arith.constant 0 : index
    %c0_253 = arith.constant 0 : index
    %497 = vector.load %arg7[%c0_252, %c0_253] : memref<8x128xf32, #tpu.memory_space<vmem>>, vector<8x128xf32>
    %498 = vector.extract_strided_slice %489 {offsets = [0, 0], sizes = [8, 128], strides = [1, 1]} : vector<8x512xf32> to vector<8x128xf32>
    %cst_254 = arith.constant 5.000000e-01 : f32
    %499 = vector.broadcast %cst_254 : f32 to vector<8x128xf32>
    %500 = arith.mulf %499, %498 : vector<8x128xf32>
    %501 = math.tanh %500 : vector<8x128xf32>
    %cst_255 = arith.constant 1.000000e+00 : f32
    %502 = vector.broadcast %cst_255 : f32 to vector<8x128xf32>
    %503 = arith.addf %501, %502 : vector<8x128xf32>
    %cst_256 = arith.constant 5.000000e-01 : f32
    %504 = vector.broadcast %cst_256 : f32 to vector<8x128xf32>
    %505 = arith.mulf %504, %503 : vector<8x128xf32>
    %506 = vector.extract_strided_slice %489 {offsets = [0, 128], sizes = [8, 128], strides = [1, 1]} : vector<8x512xf32> to vector<8x128xf32>
    %cst_257 = arith.constant 5.000000e-01 : f32
    %507 = vector.broadcast %cst_257 : f32 to vector<8x128xf32>
    %508 = arith.mulf %507, %506 : vector<8x128xf32>
    %509 = math.tanh %508 : vector<8x128xf32>
    %cst_258 = arith.constant 1.000000e+00 : f32
    %510 = vector.broadcast %cst_258 : f32 to vector<8x128xf32>
    %511 = arith.addf %509, %510 : vector<8x128xf32>
    %cst_259 = arith.constant 5.000000e-01 : f32
    %512 = vector.broadcast %cst_259 : f32 to vector<8x128xf32>
    %513 = arith.mulf %512, %511 : vector<8x128xf32>
    %514 = vector.extract_strided_slice %489 {offsets = [0, 256], sizes = [8, 128], strides = [1, 1]} : vector<8x512xf32> to vector<8x128xf32>
    %515 = math.tanh %514 : vector<8x128xf32>
    %516 = vector.extract_strided_slice %489 {offsets = [0, 384], sizes = [8, 128], strides = [1, 1]} : vector<8x512xf32> to vector<8x128xf32>
    %cst_260 = arith.constant 5.000000e-01 : f32
    %517 = vector.broadcast %cst_260 : f32 to vector<8x128xf32>
    %518 = arith.mulf %517, %516 : vector<8x128xf32>
    %519 = math.tanh %518 : vector<8x128xf32>
    %cst_261 = arith.constant 1.000000e+00 : f32
    %520 = vector.broadcast %cst_261 : f32 to vector<8x128xf32>
    %521 = arith.addf %519, %520 : vector<8x128xf32>
    %cst_262 = arith.constant 5.000000e-01 : f32
    %522 = vector.broadcast %cst_262 : f32 to vector<8x128xf32>
    %523 = arith.mulf %522, %521 : vector<8x128xf32>
    %524 = arith.mulf %513, %497 : vector<8x128xf32>
    %525 = arith.mulf %505, %515 : vector<8x128xf32>
    %526 = arith.addf %524, %525 : vector<8x128xf32>
    %527 = math.tanh %526 : vector<8x128xf32>
    %528 = arith.mulf %523, %527 : vector<8x128xf32>
    %c0_263 = arith.constant 0 : index
    %c0_264 = arith.constant 0 : index
    %529 = vector.load %arg9[%c0_263, %c0_264] : memref<8x128xf32, #tpu.memory_space<vmem>>, vector<8x128xf32>
    %530 = vector.extract_strided_slice %496 {offsets = [0, 0], sizes = [8, 128], strides = [1, 1]} : vector<8x512xf32> to vector<8x128xf32>
    %cst_265 = arith.constant 5.000000e-01 : f32
    %531 = vector.broadcast %cst_265 : f32 to vector<8x128xf32>
    %532 = arith.mulf %531, %530 : vector<8x128xf32>
    %533 = math.tanh %532 : vector<8x128xf32>
    %cst_266 = arith.constant 1.000000e+00 : f32
    %534 = vector.broadcast %cst_266 : f32 to vector<8x128xf32>
    %535 = arith.addf %533, %534 : vector<8x128xf32>
    %cst_267 = arith.constant 5.000000e-01 : f32
    %536 = vector.broadcast %cst_267 : f32 to vector<8x128xf32>
    %537 = arith.mulf %536, %535 : vector<8x128xf32>
    %538 = vector.extract_strided_slice %496 {offsets = [0, 128], sizes = [8, 128], strides = [1, 1]} : vector<8x512xf32> to vector<8x128xf32>
    %cst_268 = arith.constant 5.000000e-01 : f32
    %539 = vector.broadcast %cst_268 : f32 to vector<8x128xf32>
    %540 = arith.mulf %539, %538 : vector<8x128xf32>
    %541 = math.tanh %540 : vector<8x128xf32>
    %cst_269 = arith.constant 1.000000e+00 : f32
    %542 = vector.broadcast %cst_269 : f32 to vector<8x128xf32>
    %543 = arith.addf %541, %542 : vector<8x128xf32>
    %cst_270 = arith.constant 5.000000e-01 : f32
    %544 = vector.broadcast %cst_270 : f32 to vector<8x128xf32>
    %545 = arith.mulf %544, %543 : vector<8x128xf32>
    %546 = vector.extract_strided_slice %496 {offsets = [0, 256], sizes = [8, 128], strides = [1, 1]} : vector<8x512xf32> to vector<8x128xf32>
    %547 = math.tanh %546 : vector<8x128xf32>
    %548 = vector.extract_strided_slice %496 {offsets = [0, 384], sizes = [8, 128], strides = [1, 1]} : vector<8x512xf32> to vector<8x128xf32>
    %cst_271 = arith.constant 5.000000e-01 : f32
    %549 = vector.broadcast %cst_271 : f32 to vector<8x128xf32>
    %550 = arith.mulf %549, %548 : vector<8x128xf32>
    %551 = math.tanh %550 : vector<8x128xf32>
    %cst_272 = arith.constant 1.000000e+00 : f32
    %552 = vector.broadcast %cst_272 : f32 to vector<8x128xf32>
    %553 = arith.addf %551, %552 : vector<8x128xf32>
    %cst_273 = arith.constant 5.000000e-01 : f32
    %554 = vector.broadcast %cst_273 : f32 to vector<8x128xf32>
    %555 = arith.mulf %554, %553 : vector<8x128xf32>
    %556 = arith.mulf %545, %529 : vector<8x128xf32>
    %557 = arith.mulf %537, %547 : vector<8x128xf32>
    %558 = arith.addf %556, %557 : vector<8x128xf32>
    %559 = math.tanh %558 : vector<8x128xf32>
    %560 = arith.mulf %555, %559 : vector<8x128xf32>
    %561 = arith.truncf %528 : vector<8x128xf32> to vector<8x128xbf16>
    %c0_274 = arith.constant 0 : index
    %c0_275 = arith.constant 0 : index
    %562 = vector.load %arg6[%c0_274, %c0_275] : memref<8x128xbf16, #tpu.memory_space<vmem>>, vector<8x128xbf16>
    tpu.vector_store %arg6[%c0_274, %c0_275], %561 {strides = array<i32>} : memref<8x128xbf16, #tpu.memory_space<vmem>>, vector<8x128xbf16>,
    %c0_276 = arith.constant 0 : index
    %c0_277 = arith.constant 0 : index
    %563 = vector.load %arg7[%c0_276, %c0_277] : memref<8x128xf32, #tpu.memory_space<vmem>>, vector<8x128xf32>
    tpu.vector_store %arg7[%c0_276, %c0_277], %526 {strides = array<i32>} : memref<8x128xf32, #tpu.memory_space<vmem>>, vector<8x128xf32>,
    %564 = arith.truncf %560 : vector<8x128xf32> to vector<8x128xbf16>
    %c0_278 = arith.constant 0 : index
    %c0_279 = arith.constant 0 : index
    %565 = vector.load %arg8[%c0_278, %c0_279] : memref<8x128xbf16, #tpu.memory_space<vmem>>, vector<8x128xbf16>
    tpu.vector_store %arg8[%c0_278, %c0_279], %564 {strides = array<i32>} : memref<8x128xbf16, #tpu.memory_space<vmem>>, vector<8x128xbf16>,
    %c0_280 = arith.constant 0 : index
    %c0_281 = arith.constant 0 : index
    %566 = vector.load %arg9[%c0_280, %c0_281] : memref<8x128xf32, #tpu.memory_space<vmem>>, vector<8x128xf32>
    tpu.vector_store %arg9[%c0_280, %c0_281], %558 {strides = array<i32>} : memref<8x128xf32, #tpu.memory_space<vmem>>, vector<8x128xf32>,
    %567 = arith.truncf %528 : vector<8x128xf32> to vector<8x128xbf16>
    %568 = arith.index_cast %c5_i32 : i32 to index
    %c0_282 = arith.constant 0 : index
    %c0_283 = arith.constant 0 : index
    %569 = vector.load %arg4[%568, %c0_282, %c0_283] : memref<8x8x128xbf16, #tpu.memory_space<vmem>>, vector<1x8x128xbf16>
    %570 = vector.shape_cast %569 : vector<1x8x128xbf16> to vector<8x128xbf16>
    %571 = vector.shape_cast %567 : vector<8x128xbf16> to vector<1x8x128xbf16>
    tpu.vector_store %arg4[%568, %c0_282, %c0_283], %571 {strides = array<i32>} : memref<8x8x128xbf16, #tpu.memory_space<vmem>>, vector<1x8x128xbf16>,
    %572 = arith.truncf %560 : vector<8x128xf32> to vector<8x128xbf16>
    %573 = arith.index_cast %482 : i32 to index
    %c0_284 = arith.constant 0 : index
    %c0_285 = arith.constant 0 : index
    %574 = vector.load %arg5[%573, %c0_284, %c0_285] : memref<8x8x128xbf16, #tpu.memory_space<vmem>>, vector<1x8x128xbf16>
    %575 = vector.shape_cast %574 : vector<1x8x128xbf16> to vector<8x128xbf16>
    %576 = vector.shape_cast %572 : vector<8x128xbf16> to vector<1x8x128xbf16>
    tpu.vector_store %arg5[%573, %c0_284, %c0_285], %576 {strides = array<i32>} : memref<8x8x128xbf16, #tpu.memory_space<vmem>>, vector<1x8x128xbf16>,
    %c6_i32 = arith.constant 6 : i32
    %c7_i32_286 = arith.constant 7 : i32
    %577 = arith.subi %c7_i32_286, %c6_i32 : i32
    %c0_287 = arith.constant 0 : index
    %578 = arith.index_cast %c6_i32 : i32 to index
    %c0_288 = arith.constant 0 : index
    %c0_289 = arith.constant 0 : index
    %579 = vector.load %arg1[%c0_287, %578, %c0_288, %c0_289] : memref<1x8x8x512xbf16, #tpu.memory_space<vmem>>, vector<1x1x8x512xbf16>
    %580 = vector.shape_cast %579 : vector<1x1x8x512xbf16> to vector<8x512xbf16>
    %581 = arith.extf %580 : vector<8x512xbf16> to vector<8x512xf32>
    %c0_290 = arith.constant 0 : index
    %c0_291 = arith.constant 0 : index
    %582 = vector.load %arg6[%c0_290, %c0_291] : memref<8x128xbf16, #tpu.memory_space<vmem>>, vector<8x128xbf16>
    %cst_292 = arith.constant dense<0.000000e+00> : vector<8x512xf32>
    %583 = tpu.matmul %582, %4, %cst_292 {dimension_numbers = #tpu.dot_dimension_numbers<[1], [0], [0], [1], [0, 0, 1, 1], [], []>} : vector<8x128xbf16>, vector<128x512xbf16>, vector<8x512xf32> -> vector<8x512xf32>
    %584 = arith.addf %581, %583 : vector<8x512xf32>
    %c0_293 = arith.constant 0 : index
    %585 = arith.index_cast %577 : i32 to index
    %c0_294 = arith.constant 0 : index
    %c0_295 = arith.constant 0 : index
    %586 = vector.load %arg2[%c0_293, %585, %c0_294, %c0_295] : memref<1x8x8x512xbf16, #tpu.memory_space<vmem>>, vector<1x1x8x512xbf16>
    %587 = vector.shape_cast %586 : vector<1x1x8x512xbf16> to vector<8x512xbf16>
    %588 = arith.extf %587 : vector<8x512xbf16> to vector<8x512xf32>
    %c0_296 = arith.constant 0 : index
    %c0_297 = arith.constant 0 : index
    %589 = vector.load %arg8[%c0_296, %c0_297] : memref<8x128xbf16, #tpu.memory_space<vmem>>, vector<8x128xbf16>
    %cst_298 = arith.constant dense<0.000000e+00> : vector<8x512xf32>
    %590 = tpu.matmul %589, %6, %cst_298 {dimension_numbers = #tpu.dot_dimension_numbers<[1], [0], [0], [1], [0, 0, 1, 1], [], []>} : vector<8x128xbf16>, vector<128x512xbf16>, vector<8x512xf32> -> vector<8x512xf32>
    %591 = arith.addf %588, %590 : vector<8x512xf32>
    %c0_299 = arith.constant 0 : index
    %c0_300 = arith.constant 0 : index
    %592 = vector.load %arg7[%c0_299, %c0_300] : memref<8x128xf32, #tpu.memory_space<vmem>>, vector<8x128xf32>
    %593 = vector.extract_strided_slice %584 {offsets = [0, 0], sizes = [8, 128], strides = [1, 1]} : vector<8x512xf32> to vector<8x128xf32>
    %cst_301 = arith.constant 5.000000e-01 : f32
    %594 = vector.broadcast %cst_301 : f32 to vector<8x128xf32>
    %595 = arith.mulf %594, %593 : vector<8x128xf32>
    %596 = math.tanh %595 : vector<8x128xf32>
    %cst_302 = arith.constant 1.000000e+00 : f32
    %597 = vector.broadcast %cst_302 : f32 to vector<8x128xf32>
    %598 = arith.addf %596, %597 : vector<8x128xf32>
    %cst_303 = arith.constant 5.000000e-01 : f32
    %599 = vector.broadcast %cst_303 : f32 to vector<8x128xf32>
    %600 = arith.mulf %599, %598 : vector<8x128xf32>
    %601 = vector.extract_strided_slice %584 {offsets = [0, 128], sizes = [8, 128], strides = [1, 1]} : vector<8x512xf32> to vector<8x128xf32>
    %cst_304 = arith.constant 5.000000e-01 : f32
    %602 = vector.broadcast %cst_304 : f32 to vector<8x128xf32>
    %603 = arith.mulf %602, %601 : vector<8x128xf32>
    %604 = math.tanh %603 : vector<8x128xf32>
    %cst_305 = arith.constant 1.000000e+00 : f32
    %605 = vector.broadcast %cst_305 : f32 to vector<8x128xf32>
    %606 = arith.addf %604, %605 : vector<8x128xf32>
    %cst_306 = arith.constant 5.000000e-01 : f32
    %607 = vector.broadcast %cst_306 : f32 to vector<8x128xf32>
    %608 = arith.mulf %607, %606 : vector<8x128xf32>
    %609 = vector.extract_strided_slice %584 {offsets = [0, 256], sizes = [8, 128], strides = [1, 1]} : vector<8x512xf32> to vector<8x128xf32>
    %610 = math.tanh %609 : vector<8x128xf32>
    %611 = vector.extract_strided_slice %584 {offsets = [0, 384], sizes = [8, 128], strides = [1, 1]} : vector<8x512xf32> to vector<8x128xf32>
    %cst_307 = arith.constant 5.000000e-01 : f32
    %612 = vector.broadcast %cst_307 : f32 to vector<8x128xf32>
    %613 = arith.mulf %612, %611 : vector<8x128xf32>
    %614 = math.tanh %613 : vector<8x128xf32>
    %cst_308 = arith.constant 1.000000e+00 : f32
    %615 = vector.broadcast %cst_308 : f32 to vector<8x128xf32>
    %616 = arith.addf %614, %615 : vector<8x128xf32>
    %cst_309 = arith.constant 5.000000e-01 : f32
    %617 = vector.broadcast %cst_309 : f32 to vector<8x128xf32>
    %618 = arith.mulf %617, %616 : vector<8x128xf32>
    %619 = arith.mulf %608, %592 : vector<8x128xf32>
    %620 = arith.mulf %600, %610 : vector<8x128xf32>
    %621 = arith.addf %619, %620 : vector<8x128xf32>
    %622 = math.tanh %621 : vector<8x128xf32>
    %623 = arith.mulf %618, %622 : vector<8x128xf32>
    %c0_310 = arith.constant 0 : index
    %c0_311 = arith.constant 0 : index
    %624 = vector.load %arg9[%c0_310, %c0_311] : memref<8x128xf32, #tpu.memory_space<vmem>>, vector<8x128xf32>
    %625 = vector.extract_strided_slice %591 {offsets = [0, 0], sizes = [8, 128], strides = [1, 1]} : vector<8x512xf32> to vector<8x128xf32>
    %cst_312 = arith.constant 5.000000e-01 : f32
    %626 = vector.broadcast %cst_312 : f32 to vector<8x128xf32>
    %627 = arith.mulf %626, %625 : vector<8x128xf32>
    %628 = math.tanh %627 : vector<8x128xf32>
    %cst_313 = arith.constant 1.000000e+00 : f32
    %629 = vector.broadcast %cst_313 : f32 to vector<8x128xf32>
    %630 = arith.addf %628, %629 : vector<8x128xf32>
    %cst_314 = arith.constant 5.000000e-01 : f32
    %631 = vector.broadcast %cst_314 : f32 to vector<8x128xf32>
    %632 = arith.mulf %631, %630 : vector<8x128xf32>
    %633 = vector.extract_strided_slice %591 {offsets = [0, 128], sizes = [8, 128], strides = [1, 1]} : vector<8x512xf32> to vector<8x128xf32>
    %cst_315 = arith.constant 5.000000e-01 : f32
    %634 = vector.broadcast %cst_315 : f32 to vector<8x128xf32>
    %635 = arith.mulf %634, %633 : vector<8x128xf32>
    %636 = math.tanh %635 : vector<8x128xf32>
    %cst_316 = arith.constant 1.000000e+00 : f32
    %637 = vector.broadcast %cst_316 : f32 to vector<8x128xf32>
    %638 = arith.addf %636, %637 : vector<8x128xf32>
    %cst_317 = arith.constant 5.000000e-01 : f32
    %639 = vector.broadcast %cst_317 : f32 to vector<8x128xf32>
    %640 = arith.mulf %639, %638 : vector<8x128xf32>
    %641 = vector.extract_strided_slice %591 {offsets = [0, 256], sizes = [8, 128], strides = [1, 1]} : vector<8x512xf32> to vector<8x128xf32>
    %642 = math.tanh %641 : vector<8x128xf32>
    %643 = vector.extract_strided_slice %591 {offsets = [0, 384], sizes = [8, 128], strides = [1, 1]} : vector<8x512xf32> to vector<8x128xf32>
    %cst_318 = arith.constant 5.000000e-01 : f32
    %644 = vector.broadcast %cst_318 : f32 to vector<8x128xf32>
    %645 = arith.mulf %644, %643 : vector<8x128xf32>
    %646 = math.tanh %645 : vector<8x128xf32>
    %cst_319 = arith.constant 1.000000e+00 : f32
    %647 = vector.broadcast %cst_319 : f32 to vector<8x128xf32>
    %648 = arith.addf %646, %647 : vector<8x128xf32>
    %cst_320 = arith.constant 5.000000e-01 : f32
    %649 = vector.broadcast %cst_320 : f32 to vector<8x128xf32>
    %650 = arith.mulf %649, %648 : vector<8x128xf32>
    %651 = arith.mulf %640, %624 : vector<8x128xf32>
    %652 = arith.mulf %632, %642 : vector<8x128xf32>
    %653 = arith.addf %651, %652 : vector<8x128xf32>
    %654 = math.tanh %653 : vector<8x128xf32>
    %655 = arith.mulf %650, %654 : vector<8x128xf32>
    %656 = arith.truncf %623 : vector<8x128xf32> to vector<8x128xbf16>
    %c0_321 = arith.constant 0 : index
    %c0_322 = arith.constant 0 : index
    %657 = vector.load %arg6[%c0_321, %c0_322] : memref<8x128xbf16, #tpu.memory_space<vmem>>, vector<8x128xbf16>
    tpu.vector_store %arg6[%c0_321, %c0_322], %656 {strides = array<i32>} : memref<8x128xbf16, #tpu.memory_space<vmem>>, vector<8x128xbf16>,
    %c0_323 = arith.constant 0 : index
    %c0_324 = arith.constant 0 : index
    %658 = vector.load %arg7[%c0_323, %c0_324] : memref<8x128xf32, #tpu.memory_space<vmem>>, vector<8x128xf32>
    tpu.vector_store %arg7[%c0_323, %c0_324], %621 {strides = array<i32>} : memref<8x128xf32, #tpu.memory_space<vmem>>, vector<8x128xf32>,
    %659 = arith.truncf %655 : vector<8x128xf32> to vector<8x128xbf16>
    %c0_325 = arith.constant 0 : index
    %c0_326 = arith.constant 0 : index
    %660 = vector.load %arg8[%c0_325, %c0_326] : memref<8x128xbf16, #tpu.memory_space<vmem>>, vector<8x128xbf16>
    tpu.vector_store %arg8[%c0_325, %c0_326], %659 {strides = array<i32>} : memref<8x128xbf16, #tpu.memory_space<vmem>>, vector<8x128xbf16>,
    %c0_327 = arith.constant 0 : index
    %c0_328 = arith.constant 0 : index
    %661 = vector.load %arg9[%c0_327, %c0_328] : memref<8x128xf32, #tpu.memory_space<vmem>>, vector<8x128xf32>
    tpu.vector_store %arg9[%c0_327, %c0_328], %653 {strides = array<i32>} : memref<8x128xf32, #tpu.memory_space<vmem>>, vector<8x128xf32>,
    %662 = arith.truncf %623 : vector<8x128xf32> to vector<8x128xbf16>
    %663 = arith.index_cast %c6_i32 : i32 to index
    %c0_329 = arith.constant 0 : index
    %c0_330 = arith.constant 0 : index
    %664 = vector.load %arg4[%663, %c0_329, %c0_330] : memref<8x8x128xbf16, #tpu.memory_space<vmem>>, vector<1x8x128xbf16>
    %665 = vector.shape_cast %664 : vector<1x8x128xbf16> to vector<8x128xbf16>
    %666 = vector.shape_cast %662 : vector<8x128xbf16> to vector<1x8x128xbf16>
    tpu.vector_store %arg4[%663, %c0_329, %c0_330], %666 {strides = array<i32>} : memref<8x8x128xbf16, #tpu.memory_space<vmem>>, vector<1x8x128xbf16>,
    %667 = arith.truncf %655 : vector<8x128xf32> to vector<8x128xbf16>
    %668 = arith.index_cast %577 : i32 to index
    %c0_331 = arith.constant 0 : index
    %c0_332 = arith.constant 0 : index
    %669 = vector.load %arg5[%668, %c0_331, %c0_332] : memref<8x8x128xbf16, #tpu.memory_space<vmem>>, vector<1x8x128xbf16>
    %670 = vector.shape_cast %669 : vector<1x8x128xbf16> to vector<8x128xbf16>
    %671 = vector.shape_cast %667 : vector<8x128xbf16> to vector<1x8x128xbf16>
    tpu.vector_store %arg5[%668, %c0_331, %c0_332], %671 {strides = array<i32>} : memref<8x8x128xbf16, #tpu.memory_space<vmem>>, vector<1x8x128xbf16>,
    %c7_i32_333 = arith.constant 7 : i32
    %c7_i32_334 = arith.constant 7 : i32
    %672 = arith.subi %c7_i32_334, %c7_i32_333 : i32
    %c0_335 = arith.constant 0 : index
    %673 = arith.index_cast %c7_i32_333 : i32 to index
    %c0_336 = arith.constant 0 : index
    %c0_337 = arith.constant 0 : index
    %674 = vector.load %arg1[%c0_335, %673, %c0_336, %c0_337] : memref<1x8x8x512xbf16, #tpu.memory_space<vmem>>, vector<1x1x8x512xbf16>
    %675 = vector.shape_cast %674 : vector<1x1x8x512xbf16> to vector<8x512xbf16>
    %676 = arith.extf %675 : vector<8x512xbf16> to vector<8x512xf32>
    %c0_338 = arith.constant 0 : index
    %c0_339 = arith.constant 0 : index
    %677 = vector.load %arg6[%c0_338, %c0_339] : memref<8x128xbf16, #tpu.memory_space<vmem>>, vector<8x128xbf16>
    %cst_340 = arith.constant dense<0.000000e+00> : vector<8x512xf32>
    %678 = tpu.matmul %677, %4, %cst_340 {dimension_numbers = #tpu.dot_dimension_numbers<[1], [0], [0], [1], [0, 0, 1, 1], [], []>} : vector<8x128xbf16>, vector<128x512xbf16>, vector<8x512xf32> -> vector<8x512xf32>
    %679 = arith.addf %676, %678 : vector<8x512xf32>
    %c0_341 = arith.constant 0 : index
    %680 = arith.index_cast %672 : i32 to index
    %c0_342 = arith.constant 0 : index
    %c0_343 = arith.constant 0 : index
    %681 = vector.load %arg2[%c0_341, %680, %c0_342, %c0_343] : memref<1x8x8x512xbf16, #tpu.memory_space<vmem>>, vector<1x1x8x512xbf16>
    %682 = vector.shape_cast %681 : vector<1x1x8x512xbf16> to vector<8x512xbf16>
    %683 = arith.extf %682 : vector<8x512xbf16> to vector<8x512xf32>
    %c0_344 = arith.constant 0 : index
    %c0_345 = arith.constant 0 : index
    %684 = vector.load %arg8[%c0_344, %c0_345] : memref<8x128xbf16, #tpu.memory_space<vmem>>, vector<8x128xbf16>
    %cst_346 = arith.constant dense<0.000000e+00> : vector<8x512xf32>
    %685 = tpu.matmul %684, %6, %cst_346 {dimension_numbers = #tpu.dot_dimension_numbers<[1], [0], [0], [1], [0, 0, 1, 1], [], []>} : vector<8x128xbf16>, vector<128x512xbf16>, vector<8x512xf32> -> vector<8x512xf32>
    %686 = arith.addf %683, %685 : vector<8x512xf32>
    %c0_347 = arith.constant 0 : index
    %c0_348 = arith.constant 0 : index
    %687 = vector.load %arg7[%c0_347, %c0_348] : memref<8x128xf32, #tpu.memory_space<vmem>>, vector<8x128xf32>
    %688 = vector.extract_strided_slice %679 {offsets = [0, 0], sizes = [8, 128], strides = [1, 1]} : vector<8x512xf32> to vector<8x128xf32>
    %cst_349 = arith.constant 5.000000e-01 : f32
    %689 = vector.broadcast %cst_349 : f32 to vector<8x128xf32>
    %690 = arith.mulf %689, %688 : vector<8x128xf32>
    %691 = math.tanh %690 : vector<8x128xf32>
    %cst_350 = arith.constant 1.000000e+00 : f32
    %692 = vector.broadcast %cst_350 : f32 to vector<8x128xf32>
    %693 = arith.addf %691, %692 : vector<8x128xf32>
    %cst_351 = arith.constant 5.000000e-01 : f32
    %694 = vector.broadcast %cst_351 : f32 to vector<8x128xf32>
    %695 = arith.mulf %694, %693 : vector<8x128xf32>
    %696 = vector.extract_strided_slice %679 {offsets = [0, 128], sizes = [8, 128], strides = [1, 1]} : vector<8x512xf32> to vector<8x128xf32>
    %cst_352 = arith.constant 5.000000e-01 : f32
    %697 = vector.broadcast %cst_352 : f32 to vector<8x128xf32>
    %698 = arith.mulf %697, %696 : vector<8x128xf32>
    %699 = math.tanh %698 : vector<8x128xf32>
    %cst_353 = arith.constant 1.000000e+00 : f32
    %700 = vector.broadcast %cst_353 : f32 to vector<8x128xf32>
    %701 = arith.addf %699, %700 : vector<8x128xf32>
    %cst_354 = arith.constant 5.000000e-01 : f32
    %702 = vector.broadcast %cst_354 : f32 to vector<8x128xf32>
    %703 = arith.mulf %702, %701 : vector<8x128xf32>
    %704 = vector.extract_strided_slice %679 {offsets = [0, 256], sizes = [8, 128], strides = [1, 1]} : vector<8x512xf32> to vector<8x128xf32>
    %705 = math.tanh %704 : vector<8x128xf32>
    %706 = vector.extract_strided_slice %679 {offsets = [0, 384], sizes = [8, 128], strides = [1, 1]} : vector<8x512xf32> to vector<8x128xf32>
    %cst_355 = arith.constant 5.000000e-01 : f32
    %707 = vector.broadcast %cst_355 : f32 to vector<8x128xf32>
    %708 = arith.mulf %707, %706 : vector<8x128xf32>
    %709 = math.tanh %708 : vector<8x128xf32>
    %cst_356 = arith.constant 1.000000e+00 : f32
    %710 = vector.broadcast %cst_356 : f32 to vector<8x128xf32>
    %711 = arith.addf %709, %710 : vector<8x128xf32>
    %cst_357 = arith.constant 5.000000e-01 : f32
    %712 = vector.broadcast %cst_357 : f32 to vector<8x128xf32>
    %713 = arith.mulf %712, %711 : vector<8x128xf32>
    %714 = arith.mulf %703, %687 : vector<8x128xf32>
    %715 = arith.mulf %695, %705 : vector<8x128xf32>
    %716 = arith.addf %714, %715 : vector<8x128xf32>
    %717 = math.tanh %716 : vector<8x128xf32>
    %718 = arith.mulf %713, %717 : vector<8x128xf32>
    %c0_358 = arith.constant 0 : index
    %c0_359 = arith.constant 0 : index
    %719 = vector.load %arg9[%c0_358, %c0_359] : memref<8x128xf32, #tpu.memory_space<vmem>>, vector<8x128xf32>
    %720 = vector.extract_strided_slice %686 {offsets = [0, 0], sizes = [8, 128], strides = [1, 1]} : vector<8x512xf32> to vector<8x128xf32>
    %cst_360 = arith.constant 5.000000e-01 : f32
    %721 = vector.broadcast %cst_360 : f32 to vector<8x128xf32>
    %722 = arith.mulf %721, %720 : vector<8x128xf32>
    %723 = math.tanh %722 : vector<8x128xf32>
    %cst_361 = arith.constant 1.000000e+00 : f32
    %724 = vector.broadcast %cst_361 : f32 to vector<8x128xf32>
    %725 = arith.addf %723, %724 : vector<8x128xf32>
    %cst_362 = arith.constant 5.000000e-01 : f32
    %726 = vector.broadcast %cst_362 : f32 to vector<8x128xf32>
    %727 = arith.mulf %726, %725 : vector<8x128xf32>
    %728 = vector.extract_strided_slice %686 {offsets = [0, 128], sizes = [8, 128], strides = [1, 1]} : vector<8x512xf32> to vector<8x128xf32>
    %cst_363 = arith.constant 5.000000e-01 : f32
    %729 = vector.broadcast %cst_363 : f32 to vector<8x128xf32>
    %730 = arith.mulf %729, %728 : vector<8x128xf32>
    %731 = math.tanh %730 : vector<8x128xf32>
    %cst_364 = arith.constant 1.000000e+00 : f32
    %732 = vector.broadcast %cst_364 : f32 to vector<8x128xf32>
    %733 = arith.addf %731, %732 : vector<8x128xf32>
    %cst_365 = arith.constant 5.000000e-01 : f32
    %734 = vector.broadcast %cst_365 : f32 to vector<8x128xf32>
    %735 = arith.mulf %734, %733 : vector<8x128xf32>
    %736 = vector.extract_strided_slice %686 {offsets = [0, 256], sizes = [8, 128], strides = [1, 1]} : vector<8x512xf32> to vector<8x128xf32>
    %737 = math.tanh %736 : vector<8x128xf32>
    %738 = vector.extract_strided_slice %686 {offsets = [0, 384], sizes = [8, 128], strides = [1, 1]} : vector<8x512xf32> to vector<8x128xf32>
    %cst_366 = arith.constant 5.000000e-01 : f32
    %739 = vector.broadcast %cst_366 : f32 to vector<8x128xf32>
    %740 = arith.mulf %739, %738 : vector<8x128xf32>
    %741 = math.tanh %740 : vector<8x128xf32>
    %cst_367 = arith.constant 1.000000e+00 : f32
    %742 = vector.broadcast %cst_367 : f32 to vector<8x128xf32>
    %743 = arith.addf %741, %742 : vector<8x128xf32>
    %cst_368 = arith.constant 5.000000e-01 : f32
    %744 = vector.broadcast %cst_368 : f32 to vector<8x128xf32>
    %745 = arith.mulf %744, %743 : vector<8x128xf32>
    %746 = arith.mulf %735, %719 : vector<8x128xf32>
    %747 = arith.mulf %727, %737 : vector<8x128xf32>
    %748 = arith.addf %746, %747 : vector<8x128xf32>
    %749 = math.tanh %748 : vector<8x128xf32>
    %750 = arith.mulf %745, %749 : vector<8x128xf32>
    %751 = arith.truncf %718 : vector<8x128xf32> to vector<8x128xbf16>
    %c0_369 = arith.constant 0 : index
    %c0_370 = arith.constant 0 : index
    %752 = vector.load %arg6[%c0_369, %c0_370] : memref<8x128xbf16, #tpu.memory_space<vmem>>, vector<8x128xbf16>
    tpu.vector_store %arg6[%c0_369, %c0_370], %751 {strides = array<i32>} : memref<8x128xbf16, #tpu.memory_space<vmem>>, vector<8x128xbf16>,
    %c0_371 = arith.constant 0 : index
    %c0_372 = arith.constant 0 : index
    %753 = vector.load %arg7[%c0_371, %c0_372] : memref<8x128xf32, #tpu.memory_space<vmem>>, vector<8x128xf32>
    tpu.vector_store %arg7[%c0_371, %c0_372], %716 {strides = array<i32>} : memref<8x128xf32, #tpu.memory_space<vmem>>, vector<8x128xf32>,
    %754 = arith.truncf %750 : vector<8x128xf32> to vector<8x128xbf16>
    %c0_373 = arith.constant 0 : index
    %c0_374 = arith.constant 0 : index
    %755 = vector.load %arg8[%c0_373, %c0_374] : memref<8x128xbf16, #tpu.memory_space<vmem>>, vector<8x128xbf16>
    tpu.vector_store %arg8[%c0_373, %c0_374], %754 {strides = array<i32>} : memref<8x128xbf16, #tpu.memory_space<vmem>>, vector<8x128xbf16>,
    %c0_375 = arith.constant 0 : index
    %c0_376 = arith.constant 0 : index
    %756 = vector.load %arg9[%c0_375, %c0_376] : memref<8x128xf32, #tpu.memory_space<vmem>>, vector<8x128xf32>
    tpu.vector_store %arg9[%c0_375, %c0_376], %748 {strides = array<i32>} : memref<8x128xf32, #tpu.memory_space<vmem>>, vector<8x128xf32>,
    %757 = arith.truncf %718 : vector<8x128xf32> to vector<8x128xbf16>
    %758 = arith.index_cast %c7_i32_333 : i32 to index
    %c0_377 = arith.constant 0 : index
    %c0_378 = arith.constant 0 : index
    %759 = vector.load %arg4[%758, %c0_377, %c0_378] : memref<8x8x128xbf16, #tpu.memory_space<vmem>>, vector<1x8x128xbf16>
    %760 = vector.shape_cast %759 : vector<1x8x128xbf16> to vector<8x128xbf16>
    %761 = vector.shape_cast %757 : vector<8x128xbf16> to vector<1x8x128xbf16>
    tpu.vector_store %arg4[%758, %c0_377, %c0_378], %761 {strides = array<i32>} : memref<8x8x128xbf16, #tpu.memory_space<vmem>>, vector<1x8x128xbf16>,
    %762 = arith.truncf %750 : vector<8x128xf32> to vector<8x128xbf16>
    %763 = arith.index_cast %672 : i32 to index
    %c0_379 = arith.constant 0 : index
    %c0_380 = arith.constant 0 : index
    %764 = vector.load %arg5[%763, %c0_379, %c0_380] : memref<8x8x128xbf16, #tpu.memory_space<vmem>>, vector<1x8x128xbf16>
    %765 = vector.shape_cast %764 : vector<1x8x128xbf16> to vector<8x128xbf16>
    %766 = vector.shape_cast %762 : vector<8x128xbf16> to vector<1x8x128xbf16>
    tpu.vector_store %arg5[%763, %c0_379, %c0_380], %766 {strides = array<i32>} : memref<8x8x128xbf16, #tpu.memory_space<vmem>>, vector<1x8x128xbf16>,
    %c8_i32 = arith.constant 8 : i32
    return
  }
  func.func @transform_0(%arg0: i32) -> (i32, i32, i32, i32) {
    %c0_i32 = arith.constant 0 : i32
    %c0_i32_0 = arith.constant 0 : i32
    %c0_i32_1 = arith.constant 0 : i32
    %c0_i32_2 = arith.constant 0 : i32
    return %c0_i32, %arg0, %c0_i32_0, %c0_i32_1 : i32, i32, i32, i32
  }
  func.func @transform_1(%arg0: i32) -> (i32, i32, i32, i32) {
    %c1_i32 = arith.constant 1 : i32
    %0 = arith.subi %c1_i32, %arg0 : i32
    %c1_i32_0 = arith.constant 1 : i32
    %c0_i32 = arith.constant 0 : i32
    %c0_i32_1 = arith.constant 0 : i32
    %c0_i32_2 = arith.constant 0 : i32
    return %c1_i32_0, %0, %c0_i32, %c0_i32_1 : i32, i32, i32, i32
  }
  func.func @transform_2(%arg0: i32) -> (i32, i32, i32) {
    %c0_i32 = arith.constant 0 : i32
    %c0_i32_0 = arith.constant 0 : i32
    %c0_i32_1 = arith.constant 0 : i32
    %c0_i32_2 = arith.constant 0 : i32
    return %c0_i32, %c0_i32_0, %c0_i32_1 : i32, i32, i32
  }
  func.func @transform_3(%arg0: i32) -> (i32, i32, i32) {
    %c0_i32 = arith.constant 0 : i32
    %c0_i32_0 = arith.constant 0 : i32
    %c0_i32_1 = arith.constant 0 : i32
    return %arg0, %c0_i32, %c0_i32_0 : i32, i32, i32
  }
  func.func @transform_4(%arg0: i32) -> (i32, i32, i32) {
    %c1_i32 = arith.constant 1 : i32
    %0 = arith.subi %c1_i32, %arg0 : i32
    %c0_i32 = arith.constant 0 : i32
    %c0_i32_0 = arith.constant 0 : i32
    %c0_i32_1 = arith.constant 0 : i32
    return %0, %c0_i32, %c0_i32_0 : i32, i32, i32
  }
}

module attributes {stable_mosaic.version = 11 : i64} {
  func.func @_lstm_chunk_kernel(%arg0: i32, %arg1: memref<1x8x8x512xbf16, #tpu.memory_space<vmem>>, %arg2: memref<1x8x8x512xbf16, #tpu.memory_space<vmem>>, %arg3: memref<2x128x512xbf16, #tpu.memory_space<vmem>>, %arg4: memref<8x8x128xf32, #tpu.memory_space<vmem>>, %arg5: memref<8x8x128xf32, #tpu.memory_space<vmem>>, %arg6: memref<8x128xbf16, #tpu.memory_space<vmem>>, %arg7: memref<8x128xf32, #tpu.memory_space<vmem>>, %arg8: memref<8x128xbf16, #tpu.memory_space<vmem>>, %arg9: memref<8x128xf32, #tpu.memory_space<vmem>>) attributes {dimension_semantics = [#tpu.dimension_semantics<arbitrary>], iteration_bounds = array<i64: 2>, scalar_prefetch = 0 : i64, scratch_operands = 4 : i64, tpu.core_type = #tpu.core_type<tc>, window_params = [{transform_indices = @transform_0, window_bounds = array<i64: 1, 8, 8, 512>}, {transform_indices = @transform_1, window_bounds = array<i64: 1, 8, 8, 512>}, {pipeline_mode = #tpu.pipeline_mode<synchronous>, transform_indices = @transform_2, window_bounds = array<i64: 2, 128, 512>}, {transform_indices = @transform_3, window_bounds = array<i64: 8, 8, 128>}, {transform_indices = @transform_4, window_bounds = array<i64: 8, 8, 128>}]} {
    %c0_i32 = arith.constant 0 : i32
    %0 = arith.cmpi eq, %arg0, %c0_i32 : i32
    %1 = arith.extui %0 : i1 to i32
    %c0_i32_0 = arith.constant 0 : i32
    %2 = arith.cmpi ne, %1, %c0_i32_0 : i32
    scf.if %2 {
      %cst_381 = arith.constant 0.000000e+00 : bf16
      %751 = vector.broadcast %cst_381 : bf16 to vector<8x128xbf16>
      %c0_382 = arith.constant 0 : index
      %c0_383 = arith.constant 0 : index
      %752 = vector.load %arg6[%c0_382, %c0_383] : memref<8x128xbf16, #tpu.memory_space<vmem>>, vector<8x128xbf16>
      tpu.vector_store %arg6[%c0_382, %c0_383], %751 {strides = array<i32>} : memref<8x128xbf16, #tpu.memory_space<vmem>>, vector<8x128xbf16>,
      %cst_384 = arith.constant 0.000000e+00 : f32
      %753 = vector.broadcast %cst_384 : f32 to vector<8x128xf32>
      %c0_385 = arith.constant 0 : index
      %c0_386 = arith.constant 0 : index
      %754 = vector.load %arg7[%c0_385, %c0_386] : memref<8x128xf32, #tpu.memory_space<vmem>>, vector<8x128xf32>
      tpu.vector_store %arg7[%c0_385, %c0_386], %753 {strides = array<i32>} : memref<8x128xf32, #tpu.memory_space<vmem>>, vector<8x128xf32>,
      %cst_387 = arith.constant 0.000000e+00 : bf16
      %755 = vector.broadcast %cst_387 : bf16 to vector<8x128xbf16>
      %c0_388 = arith.constant 0 : index
      %c0_389 = arith.constant 0 : index
      %756 = vector.load %arg8[%c0_388, %c0_389] : memref<8x128xbf16, #tpu.memory_space<vmem>>, vector<8x128xbf16>
      tpu.vector_store %arg8[%c0_388, %c0_389], %755 {strides = array<i32>} : memref<8x128xbf16, #tpu.memory_space<vmem>>, vector<8x128xbf16>,
      %cst_390 = arith.constant 0.000000e+00 : f32
      %757 = vector.broadcast %cst_390 : f32 to vector<8x128xf32>
      %c0_391 = arith.constant 0 : index
      %c0_392 = arith.constant 0 : index
      %758 = vector.load %arg9[%c0_391, %c0_392] : memref<8x128xf32, #tpu.memory_space<vmem>>, vector<8x128xf32>
      tpu.vector_store %arg9[%c0_391, %c0_392], %757 {strides = array<i32>} : memref<8x128xf32, #tpu.memory_space<vmem>>, vector<8x128xf32>,
    } else {
    }
    %c0 = arith.constant 0 : index
    %c0_1 = arith.constant 0 : index
    %c0_2 = arith.constant 0 : index
    %3 = vector.load %arg3[%c0, %c0_1, %c0_2] : memref<2x128x512xbf16, #tpu.memory_space<vmem>>, vector<1x128x512xbf16>
    %4 = vector.shape_cast %3 : vector<1x128x512xbf16> to vector<128x512xbf16>
    %c1 = arith.constant 1 : index
    %c0_3 = arith.constant 0 : index
    %c0_4 = arith.constant 0 : index
    %5 = vector.load %arg3[%c1, %c0_3, %c0_4] : memref<2x128x512xbf16, #tpu.memory_space<vmem>>, vector<1x128x512xbf16>
    %6 = vector.shape_cast %5 : vector<1x128x512xbf16> to vector<128x512xbf16>
    %c0_i32_5 = arith.constant 0 : i32
    %c7_i32 = arith.constant 7 : i32
    %7 = arith.subi %c7_i32, %c0_i32_5 : i32
    %c0_6 = arith.constant 0 : index
    %8 = arith.index_cast %c0_i32_5 : i32 to index
    %c0_7 = arith.constant 0 : index
    %c0_8 = arith.constant 0 : index
    %9 = vector.load %arg1[%c0_6, %8, %c0_7, %c0_8] : memref<1x8x8x512xbf16, #tpu.memory_space<vmem>>, vector<1x1x8x512xbf16>
    %10 = vector.shape_cast %9 : vector<1x1x8x512xbf16> to vector<8x512xbf16>
    %11 = arith.extf %10 : vector<8x512xbf16> to vector<8x512xf32>
    %c0_9 = arith.constant 0 : index
    %c0_10 = arith.constant 0 : index
    %12 = vector.load %arg6[%c0_9, %c0_10] : memref<8x128xbf16, #tpu.memory_space<vmem>>, vector<8x128xbf16>
    %cst = arith.constant dense<0.000000e+00> : vector<8x512xf32>
    %13 = tpu.matmul %12, %4, %cst {dimension_numbers = #tpu.dot_dimension_numbers<[1], [0], [0], [1], [0, 0, 1, 1], [], []>} : vector<8x128xbf16>, vector<128x512xbf16>, vector<8x512xf32> -> vector<8x512xf32>
    %14 = arith.addf %11, %13 : vector<8x512xf32>
    %c0_11 = arith.constant 0 : index
    %15 = arith.index_cast %7 : i32 to index
    %c0_12 = arith.constant 0 : index
    %c0_13 = arith.constant 0 : index
    %16 = vector.load %arg2[%c0_11, %15, %c0_12, %c0_13] : memref<1x8x8x512xbf16, #tpu.memory_space<vmem>>, vector<1x1x8x512xbf16>
    %17 = vector.shape_cast %16 : vector<1x1x8x512xbf16> to vector<8x512xbf16>
    %18 = arith.extf %17 : vector<8x512xbf16> to vector<8x512xf32>
    %c0_14 = arith.constant 0 : index
    %c0_15 = arith.constant 0 : index
    %19 = vector.load %arg8[%c0_14, %c0_15] : memref<8x128xbf16, #tpu.memory_space<vmem>>, vector<8x128xbf16>
    %cst_16 = arith.constant dense<0.000000e+00> : vector<8x512xf32>
    %20 = tpu.matmul %19, %6, %cst_16 {dimension_numbers = #tpu.dot_dimension_numbers<[1], [0], [0], [1], [0, 0, 1, 1], [], []>} : vector<8x128xbf16>, vector<128x512xbf16>, vector<8x512xf32> -> vector<8x512xf32>
    %21 = arith.addf %18, %20 : vector<8x512xf32>
    %c0_17 = arith.constant 0 : index
    %c0_18 = arith.constant 0 : index
    %22 = vector.load %arg7[%c0_17, %c0_18] : memref<8x128xf32, #tpu.memory_space<vmem>>, vector<8x128xf32>
    %23 = vector.extract_strided_slice %14 {offsets = [0, 0], sizes = [8, 128], strides = [1, 1]} : vector<8x512xf32> to vector<8x128xf32>
    %cst_19 = arith.constant 5.000000e-01 : f32
    %24 = vector.broadcast %cst_19 : f32 to vector<8x128xf32>
    %25 = arith.mulf %24, %23 : vector<8x128xf32>
    %26 = math.tanh %25 : vector<8x128xf32>
    %cst_20 = arith.constant 1.000000e+00 : f32
    %27 = vector.broadcast %cst_20 : f32 to vector<8x128xf32>
    %28 = arith.addf %26, %27 : vector<8x128xf32>
    %cst_21 = arith.constant 5.000000e-01 : f32
    %29 = vector.broadcast %cst_21 : f32 to vector<8x128xf32>
    %30 = arith.mulf %29, %28 : vector<8x128xf32>
    %31 = vector.extract_strided_slice %14 {offsets = [0, 128], sizes = [8, 128], strides = [1, 1]} : vector<8x512xf32> to vector<8x128xf32>
    %cst_22 = arith.constant 5.000000e-01 : f32
    %32 = vector.broadcast %cst_22 : f32 to vector<8x128xf32>
    %33 = arith.mulf %32, %31 : vector<8x128xf32>
    %34 = math.tanh %33 : vector<8x128xf32>
    %cst_23 = arith.constant 1.000000e+00 : f32
    %35 = vector.broadcast %cst_23 : f32 to vector<8x128xf32>
    %36 = arith.addf %34, %35 : vector<8x128xf32>
    %cst_24 = arith.constant 5.000000e-01 : f32
    %37 = vector.broadcast %cst_24 : f32 to vector<8x128xf32>
    %38 = arith.mulf %37, %36 : vector<8x128xf32>
    %39 = vector.extract_strided_slice %14 {offsets = [0, 256], sizes = [8, 128], strides = [1, 1]} : vector<8x512xf32> to vector<8x128xf32>
    %40 = math.tanh %39 : vector<8x128xf32>
    %41 = vector.extract_strided_slice %14 {offsets = [0, 384], sizes = [8, 128], strides = [1, 1]} : vector<8x512xf32> to vector<8x128xf32>
    %cst_25 = arith.constant 5.000000e-01 : f32
    %42 = vector.broadcast %cst_25 : f32 to vector<8x128xf32>
    %43 = arith.mulf %42, %41 : vector<8x128xf32>
    %44 = math.tanh %43 : vector<8x128xf32>
    %cst_26 = arith.constant 1.000000e+00 : f32
    %45 = vector.broadcast %cst_26 : f32 to vector<8x128xf32>
    %46 = arith.addf %44, %45 : vector<8x128xf32>
    %cst_27 = arith.constant 5.000000e-01 : f32
    %47 = vector.broadcast %cst_27 : f32 to vector<8x128xf32>
    %48 = arith.mulf %47, %46 : vector<8x128xf32>
    %49 = arith.mulf %38, %22 : vector<8x128xf32>
    %50 = arith.mulf %30, %40 : vector<8x128xf32>
    %51 = arith.addf %49, %50 : vector<8x128xf32>
    %52 = math.tanh %51 : vector<8x128xf32>
    %53 = arith.mulf %48, %52 : vector<8x128xf32>
    %c0_28 = arith.constant 0 : index
    %c0_29 = arith.constant 0 : index
    %54 = vector.load %arg9[%c0_28, %c0_29] : memref<8x128xf32, #tpu.memory_space<vmem>>, vector<8x128xf32>
    %55 = vector.extract_strided_slice %21 {offsets = [0, 0], sizes = [8, 128], strides = [1, 1]} : vector<8x512xf32> to vector<8x128xf32>
    %cst_30 = arith.constant 5.000000e-01 : f32
    %56 = vector.broadcast %cst_30 : f32 to vector<8x128xf32>
    %57 = arith.mulf %56, %55 : vector<8x128xf32>
    %58 = math.tanh %57 : vector<8x128xf32>
    %cst_31 = arith.constant 1.000000e+00 : f32
    %59 = vector.broadcast %cst_31 : f32 to vector<8x128xf32>
    %60 = arith.addf %58, %59 : vector<8x128xf32>
    %cst_32 = arith.constant 5.000000e-01 : f32
    %61 = vector.broadcast %cst_32 : f32 to vector<8x128xf32>
    %62 = arith.mulf %61, %60 : vector<8x128xf32>
    %63 = vector.extract_strided_slice %21 {offsets = [0, 128], sizes = [8, 128], strides = [1, 1]} : vector<8x512xf32> to vector<8x128xf32>
    %cst_33 = arith.constant 5.000000e-01 : f32
    %64 = vector.broadcast %cst_33 : f32 to vector<8x128xf32>
    %65 = arith.mulf %64, %63 : vector<8x128xf32>
    %66 = math.tanh %65 : vector<8x128xf32>
    %cst_34 = arith.constant 1.000000e+00 : f32
    %67 = vector.broadcast %cst_34 : f32 to vector<8x128xf32>
    %68 = arith.addf %66, %67 : vector<8x128xf32>
    %cst_35 = arith.constant 5.000000e-01 : f32
    %69 = vector.broadcast %cst_35 : f32 to vector<8x128xf32>
    %70 = arith.mulf %69, %68 : vector<8x128xf32>
    %71 = vector.extract_strided_slice %21 {offsets = [0, 256], sizes = [8, 128], strides = [1, 1]} : vector<8x512xf32> to vector<8x128xf32>
    %72 = math.tanh %71 : vector<8x128xf32>
    %73 = vector.extract_strided_slice %21 {offsets = [0, 384], sizes = [8, 128], strides = [1, 1]} : vector<8x512xf32> to vector<8x128xf32>
    %cst_36 = arith.constant 5.000000e-01 : f32
    %74 = vector.broadcast %cst_36 : f32 to vector<8x128xf32>
    %75 = arith.mulf %74, %73 : vector<8x128xf32>
    %76 = math.tanh %75 : vector<8x128xf32>
    %cst_37 = arith.constant 1.000000e+00 : f32
    %77 = vector.broadcast %cst_37 : f32 to vector<8x128xf32>
    %78 = arith.addf %76, %77 : vector<8x128xf32>
    %cst_38 = arith.constant 5.000000e-01 : f32
    %79 = vector.broadcast %cst_38 : f32 to vector<8x128xf32>
    %80 = arith.mulf %79, %78 : vector<8x128xf32>
    %81 = arith.mulf %70, %54 : vector<8x128xf32>
    %82 = arith.mulf %62, %72 : vector<8x128xf32>
    %83 = arith.addf %81, %82 : vector<8x128xf32>
    %84 = math.tanh %83 : vector<8x128xf32>
    %85 = arith.mulf %80, %84 : vector<8x128xf32>
    %86 = arith.truncf %53 : vector<8x128xf32> to vector<8x128xbf16>
    %c0_39 = arith.constant 0 : index
    %c0_40 = arith.constant 0 : index
    %87 = vector.load %arg6[%c0_39, %c0_40] : memref<8x128xbf16, #tpu.memory_space<vmem>>, vector<8x128xbf16>
    tpu.vector_store %arg6[%c0_39, %c0_40], %86 {strides = array<i32>} : memref<8x128xbf16, #tpu.memory_space<vmem>>, vector<8x128xbf16>,
    %c0_41 = arith.constant 0 : index
    %c0_42 = arith.constant 0 : index
    %88 = vector.load %arg7[%c0_41, %c0_42] : memref<8x128xf32, #tpu.memory_space<vmem>>, vector<8x128xf32>
    tpu.vector_store %arg7[%c0_41, %c0_42], %51 {strides = array<i32>} : memref<8x128xf32, #tpu.memory_space<vmem>>, vector<8x128xf32>,
    %89 = arith.truncf %85 : vector<8x128xf32> to vector<8x128xbf16>
    %c0_43 = arith.constant 0 : index
    %c0_44 = arith.constant 0 : index
    %90 = vector.load %arg8[%c0_43, %c0_44] : memref<8x128xbf16, #tpu.memory_space<vmem>>, vector<8x128xbf16>
    tpu.vector_store %arg8[%c0_43, %c0_44], %89 {strides = array<i32>} : memref<8x128xbf16, #tpu.memory_space<vmem>>, vector<8x128xbf16>,
    %c0_45 = arith.constant 0 : index
    %c0_46 = arith.constant 0 : index
    %91 = vector.load %arg9[%c0_45, %c0_46] : memref<8x128xf32, #tpu.memory_space<vmem>>, vector<8x128xf32>
    tpu.vector_store %arg9[%c0_45, %c0_46], %83 {strides = array<i32>} : memref<8x128xf32, #tpu.memory_space<vmem>>, vector<8x128xf32>,
    %92 = arith.index_cast %c0_i32_5 : i32 to index
    %c0_47 = arith.constant 0 : index
    %c0_48 = arith.constant 0 : index
    %93 = vector.load %arg4[%92, %c0_47, %c0_48] : memref<8x8x128xf32, #tpu.memory_space<vmem>>, vector<1x8x128xf32>
    %94 = vector.shape_cast %93 : vector<1x8x128xf32> to vector<8x128xf32>
    %95 = vector.shape_cast %53 : vector<8x128xf32> to vector<1x8x128xf32>
    tpu.vector_store %arg4[%92, %c0_47, %c0_48], %95 {strides = array<i32>} : memref<8x8x128xf32, #tpu.memory_space<vmem>>, vector<1x8x128xf32>,
    %96 = arith.index_cast %7 : i32 to index
    %c0_49 = arith.constant 0 : index
    %c0_50 = arith.constant 0 : index
    %97 = vector.load %arg5[%96, %c0_49, %c0_50] : memref<8x8x128xf32, #tpu.memory_space<vmem>>, vector<1x8x128xf32>
    %98 = vector.shape_cast %97 : vector<1x8x128xf32> to vector<8x128xf32>
    %99 = vector.shape_cast %85 : vector<8x128xf32> to vector<1x8x128xf32>
    tpu.vector_store %arg5[%96, %c0_49, %c0_50], %99 {strides = array<i32>} : memref<8x8x128xf32, #tpu.memory_space<vmem>>, vector<1x8x128xf32>,
    %c1_i32 = arith.constant 1 : i32
    %c7_i32_51 = arith.constant 7 : i32
    %100 = arith.subi %c7_i32_51, %c1_i32 : i32
    %c0_52 = arith.constant 0 : index
    %101 = arith.index_cast %c1_i32 : i32 to index
    %c0_53 = arith.constant 0 : index
    %c0_54 = arith.constant 0 : index
    %102 = vector.load %arg1[%c0_52, %101, %c0_53, %c0_54] : memref<1x8x8x512xbf16, #tpu.memory_space<vmem>>, vector<1x1x8x512xbf16>
    %103 = vector.shape_cast %102 : vector<1x1x8x512xbf16> to vector<8x512xbf16>
    %104 = arith.extf %103 : vector<8x512xbf16> to vector<8x512xf32>
    %c0_55 = arith.constant 0 : index
    %c0_56 = arith.constant 0 : index
    %105 = vector.load %arg6[%c0_55, %c0_56] : memref<8x128xbf16, #tpu.memory_space<vmem>>, vector<8x128xbf16>
    %cst_57 = arith.constant dense<0.000000e+00> : vector<8x512xf32>
    %106 = tpu.matmul %105, %4, %cst_57 {dimension_numbers = #tpu.dot_dimension_numbers<[1], [0], [0], [1], [0, 0, 1, 1], [], []>} : vector<8x128xbf16>, vector<128x512xbf16>, vector<8x512xf32> -> vector<8x512xf32>
    %107 = arith.addf %104, %106 : vector<8x512xf32>
    %c0_58 = arith.constant 0 : index
    %108 = arith.index_cast %100 : i32 to index
    %c0_59 = arith.constant 0 : index
    %c0_60 = arith.constant 0 : index
    %109 = vector.load %arg2[%c0_58, %108, %c0_59, %c0_60] : memref<1x8x8x512xbf16, #tpu.memory_space<vmem>>, vector<1x1x8x512xbf16>
    %110 = vector.shape_cast %109 : vector<1x1x8x512xbf16> to vector<8x512xbf16>
    %111 = arith.extf %110 : vector<8x512xbf16> to vector<8x512xf32>
    %c0_61 = arith.constant 0 : index
    %c0_62 = arith.constant 0 : index
    %112 = vector.load %arg8[%c0_61, %c0_62] : memref<8x128xbf16, #tpu.memory_space<vmem>>, vector<8x128xbf16>
    %cst_63 = arith.constant dense<0.000000e+00> : vector<8x512xf32>
    %113 = tpu.matmul %112, %6, %cst_63 {dimension_numbers = #tpu.dot_dimension_numbers<[1], [0], [0], [1], [0, 0, 1, 1], [], []>} : vector<8x128xbf16>, vector<128x512xbf16>, vector<8x512xf32> -> vector<8x512xf32>
    %114 = arith.addf %111, %113 : vector<8x512xf32>
    %c0_64 = arith.constant 0 : index
    %c0_65 = arith.constant 0 : index
    %115 = vector.load %arg7[%c0_64, %c0_65] : memref<8x128xf32, #tpu.memory_space<vmem>>, vector<8x128xf32>
    %116 = vector.extract_strided_slice %107 {offsets = [0, 0], sizes = [8, 128], strides = [1, 1]} : vector<8x512xf32> to vector<8x128xf32>
    %cst_66 = arith.constant 5.000000e-01 : f32
    %117 = vector.broadcast %cst_66 : f32 to vector<8x128xf32>
    %118 = arith.mulf %117, %116 : vector<8x128xf32>
    %119 = math.tanh %118 : vector<8x128xf32>
    %cst_67 = arith.constant 1.000000e+00 : f32
    %120 = vector.broadcast %cst_67 : f32 to vector<8x128xf32>
    %121 = arith.addf %119, %120 : vector<8x128xf32>
    %cst_68 = arith.constant 5.000000e-01 : f32
    %122 = vector.broadcast %cst_68 : f32 to vector<8x128xf32>
    %123 = arith.mulf %122, %121 : vector<8x128xf32>
    %124 = vector.extract_strided_slice %107 {offsets = [0, 128], sizes = [8, 128], strides = [1, 1]} : vector<8x512xf32> to vector<8x128xf32>
    %cst_69 = arith.constant 5.000000e-01 : f32
    %125 = vector.broadcast %cst_69 : f32 to vector<8x128xf32>
    %126 = arith.mulf %125, %124 : vector<8x128xf32>
    %127 = math.tanh %126 : vector<8x128xf32>
    %cst_70 = arith.constant 1.000000e+00 : f32
    %128 = vector.broadcast %cst_70 : f32 to vector<8x128xf32>
    %129 = arith.addf %127, %128 : vector<8x128xf32>
    %cst_71 = arith.constant 5.000000e-01 : f32
    %130 = vector.broadcast %cst_71 : f32 to vector<8x128xf32>
    %131 = arith.mulf %130, %129 : vector<8x128xf32>
    %132 = vector.extract_strided_slice %107 {offsets = [0, 256], sizes = [8, 128], strides = [1, 1]} : vector<8x512xf32> to vector<8x128xf32>
    %133 = math.tanh %132 : vector<8x128xf32>
    %134 = vector.extract_strided_slice %107 {offsets = [0, 384], sizes = [8, 128], strides = [1, 1]} : vector<8x512xf32> to vector<8x128xf32>
    %cst_72 = arith.constant 5.000000e-01 : f32
    %135 = vector.broadcast %cst_72 : f32 to vector<8x128xf32>
    %136 = arith.mulf %135, %134 : vector<8x128xf32>
    %137 = math.tanh %136 : vector<8x128xf32>
    %cst_73 = arith.constant 1.000000e+00 : f32
    %138 = vector.broadcast %cst_73 : f32 to vector<8x128xf32>
    %139 = arith.addf %137, %138 : vector<8x128xf32>
    %cst_74 = arith.constant 5.000000e-01 : f32
    %140 = vector.broadcast %cst_74 : f32 to vector<8x128xf32>
    %141 = arith.mulf %140, %139 : vector<8x128xf32>
    %142 = arith.mulf %131, %115 : vector<8x128xf32>
    %143 = arith.mulf %123, %133 : vector<8x128xf32>
    %144 = arith.addf %142, %143 : vector<8x128xf32>
    %145 = math.tanh %144 : vector<8x128xf32>
    %146 = arith.mulf %141, %145 : vector<8x128xf32>
    %c0_75 = arith.constant 0 : index
    %c0_76 = arith.constant 0 : index
    %147 = vector.load %arg9[%c0_75, %c0_76] : memref<8x128xf32, #tpu.memory_space<vmem>>, vector<8x128xf32>
    %148 = vector.extract_strided_slice %114 {offsets = [0, 0], sizes = [8, 128], strides = [1, 1]} : vector<8x512xf32> to vector<8x128xf32>
    %cst_77 = arith.constant 5.000000e-01 : f32
    %149 = vector.broadcast %cst_77 : f32 to vector<8x128xf32>
    %150 = arith.mulf %149, %148 : vector<8x128xf32>
    %151 = math.tanh %150 : vector<8x128xf32>
    %cst_78 = arith.constant 1.000000e+00 : f32
    %152 = vector.broadcast %cst_78 : f32 to vector<8x128xf32>
    %153 = arith.addf %151, %152 : vector<8x128xf32>
    %cst_79 = arith.constant 5.000000e-01 : f32
    %154 = vector.broadcast %cst_79 : f32 to vector<8x128xf32>
    %155 = arith.mulf %154, %153 : vector<8x128xf32>
    %156 = vector.extract_strided_slice %114 {offsets = [0, 128], sizes = [8, 128], strides = [1, 1]} : vector<8x512xf32> to vector<8x128xf32>
    %cst_80 = arith.constant 5.000000e-01 : f32
    %157 = vector.broadcast %cst_80 : f32 to vector<8x128xf32>
    %158 = arith.mulf %157, %156 : vector<8x128xf32>
    %159 = math.tanh %158 : vector<8x128xf32>
    %cst_81 = arith.constant 1.000000e+00 : f32
    %160 = vector.broadcast %cst_81 : f32 to vector<8x128xf32>
    %161 = arith.addf %159, %160 : vector<8x128xf32>
    %cst_82 = arith.constant 5.000000e-01 : f32
    %162 = vector.broadcast %cst_82 : f32 to vector<8x128xf32>
    %163 = arith.mulf %162, %161 : vector<8x128xf32>
    %164 = vector.extract_strided_slice %114 {offsets = [0, 256], sizes = [8, 128], strides = [1, 1]} : vector<8x512xf32> to vector<8x128xf32>
    %165 = math.tanh %164 : vector<8x128xf32>
    %166 = vector.extract_strided_slice %114 {offsets = [0, 384], sizes = [8, 128], strides = [1, 1]} : vector<8x512xf32> to vector<8x128xf32>
    %cst_83 = arith.constant 5.000000e-01 : f32
    %167 = vector.broadcast %cst_83 : f32 to vector<8x128xf32>
    %168 = arith.mulf %167, %166 : vector<8x128xf32>
    %169 = math.tanh %168 : vector<8x128xf32>
    %cst_84 = arith.constant 1.000000e+00 : f32
    %170 = vector.broadcast %cst_84 : f32 to vector<8x128xf32>
    %171 = arith.addf %169, %170 : vector<8x128xf32>
    %cst_85 = arith.constant 5.000000e-01 : f32
    %172 = vector.broadcast %cst_85 : f32 to vector<8x128xf32>
    %173 = arith.mulf %172, %171 : vector<8x128xf32>
    %174 = arith.mulf %163, %147 : vector<8x128xf32>
    %175 = arith.mulf %155, %165 : vector<8x128xf32>
    %176 = arith.addf %174, %175 : vector<8x128xf32>
    %177 = math.tanh %176 : vector<8x128xf32>
    %178 = arith.mulf %173, %177 : vector<8x128xf32>
    %179 = arith.truncf %146 : vector<8x128xf32> to vector<8x128xbf16>
    %c0_86 = arith.constant 0 : index
    %c0_87 = arith.constant 0 : index
    %180 = vector.load %arg6[%c0_86, %c0_87] : memref<8x128xbf16, #tpu.memory_space<vmem>>, vector<8x128xbf16>
    tpu.vector_store %arg6[%c0_86, %c0_87], %179 {strides = array<i32>} : memref<8x128xbf16, #tpu.memory_space<vmem>>, vector<8x128xbf16>,
    %c0_88 = arith.constant 0 : index
    %c0_89 = arith.constant 0 : index
    %181 = vector.load %arg7[%c0_88, %c0_89] : memref<8x128xf32, #tpu.memory_space<vmem>>, vector<8x128xf32>
    tpu.vector_store %arg7[%c0_88, %c0_89], %144 {strides = array<i32>} : memref<8x128xf32, #tpu.memory_space<vmem>>, vector<8x128xf32>,
    %182 = arith.truncf %178 : vector<8x128xf32> to vector<8x128xbf16>
    %c0_90 = arith.constant 0 : index
    %c0_91 = arith.constant 0 : index
    %183 = vector.load %arg8[%c0_90, %c0_91] : memref<8x128xbf16, #tpu.memory_space<vmem>>, vector<8x128xbf16>
    tpu.vector_store %arg8[%c0_90, %c0_91], %182 {strides = array<i32>} : memref<8x128xbf16, #tpu.memory_space<vmem>>, vector<8x128xbf16>,
    %c0_92 = arith.constant 0 : index
    %c0_93 = arith.constant 0 : index
    %184 = vector.load %arg9[%c0_92, %c0_93] : memref<8x128xf32, #tpu.memory_space<vmem>>, vector<8x128xf32>
    tpu.vector_store %arg9[%c0_92, %c0_93], %176 {strides = array<i32>} : memref<8x128xf32, #tpu.memory_space<vmem>>, vector<8x128xf32>,
    %185 = arith.index_cast %c1_i32 : i32 to index
    %c0_94 = arith.constant 0 : index
    %c0_95 = arith.constant 0 : index
    %186 = vector.load %arg4[%185, %c0_94, %c0_95] : memref<8x8x128xf32, #tpu.memory_space<vmem>>, vector<1x8x128xf32>
    %187 = vector.shape_cast %186 : vector<1x8x128xf32> to vector<8x128xf32>
    %188 = vector.shape_cast %146 : vector<8x128xf32> to vector<1x8x128xf32>
    tpu.vector_store %arg4[%185, %c0_94, %c0_95], %188 {strides = array<i32>} : memref<8x8x128xf32, #tpu.memory_space<vmem>>, vector<1x8x128xf32>,
    %189 = arith.index_cast %100 : i32 to index
    %c0_96 = arith.constant 0 : index
    %c0_97 = arith.constant 0 : index
    %190 = vector.load %arg5[%189, %c0_96, %c0_97] : memref<8x8x128xf32, #tpu.memory_space<vmem>>, vector<1x8x128xf32>
    %191 = vector.shape_cast %190 : vector<1x8x128xf32> to vector<8x128xf32>
    %192 = vector.shape_cast %178 : vector<8x128xf32> to vector<1x8x128xf32>
    tpu.vector_store %arg5[%189, %c0_96, %c0_97], %192 {strides = array<i32>} : memref<8x8x128xf32, #tpu.memory_space<vmem>>, vector<1x8x128xf32>,
    %c2_i32 = arith.constant 2 : i32
    %c7_i32_98 = arith.constant 7 : i32
    %193 = arith.subi %c7_i32_98, %c2_i32 : i32
    %c0_99 = arith.constant 0 : index
    %194 = arith.index_cast %c2_i32 : i32 to index
    %c0_100 = arith.constant 0 : index
    %c0_101 = arith.constant 0 : index
    %195 = vector.load %arg1[%c0_99, %194, %c0_100, %c0_101] : memref<1x8x8x512xbf16, #tpu.memory_space<vmem>>, vector<1x1x8x512xbf16>
    %196 = vector.shape_cast %195 : vector<1x1x8x512xbf16> to vector<8x512xbf16>
    %197 = arith.extf %196 : vector<8x512xbf16> to vector<8x512xf32>
    %c0_102 = arith.constant 0 : index
    %c0_103 = arith.constant 0 : index
    %198 = vector.load %arg6[%c0_102, %c0_103] : memref<8x128xbf16, #tpu.memory_space<vmem>>, vector<8x128xbf16>
    %cst_104 = arith.constant dense<0.000000e+00> : vector<8x512xf32>
    %199 = tpu.matmul %198, %4, %cst_104 {dimension_numbers = #tpu.dot_dimension_numbers<[1], [0], [0], [1], [0, 0, 1, 1], [], []>} : vector<8x128xbf16>, vector<128x512xbf16>, vector<8x512xf32> -> vector<8x512xf32>
    %200 = arith.addf %197, %199 : vector<8x512xf32>
    %c0_105 = arith.constant 0 : index
    %201 = arith.index_cast %193 : i32 to index
    %c0_106 = arith.constant 0 : index
    %c0_107 = arith.constant 0 : index
    %202 = vector.load %arg2[%c0_105, %201, %c0_106, %c0_107] : memref<1x8x8x512xbf16, #tpu.memory_space<vmem>>, vector<1x1x8x512xbf16>
    %203 = vector.shape_cast %202 : vector<1x1x8x512xbf16> to vector<8x512xbf16>
    %204 = arith.extf %203 : vector<8x512xbf16> to vector<8x512xf32>
    %c0_108 = arith.constant 0 : index
    %c0_109 = arith.constant 0 : index
    %205 = vector.load %arg8[%c0_108, %c0_109] : memref<8x128xbf16, #tpu.memory_space<vmem>>, vector<8x128xbf16>
    %cst_110 = arith.constant dense<0.000000e+00> : vector<8x512xf32>
    %206 = tpu.matmul %205, %6, %cst_110 {dimension_numbers = #tpu.dot_dimension_numbers<[1], [0], [0], [1], [0, 0, 1, 1], [], []>} : vector<8x128xbf16>, vector<128x512xbf16>, vector<8x512xf32> -> vector<8x512xf32>
    %207 = arith.addf %204, %206 : vector<8x512xf32>
    %c0_111 = arith.constant 0 : index
    %c0_112 = arith.constant 0 : index
    %208 = vector.load %arg7[%c0_111, %c0_112] : memref<8x128xf32, #tpu.memory_space<vmem>>, vector<8x128xf32>
    %209 = vector.extract_strided_slice %200 {offsets = [0, 0], sizes = [8, 128], strides = [1, 1]} : vector<8x512xf32> to vector<8x128xf32>
    %cst_113 = arith.constant 5.000000e-01 : f32
    %210 = vector.broadcast %cst_113 : f32 to vector<8x128xf32>
    %211 = arith.mulf %210, %209 : vector<8x128xf32>
    %212 = math.tanh %211 : vector<8x128xf32>
    %cst_114 = arith.constant 1.000000e+00 : f32
    %213 = vector.broadcast %cst_114 : f32 to vector<8x128xf32>
    %214 = arith.addf %212, %213 : vector<8x128xf32>
    %cst_115 = arith.constant 5.000000e-01 : f32
    %215 = vector.broadcast %cst_115 : f32 to vector<8x128xf32>
    %216 = arith.mulf %215, %214 : vector<8x128xf32>
    %217 = vector.extract_strided_slice %200 {offsets = [0, 128], sizes = [8, 128], strides = [1, 1]} : vector<8x512xf32> to vector<8x128xf32>
    %cst_116 = arith.constant 5.000000e-01 : f32
    %218 = vector.broadcast %cst_116 : f32 to vector<8x128xf32>
    %219 = arith.mulf %218, %217 : vector<8x128xf32>
    %220 = math.tanh %219 : vector<8x128xf32>
    %cst_117 = arith.constant 1.000000e+00 : f32
    %221 = vector.broadcast %cst_117 : f32 to vector<8x128xf32>
    %222 = arith.addf %220, %221 : vector<8x128xf32>
    %cst_118 = arith.constant 5.000000e-01 : f32
    %223 = vector.broadcast %cst_118 : f32 to vector<8x128xf32>
    %224 = arith.mulf %223, %222 : vector<8x128xf32>
    %225 = vector.extract_strided_slice %200 {offsets = [0, 256], sizes = [8, 128], strides = [1, 1]} : vector<8x512xf32> to vector<8x128xf32>
    %226 = math.tanh %225 : vector<8x128xf32>
    %227 = vector.extract_strided_slice %200 {offsets = [0, 384], sizes = [8, 128], strides = [1, 1]} : vector<8x512xf32> to vector<8x128xf32>
    %cst_119 = arith.constant 5.000000e-01 : f32
    %228 = vector.broadcast %cst_119 : f32 to vector<8x128xf32>
    %229 = arith.mulf %228, %227 : vector<8x128xf32>
    %230 = math.tanh %229 : vector<8x128xf32>
    %cst_120 = arith.constant 1.000000e+00 : f32
    %231 = vector.broadcast %cst_120 : f32 to vector<8x128xf32>
    %232 = arith.addf %230, %231 : vector<8x128xf32>
    %cst_121 = arith.constant 5.000000e-01 : f32
    %233 = vector.broadcast %cst_121 : f32 to vector<8x128xf32>
    %234 = arith.mulf %233, %232 : vector<8x128xf32>
    %235 = arith.mulf %224, %208 : vector<8x128xf32>
    %236 = arith.mulf %216, %226 : vector<8x128xf32>
    %237 = arith.addf %235, %236 : vector<8x128xf32>
    %238 = math.tanh %237 : vector<8x128xf32>
    %239 = arith.mulf %234, %238 : vector<8x128xf32>
    %c0_122 = arith.constant 0 : index
    %c0_123 = arith.constant 0 : index
    %240 = vector.load %arg9[%c0_122, %c0_123] : memref<8x128xf32, #tpu.memory_space<vmem>>, vector<8x128xf32>
    %241 = vector.extract_strided_slice %207 {offsets = [0, 0], sizes = [8, 128], strides = [1, 1]} : vector<8x512xf32> to vector<8x128xf32>
    %cst_124 = arith.constant 5.000000e-01 : f32
    %242 = vector.broadcast %cst_124 : f32 to vector<8x128xf32>
    %243 = arith.mulf %242, %241 : vector<8x128xf32>
    %244 = math.tanh %243 : vector<8x128xf32>
    %cst_125 = arith.constant 1.000000e+00 : f32
    %245 = vector.broadcast %cst_125 : f32 to vector<8x128xf32>
    %246 = arith.addf %244, %245 : vector<8x128xf32>
    %cst_126 = arith.constant 5.000000e-01 : f32
    %247 = vector.broadcast %cst_126 : f32 to vector<8x128xf32>
    %248 = arith.mulf %247, %246 : vector<8x128xf32>
    %249 = vector.extract_strided_slice %207 {offsets = [0, 128], sizes = [8, 128], strides = [1, 1]} : vector<8x512xf32> to vector<8x128xf32>
    %cst_127 = arith.constant 5.000000e-01 : f32
    %250 = vector.broadcast %cst_127 : f32 to vector<8x128xf32>
    %251 = arith.mulf %250, %249 : vector<8x128xf32>
    %252 = math.tanh %251 : vector<8x128xf32>
    %cst_128 = arith.constant 1.000000e+00 : f32
    %253 = vector.broadcast %cst_128 : f32 to vector<8x128xf32>
    %254 = arith.addf %252, %253 : vector<8x128xf32>
    %cst_129 = arith.constant 5.000000e-01 : f32
    %255 = vector.broadcast %cst_129 : f32 to vector<8x128xf32>
    %256 = arith.mulf %255, %254 : vector<8x128xf32>
    %257 = vector.extract_strided_slice %207 {offsets = [0, 256], sizes = [8, 128], strides = [1, 1]} : vector<8x512xf32> to vector<8x128xf32>
    %258 = math.tanh %257 : vector<8x128xf32>
    %259 = vector.extract_strided_slice %207 {offsets = [0, 384], sizes = [8, 128], strides = [1, 1]} : vector<8x512xf32> to vector<8x128xf32>
    %cst_130 = arith.constant 5.000000e-01 : f32
    %260 = vector.broadcast %cst_130 : f32 to vector<8x128xf32>
    %261 = arith.mulf %260, %259 : vector<8x128xf32>
    %262 = math.tanh %261 : vector<8x128xf32>
    %cst_131 = arith.constant 1.000000e+00 : f32
    %263 = vector.broadcast %cst_131 : f32 to vector<8x128xf32>
    %264 = arith.addf %262, %263 : vector<8x128xf32>
    %cst_132 = arith.constant 5.000000e-01 : f32
    %265 = vector.broadcast %cst_132 : f32 to vector<8x128xf32>
    %266 = arith.mulf %265, %264 : vector<8x128xf32>
    %267 = arith.mulf %256, %240 : vector<8x128xf32>
    %268 = arith.mulf %248, %258 : vector<8x128xf32>
    %269 = arith.addf %267, %268 : vector<8x128xf32>
    %270 = math.tanh %269 : vector<8x128xf32>
    %271 = arith.mulf %266, %270 : vector<8x128xf32>
    %272 = arith.truncf %239 : vector<8x128xf32> to vector<8x128xbf16>
    %c0_133 = arith.constant 0 : index
    %c0_134 = arith.constant 0 : index
    %273 = vector.load %arg6[%c0_133, %c0_134] : memref<8x128xbf16, #tpu.memory_space<vmem>>, vector<8x128xbf16>
    tpu.vector_store %arg6[%c0_133, %c0_134], %272 {strides = array<i32>} : memref<8x128xbf16, #tpu.memory_space<vmem>>, vector<8x128xbf16>,
    %c0_135 = arith.constant 0 : index
    %c0_136 = arith.constant 0 : index
    %274 = vector.load %arg7[%c0_135, %c0_136] : memref<8x128xf32, #tpu.memory_space<vmem>>, vector<8x128xf32>
    tpu.vector_store %arg7[%c0_135, %c0_136], %237 {strides = array<i32>} : memref<8x128xf32, #tpu.memory_space<vmem>>, vector<8x128xf32>,
    %275 = arith.truncf %271 : vector<8x128xf32> to vector<8x128xbf16>
    %c0_137 = arith.constant 0 : index
    %c0_138 = arith.constant 0 : index
    %276 = vector.load %arg8[%c0_137, %c0_138] : memref<8x128xbf16, #tpu.memory_space<vmem>>, vector<8x128xbf16>
    tpu.vector_store %arg8[%c0_137, %c0_138], %275 {strides = array<i32>} : memref<8x128xbf16, #tpu.memory_space<vmem>>, vector<8x128xbf16>,
    %c0_139 = arith.constant 0 : index
    %c0_140 = arith.constant 0 : index
    %277 = vector.load %arg9[%c0_139, %c0_140] : memref<8x128xf32, #tpu.memory_space<vmem>>, vector<8x128xf32>
    tpu.vector_store %arg9[%c0_139, %c0_140], %269 {strides = array<i32>} : memref<8x128xf32, #tpu.memory_space<vmem>>, vector<8x128xf32>,
    %278 = arith.index_cast %c2_i32 : i32 to index
    %c0_141 = arith.constant 0 : index
    %c0_142 = arith.constant 0 : index
    %279 = vector.load %arg4[%278, %c0_141, %c0_142] : memref<8x8x128xf32, #tpu.memory_space<vmem>>, vector<1x8x128xf32>
    %280 = vector.shape_cast %279 : vector<1x8x128xf32> to vector<8x128xf32>
    %281 = vector.shape_cast %239 : vector<8x128xf32> to vector<1x8x128xf32>
    tpu.vector_store %arg4[%278, %c0_141, %c0_142], %281 {strides = array<i32>} : memref<8x8x128xf32, #tpu.memory_space<vmem>>, vector<1x8x128xf32>,
    %282 = arith.index_cast %193 : i32 to index
    %c0_143 = arith.constant 0 : index
    %c0_144 = arith.constant 0 : index
    %283 = vector.load %arg5[%282, %c0_143, %c0_144] : memref<8x8x128xf32, #tpu.memory_space<vmem>>, vector<1x8x128xf32>
    %284 = vector.shape_cast %283 : vector<1x8x128xf32> to vector<8x128xf32>
    %285 = vector.shape_cast %271 : vector<8x128xf32> to vector<1x8x128xf32>
    tpu.vector_store %arg5[%282, %c0_143, %c0_144], %285 {strides = array<i32>} : memref<8x8x128xf32, #tpu.memory_space<vmem>>, vector<1x8x128xf32>,
    %c3_i32 = arith.constant 3 : i32
    %c7_i32_145 = arith.constant 7 : i32
    %286 = arith.subi %c7_i32_145, %c3_i32 : i32
    %c0_146 = arith.constant 0 : index
    %287 = arith.index_cast %c3_i32 : i32 to index
    %c0_147 = arith.constant 0 : index
    %c0_148 = arith.constant 0 : index
    %288 = vector.load %arg1[%c0_146, %287, %c0_147, %c0_148] : memref<1x8x8x512xbf16, #tpu.memory_space<vmem>>, vector<1x1x8x512xbf16>
    %289 = vector.shape_cast %288 : vector<1x1x8x512xbf16> to vector<8x512xbf16>
    %290 = arith.extf %289 : vector<8x512xbf16> to vector<8x512xf32>
    %c0_149 = arith.constant 0 : index
    %c0_150 = arith.constant 0 : index
    %291 = vector.load %arg6[%c0_149, %c0_150] : memref<8x128xbf16, #tpu.memory_space<vmem>>, vector<8x128xbf16>
    %cst_151 = arith.constant dense<0.000000e+00> : vector<8x512xf32>
    %292 = tpu.matmul %291, %4, %cst_151 {dimension_numbers = #tpu.dot_dimension_numbers<[1], [0], [0], [1], [0, 0, 1, 1], [], []>} : vector<8x128xbf16>, vector<128x512xbf16>, vector<8x512xf32> -> vector<8x512xf32>
    %293 = arith.addf %290, %292 : vector<8x512xf32>
    %c0_152 = arith.constant 0 : index
    %294 = arith.index_cast %286 : i32 to index
    %c0_153 = arith.constant 0 : index
    %c0_154 = arith.constant 0 : index
    %295 = vector.load %arg2[%c0_152, %294, %c0_153, %c0_154] : memref<1x8x8x512xbf16, #tpu.memory_space<vmem>>, vector<1x1x8x512xbf16>
    %296 = vector.shape_cast %295 : vector<1x1x8x512xbf16> to vector<8x512xbf16>
    %297 = arith.extf %296 : vector<8x512xbf16> to vector<8x512xf32>
    %c0_155 = arith.constant 0 : index
    %c0_156 = arith.constant 0 : index
    %298 = vector.load %arg8[%c0_155, %c0_156] : memref<8x128xbf16, #tpu.memory_space<vmem>>, vector<8x128xbf16>
    %cst_157 = arith.constant dense<0.000000e+00> : vector<8x512xf32>
    %299 = tpu.matmul %298, %6, %cst_157 {dimension_numbers = #tpu.dot_dimension_numbers<[1], [0], [0], [1], [0, 0, 1, 1], [], []>} : vector<8x128xbf16>, vector<128x512xbf16>, vector<8x512xf32> -> vector<8x512xf32>
    %300 = arith.addf %297, %299 : vector<8x512xf32>
    %c0_158 = arith.constant 0 : index
    %c0_159 = arith.constant 0 : index
    %301 = vector.load %arg7[%c0_158, %c0_159] : memref<8x128xf32, #tpu.memory_space<vmem>>, vector<8x128xf32>
    %302 = vector.extract_strided_slice %293 {offsets = [0, 0], sizes = [8, 128], strides = [1, 1]} : vector<8x512xf32> to vector<8x128xf32>
    %cst_160 = arith.constant 5.000000e-01 : f32
    %303 = vector.broadcast %cst_160 : f32 to vector<8x128xf32>
    %304 = arith.mulf %303, %302 : vector<8x128xf32>
    %305 = math.tanh %304 : vector<8x128xf32>
    %cst_161 = arith.constant 1.000000e+00 : f32
    %306 = vector.broadcast %cst_161 : f32 to vector<8x128xf32>
    %307 = arith.addf %305, %306 : vector<8x128xf32>
    %cst_162 = arith.constant 5.000000e-01 : f32
    %308 = vector.broadcast %cst_162 : f32 to vector<8x128xf32>
    %309 = arith.mulf %308, %307 : vector<8x128xf32>
    %310 = vector.extract_strided_slice %293 {offsets = [0, 128], sizes = [8, 128], strides = [1, 1]} : vector<8x512xf32> to vector<8x128xf32>
    %cst_163 = arith.constant 5.000000e-01 : f32
    %311 = vector.broadcast %cst_163 : f32 to vector<8x128xf32>
    %312 = arith.mulf %311, %310 : vector<8x128xf32>
    %313 = math.tanh %312 : vector<8x128xf32>
    %cst_164 = arith.constant 1.000000e+00 : f32
    %314 = vector.broadcast %cst_164 : f32 to vector<8x128xf32>
    %315 = arith.addf %313, %314 : vector<8x128xf32>
    %cst_165 = arith.constant 5.000000e-01 : f32
    %316 = vector.broadcast %cst_165 : f32 to vector<8x128xf32>
    %317 = arith.mulf %316, %315 : vector<8x128xf32>
    %318 = vector.extract_strided_slice %293 {offsets = [0, 256], sizes = [8, 128], strides = [1, 1]} : vector<8x512xf32> to vector<8x128xf32>
    %319 = math.tanh %318 : vector<8x128xf32>
    %320 = vector.extract_strided_slice %293 {offsets = [0, 384], sizes = [8, 128], strides = [1, 1]} : vector<8x512xf32> to vector<8x128xf32>
    %cst_166 = arith.constant 5.000000e-01 : f32
    %321 = vector.broadcast %cst_166 : f32 to vector<8x128xf32>
    %322 = arith.mulf %321, %320 : vector<8x128xf32>
    %323 = math.tanh %322 : vector<8x128xf32>
    %cst_167 = arith.constant 1.000000e+00 : f32
    %324 = vector.broadcast %cst_167 : f32 to vector<8x128xf32>
    %325 = arith.addf %323, %324 : vector<8x128xf32>
    %cst_168 = arith.constant 5.000000e-01 : f32
    %326 = vector.broadcast %cst_168 : f32 to vector<8x128xf32>
    %327 = arith.mulf %326, %325 : vector<8x128xf32>
    %328 = arith.mulf %317, %301 : vector<8x128xf32>
    %329 = arith.mulf %309, %319 : vector<8x128xf32>
    %330 = arith.addf %328, %329 : vector<8x128xf32>
    %331 = math.tanh %330 : vector<8x128xf32>
    %332 = arith.mulf %327, %331 : vector<8x128xf32>
    %c0_169 = arith.constant 0 : index
    %c0_170 = arith.constant 0 : index
    %333 = vector.load %arg9[%c0_169, %c0_170] : memref<8x128xf32, #tpu.memory_space<vmem>>, vector<8x128xf32>
    %334 = vector.extract_strided_slice %300 {offsets = [0, 0], sizes = [8, 128], strides = [1, 1]} : vector<8x512xf32> to vector<8x128xf32>
    %cst_171 = arith.constant 5.000000e-01 : f32
    %335 = vector.broadcast %cst_171 : f32 to vector<8x128xf32>
    %336 = arith.mulf %335, %334 : vector<8x128xf32>
    %337 = math.tanh %336 : vector<8x128xf32>
    %cst_172 = arith.constant 1.000000e+00 : f32
    %338 = vector.broadcast %cst_172 : f32 to vector<8x128xf32>
    %339 = arith.addf %337, %338 : vector<8x128xf32>
    %cst_173 = arith.constant 5.000000e-01 : f32
    %340 = vector.broadcast %cst_173 : f32 to vector<8x128xf32>
    %341 = arith.mulf %340, %339 : vector<8x128xf32>
    %342 = vector.extract_strided_slice %300 {offsets = [0, 128], sizes = [8, 128], strides = [1, 1]} : vector<8x512xf32> to vector<8x128xf32>
    %cst_174 = arith.constant 5.000000e-01 : f32
    %343 = vector.broadcast %cst_174 : f32 to vector<8x128xf32>
    %344 = arith.mulf %343, %342 : vector<8x128xf32>
    %345 = math.tanh %344 : vector<8x128xf32>
    %cst_175 = arith.constant 1.000000e+00 : f32
    %346 = vector.broadcast %cst_175 : f32 to vector<8x128xf32>
    %347 = arith.addf %345, %346 : vector<8x128xf32>
    %cst_176 = arith.constant 5.000000e-01 : f32
    %348 = vector.broadcast %cst_176 : f32 to vector<8x128xf32>
    %349 = arith.mulf %348, %347 : vector<8x128xf32>
    %350 = vector.extract_strided_slice %300 {offsets = [0, 256], sizes = [8, 128], strides = [1, 1]} : vector<8x512xf32> to vector<8x128xf32>
    %351 = math.tanh %350 : vector<8x128xf32>
    %352 = vector.extract_strided_slice %300 {offsets = [0, 384], sizes = [8, 128], strides = [1, 1]} : vector<8x512xf32> to vector<8x128xf32>
    %cst_177 = arith.constant 5.000000e-01 : f32
    %353 = vector.broadcast %cst_177 : f32 to vector<8x128xf32>
    %354 = arith.mulf %353, %352 : vector<8x128xf32>
    %355 = math.tanh %354 : vector<8x128xf32>
    %cst_178 = arith.constant 1.000000e+00 : f32
    %356 = vector.broadcast %cst_178 : f32 to vector<8x128xf32>
    %357 = arith.addf %355, %356 : vector<8x128xf32>
    %cst_179 = arith.constant 5.000000e-01 : f32
    %358 = vector.broadcast %cst_179 : f32 to vector<8x128xf32>
    %359 = arith.mulf %358, %357 : vector<8x128xf32>
    %360 = arith.mulf %349, %333 : vector<8x128xf32>
    %361 = arith.mulf %341, %351 : vector<8x128xf32>
    %362 = arith.addf %360, %361 : vector<8x128xf32>
    %363 = math.tanh %362 : vector<8x128xf32>
    %364 = arith.mulf %359, %363 : vector<8x128xf32>
    %365 = arith.truncf %332 : vector<8x128xf32> to vector<8x128xbf16>
    %c0_180 = arith.constant 0 : index
    %c0_181 = arith.constant 0 : index
    %366 = vector.load %arg6[%c0_180, %c0_181] : memref<8x128xbf16, #tpu.memory_space<vmem>>, vector<8x128xbf16>
    tpu.vector_store %arg6[%c0_180, %c0_181], %365 {strides = array<i32>} : memref<8x128xbf16, #tpu.memory_space<vmem>>, vector<8x128xbf16>,
    %c0_182 = arith.constant 0 : index
    %c0_183 = arith.constant 0 : index
    %367 = vector.load %arg7[%c0_182, %c0_183] : memref<8x128xf32, #tpu.memory_space<vmem>>, vector<8x128xf32>
    tpu.vector_store %arg7[%c0_182, %c0_183], %330 {strides = array<i32>} : memref<8x128xf32, #tpu.memory_space<vmem>>, vector<8x128xf32>,
    %368 = arith.truncf %364 : vector<8x128xf32> to vector<8x128xbf16>
    %c0_184 = arith.constant 0 : index
    %c0_185 = arith.constant 0 : index
    %369 = vector.load %arg8[%c0_184, %c0_185] : memref<8x128xbf16, #tpu.memory_space<vmem>>, vector<8x128xbf16>
    tpu.vector_store %arg8[%c0_184, %c0_185], %368 {strides = array<i32>} : memref<8x128xbf16, #tpu.memory_space<vmem>>, vector<8x128xbf16>,
    %c0_186 = arith.constant 0 : index
    %c0_187 = arith.constant 0 : index
    %370 = vector.load %arg9[%c0_186, %c0_187] : memref<8x128xf32, #tpu.memory_space<vmem>>, vector<8x128xf32>
    tpu.vector_store %arg9[%c0_186, %c0_187], %362 {strides = array<i32>} : memref<8x128xf32, #tpu.memory_space<vmem>>, vector<8x128xf32>,
    %371 = arith.index_cast %c3_i32 : i32 to index
    %c0_188 = arith.constant 0 : index
    %c0_189 = arith.constant 0 : index
    %372 = vector.load %arg4[%371, %c0_188, %c0_189] : memref<8x8x128xf32, #tpu.memory_space<vmem>>, vector<1x8x128xf32>
    %373 = vector.shape_cast %372 : vector<1x8x128xf32> to vector<8x128xf32>
    %374 = vector.shape_cast %332 : vector<8x128xf32> to vector<1x8x128xf32>
    tpu.vector_store %arg4[%371, %c0_188, %c0_189], %374 {strides = array<i32>} : memref<8x8x128xf32, #tpu.memory_space<vmem>>, vector<1x8x128xf32>,
    %375 = arith.index_cast %286 : i32 to index
    %c0_190 = arith.constant 0 : index
    %c0_191 = arith.constant 0 : index
    %376 = vector.load %arg5[%375, %c0_190, %c0_191] : memref<8x8x128xf32, #tpu.memory_space<vmem>>, vector<1x8x128xf32>
    %377 = vector.shape_cast %376 : vector<1x8x128xf32> to vector<8x128xf32>
    %378 = vector.shape_cast %364 : vector<8x128xf32> to vector<1x8x128xf32>
    tpu.vector_store %arg5[%375, %c0_190, %c0_191], %378 {strides = array<i32>} : memref<8x8x128xf32, #tpu.memory_space<vmem>>, vector<1x8x128xf32>,
    %c4_i32 = arith.constant 4 : i32
    %c7_i32_192 = arith.constant 7 : i32
    %379 = arith.subi %c7_i32_192, %c4_i32 : i32
    %c0_193 = arith.constant 0 : index
    %380 = arith.index_cast %c4_i32 : i32 to index
    %c0_194 = arith.constant 0 : index
    %c0_195 = arith.constant 0 : index
    %381 = vector.load %arg1[%c0_193, %380, %c0_194, %c0_195] : memref<1x8x8x512xbf16, #tpu.memory_space<vmem>>, vector<1x1x8x512xbf16>
    %382 = vector.shape_cast %381 : vector<1x1x8x512xbf16> to vector<8x512xbf16>
    %383 = arith.extf %382 : vector<8x512xbf16> to vector<8x512xf32>
    %c0_196 = arith.constant 0 : index
    %c0_197 = arith.constant 0 : index
    %384 = vector.load %arg6[%c0_196, %c0_197] : memref<8x128xbf16, #tpu.memory_space<vmem>>, vector<8x128xbf16>
    %cst_198 = arith.constant dense<0.000000e+00> : vector<8x512xf32>
    %385 = tpu.matmul %384, %4, %cst_198 {dimension_numbers = #tpu.dot_dimension_numbers<[1], [0], [0], [1], [0, 0, 1, 1], [], []>} : vector<8x128xbf16>, vector<128x512xbf16>, vector<8x512xf32> -> vector<8x512xf32>
    %386 = arith.addf %383, %385 : vector<8x512xf32>
    %c0_199 = arith.constant 0 : index
    %387 = arith.index_cast %379 : i32 to index
    %c0_200 = arith.constant 0 : index
    %c0_201 = arith.constant 0 : index
    %388 = vector.load %arg2[%c0_199, %387, %c0_200, %c0_201] : memref<1x8x8x512xbf16, #tpu.memory_space<vmem>>, vector<1x1x8x512xbf16>
    %389 = vector.shape_cast %388 : vector<1x1x8x512xbf16> to vector<8x512xbf16>
    %390 = arith.extf %389 : vector<8x512xbf16> to vector<8x512xf32>
    %c0_202 = arith.constant 0 : index
    %c0_203 = arith.constant 0 : index
    %391 = vector.load %arg8[%c0_202, %c0_203] : memref<8x128xbf16, #tpu.memory_space<vmem>>, vector<8x128xbf16>
    %cst_204 = arith.constant dense<0.000000e+00> : vector<8x512xf32>
    %392 = tpu.matmul %391, %6, %cst_204 {dimension_numbers = #tpu.dot_dimension_numbers<[1], [0], [0], [1], [0, 0, 1, 1], [], []>} : vector<8x128xbf16>, vector<128x512xbf16>, vector<8x512xf32> -> vector<8x512xf32>
    %393 = arith.addf %390, %392 : vector<8x512xf32>
    %c0_205 = arith.constant 0 : index
    %c0_206 = arith.constant 0 : index
    %394 = vector.load %arg7[%c0_205, %c0_206] : memref<8x128xf32, #tpu.memory_space<vmem>>, vector<8x128xf32>
    %395 = vector.extract_strided_slice %386 {offsets = [0, 0], sizes = [8, 128], strides = [1, 1]} : vector<8x512xf32> to vector<8x128xf32>
    %cst_207 = arith.constant 5.000000e-01 : f32
    %396 = vector.broadcast %cst_207 : f32 to vector<8x128xf32>
    %397 = arith.mulf %396, %395 : vector<8x128xf32>
    %398 = math.tanh %397 : vector<8x128xf32>
    %cst_208 = arith.constant 1.000000e+00 : f32
    %399 = vector.broadcast %cst_208 : f32 to vector<8x128xf32>
    %400 = arith.addf %398, %399 : vector<8x128xf32>
    %cst_209 = arith.constant 5.000000e-01 : f32
    %401 = vector.broadcast %cst_209 : f32 to vector<8x128xf32>
    %402 = arith.mulf %401, %400 : vector<8x128xf32>
    %403 = vector.extract_strided_slice %386 {offsets = [0, 128], sizes = [8, 128], strides = [1, 1]} : vector<8x512xf32> to vector<8x128xf32>
    %cst_210 = arith.constant 5.000000e-01 : f32
    %404 = vector.broadcast %cst_210 : f32 to vector<8x128xf32>
    %405 = arith.mulf %404, %403 : vector<8x128xf32>
    %406 = math.tanh %405 : vector<8x128xf32>
    %cst_211 = arith.constant 1.000000e+00 : f32
    %407 = vector.broadcast %cst_211 : f32 to vector<8x128xf32>
    %408 = arith.addf %406, %407 : vector<8x128xf32>
    %cst_212 = arith.constant 5.000000e-01 : f32
    %409 = vector.broadcast %cst_212 : f32 to vector<8x128xf32>
    %410 = arith.mulf %409, %408 : vector<8x128xf32>
    %411 = vector.extract_strided_slice %386 {offsets = [0, 256], sizes = [8, 128], strides = [1, 1]} : vector<8x512xf32> to vector<8x128xf32>
    %412 = math.tanh %411 : vector<8x128xf32>
    %413 = vector.extract_strided_slice %386 {offsets = [0, 384], sizes = [8, 128], strides = [1, 1]} : vector<8x512xf32> to vector<8x128xf32>
    %cst_213 = arith.constant 5.000000e-01 : f32
    %414 = vector.broadcast %cst_213 : f32 to vector<8x128xf32>
    %415 = arith.mulf %414, %413 : vector<8x128xf32>
    %416 = math.tanh %415 : vector<8x128xf32>
    %cst_214 = arith.constant 1.000000e+00 : f32
    %417 = vector.broadcast %cst_214 : f32 to vector<8x128xf32>
    %418 = arith.addf %416, %417 : vector<8x128xf32>
    %cst_215 = arith.constant 5.000000e-01 : f32
    %419 = vector.broadcast %cst_215 : f32 to vector<8x128xf32>
    %420 = arith.mulf %419, %418 : vector<8x128xf32>
    %421 = arith.mulf %410, %394 : vector<8x128xf32>
    %422 = arith.mulf %402, %412 : vector<8x128xf32>
    %423 = arith.addf %421, %422 : vector<8x128xf32>
    %424 = math.tanh %423 : vector<8x128xf32>
    %425 = arith.mulf %420, %424 : vector<8x128xf32>
    %c0_216 = arith.constant 0 : index
    %c0_217 = arith.constant 0 : index
    %426 = vector.load %arg9[%c0_216, %c0_217] : memref<8x128xf32, #tpu.memory_space<vmem>>, vector<8x128xf32>
    %427 = vector.extract_strided_slice %393 {offsets = [0, 0], sizes = [8, 128], strides = [1, 1]} : vector<8x512xf32> to vector<8x128xf32>
    %cst_218 = arith.constant 5.000000e-01 : f32
    %428 = vector.broadcast %cst_218 : f32 to vector<8x128xf32>
    %429 = arith.mulf %428, %427 : vector<8x128xf32>
    %430 = math.tanh %429 : vector<8x128xf32>
    %cst_219 = arith.constant 1.000000e+00 : f32
    %431 = vector.broadcast %cst_219 : f32 to vector<8x128xf32>
    %432 = arith.addf %430, %431 : vector<8x128xf32>
    %cst_220 = arith.constant 5.000000e-01 : f32
    %433 = vector.broadcast %cst_220 : f32 to vector<8x128xf32>
    %434 = arith.mulf %433, %432 : vector<8x128xf32>
    %435 = vector.extract_strided_slice %393 {offsets = [0, 128], sizes = [8, 128], strides = [1, 1]} : vector<8x512xf32> to vector<8x128xf32>
    %cst_221 = arith.constant 5.000000e-01 : f32
    %436 = vector.broadcast %cst_221 : f32 to vector<8x128xf32>
    %437 = arith.mulf %436, %435 : vector<8x128xf32>
    %438 = math.tanh %437 : vector<8x128xf32>
    %cst_222 = arith.constant 1.000000e+00 : f32
    %439 = vector.broadcast %cst_222 : f32 to vector<8x128xf32>
    %440 = arith.addf %438, %439 : vector<8x128xf32>
    %cst_223 = arith.constant 5.000000e-01 : f32
    %441 = vector.broadcast %cst_223 : f32 to vector<8x128xf32>
    %442 = arith.mulf %441, %440 : vector<8x128xf32>
    %443 = vector.extract_strided_slice %393 {offsets = [0, 256], sizes = [8, 128], strides = [1, 1]} : vector<8x512xf32> to vector<8x128xf32>
    %444 = math.tanh %443 : vector<8x128xf32>
    %445 = vector.extract_strided_slice %393 {offsets = [0, 384], sizes = [8, 128], strides = [1, 1]} : vector<8x512xf32> to vector<8x128xf32>
    %cst_224 = arith.constant 5.000000e-01 : f32
    %446 = vector.broadcast %cst_224 : f32 to vector<8x128xf32>
    %447 = arith.mulf %446, %445 : vector<8x128xf32>
    %448 = math.tanh %447 : vector<8x128xf32>
    %cst_225 = arith.constant 1.000000e+00 : f32
    %449 = vector.broadcast %cst_225 : f32 to vector<8x128xf32>
    %450 = arith.addf %448, %449 : vector<8x128xf32>
    %cst_226 = arith.constant 5.000000e-01 : f32
    %451 = vector.broadcast %cst_226 : f32 to vector<8x128xf32>
    %452 = arith.mulf %451, %450 : vector<8x128xf32>
    %453 = arith.mulf %442, %426 : vector<8x128xf32>
    %454 = arith.mulf %434, %444 : vector<8x128xf32>
    %455 = arith.addf %453, %454 : vector<8x128xf32>
    %456 = math.tanh %455 : vector<8x128xf32>
    %457 = arith.mulf %452, %456 : vector<8x128xf32>
    %458 = arith.truncf %425 : vector<8x128xf32> to vector<8x128xbf16>
    %c0_227 = arith.constant 0 : index
    %c0_228 = arith.constant 0 : index
    %459 = vector.load %arg6[%c0_227, %c0_228] : memref<8x128xbf16, #tpu.memory_space<vmem>>, vector<8x128xbf16>
    tpu.vector_store %arg6[%c0_227, %c0_228], %458 {strides = array<i32>} : memref<8x128xbf16, #tpu.memory_space<vmem>>, vector<8x128xbf16>,
    %c0_229 = arith.constant 0 : index
    %c0_230 = arith.constant 0 : index
    %460 = vector.load %arg7[%c0_229, %c0_230] : memref<8x128xf32, #tpu.memory_space<vmem>>, vector<8x128xf32>
    tpu.vector_store %arg7[%c0_229, %c0_230], %423 {strides = array<i32>} : memref<8x128xf32, #tpu.memory_space<vmem>>, vector<8x128xf32>,
    %461 = arith.truncf %457 : vector<8x128xf32> to vector<8x128xbf16>
    %c0_231 = arith.constant 0 : index
    %c0_232 = arith.constant 0 : index
    %462 = vector.load %arg8[%c0_231, %c0_232] : memref<8x128xbf16, #tpu.memory_space<vmem>>, vector<8x128xbf16>
    tpu.vector_store %arg8[%c0_231, %c0_232], %461 {strides = array<i32>} : memref<8x128xbf16, #tpu.memory_space<vmem>>, vector<8x128xbf16>,
    %c0_233 = arith.constant 0 : index
    %c0_234 = arith.constant 0 : index
    %463 = vector.load %arg9[%c0_233, %c0_234] : memref<8x128xf32, #tpu.memory_space<vmem>>, vector<8x128xf32>
    tpu.vector_store %arg9[%c0_233, %c0_234], %455 {strides = array<i32>} : memref<8x128xf32, #tpu.memory_space<vmem>>, vector<8x128xf32>,
    %464 = arith.index_cast %c4_i32 : i32 to index
    %c0_235 = arith.constant 0 : index
    %c0_236 = arith.constant 0 : index
    %465 = vector.load %arg4[%464, %c0_235, %c0_236] : memref<8x8x128xf32, #tpu.memory_space<vmem>>, vector<1x8x128xf32>
    %466 = vector.shape_cast %465 : vector<1x8x128xf32> to vector<8x128xf32>
    %467 = vector.shape_cast %425 : vector<8x128xf32> to vector<1x8x128xf32>
    tpu.vector_store %arg4[%464, %c0_235, %c0_236], %467 {strides = array<i32>} : memref<8x8x128xf32, #tpu.memory_space<vmem>>, vector<1x8x128xf32>,
    %468 = arith.index_cast %379 : i32 to index
    %c0_237 = arith.constant 0 : index
    %c0_238 = arith.constant 0 : index
    %469 = vector.load %arg5[%468, %c0_237, %c0_238] : memref<8x8x128xf32, #tpu.memory_space<vmem>>, vector<1x8x128xf32>
    %470 = vector.shape_cast %469 : vector<1x8x128xf32> to vector<8x128xf32>
    %471 = vector.shape_cast %457 : vector<8x128xf32> to vector<1x8x128xf32>
    tpu.vector_store %arg5[%468, %c0_237, %c0_238], %471 {strides = array<i32>} : memref<8x8x128xf32, #tpu.memory_space<vmem>>, vector<1x8x128xf32>,
    %c5_i32 = arith.constant 5 : i32
    %c7_i32_239 = arith.constant 7 : i32
    %472 = arith.subi %c7_i32_239, %c5_i32 : i32
    %c0_240 = arith.constant 0 : index
    %473 = arith.index_cast %c5_i32 : i32 to index
    %c0_241 = arith.constant 0 : index
    %c0_242 = arith.constant 0 : index
    %474 = vector.load %arg1[%c0_240, %473, %c0_241, %c0_242] : memref<1x8x8x512xbf16, #tpu.memory_space<vmem>>, vector<1x1x8x512xbf16>
    %475 = vector.shape_cast %474 : vector<1x1x8x512xbf16> to vector<8x512xbf16>
    %476 = arith.extf %475 : vector<8x512xbf16> to vector<8x512xf32>
    %c0_243 = arith.constant 0 : index
    %c0_244 = arith.constant 0 : index
    %477 = vector.load %arg6[%c0_243, %c0_244] : memref<8x128xbf16, #tpu.memory_space<vmem>>, vector<8x128xbf16>
    %cst_245 = arith.constant dense<0.000000e+00> : vector<8x512xf32>
    %478 = tpu.matmul %477, %4, %cst_245 {dimension_numbers = #tpu.dot_dimension_numbers<[1], [0], [0], [1], [0, 0, 1, 1], [], []>} : vector<8x128xbf16>, vector<128x512xbf16>, vector<8x512xf32> -> vector<8x512xf32>
    %479 = arith.addf %476, %478 : vector<8x512xf32>
    %c0_246 = arith.constant 0 : index
    %480 = arith.index_cast %472 : i32 to index
    %c0_247 = arith.constant 0 : index
    %c0_248 = arith.constant 0 : index
    %481 = vector.load %arg2[%c0_246, %480, %c0_247, %c0_248] : memref<1x8x8x512xbf16, #tpu.memory_space<vmem>>, vector<1x1x8x512xbf16>
    %482 = vector.shape_cast %481 : vector<1x1x8x512xbf16> to vector<8x512xbf16>
    %483 = arith.extf %482 : vector<8x512xbf16> to vector<8x512xf32>
    %c0_249 = arith.constant 0 : index
    %c0_250 = arith.constant 0 : index
    %484 = vector.load %arg8[%c0_249, %c0_250] : memref<8x128xbf16, #tpu.memory_space<vmem>>, vector<8x128xbf16>
    %cst_251 = arith.constant dense<0.000000e+00> : vector<8x512xf32>
    %485 = tpu.matmul %484, %6, %cst_251 {dimension_numbers = #tpu.dot_dimension_numbers<[1], [0], [0], [1], [0, 0, 1, 1], [], []>} : vector<8x128xbf16>, vector<128x512xbf16>, vector<8x512xf32> -> vector<8x512xf32>
    %486 = arith.addf %483, %485 : vector<8x512xf32>
    %c0_252 = arith.constant 0 : index
    %c0_253 = arith.constant 0 : index
    %487 = vector.load %arg7[%c0_252, %c0_253] : memref<8x128xf32, #tpu.memory_space<vmem>>, vector<8x128xf32>
    %488 = vector.extract_strided_slice %479 {offsets = [0, 0], sizes = [8, 128], strides = [1, 1]} : vector<8x512xf32> to vector<8x128xf32>
    %cst_254 = arith.constant 5.000000e-01 : f32
    %489 = vector.broadcast %cst_254 : f32 to vector<8x128xf32>
    %490 = arith.mulf %489, %488 : vector<8x128xf32>
    %491 = math.tanh %490 : vector<8x128xf32>
    %cst_255 = arith.constant 1.000000e+00 : f32
    %492 = vector.broadcast %cst_255 : f32 to vector<8x128xf32>
    %493 = arith.addf %491, %492 : vector<8x128xf32>
    %cst_256 = arith.constant 5.000000e-01 : f32
    %494 = vector.broadcast %cst_256 : f32 to vector<8x128xf32>
    %495 = arith.mulf %494, %493 : vector<8x128xf32>
    %496 = vector.extract_strided_slice %479 {offsets = [0, 128], sizes = [8, 128], strides = [1, 1]} : vector<8x512xf32> to vector<8x128xf32>
    %cst_257 = arith.constant 5.000000e-01 : f32
    %497 = vector.broadcast %cst_257 : f32 to vector<8x128xf32>
    %498 = arith.mulf %497, %496 : vector<8x128xf32>
    %499 = math.tanh %498 : vector<8x128xf32>
    %cst_258 = arith.constant 1.000000e+00 : f32
    %500 = vector.broadcast %cst_258 : f32 to vector<8x128xf32>
    %501 = arith.addf %499, %500 : vector<8x128xf32>
    %cst_259 = arith.constant 5.000000e-01 : f32
    %502 = vector.broadcast %cst_259 : f32 to vector<8x128xf32>
    %503 = arith.mulf %502, %501 : vector<8x128xf32>
    %504 = vector.extract_strided_slice %479 {offsets = [0, 256], sizes = [8, 128], strides = [1, 1]} : vector<8x512xf32> to vector<8x128xf32>
    %505 = math.tanh %504 : vector<8x128xf32>
    %506 = vector.extract_strided_slice %479 {offsets = [0, 384], sizes = [8, 128], strides = [1, 1]} : vector<8x512xf32> to vector<8x128xf32>
    %cst_260 = arith.constant 5.000000e-01 : f32
    %507 = vector.broadcast %cst_260 : f32 to vector<8x128xf32>
    %508 = arith.mulf %507, %506 : vector<8x128xf32>
    %509 = math.tanh %508 : vector<8x128xf32>
    %cst_261 = arith.constant 1.000000e+00 : f32
    %510 = vector.broadcast %cst_261 : f32 to vector<8x128xf32>
    %511 = arith.addf %509, %510 : vector<8x128xf32>
    %cst_262 = arith.constant 5.000000e-01 : f32
    %512 = vector.broadcast %cst_262 : f32 to vector<8x128xf32>
    %513 = arith.mulf %512, %511 : vector<8x128xf32>
    %514 = arith.mulf %503, %487 : vector<8x128xf32>
    %515 = arith.mulf %495, %505 : vector<8x128xf32>
    %516 = arith.addf %514, %515 : vector<8x128xf32>
    %517 = math.tanh %516 : vector<8x128xf32>
    %518 = arith.mulf %513, %517 : vector<8x128xf32>
    %c0_263 = arith.constant 0 : index
    %c0_264 = arith.constant 0 : index
    %519 = vector.load %arg9[%c0_263, %c0_264] : memref<8x128xf32, #tpu.memory_space<vmem>>, vector<8x128xf32>
    %520 = vector.extract_strided_slice %486 {offsets = [0, 0], sizes = [8, 128], strides = [1, 1]} : vector<8x512xf32> to vector<8x128xf32>
    %cst_265 = arith.constant 5.000000e-01 : f32
    %521 = vector.broadcast %cst_265 : f32 to vector<8x128xf32>
    %522 = arith.mulf %521, %520 : vector<8x128xf32>
    %523 = math.tanh %522 : vector<8x128xf32>
    %cst_266 = arith.constant 1.000000e+00 : f32
    %524 = vector.broadcast %cst_266 : f32 to vector<8x128xf32>
    %525 = arith.addf %523, %524 : vector<8x128xf32>
    %cst_267 = arith.constant 5.000000e-01 : f32
    %526 = vector.broadcast %cst_267 : f32 to vector<8x128xf32>
    %527 = arith.mulf %526, %525 : vector<8x128xf32>
    %528 = vector.extract_strided_slice %486 {offsets = [0, 128], sizes = [8, 128], strides = [1, 1]} : vector<8x512xf32> to vector<8x128xf32>
    %cst_268 = arith.constant 5.000000e-01 : f32
    %529 = vector.broadcast %cst_268 : f32 to vector<8x128xf32>
    %530 = arith.mulf %529, %528 : vector<8x128xf32>
    %531 = math.tanh %530 : vector<8x128xf32>
    %cst_269 = arith.constant 1.000000e+00 : f32
    %532 = vector.broadcast %cst_269 : f32 to vector<8x128xf32>
    %533 = arith.addf %531, %532 : vector<8x128xf32>
    %cst_270 = arith.constant 5.000000e-01 : f32
    %534 = vector.broadcast %cst_270 : f32 to vector<8x128xf32>
    %535 = arith.mulf %534, %533 : vector<8x128xf32>
    %536 = vector.extract_strided_slice %486 {offsets = [0, 256], sizes = [8, 128], strides = [1, 1]} : vector<8x512xf32> to vector<8x128xf32>
    %537 = math.tanh %536 : vector<8x128xf32>
    %538 = vector.extract_strided_slice %486 {offsets = [0, 384], sizes = [8, 128], strides = [1, 1]} : vector<8x512xf32> to vector<8x128xf32>
    %cst_271 = arith.constant 5.000000e-01 : f32
    %539 = vector.broadcast %cst_271 : f32 to vector<8x128xf32>
    %540 = arith.mulf %539, %538 : vector<8x128xf32>
    %541 = math.tanh %540 : vector<8x128xf32>
    %cst_272 = arith.constant 1.000000e+00 : f32
    %542 = vector.broadcast %cst_272 : f32 to vector<8x128xf32>
    %543 = arith.addf %541, %542 : vector<8x128xf32>
    %cst_273 = arith.constant 5.000000e-01 : f32
    %544 = vector.broadcast %cst_273 : f32 to vector<8x128xf32>
    %545 = arith.mulf %544, %543 : vector<8x128xf32>
    %546 = arith.mulf %535, %519 : vector<8x128xf32>
    %547 = arith.mulf %527, %537 : vector<8x128xf32>
    %548 = arith.addf %546, %547 : vector<8x128xf32>
    %549 = math.tanh %548 : vector<8x128xf32>
    %550 = arith.mulf %545, %549 : vector<8x128xf32>
    %551 = arith.truncf %518 : vector<8x128xf32> to vector<8x128xbf16>
    %c0_274 = arith.constant 0 : index
    %c0_275 = arith.constant 0 : index
    %552 = vector.load %arg6[%c0_274, %c0_275] : memref<8x128xbf16, #tpu.memory_space<vmem>>, vector<8x128xbf16>
    tpu.vector_store %arg6[%c0_274, %c0_275], %551 {strides = array<i32>} : memref<8x128xbf16, #tpu.memory_space<vmem>>, vector<8x128xbf16>,
    %c0_276 = arith.constant 0 : index
    %c0_277 = arith.constant 0 : index
    %553 = vector.load %arg7[%c0_276, %c0_277] : memref<8x128xf32, #tpu.memory_space<vmem>>, vector<8x128xf32>
    tpu.vector_store %arg7[%c0_276, %c0_277], %516 {strides = array<i32>} : memref<8x128xf32, #tpu.memory_space<vmem>>, vector<8x128xf32>,
    %554 = arith.truncf %550 : vector<8x128xf32> to vector<8x128xbf16>
    %c0_278 = arith.constant 0 : index
    %c0_279 = arith.constant 0 : index
    %555 = vector.load %arg8[%c0_278, %c0_279] : memref<8x128xbf16, #tpu.memory_space<vmem>>, vector<8x128xbf16>
    tpu.vector_store %arg8[%c0_278, %c0_279], %554 {strides = array<i32>} : memref<8x128xbf16, #tpu.memory_space<vmem>>, vector<8x128xbf16>,
    %c0_280 = arith.constant 0 : index
    %c0_281 = arith.constant 0 : index
    %556 = vector.load %arg9[%c0_280, %c0_281] : memref<8x128xf32, #tpu.memory_space<vmem>>, vector<8x128xf32>
    tpu.vector_store %arg9[%c0_280, %c0_281], %548 {strides = array<i32>} : memref<8x128xf32, #tpu.memory_space<vmem>>, vector<8x128xf32>,
    %557 = arith.index_cast %c5_i32 : i32 to index
    %c0_282 = arith.constant 0 : index
    %c0_283 = arith.constant 0 : index
    %558 = vector.load %arg4[%557, %c0_282, %c0_283] : memref<8x8x128xf32, #tpu.memory_space<vmem>>, vector<1x8x128xf32>
    %559 = vector.shape_cast %558 : vector<1x8x128xf32> to vector<8x128xf32>
    %560 = vector.shape_cast %518 : vector<8x128xf32> to vector<1x8x128xf32>
    tpu.vector_store %arg4[%557, %c0_282, %c0_283], %560 {strides = array<i32>} : memref<8x8x128xf32, #tpu.memory_space<vmem>>, vector<1x8x128xf32>,
    %561 = arith.index_cast %472 : i32 to index
    %c0_284 = arith.constant 0 : index
    %c0_285 = arith.constant 0 : index
    %562 = vector.load %arg5[%561, %c0_284, %c0_285] : memref<8x8x128xf32, #tpu.memory_space<vmem>>, vector<1x8x128xf32>
    %563 = vector.shape_cast %562 : vector<1x8x128xf32> to vector<8x128xf32>
    %564 = vector.shape_cast %550 : vector<8x128xf32> to vector<1x8x128xf32>
    tpu.vector_store %arg5[%561, %c0_284, %c0_285], %564 {strides = array<i32>} : memref<8x8x128xf32, #tpu.memory_space<vmem>>, vector<1x8x128xf32>,
    %c6_i32 = arith.constant 6 : i32
    %c7_i32_286 = arith.constant 7 : i32
    %565 = arith.subi %c7_i32_286, %c6_i32 : i32
    %c0_287 = arith.constant 0 : index
    %566 = arith.index_cast %c6_i32 : i32 to index
    %c0_288 = arith.constant 0 : index
    %c0_289 = arith.constant 0 : index
    %567 = vector.load %arg1[%c0_287, %566, %c0_288, %c0_289] : memref<1x8x8x512xbf16, #tpu.memory_space<vmem>>, vector<1x1x8x512xbf16>
    %568 = vector.shape_cast %567 : vector<1x1x8x512xbf16> to vector<8x512xbf16>
    %569 = arith.extf %568 : vector<8x512xbf16> to vector<8x512xf32>
    %c0_290 = arith.constant 0 : index
    %c0_291 = arith.constant 0 : index
    %570 = vector.load %arg6[%c0_290, %c0_291] : memref<8x128xbf16, #tpu.memory_space<vmem>>, vector<8x128xbf16>
    %cst_292 = arith.constant dense<0.000000e+00> : vector<8x512xf32>
    %571 = tpu.matmul %570, %4, %cst_292 {dimension_numbers = #tpu.dot_dimension_numbers<[1], [0], [0], [1], [0, 0, 1, 1], [], []>} : vector<8x128xbf16>, vector<128x512xbf16>, vector<8x512xf32> -> vector<8x512xf32>
    %572 = arith.addf %569, %571 : vector<8x512xf32>
    %c0_293 = arith.constant 0 : index
    %573 = arith.index_cast %565 : i32 to index
    %c0_294 = arith.constant 0 : index
    %c0_295 = arith.constant 0 : index
    %574 = vector.load %arg2[%c0_293, %573, %c0_294, %c0_295] : memref<1x8x8x512xbf16, #tpu.memory_space<vmem>>, vector<1x1x8x512xbf16>
    %575 = vector.shape_cast %574 : vector<1x1x8x512xbf16> to vector<8x512xbf16>
    %576 = arith.extf %575 : vector<8x512xbf16> to vector<8x512xf32>
    %c0_296 = arith.constant 0 : index
    %c0_297 = arith.constant 0 : index
    %577 = vector.load %arg8[%c0_296, %c0_297] : memref<8x128xbf16, #tpu.memory_space<vmem>>, vector<8x128xbf16>
    %cst_298 = arith.constant dense<0.000000e+00> : vector<8x512xf32>
    %578 = tpu.matmul %577, %6, %cst_298 {dimension_numbers = #tpu.dot_dimension_numbers<[1], [0], [0], [1], [0, 0, 1, 1], [], []>} : vector<8x128xbf16>, vector<128x512xbf16>, vector<8x512xf32> -> vector<8x512xf32>
    %579 = arith.addf %576, %578 : vector<8x512xf32>
    %c0_299 = arith.constant 0 : index
    %c0_300 = arith.constant 0 : index
    %580 = vector.load %arg7[%c0_299, %c0_300] : memref<8x128xf32, #tpu.memory_space<vmem>>, vector<8x128xf32>
    %581 = vector.extract_strided_slice %572 {offsets = [0, 0], sizes = [8, 128], strides = [1, 1]} : vector<8x512xf32> to vector<8x128xf32>
    %cst_301 = arith.constant 5.000000e-01 : f32
    %582 = vector.broadcast %cst_301 : f32 to vector<8x128xf32>
    %583 = arith.mulf %582, %581 : vector<8x128xf32>
    %584 = math.tanh %583 : vector<8x128xf32>
    %cst_302 = arith.constant 1.000000e+00 : f32
    %585 = vector.broadcast %cst_302 : f32 to vector<8x128xf32>
    %586 = arith.addf %584, %585 : vector<8x128xf32>
    %cst_303 = arith.constant 5.000000e-01 : f32
    %587 = vector.broadcast %cst_303 : f32 to vector<8x128xf32>
    %588 = arith.mulf %587, %586 : vector<8x128xf32>
    %589 = vector.extract_strided_slice %572 {offsets = [0, 128], sizes = [8, 128], strides = [1, 1]} : vector<8x512xf32> to vector<8x128xf32>
    %cst_304 = arith.constant 5.000000e-01 : f32
    %590 = vector.broadcast %cst_304 : f32 to vector<8x128xf32>
    %591 = arith.mulf %590, %589 : vector<8x128xf32>
    %592 = math.tanh %591 : vector<8x128xf32>
    %cst_305 = arith.constant 1.000000e+00 : f32
    %593 = vector.broadcast %cst_305 : f32 to vector<8x128xf32>
    %594 = arith.addf %592, %593 : vector<8x128xf32>
    %cst_306 = arith.constant 5.000000e-01 : f32
    %595 = vector.broadcast %cst_306 : f32 to vector<8x128xf32>
    %596 = arith.mulf %595, %594 : vector<8x128xf32>
    %597 = vector.extract_strided_slice %572 {offsets = [0, 256], sizes = [8, 128], strides = [1, 1]} : vector<8x512xf32> to vector<8x128xf32>
    %598 = math.tanh %597 : vector<8x128xf32>
    %599 = vector.extract_strided_slice %572 {offsets = [0, 384], sizes = [8, 128], strides = [1, 1]} : vector<8x512xf32> to vector<8x128xf32>
    %cst_307 = arith.constant 5.000000e-01 : f32
    %600 = vector.broadcast %cst_307 : f32 to vector<8x128xf32>
    %601 = arith.mulf %600, %599 : vector<8x128xf32>
    %602 = math.tanh %601 : vector<8x128xf32>
    %cst_308 = arith.constant 1.000000e+00 : f32
    %603 = vector.broadcast %cst_308 : f32 to vector<8x128xf32>
    %604 = arith.addf %602, %603 : vector<8x128xf32>
    %cst_309 = arith.constant 5.000000e-01 : f32
    %605 = vector.broadcast %cst_309 : f32 to vector<8x128xf32>
    %606 = arith.mulf %605, %604 : vector<8x128xf32>
    %607 = arith.mulf %596, %580 : vector<8x128xf32>
    %608 = arith.mulf %588, %598 : vector<8x128xf32>
    %609 = arith.addf %607, %608 : vector<8x128xf32>
    %610 = math.tanh %609 : vector<8x128xf32>
    %611 = arith.mulf %606, %610 : vector<8x128xf32>
    %c0_310 = arith.constant 0 : index
    %c0_311 = arith.constant 0 : index
    %612 = vector.load %arg9[%c0_310, %c0_311] : memref<8x128xf32, #tpu.memory_space<vmem>>, vector<8x128xf32>
    %613 = vector.extract_strided_slice %579 {offsets = [0, 0], sizes = [8, 128], strides = [1, 1]} : vector<8x512xf32> to vector<8x128xf32>
    %cst_312 = arith.constant 5.000000e-01 : f32
    %614 = vector.broadcast %cst_312 : f32 to vector<8x128xf32>
    %615 = arith.mulf %614, %613 : vector<8x128xf32>
    %616 = math.tanh %615 : vector<8x128xf32>
    %cst_313 = arith.constant 1.000000e+00 : f32
    %617 = vector.broadcast %cst_313 : f32 to vector<8x128xf32>
    %618 = arith.addf %616, %617 : vector<8x128xf32>
    %cst_314 = arith.constant 5.000000e-01 : f32
    %619 = vector.broadcast %cst_314 : f32 to vector<8x128xf32>
    %620 = arith.mulf %619, %618 : vector<8x128xf32>
    %621 = vector.extract_strided_slice %579 {offsets = [0, 128], sizes = [8, 128], strides = [1, 1]} : vector<8x512xf32> to vector<8x128xf32>
    %cst_315 = arith.constant 5.000000e-01 : f32
    %622 = vector.broadcast %cst_315 : f32 to vector<8x128xf32>
    %623 = arith.mulf %622, %621 : vector<8x128xf32>
    %624 = math.tanh %623 : vector<8x128xf32>
    %cst_316 = arith.constant 1.000000e+00 : f32
    %625 = vector.broadcast %cst_316 : f32 to vector<8x128xf32>
    %626 = arith.addf %624, %625 : vector<8x128xf32>
    %cst_317 = arith.constant 5.000000e-01 : f32
    %627 = vector.broadcast %cst_317 : f32 to vector<8x128xf32>
    %628 = arith.mulf %627, %626 : vector<8x128xf32>
    %629 = vector.extract_strided_slice %579 {offsets = [0, 256], sizes = [8, 128], strides = [1, 1]} : vector<8x512xf32> to vector<8x128xf32>
    %630 = math.tanh %629 : vector<8x128xf32>
    %631 = vector.extract_strided_slice %579 {offsets = [0, 384], sizes = [8, 128], strides = [1, 1]} : vector<8x512xf32> to vector<8x128xf32>
    %cst_318 = arith.constant 5.000000e-01 : f32
    %632 = vector.broadcast %cst_318 : f32 to vector<8x128xf32>
    %633 = arith.mulf %632, %631 : vector<8x128xf32>
    %634 = math.tanh %633 : vector<8x128xf32>
    %cst_319 = arith.constant 1.000000e+00 : f32
    %635 = vector.broadcast %cst_319 : f32 to vector<8x128xf32>
    %636 = arith.addf %634, %635 : vector<8x128xf32>
    %cst_320 = arith.constant 5.000000e-01 : f32
    %637 = vector.broadcast %cst_320 : f32 to vector<8x128xf32>
    %638 = arith.mulf %637, %636 : vector<8x128xf32>
    %639 = arith.mulf %628, %612 : vector<8x128xf32>
    %640 = arith.mulf %620, %630 : vector<8x128xf32>
    %641 = arith.addf %639, %640 : vector<8x128xf32>
    %642 = math.tanh %641 : vector<8x128xf32>
    %643 = arith.mulf %638, %642 : vector<8x128xf32>
    %644 = arith.truncf %611 : vector<8x128xf32> to vector<8x128xbf16>
    %c0_321 = arith.constant 0 : index
    %c0_322 = arith.constant 0 : index
    %645 = vector.load %arg6[%c0_321, %c0_322] : memref<8x128xbf16, #tpu.memory_space<vmem>>, vector<8x128xbf16>
    tpu.vector_store %arg6[%c0_321, %c0_322], %644 {strides = array<i32>} : memref<8x128xbf16, #tpu.memory_space<vmem>>, vector<8x128xbf16>,
    %c0_323 = arith.constant 0 : index
    %c0_324 = arith.constant 0 : index
    %646 = vector.load %arg7[%c0_323, %c0_324] : memref<8x128xf32, #tpu.memory_space<vmem>>, vector<8x128xf32>
    tpu.vector_store %arg7[%c0_323, %c0_324], %609 {strides = array<i32>} : memref<8x128xf32, #tpu.memory_space<vmem>>, vector<8x128xf32>,
    %647 = arith.truncf %643 : vector<8x128xf32> to vector<8x128xbf16>
    %c0_325 = arith.constant 0 : index
    %c0_326 = arith.constant 0 : index
    %648 = vector.load %arg8[%c0_325, %c0_326] : memref<8x128xbf16, #tpu.memory_space<vmem>>, vector<8x128xbf16>
    tpu.vector_store %arg8[%c0_325, %c0_326], %647 {strides = array<i32>} : memref<8x128xbf16, #tpu.memory_space<vmem>>, vector<8x128xbf16>,
    %c0_327 = arith.constant 0 : index
    %c0_328 = arith.constant 0 : index
    %649 = vector.load %arg9[%c0_327, %c0_328] : memref<8x128xf32, #tpu.memory_space<vmem>>, vector<8x128xf32>
    tpu.vector_store %arg9[%c0_327, %c0_328], %641 {strides = array<i32>} : memref<8x128xf32, #tpu.memory_space<vmem>>, vector<8x128xf32>,
    %650 = arith.index_cast %c6_i32 : i32 to index
    %c0_329 = arith.constant 0 : index
    %c0_330 = arith.constant 0 : index
    %651 = vector.load %arg4[%650, %c0_329, %c0_330] : memref<8x8x128xf32, #tpu.memory_space<vmem>>, vector<1x8x128xf32>
    %652 = vector.shape_cast %651 : vector<1x8x128xf32> to vector<8x128xf32>
    %653 = vector.shape_cast %611 : vector<8x128xf32> to vector<1x8x128xf32>
    tpu.vector_store %arg4[%650, %c0_329, %c0_330], %653 {strides = array<i32>} : memref<8x8x128xf32, #tpu.memory_space<vmem>>, vector<1x8x128xf32>,
    %654 = arith.index_cast %565 : i32 to index
    %c0_331 = arith.constant 0 : index
    %c0_332 = arith.constant 0 : index
    %655 = vector.load %arg5[%654, %c0_331, %c0_332] : memref<8x8x128xf32, #tpu.memory_space<vmem>>, vector<1x8x128xf32>
    %656 = vector.shape_cast %655 : vector<1x8x128xf32> to vector<8x128xf32>
    %657 = vector.shape_cast %643 : vector<8x128xf32> to vector<1x8x128xf32>
    tpu.vector_store %arg5[%654, %c0_331, %c0_332], %657 {strides = array<i32>} : memref<8x8x128xf32, #tpu.memory_space<vmem>>, vector<1x8x128xf32>,
    %c7_i32_333 = arith.constant 7 : i32
    %c7_i32_334 = arith.constant 7 : i32
    %658 = arith.subi %c7_i32_334, %c7_i32_333 : i32
    %c0_335 = arith.constant 0 : index
    %659 = arith.index_cast %c7_i32_333 : i32 to index
    %c0_336 = arith.constant 0 : index
    %c0_337 = arith.constant 0 : index
    %660 = vector.load %arg1[%c0_335, %659, %c0_336, %c0_337] : memref<1x8x8x512xbf16, #tpu.memory_space<vmem>>, vector<1x1x8x512xbf16>
    %661 = vector.shape_cast %660 : vector<1x1x8x512xbf16> to vector<8x512xbf16>
    %662 = arith.extf %661 : vector<8x512xbf16> to vector<8x512xf32>
    %c0_338 = arith.constant 0 : index
    %c0_339 = arith.constant 0 : index
    %663 = vector.load %arg6[%c0_338, %c0_339] : memref<8x128xbf16, #tpu.memory_space<vmem>>, vector<8x128xbf16>
    %cst_340 = arith.constant dense<0.000000e+00> : vector<8x512xf32>
    %664 = tpu.matmul %663, %4, %cst_340 {dimension_numbers = #tpu.dot_dimension_numbers<[1], [0], [0], [1], [0, 0, 1, 1], [], []>} : vector<8x128xbf16>, vector<128x512xbf16>, vector<8x512xf32> -> vector<8x512xf32>
    %665 = arith.addf %662, %664 : vector<8x512xf32>
    %c0_341 = arith.constant 0 : index
    %666 = arith.index_cast %658 : i32 to index
    %c0_342 = arith.constant 0 : index
    %c0_343 = arith.constant 0 : index
    %667 = vector.load %arg2[%c0_341, %666, %c0_342, %c0_343] : memref<1x8x8x512xbf16, #tpu.memory_space<vmem>>, vector<1x1x8x512xbf16>
    %668 = vector.shape_cast %667 : vector<1x1x8x512xbf16> to vector<8x512xbf16>
    %669 = arith.extf %668 : vector<8x512xbf16> to vector<8x512xf32>
    %c0_344 = arith.constant 0 : index
    %c0_345 = arith.constant 0 : index
    %670 = vector.load %arg8[%c0_344, %c0_345] : memref<8x128xbf16, #tpu.memory_space<vmem>>, vector<8x128xbf16>
    %cst_346 = arith.constant dense<0.000000e+00> : vector<8x512xf32>
    %671 = tpu.matmul %670, %6, %cst_346 {dimension_numbers = #tpu.dot_dimension_numbers<[1], [0], [0], [1], [0, 0, 1, 1], [], []>} : vector<8x128xbf16>, vector<128x512xbf16>, vector<8x512xf32> -> vector<8x512xf32>
    %672 = arith.addf %669, %671 : vector<8x512xf32>
    %c0_347 = arith.constant 0 : index
    %c0_348 = arith.constant 0 : index
    %673 = vector.load %arg7[%c0_347, %c0_348] : memref<8x128xf32, #tpu.memory_space<vmem>>, vector<8x128xf32>
    %674 = vector.extract_strided_slice %665 {offsets = [0, 0], sizes = [8, 128], strides = [1, 1]} : vector<8x512xf32> to vector<8x128xf32>
    %cst_349 = arith.constant 5.000000e-01 : f32
    %675 = vector.broadcast %cst_349 : f32 to vector<8x128xf32>
    %676 = arith.mulf %675, %674 : vector<8x128xf32>
    %677 = math.tanh %676 : vector<8x128xf32>
    %cst_350 = arith.constant 1.000000e+00 : f32
    %678 = vector.broadcast %cst_350 : f32 to vector<8x128xf32>
    %679 = arith.addf %677, %678 : vector<8x128xf32>
    %cst_351 = arith.constant 5.000000e-01 : f32
    %680 = vector.broadcast %cst_351 : f32 to vector<8x128xf32>
    %681 = arith.mulf %680, %679 : vector<8x128xf32>
    %682 = vector.extract_strided_slice %665 {offsets = [0, 128], sizes = [8, 128], strides = [1, 1]} : vector<8x512xf32> to vector<8x128xf32>
    %cst_352 = arith.constant 5.000000e-01 : f32
    %683 = vector.broadcast %cst_352 : f32 to vector<8x128xf32>
    %684 = arith.mulf %683, %682 : vector<8x128xf32>
    %685 = math.tanh %684 : vector<8x128xf32>
    %cst_353 = arith.constant 1.000000e+00 : f32
    %686 = vector.broadcast %cst_353 : f32 to vector<8x128xf32>
    %687 = arith.addf %685, %686 : vector<8x128xf32>
    %cst_354 = arith.constant 5.000000e-01 : f32
    %688 = vector.broadcast %cst_354 : f32 to vector<8x128xf32>
    %689 = arith.mulf %688, %687 : vector<8x128xf32>
    %690 = vector.extract_strided_slice %665 {offsets = [0, 256], sizes = [8, 128], strides = [1, 1]} : vector<8x512xf32> to vector<8x128xf32>
    %691 = math.tanh %690 : vector<8x128xf32>
    %692 = vector.extract_strided_slice %665 {offsets = [0, 384], sizes = [8, 128], strides = [1, 1]} : vector<8x512xf32> to vector<8x128xf32>
    %cst_355 = arith.constant 5.000000e-01 : f32
    %693 = vector.broadcast %cst_355 : f32 to vector<8x128xf32>
    %694 = arith.mulf %693, %692 : vector<8x128xf32>
    %695 = math.tanh %694 : vector<8x128xf32>
    %cst_356 = arith.constant 1.000000e+00 : f32
    %696 = vector.broadcast %cst_356 : f32 to vector<8x128xf32>
    %697 = arith.addf %695, %696 : vector<8x128xf32>
    %cst_357 = arith.constant 5.000000e-01 : f32
    %698 = vector.broadcast %cst_357 : f32 to vector<8x128xf32>
    %699 = arith.mulf %698, %697 : vector<8x128xf32>
    %700 = arith.mulf %689, %673 : vector<8x128xf32>
    %701 = arith.mulf %681, %691 : vector<8x128xf32>
    %702 = arith.addf %700, %701 : vector<8x128xf32>
    %703 = math.tanh %702 : vector<8x128xf32>
    %704 = arith.mulf %699, %703 : vector<8x128xf32>
    %c0_358 = arith.constant 0 : index
    %c0_359 = arith.constant 0 : index
    %705 = vector.load %arg9[%c0_358, %c0_359] : memref<8x128xf32, #tpu.memory_space<vmem>>, vector<8x128xf32>
    %706 = vector.extract_strided_slice %672 {offsets = [0, 0], sizes = [8, 128], strides = [1, 1]} : vector<8x512xf32> to vector<8x128xf32>
    %cst_360 = arith.constant 5.000000e-01 : f32
    %707 = vector.broadcast %cst_360 : f32 to vector<8x128xf32>
    %708 = arith.mulf %707, %706 : vector<8x128xf32>
    %709 = math.tanh %708 : vector<8x128xf32>
    %cst_361 = arith.constant 1.000000e+00 : f32
    %710 = vector.broadcast %cst_361 : f32 to vector<8x128xf32>
    %711 = arith.addf %709, %710 : vector<8x128xf32>
    %cst_362 = arith.constant 5.000000e-01 : f32
    %712 = vector.broadcast %cst_362 : f32 to vector<8x128xf32>
    %713 = arith.mulf %712, %711 : vector<8x128xf32>
    %714 = vector.extract_strided_slice %672 {offsets = [0, 128], sizes = [8, 128], strides = [1, 1]} : vector<8x512xf32> to vector<8x128xf32>
    %cst_363 = arith.constant 5.000000e-01 : f32
    %715 = vector.broadcast %cst_363 : f32 to vector<8x128xf32>
    %716 = arith.mulf %715, %714 : vector<8x128xf32>
    %717 = math.tanh %716 : vector<8x128xf32>
    %cst_364 = arith.constant 1.000000e+00 : f32
    %718 = vector.broadcast %cst_364 : f32 to vector<8x128xf32>
    %719 = arith.addf %717, %718 : vector<8x128xf32>
    %cst_365 = arith.constant 5.000000e-01 : f32
    %720 = vector.broadcast %cst_365 : f32 to vector<8x128xf32>
    %721 = arith.mulf %720, %719 : vector<8x128xf32>
    %722 = vector.extract_strided_slice %672 {offsets = [0, 256], sizes = [8, 128], strides = [1, 1]} : vector<8x512xf32> to vector<8x128xf32>
    %723 = math.tanh %722 : vector<8x128xf32>
    %724 = vector.extract_strided_slice %672 {offsets = [0, 384], sizes = [8, 128], strides = [1, 1]} : vector<8x512xf32> to vector<8x128xf32>
    %cst_366 = arith.constant 5.000000e-01 : f32
    %725 = vector.broadcast %cst_366 : f32 to vector<8x128xf32>
    %726 = arith.mulf %725, %724 : vector<8x128xf32>
    %727 = math.tanh %726 : vector<8x128xf32>
    %cst_367 = arith.constant 1.000000e+00 : f32
    %728 = vector.broadcast %cst_367 : f32 to vector<8x128xf32>
    %729 = arith.addf %727, %728 : vector<8x128xf32>
    %cst_368 = arith.constant 5.000000e-01 : f32
    %730 = vector.broadcast %cst_368 : f32 to vector<8x128xf32>
    %731 = arith.mulf %730, %729 : vector<8x128xf32>
    %732 = arith.mulf %721, %705 : vector<8x128xf32>
    %733 = arith.mulf %713, %723 : vector<8x128xf32>
    %734 = arith.addf %732, %733 : vector<8x128xf32>
    %735 = math.tanh %734 : vector<8x128xf32>
    %736 = arith.mulf %731, %735 : vector<8x128xf32>
    %737 = arith.truncf %704 : vector<8x128xf32> to vector<8x128xbf16>
    %c0_369 = arith.constant 0 : index
    %c0_370 = arith.constant 0 : index
    %738 = vector.load %arg6[%c0_369, %c0_370] : memref<8x128xbf16, #tpu.memory_space<vmem>>, vector<8x128xbf16>
    tpu.vector_store %arg6[%c0_369, %c0_370], %737 {strides = array<i32>} : memref<8x128xbf16, #tpu.memory_space<vmem>>, vector<8x128xbf16>,
    %c0_371 = arith.constant 0 : index
    %c0_372 = arith.constant 0 : index
    %739 = vector.load %arg7[%c0_371, %c0_372] : memref<8x128xf32, #tpu.memory_space<vmem>>, vector<8x128xf32>
    tpu.vector_store %arg7[%c0_371, %c0_372], %702 {strides = array<i32>} : memref<8x128xf32, #tpu.memory_space<vmem>>, vector<8x128xf32>,
    %740 = arith.truncf %736 : vector<8x128xf32> to vector<8x128xbf16>
    %c0_373 = arith.constant 0 : index
    %c0_374 = arith.constant 0 : index
    %741 = vector.load %arg8[%c0_373, %c0_374] : memref<8x128xbf16, #tpu.memory_space<vmem>>, vector<8x128xbf16>
    tpu.vector_store %arg8[%c0_373, %c0_374], %740 {strides = array<i32>} : memref<8x128xbf16, #tpu.memory_space<vmem>>, vector<8x128xbf16>,
    %c0_375 = arith.constant 0 : index
    %c0_376 = arith.constant 0 : index
    %742 = vector.load %arg9[%c0_375, %c0_376] : memref<8x128xf32, #tpu.memory_space<vmem>>, vector<8x128xf32>
    tpu.vector_store %arg9[%c0_375, %c0_376], %734 {strides = array<i32>} : memref<8x128xf32, #tpu.memory_space<vmem>>, vector<8x128xf32>,
    %743 = arith.index_cast %c7_i32_333 : i32 to index
    %c0_377 = arith.constant 0 : index
    %c0_378 = arith.constant 0 : index
    %744 = vector.load %arg4[%743, %c0_377, %c0_378] : memref<8x8x128xf32, #tpu.memory_space<vmem>>, vector<1x8x128xf32>
    %745 = vector.shape_cast %744 : vector<1x8x128xf32> to vector<8x128xf32>
    %746 = vector.shape_cast %704 : vector<8x128xf32> to vector<1x8x128xf32>
    tpu.vector_store %arg4[%743, %c0_377, %c0_378], %746 {strides = array<i32>} : memref<8x8x128xf32, #tpu.memory_space<vmem>>, vector<1x8x128xf32>,
    %747 = arith.index_cast %658 : i32 to index
    %c0_379 = arith.constant 0 : index
    %c0_380 = arith.constant 0 : index
    %748 = vector.load %arg5[%747, %c0_379, %c0_380] : memref<8x8x128xf32, #tpu.memory_space<vmem>>, vector<1x8x128xf32>
    %749 = vector.shape_cast %748 : vector<1x8x128xf32> to vector<8x128xf32>
    %750 = vector.shape_cast %736 : vector<8x128xf32> to vector<1x8x128xf32>
    tpu.vector_store %arg5[%747, %c0_379, %c0_380], %750 {strides = array<i32>} : memref<8x8x128xf32, #tpu.memory_space<vmem>>, vector<1x8x128xf32>,
    %c8_i32 = arith.constant 8 : i32
    return
  }
  func.func @transform_0(%arg0: i32) -> (i32, i32, i32, i32) {
    %c0_i32 = arith.constant 0 : i32
    %c0_i32_0 = arith.constant 0 : i32
    %c0_i32_1 = arith.constant 0 : i32
    %c0_i32_2 = arith.constant 0 : i32
    return %c0_i32, %arg0, %c0_i32_0, %c0_i32_1 : i32, i32, i32, i32
  }
  func.func @transform_1(%arg0: i32) -> (i32, i32, i32, i32) {
    %c1_i32 = arith.constant 1 : i32
    %0 = arith.subi %c1_i32, %arg0 : i32
    %c1_i32_0 = arith.constant 1 : i32
    %c0_i32 = arith.constant 0 : i32
    %c0_i32_1 = arith.constant 0 : i32
    %c0_i32_2 = arith.constant 0 : i32
    return %c1_i32_0, %0, %c0_i32, %c0_i32_1 : i32, i32, i32, i32
  }
  func.func @transform_2(%arg0: i32) -> (i32, i32, i32) {
    %c0_i32 = arith.constant 0 : i32
    %c0_i32_0 = arith.constant 0 : i32
    %c0_i32_1 = arith.constant 0 : i32
    %c0_i32_2 = arith.constant 0 : i32
    return %c0_i32, %c0_i32_0, %c0_i32_1 : i32, i32, i32
  }
  func.func @transform_3(%arg0: i32) -> (i32, i32, i32) {
    %c0_i32 = arith.constant 0 : i32
    %c0_i32_0 = arith.constant 0 : i32
    %c0_i32_1 = arith.constant 0 : i32
    return %arg0, %c0_i32, %c0_i32_0 : i32, i32, i32
  }
  func.func @transform_4(%arg0: i32) -> (i32, i32, i32) {
    %c1_i32 = arith.constant 1 : i32
    %0 = arith.subi %c1_i32, %arg0 : i32
    %c0_i32 = arith.constant 0 : i32
    %c0_i32_0 = arith.constant 0 : i32
    %c0_i32_1 = arith.constant 0 : i32
    return %0, %c0_i32, %c0_i32_0 : i32, i32, i32
  }
}

</mosaic_0001>

<llo_original>
// kernel: rnn_decoder_forward.3
$region0: #{rnn_decoder_forward.3}
  #allocation0 [shape = 'u32[]', space=smem, size = 0x4, offset = 0x4, fixed_abs, tag = 'smem constant byte address 0x4 - core index']
  #allocation1 [shape = 'u32[72,128]{1,0:T(1,128)}', space=vmem, size = 0x9000, scoped, tag = 'internal scratch']
  #allocation2 [shape = 'bf16[8,128]{1,0:T(8,128)(2,1)}', space=vmem, size = 0x800, scoped, tag = 'scratch operand']
  #allocation3 [shape = 'f32[8,128]{1,0:T(8,128)}', space=vmem, size = 0x1000, scoped, tag = 'scratch operand']
  #allocation4 [shape = 'bf16[8,128]{1,0:T(8,128)(2,1)}', space=vmem, size = 0x800, scoped, tag = 'scratch operand']
  #allocation5 [shape = 'f32[8,128]{1,0:T(8,128)}', space=vmem, size = 0x1000, scoped, tag = 'scratch operand']
  %s0 = inlined_call_operand.vmem [shape: bf16[2,16,8,512], index: 0, kind: input, shape index: {}, may-alias: {0,1}]
  %s1 = inlined_call_operand.vmem [shape: bf16[2,16,8,512], index: 1, kind: input, shape index: {}, may-alias: {0,1}]
  %s2 = inlined_call_operand.vmem [shape: bf16[2,128,512], index: 2, kind: input, shape index: {}]
  %s3 = inlined_call_operand.vmem [shape: f32[16,8,128], index: 3, kind: output, shape index: {0}]
  %s4 = inlined_call_operand.vmem [shape: f32[16,8,128], index: 4, kind: output, shape index: {1}]
  %5 = xla_tuple %s3, %s4
  %s6 = sld [smem:[#allocation0]]
  $region57: #{rnn_decoder_forward.3} parent=0
    _
  %s8 = ssub.s32 1, %s6
  %s9 = scalar_select 0, %s8, %s6
  loop: start=0, step=1, limit=4
  $region2: #{rnn_decoder_forward.3} parent=0 // loop_pre_header
    _
  $region3: #{rnn_decoder_forward.3} parent=0 // loop_header
    %s11 = sphi 0, %s15
    %p12 = scmp.ge.s32.totalorder %s11, 4
    %s21 = sphi 0, %s23
    %s24 = sphi 0, %s21
    %s25 = sphi 0, %s24
    %s41 = sphi 0, %s25
    %s49 = sphi 0, %s51
    %s52 = sphi 0, %s49
    %s53 = sphi 0, %s52
    %s69 = sphi 0, %s53
    %s73 = sphi 0, %s73
    %s75 = sphi 0, %s73
    %s76 = sphi 0, %s75
    %s90 = sphi 0, %s76
    %s96 = sphi 0, %s98
    %s99 = sphi 0, %s96
    %s100 = sphi 0, %s99
    %s116 = sphi 0, %s100
    %s124 = sphi 0, %s126
    %s127 = sphi 0, %s124
    %s128 = sphi 0, %s127
    %s144 = sphi 0, %s128
  $region4: #{rnn_decoder_forward.3} parent=0 // loop_header_branch
    %14 = sbr.rel (%p12) target = $region8
  $region5: #{rnn_decoder_forward.3} parent=0 // loop_body
    %s16 = ssub.s32 %s11, 1
    %s17 = ssub.s32 %s11, 2
    %s18 = sadd.s32 %s11, 1
    %s19 = ssub.s32 %s11, %s18
    %p20 = scmp.eq.s32.totalorder %s19, 0
    %s22 = sadd.s32 %s21, 1
    %s23 = scalar_select %p20, %s21, %s22
    %p26 = pneg %p20
    %p27 = scmp.eq.s32.totalorder %s11, 1
    %p28 = por %p26, %p27
    %p29 = scmp.ne.s32.totalorder %s21, %s24
    %p30 = scmp.eq.s32.totalorder %s11, 0
    %p31 = por %p29, %p30
    %p32 = scmp.ne.s32.totalorder %s21, %s24
    %p33 = scmp.eq.s32.totalorder %s16, 1
    %p34 = por %p32, %p33
    %p35 = scmp.ne.s32.totalorder %s24, %s25
    %p36 = scmp.eq.s32.totalorder %s16, 0
    %p37 = por %p35, %p36
    %p38 = scmp.ne.s32.totalorder %s24, %s25
    %p39 = scmp.eq.s32.totalorder %s17, 1
    %p40 = por %p38, %p39
    %p42 = scmp.ne.s32.totalorder %s25, %s41
    %p43 = scmp.eq.s32.totalorder %s17, 0
    %p44 = por %p42, %p43
    %s45 = ssub.s32 1, %s11
    %s46 = ssub.s32 1, %s18
    %s47 = ssub.s32 %s45, %s46
    %p48 = scmp.eq.s32.totalorder %s47, 0
    %s50 = sadd.s32 %s49, 1
    %s51 = scalar_select %p48, %s49, %s50
    %p54 = pneg %p48
    %p55 = scmp.eq.s32.totalorder %s11, 1
    %p56 = por %p54, %p55
    %p57 = scmp.ne.s32.totalorder %s49, %s52
    %p58 = scmp.eq.s32.totalorder %s11, 0
    %p59 = por %p57, %p58
    %p60 = scmp.ne.s32.totalorder %s49, %s52
    %p61 = scmp.eq.s32.totalorder %s16, 1
    %p62 = por %p60, %p61
    %p63 = scmp.ne.s32.totalorder %s52, %s53
    %p64 = scmp.eq.s32.totalorder %s16, 0
    %p65 = por %p63, %p64
    %p66 = scmp.ne.s32.totalorder %s52, %s53
    %p67 = scmp.eq.s32.totalorder %s17, 1
    %p68 = por %p66, %p67
    %p70 = scmp.ne.s32.totalorder %s53, %s69
    %p71 = scmp.eq.s32.totalorder %s17, 0
    %p72 = por %p70, %p71
    %s74 = sadd.s32 %s73, 1
    %p77 = scmp.eq.s32.totalorder %s11, 1
    %p78 = scmp.ne.s32.totalorder %s73, %s75
    %p79 = scmp.eq.s32.totalorder %s11, 0
    %p80 = por %p78, %p79
    %p81 = scmp.ne.s32.totalorder %s73, %s75
    %p82 = scmp.eq.s32.totalorder %s16, 1
    %p83 = por %p81, %p82
    %p84 = scmp.ne.s32.totalorder %s75, %s76
    %p85 = scmp.eq.s32.totalorder %s16, 0
    %p86 = por %p84, %p85
    %p87 = scmp.ne.s32.totalorder %s75, %s76
    %p88 = scmp.eq.s32.totalorder %s17, 1
    %p89 = por %p87, %p88
    %p91 = scmp.ne.s32.totalorder %s76, %s90
    %p92 = scmp.eq.s32.totalorder %s17, 0
    %p93 = por %p91, %p92
    %s94 = ssub.s32 %s11, %s18
    %p95 = scmp.eq.s32.totalorder %s94, 0
    %s97 = sadd.s32 %s96, 1
    %s98 = scalar_select %p95, %s96, %s97
    %p101 = pneg %p95
    %p102 = scmp.eq.s32.totalorder %s11, 1
    %p103 = por %p101, %p102
    %p104 = scmp.ne.s32.totalorder %s96, %s99
    %p105 = scmp.eq.s32.totalorder %s11, 0
    %p106 = por %p104, %p105
    %p107 = scmp.ne.s32.totalorder %s96, %s99
    %p108 = scmp.eq.s32.totalorder %s16, 1
    %p109 = por %p107, %p108
    %p110 = scmp.ne.s32.totalorder %s99, %s100
    %p111 = scmp.eq.s32.totalorder %s16, 0
    %p112 = por %p110, %p111
    %p113 = scmp.ne.s32.totalorder %s99, %s100
    %p114 = scmp.eq.s32.totalorder %s17, 1
    %p115 = por %p113, %p114
    %p117 = scmp.ne.s32.totalorder %s100, %s116
    %p118 = scmp.eq.s32.totalorder %s17, 0
    %p119 = por %p117, %p118
    %s120 = ssub.s32 1, %s11
    %s121 = ssub.s32 1, %s18
    %s122 = ssub.s32 %s120, %s121
    %p123 = scmp.eq.s32.totalorder %s122, 0
    %s125 = sadd.s32 %s124, 1
    %s126 = scalar_select %p123, %s124, %s125
    %p129 = pneg %p123
    %p130 = scmp.eq.s32.totalorder %s11, 1
    %p131 = por %p129, %p130
    %p132 = scmp.ne.s32.totalorder %s124, %s127
    %p133 = scmp.eq.s32.totalorder %s11, 0
    %p134 = por %p132, %p133
    %p135 = scmp.ne.s32.totalorder %s124, %s127
    %p136 = scmp.eq.s32.totalorder %s16, 1
    %p137 = por %p135, %p136
    %p138 = scmp.ne.s32.totalorder %s127, %s128
    %p139 = scmp.eq.s32.totalorder %s16, 0
    %p140 = por %p138, %p139
    %p141 = scmp.ne.s32.totalorder %s127, %s128
    %p142 = scmp.eq.s32.totalorder %s17, 1
    %p143 = por %p141, %p142
    %p145 = scmp.ne.s32.totalorder %s128, %s144
    %p146 = scmp.eq.s32.totalorder %s17, 0
    %p147 = por %p145, %p146
    %p148 = scmp.le.s32.totalorder 1, %s11
    %p149 = scmp.lt.s32.totalorder %s11, 3
    %p150 = pnand %p148, %p149
    %p151 = pneg %p150
    // Predicated region
    $region9: #{rnn_decoder_forward.3} parent=5 // pred_check
      _
    $region10: #{rnn_decoder_forward.3} parent=5 // pred_check_branch
      %153 = sbr.rel (%p150) target = $region12
    $region11: #{rnn_decoder_forward.3} parent=5 // pred_region
      %s154 = ssub.s32 %s11, 1
      // Predicated region
      $region13: #{rnn_decoder_forward.3} parent=11 // pred_check
        %p155 = pneg %p86
      $region14: #{rnn_decoder_forward.3} parent=11 // pred_check_branch
        %157 = sbr.rel (%p155) target = $region16
      $region15: #{rnn_decoder_forward.3} parent=11 // pred_region
        _
      $region16: #{rnn_decoder_forward.3} parent=11 // pred_fallthru
        _
    $region12: #{rnn_decoder_forward.3} parent=5 // pred_fallthru
      _
    %p158 = scmp.lt.s32.totalorder %s11, 2
    // Predicated region
    $region17: #{rnn_decoder_forward.3} parent=5 // pred_check
      %p159 = pneg %p158
    $region18: #{rnn_decoder_forward.3} parent=5 // pred_check_branch
      %161 = sbr.rel (%p159) target = $region20
    $region19: #{rnn_decoder_forward.3} parent=5 // pred_region
      // Predicated region
      $region21: #{rnn_decoder_forward.3} parent=19 // pred_check
        %p162 = pneg %p31
      $region22: #{rnn_decoder_forward.3} parent=19 // pred_check_branch
        %164 = sbr.rel (%p162) target = $region24
      $region23: #{rnn_decoder_forward.3} parent=19 // pred_region
        %s165 = smul.u32 8, %s11
        %p166 = scmp.lt.s32.totalorder %s165, 15
        %s167 = scalar_select %p166, %s165, 15
        %s168 = smul.addr %s167, 4
        %s169 = smul.addr %s168, 4
        %s170 = scalar_lea.vmem %s0, %s169
        %s171 = smul.u32 8, %s11
      $region24: #{rnn_decoder_forward.3} parent=19 // pred_fallthru
        _
      // Predicated region
      $region25: #{rnn_decoder_forward.3} parent=19 // pred_check
        %p172 = pneg %p59
      $region26: #{rnn_decoder_forward.3} parent=19 // pred_check_branch
        %174 = sbr.rel (%p172) target = $region28
      $region27: #{rnn_decoder_forward.3} parent=19 // pred_region
        %s175 = ssub.s32 1, %s11
        %s176 = smul.u32 8, %s175
        %p177 = scmp.lt.s32.totalorder %s176, 15
        %s178 = scalar_select %p177, %s176, 15
        %s179 = smul.addr %s178, 4
        %s180 = sadd.s32 %s179, 64
        %s181 = smul.addr %s180, 4
        %s182 = scalar_lea.vmem %s1, %s181
        %s183 = ssub.s32 1, %s11
        %s184 = smul.u32 8, %s183
      $region28: #{rnn_decoder_forward.3} parent=19 // pred_fallthru
        _
    $region20: #{rnn_decoder_forward.3} parent=5 // pred_fallthru
      _
    %p185 = scmp.le.s32.totalorder 1, %s11
    %p186 = scmp.lt.s32.totalorder %s11, 3
    %p187 = pnand %p185, %p186
    %p188 = pneg %p187
    // Predicated region
    $region29: #{rnn_decoder_forward.3} parent=5 // pred_check
      _
    $region30: #{rnn_decoder_forward.3} parent=5 // pred_check_branch
      %190 = sbr.rel (%p187) target = $region32
    $region31: #{rnn_decoder_forward.3} parent=5 // pred_region
      %s191 = ssub.s32 %s11, 1
      %s192 = smul.u32 8, %s16
      %p193 = scmp.lt.s32.totalorder %s192, 15
      %s194 = scalar_select %p193, %s192, 15
      %s195 = smul.addr %s194, 4
      %s196 = smul.addr %s195, 4
      %s197 = scalar_lea.vmem %s0, %s196
      %p198 = pneg %p37
      %p199 = pneg %p34
      %s200 = ssub.s32 1, %s16
      %s201 = smul.u32 8, %s200
      %p202 = scmp.lt.s32.totalorder %s201, 15
      %s203 = scalar_select %p202, %s201, 15
      %s204 = smul.addr %s203, 4
      %s205 = sadd.s32 %s204, 64
      %s206 = smul.addr %s205, 4
      %s207 = scalar_lea.vmem %s1, %s206
      %p208 = pneg %p65
      %p209 = pneg %p62
      %p210 = pneg %p86
      %p211 = pneg %p83
      %p212 = pneg %p112
      %p213 = pneg %p109
      %s214 = smul.u32 8, %s16
      %p215 = scmp.lt.s32.totalorder %s214, 15
      %s216 = scalar_select %p215, %s214, 15
      %s217 = smul.addr %s216, 8
      %s218 = scalar_lea.vmem %s3, %s217
      %p219 = pneg %p140
      %p220 = pneg %p137
      %s221 = ssub.s32 1, %s16
      %s222 = smul.u32 8, %s221
      %p223 = scmp.lt.s32.totalorder %s222, 15
      %s224 = scalar_select %p223, %s222, 15
      %s225 = smul.addr %s224, 8
      %s226 = scalar_lea.vmem %s4, %s225
      %s227 = smul.u32 8, %s16
      %p228 = scmp.lt.s32.totalorder %s227, 15
      %s229 = scalar_select %p228, %s227, 15
      %s230 = smul.addr %s229, 4
      %s231 = smul.addr %s230, 4
      %s232 = scalar_lea.vmem %s0, %s231
      %s233 = smul.u32 8, %s16
      %s234 = ssub.s32 1, %s16
      %s235 = smul.u32 8, %s234
      %p236 = scmp.lt.s32.totalorder %s235, 15
      %s237 = scalar_select %p236, %s235, 15
      %s238 = smul.addr %s237, 4
      %s239 = sadd.s32 %s238, 64
      %s240 = smul.addr %s239, 4
      %s241 = scalar_lea.vmem %s1, %s240
      %s242 = ssub.s32 1, %s16
      %s243 = smul.u32 8, %s242
      %s244 = smul.u32 8, %s16
      %p245 = scmp.lt.s32.totalorder %s244, 15
      %s246 = scalar_select %p245, %s244, 15
      %s247 = smul.addr %s246, 8
      %s248 = scalar_lea.vmem %s3, %s247
      %s249 = smul.u32 8, %s16
      %s250 = ssub.s32 1, %s16
      %s251 = smul.u32 8, %s250
      %p252 = scmp.lt.s32.totalorder %s251, 15
      %s253 = scalar_select %p252, %s251, 15
      %s254 = smul.addr %s253, 8
      %s255 = scalar_lea.vmem %s4, %s254
      %s256 = ssub.s32 1, %s16
      %s257 = smul.u32 8, %s256
      %p259 = scmp.eq.s32.totalorder %s16, 0
      // Predicated region
      $region33: #{rnn_decoder_forward.3} parent=31 // pred_check
        %p260 = pneg %p259
      $region34: #{rnn_decoder_forward.3} parent=31 // pred_check_branch
        %262 = sbr.rel (%p260) target = $region36
      $region35: #{rnn_decoder_forward.3} parent=31 // pred_region
        %263 = vst [vmem:[#allocation2] sm:$0xf] 0
        %264 = vst [vmem:[#allocation3] sm:$0xff] 0.0
        %265 = vst [vmem:[#allocation4] sm:$0xf] 0
        %266 = vst [vmem:[#allocation5] sm:$0xff] 0.0
      $region36: #{rnn_decoder_forward.3} parent=31 // pred_fallthru
        _
      %v267 = vld [vmem:[%s2] sm:$0xff]
      %v268 = vld [vmem:[%s2 + $0x8] sm:$0xff]
      %v269 = vld [vmem:[%s2 + $0x10] sm:$0xff]
      %v270 = vld [vmem:[%s2 + $0x18] sm:$0xff]
      %v271 = vld [vmem:[%s2 + $0x20] sm:$0xff]
      %v272 = vld [vmem:[%s2 + $0x28] sm:$0xff]
      %v273 = vld [vmem:[%s2 + $0x30] sm:$0xff]
      %v274 = vld [vmem:[%s2 + $0x38] sm:$0xff]
      %v275 = vld [vmem:[%s2 + $0x40] sm:$0xff]
      %v276 = vld [vmem:[%s2 + $0x48] sm:$0xff]
      %v277 = vld [vmem:[%s2 + $0x50] sm:$0xff]
      %v278 = vld [vmem:[%s2 + $0x58] sm:$0xff]
      %v279 = vld [vmem:[%s2 + $0x60] sm:$0xff]
      %v280 = vld [vmem:[%s2 + $0x68] sm:$0xff]
      %v281 = vld [vmem:[%s2 + $0x70] sm:$0xff]
      %v282 = vld [vmem:[%s2 + $0x78] sm:$0xff]
      %v283 = vld [vmem:[%s2 + $0x80] sm:$0xff]
      %v284 = vld [vmem:[%s2 + $0x88] sm:$0xff]
      %v285 = vld [vmem:[%s2 + $0x90] sm:$0xff]
      %v286 = vld [vmem:[%s2 + $0x98] sm:$0xff]
      %v287 = vld [vmem:[%s2 + $0xa0] sm:$0xff]
      %v288 = vld [vmem:[%s2 + $0xa8] sm:$0xff]
      %v289 = vld [vmem:[%s2 + $0xb0] sm:$0xff]
      %v290 = vld [vmem:[%s2 + $0xb8] sm:$0xff]
      %v291 = vld [vmem:[%s2 + $0xc0] sm:$0xff]
      %v292 = vld [vmem:[%s2 + $0xc8] sm:$0xff]
      %v293 = vld [vmem:[%s2 + $0xd0] sm:$0xff]
      %v294 = vld [vmem:[%s2 + $0xd8] sm:$0xff]
      %v295 = vld [vmem:[%s2 + $0xe0] sm:$0xff]
      %v296 = vld [vmem:[%s2 + $0xe8] sm:$0xff]
      %v297 = vld [vmem:[%s2 + $0xf0] sm:$0xff]
      %v298 = vld [vmem:[%s2 + $0xf8] sm:$0xff]
      %s299 = scalar_lea.vmem %s2, 256
      %v300 = vld [vmem:[%s299] sm:$0xff]
      %v301 = vld [vmem:[%s299 + $0x8] sm:$0xff]
      %v302 = vld [vmem:[%s299 + $0x10] sm:$0xff]
      %v303 = vld [vmem:[%s299 + $0x18] sm:$0xff]
      %v304 = vld [vmem:[%s299 + $0x20] sm:$0xff]
      %v305 = vld [vmem:[%s299 + $0x28] sm:$0xff]
      %v306 = vld [vmem:[%s299 + $0x30] sm:$0xff]
      %v307 = vld [vmem:[%s299 + $0x38] sm:$0xff]
      %v308 = vld [vmem:[%s299 + $0x40] sm:$0xff]
      %v309 = vld [vmem:[%s299 + $0x48] sm:$0xff]
      %v310 = vld [vmem:[%s299 + $0x50] sm:$0xff]
      %v311 = vld [vmem:[%s299 + $0x58] sm:$0xff]
      %v312 = vld [vmem:[%s299 + $0x60] sm:$0xff]
      %v313 = vld [vmem:[%s299 + $0x68] sm:$0xff]
      %v314 = vld [vmem:[%s299 + $0x70] sm:$0xff]
      %v315 = vld [vmem:[%s299 + $0x78] sm:$0xff]
      %v316 = vld [vmem:[%s299 + $0x80] sm:$0xff]
      %v317 = vld [vmem:[%s299 + $0x88] sm:$0xff]
      %v318 = vld [vmem:[%s299 + $0x90] sm:$0xff]
      %v319 = vld [vmem:[%s299 + $0x98] sm:$0xff]
      %v320 = vld [vmem:[%s299 + $0xa0] sm:$0xff]
      %v321 = vld [vmem:[%s299 + $0xa8] sm:$0xff]
      %v322 = vld [vmem:[%s299 + $0xb0] sm:$0xff]
      %v323 = vld [vmem:[%s299 + $0xb8] sm:$0xff]
      %v324 = vld [vmem:[%s299 + $0xc0] sm:$0xff]
      %v325 = vld [vmem:[%s299 + $0xc8] sm:$0xff]
      %v326 = vld [vmem:[%s299 + $0xd0] sm:$0xff]
      %v327 = vld [vmem:[%s299 + $0xd8] sm:$0xff]
      %v328 = vld [vmem:[%s299 + $0xe0] sm:$0xff]
      %v329 = vld [vmem:[%s299 + $0xe8] sm:$0xff]
      %v330 = vld [vmem:[%s299 + $0xf0] sm:$0xff]
      %v331 = vld [vmem:[%s299 + $0xf8] sm:$0xff]
      %v332 = vld [vmem:[%s232] sm:$0xff]
      %v333 = vld [vmem:[%s232 + $0x8] sm:$0xff]
      %v334 = vunpack.c.l.bf16 %v332
      %v335 = vunpack.c.h.bf16 %v332
      %v336 = vunpack.c.l.bf16 %v333
      %v337 = vunpack.c.h.bf16 %v333
      %v338 = vld [vmem:[#allocation2] sm:$0xf]
      %v371 = vunpack.c.l.b16 %v267
      %v372 = vunpack.c.h.b16 %v267
      %v373 = vunpack.c.l.b16 %v268
      %v374 = vunpack.c.h.b16 %v268
      %v375 = vunpack.c.l.b16 %v269
      %v376 = vunpack.c.h.b16 %v269
      %v377 = vunpack.c.l.b16 %v270
      %v378 = vunpack.c.h.b16 %v270
      %v379 = vunpack.c.l.b16 %v271
      %v380 = vunpack.c.h.b16 %v271
      %v381 = vunpack.c.l.b16 %v272
      %v382 = vunpack.c.h.b16 %v272
      %v383 = vunpack.c.l.b16 %v273
      %v384 = vunpack.c.h.b16 %v273
      %v385 = vunpack.c.l.b16 %v274
      %v386 = vunpack.c.h.b16 %v274
      %v387 = vunpack.c.l.b16 %v275
      %v388 = vunpack.c.h.b16 %v275
      %v389 = vunpack.c.l.b16 %v276
      %v390 = vunpack.c.h.b16 %v276
      %v391 = vunpack.c.l.b16 %v277
      %v392 = vunpack.c.h.b16 %v277
      %v393 = vunpack.c.l.b16 %v278
      %v394 = vunpack.c.h.b16 %v278
      %v395 = vunpack.c.l.b16 %v279
      %v396 = vunpack.c.h.b16 %v279
      %v397 = vunpack.c.l.b16 %v280
      %v398 = vunpack.c.h.b16 %v280
      %v399 = vunpack.c.l.b16 %v281
      %v400 = vunpack.c.h.b16 %v281
      %v401 = vunpack.c.l.b16 %v282
      %v402 = vunpack.c.h.b16 %v282
      %v403 = vunpack.c.l.b16 %v283
      %v404 = vunpack.c.h.b16 %v283
      %v405 = vunpack.c.l.b16 %v284
      %v406 = vunpack.c.h.b16 %v284
      %v407 = vunpack.c.l.b16 %v285
      %v408 = vunpack.c.h.b16 %v285
      %v409 = vunpack.c.l.b16 %v286
      %v410 = vunpack.c.h.b16 %v286
      %v411 = vunpack.c.l.b16 %v287
      %v412 = vunpack.c.h.b16 %v287
      %v413 = vunpack.c.l.b16 %v288
      %v414 = vunpack.c.h.b16 %v288
      %v415 = vunpack.c.l.b16 %v289
      %v416 = vunpack.c.h.b16 %v289
      %v417 = vunpack.c.l.b16 %v290
      %v418 = vunpack.c.h.b16 %v290
      %v419 = vunpack.c.l.b16 %v291
      %v420 = vunpack.c.h.b16 %v291
      %v421 = vunpack.c.l.b16 %v292
      %v422 = vunpack.c.h.b16 %v292
      %v423 = vunpack.c.l.b16 %v293
      %v424 = vunpack.c.h.b16 %v293
      %v425 = vunpack.c.l.b16 %v294
      %v426 = vunpack.c.h.b16 %v294
      %v427 = vunpack.c.l.b16 %v295
      %v428 = vunpack.c.h.b16 %v295
      %v429 = vunpack.c.l.b16 %v296
      %v430 = vunpack.c.h.b16 %v296
      %v431 = vunpack.c.l.b16 %v297
      %v432 = vunpack.c.h.b16 %v297
      %v433 = vunpack.c.l.b16 %v298
      %v434 = vunpack.c.h.b16 %v298
      %v435 = vpack.c.b16 %v375, %v371
      %v436 = vpack.c.b16 %v376, %v372
      %v437 = vpack.c.b16 %v377, %v373
      %v438 = vpack.c.b16 %v378, %v374
      %v439 = vpack.c.b16 %v383, %v379
      %v440 = vpack.c.b16 %v384, %v380
      %v441 = vpack.c.b16 %v385, %v381
      %v442 = vpack.c.b16 %v386, %v382
      %v443 = vpack.c.b16 %v391, %v387
      %v444 = vpack.c.b16 %v392, %v388
      %v445 = vpack.c.b16 %v393, %v389
      %v446 = vpack.c.b16 %v394, %v390
      %v447 = vpack.c.b16 %v399, %v395
      %v448 = vpack.c.b16 %v400, %v396
      %v449 = vpack.c.b16 %v401, %v397
      %v450 = vpack.c.b16 %v402, %v398
      %v451 = vpack.c.b16 %v407, %v403
      %v452 = vpack.c.b16 %v408, %v404
      %v453 = vpack.c.b16 %v409, %v405
      %v454 = vpack.c.b16 %v410, %v406
      %v455 = vpack.c.b16 %v415, %v411
      %v456 = vpack.c.b16 %v416, %v412
      %v457 = vpack.c.b16 %v417, %v413
      %v458 = vpack.c.b16 %v418, %v414
      %v459 = vpack.c.b16 %v423, %v419
      %v460 = vpack.c.b16 %v424, %v420
      %v461 = vpack.c.b16 %v425, %v421
      %v462 = vpack.c.b16 %v426, %v422
      %v463 = vpack.c.b16 %v431, %v427
      %v464 = vpack.c.b16 %v432, %v428
      %v465 = vpack.c.b16 %v433, %v429
      %v466 = vpack.c.b16 %v434, %v430
      %499 = vmatpush.bf16.msra.mxu0 %v463
      %500 = vmatpush.bf16.msra.mxu0 %v459
      %501 = vmatpush.bf16.msra.mxu0 %v455
      %502 = vmatpush.bf16.msra.mxu0 %v451
      %503 = vmatpush.bf16.msra.mxu0 %v447
      %504 = vmatpush.bf16.msra.mxu0 %v443
      %505 = vmatpush.bf16.msra.mxu0 %v439
      %506 = vmatpush.bf16.msra.mxu0 %v435
      %507 = vmatmul.bf16.gmra.mxu0 %v338
      %v508 = vpop.f32.mrf.mxu0
      %v509 = vadd.f32 0.0, %v508
      %v510 = vpop.f32.mrf.mxu0
      %511 = vdwg.mxu0
      %512 = vmatpush.bf16.msra.mxu0 %v464
      %513 = vmatpush.bf16.msra.mxu0 %v460
      %514 = vmatpush.bf16.msra.mxu0 %v456
      %515 = vmatpush.bf16.msra.mxu0 %v452
      %516 = vmatpush.bf16.msra.mxu0 %v448
      %517 = vmatpush.bf16.msra.mxu0 %v444
      %518 = vmatpush.bf16.msra.mxu0 %v440
      %519 = vmatpush.bf16.msra.mxu0 %v436
      %520 = vmatmul.bf16.gmra.mxu0 %v338
      %v521 = vpop.f32.mrf.mxu0
      %v522 = vadd.f32 0.0, %v521
      %v523 = vpop.f32.mrf.mxu0
      %524 = vdwg.mxu0
      %525 = vmatpush.bf16.msra.mxu0 %v465
      %526 = vmatpush.bf16.msra.mxu0 %v461
      %527 = vmatpush.bf16.msra.mxu0 %v457
      %528 = vmatpush.bf16.msra.mxu0 %v453
      %529 = vmatpush.bf16.msra.mxu0 %v449
      %530 = vmatpush.bf16.msra.mxu0 %v445
      %531 = vmatpush.bf16.msra.mxu0 %v441
      %532 = vmatpush.bf16.msra.mxu0 %v437
      %533 = vmatmul.bf16.gmra.mxu0 %v338
      %v534 = vpop.f32.mrf.mxu0
      %v535 = vadd.f32 0.0, %v534
      %v536 = vpop.f32.mrf.mxu0
      %537 = vdwg.mxu0
      %538 = vmatpush.bf16.msra.mxu0 %v466
      %539 = vmatpush.bf16.msra.mxu0 %v462
      %540 = vmatpush.bf16.msra.mxu0 %v458
      %541 = vmatpush.bf16.msra.mxu0 %v454
      %542 = vmatpush.bf16.msra.mxu0 %v450
      %543 = vmatpush.bf16.msra.mxu0 %v446
      %544 = vmatpush.bf16.msra.mxu0 %v442
      %545 = vmatpush.bf16.msra.mxu0 %v438
      %546 = vmatmul.bf16.gmra.mxu0 %v338
      %v547 = vpop.f32.mrf.mxu0
      %v548 = vadd.f32 0.0, %v547
      %v549 = vpop.f32.mrf.mxu0
      %550 = vdwg.mxu0
      %v551 = vadd.f32 %v334, %v509
      %v552 = vadd.f32 %v335, %v522
      %v553 = vadd.f32 %v336, %v535
      %v554 = vadd.f32 %v337, %v548
      %s555 = scalar_lea.vmem %s241, 112
      %v556 = vld [vmem:[%s555] sm:$0xff]
      %v557 = vld [vmem:[%s555 + $0x8] sm:$0xff]
      %v558 = vunpack.c.l.bf16 %v556
      %v559 = vunpack.c.h.bf16 %v556
      %v560 = vunpack.c.l.bf16 %v557
      %v561 = vunpack.c.h.bf16 %v557
      %v562 = vld [vmem:[#allocation4] sm:$0xf]
      %v595 = vunpack.c.l.b16 %v300
      %v596 = vunpack.c.h.b16 %v300
      %v597 = vunpack.c.l.b16 %v301
      %v598 = vunpack.c.h.b16 %v301
      %v599 = vunpack.c.l.b16 %v302
      %v600 = vunpack.c.h.b16 %v302
      %v601 = vunpack.c.l.b16 %v303
      %v602 = vunpack.c.h.b16 %v303
      %v603 = vunpack.c.l.b16 %v304
      %v604 = vunpack.c.h.b16 %v304
      %v605 = vunpack.c.l.b16 %v305
      %v606 = vunpack.c.h.b16 %v305
      %v607 = vunpack.c.l.b16 %v306
      %v608 = vunpack.c.h.b16 %v306
      %v609 = vunpack.c.l.b16 %v307
      %v610 = vunpack.c.h.b16 %v307
      %v611 = vunpack.c.l.b16 %v308
      %v612 = vunpack.c.h.b16 %v308
      %v613 = vunpack.c.l.b16 %v309
      %v614 = vunpack.c.h.b16 %v309
      %v615 = vunpack.c.l.b16 %v310
      %v616 = vunpack.c.h.b16 %v310
      %v617 = vunpack.c.l.b16 %v311
      %v618 = vunpack.c.h.b16 %v311
      %v619 = vunpack.c.l.b16 %v312
      %v620 = vunpack.c.h.b16 %v312
      %v621 = vunpack.c.l.b16 %v313
      %v622 = vunpack.c.h.b16 %v313
      %v623 = vunpack.c.l.b16 %v314
      %v624 = vunpack.c.h.b16 %v314
      %v625 = vunpack.c.l.b16 %v315
      %v626 = vunpack.c.h.b16 %v315
      %v627 = vunpack.c.l.b16 %v316
      %v628 = vunpack.c.h.b16 %v316
      %v629 = vunpack.c.l.b16 %v317
      %v630 = vunpack.c.h.b16 %v317
      %v631 = vunpack.c.l.b16 %v318
      %v632 = vunpack.c.h.b16 %v318
      %v633 = vunpack.c.l.b16 %v319
      %v634 = vunpack.c.h.b16 %v319
      %v635 = vunpack.c.l.b16 %v320
      %v636 = vunpack.c.h.b16 %v320
      %v637 = vunpack.c.l.b16 %v321
      %v638 = vunpack.c.h.b16 %v321
      %v639 = vunpack.c.l.b16 %v322
      %v640 = vunpack.c.h.b16 %v322
      %v641 = vunpack.c.l.b16 %v323
      %v642 = vunpack.c.h.b16 %v323
      %v643 = vunpack.c.l.b16 %v324
      %v644 = vunpack.c.h.b16 %v324
      %v645 = vunpack.c.l.b16 %v325
      %v646 = vunpack.c.h.b16 %v325
      %v647 = vunpack.c.l.b16 %v326
      %v648 = vunpack.c.h.b16 %v326
      %v649 = vunpack.c.l.b16 %v327
      %v650 = vunpack.c.h.b16 %v327
      %v651 = vunpack.c.l.b16 %v328
      %v652 = vunpack.c.h.b16 %v328
      %v653 = vunpack.c.l.b16 %v329
      %v654 = vunpack.c.h.b16 %v329
      %v655 = vunpack.c.l.b16 %v330
      %v656 = vunpack.c.h.b16 %v330
      %v657 = vunpack.c.l.b16 %v331
      %v658 = vunpack.c.h.b16 %v331
      %v659 = vpack.c.b16 %v599, %v595
      %v660 = vpack.c.b16 %v600, %v596
      %v661 = vpack.c.b16 %v601, %v597
      %v662 = vpack.c.b16 %v602, %v598
      %v663 = vpack.c.b16 %v607, %v603
      %v664 = vpack.c.b16 %v608, %v604
      %v665 = vpack.c.b16 %v609, %v605
      %v666 = vpack.c.b16 %v610, %v606
      %v667 = vpack.c.b16 %v615, %v611
      %v668 = vpack.c.b16 %v616, %v612
      %v669 = vpack.c.b16 %v617, %v613
      %v670 = vpack.c.b16 %v618, %v614
      %v671 = vpack.c.b16 %v623, %v619
      %v672 = vpack.c.b16 %v624, %v620
      %v673 = vpack.c.b16 %v625, %v621
      %v674 = vpack.c.b16 %v626, %v622
      %v675 = vpack.c.b16 %v631, %v627
      %v676 = vpack.c.b16 %v632, %v628
      %v677 = vpack.c.b16 %v633, %v629
      %v678 = vpack.c.b16 %v634, %v630
      %v679 = vpack.c.b16 %v639, %v635
      %v680 = vpack.c.b16 %v640, %v636
      %v681 = vpack.c.b16 %v641, %v637
      %v682 = vpack.c.b16 %v642, %v638
      %v683 = vpack.c.b16 %v647, %v643
      %v684 = vpack.c.b16 %v648, %v644
      %v685 = vpack.c.b16 %v649, %v645
      %v686 = vpack.c.b16 %v650, %v646
      %v687 = vpack.c.b16 %v655, %v651
      %v688 = vpack.c.b16 %v656, %v652
      %v689 = vpack.c.b16 %v657, %v653
      %v690 = vpack.c.b16 %v658, %v654
      %723 = vmatpush.bf16.msra.mxu0 %v687
      %724 = vmatpush.bf16.msra.mxu0 %v683
      %725 = vmatpush.bf16.msra.mxu0 %v679
      %726 = vmatpush.bf16.msra.mxu0 %v675
      %727 = vmatpush.bf16.msra.mxu0 %v671
      %728 = vmatpush.bf16.msra.mxu0 %v667
      %729 = vmatpush.bf16.msra.mxu0 %v663
      %730 = vmatpush.bf16.msra.mxu0 %v659
      %731 = vmatmul.bf16.gmra.mxu0 %v562
      %v732 = vpop.f32.mrf.mxu0
      %v733 = vadd.f32 0.0, %v732
      %v734 = vpop.f32.mrf.mxu0
      %735 = vdwg.mxu0
      %736 = vmatpush.bf16.msra.mxu0 %v688
      %737 = vmatpush.bf16.msra.mxu0 %v684
      %738 = vmatpush.bf16.msra.mxu0 %v680
      %739 = vmatpush.bf16.msra.mxu0 %v676
      %740 = vmatpush.bf16.msra.mxu0 %v672
      %741 = vmatpush.bf16.msra.mxu0 %v668
      %742 = vmatpush.bf16.msra.mxu0 %v664
      %743 = vmatpush.bf16.msra.mxu0 %v660
      %744 = vmatmul.bf16.gmra.mxu0 %v562
      %v745 = vpop.f32.mrf.mxu0
      %v746 = vadd.f32 0.0, %v745
      %v747 = vpop.f32.mrf.mxu0
      %748 = vdwg.mxu0
      %749 = vmatpush.bf16.msra.mxu0 %v689
      %750 = vmatpush.bf16.msra.mxu0 %v685
      %751 = vmatpush.bf16.msra.mxu0 %v681
      %752 = vmatpush.bf16.msra.mxu0 %v677
      %753 = vmatpush.bf16.msra.mxu0 %v673
      %754 = vmatpush.bf16.msra.mxu0 %v669
      %755 = vmatpush.bf16.msra.mxu0 %v665
      %756 = vmatpush.bf16.msra.mxu0 %v661
      %757 = vmatmul.bf16.gmra.mxu0 %v562
      %v758 = vpop.f32.mrf.mxu0
      %v759 = vadd.f32 0.0, %v758
      %v760 = vpop.f32.mrf.mxu0
      %761 = vdwg.mxu0
      %762 = vmatpush.bf16.msra.mxu0 %v690
      %763 = vmatpush.bf16.msra.mxu0 %v686
      %764 = vmatpush.bf16.msra.mxu0 %v682
      %765 = vmatpush.bf16.msra.mxu0 %v678
      %766 = vmatpush.bf16.msra.mxu0 %v674
      %767 = vmatpush.bf16.msra.mxu0 %v670
      %768 = vmatpush.bf16.msra.mxu0 %v666
      %769 = vmatpush.bf16.msra.mxu0 %v662
      %770 = vmatmul.bf16.gmra.mxu0 %v562
      %v771 = vpop.f32.mrf.mxu0
      %v772 = vadd.f32 0.0, %v771
      %v773 = vpop.f32.mrf.mxu0
      %774 = vdwg.mxu0
      %v775 = vadd.f32 %v558, %v733
      %v776 = vadd.f32 %v559, %v746
      %v777 = vadd.f32 %v560, %v759
      %v778 = vadd.f32 %v561, %v772
      %v779 = vld [vmem:[#allocation3] sm:$0xff]
      %v780 = vmul.f32 %v551, 0.5
      %v781 = vtanh.pop %v780
      %v782 = vadd.f32 %v781, 1.0
      %v783 = vmul.f32 %v782, 0.5
      %v784 = vmul.f32 %v552, 0.5
      %v785 = vtanh.pop %v784
      %v786 = vadd.f32 %v785, 1.0
      %v787 = vmul.f32 %v786, 0.5
      %v788 = vtanh.pop %v553
      %v789 = vmul.f32 %v554, 0.5
      %v790 = vtanh.pop %v789
      %v791 = vadd.f32 %v790, 1.0
      %v792 = vmul.f32 %v791, 0.5
      %v793 = vmul.f32 %v787, %v779
      %v794 = vmul.f32 %v783, %v788
      %v795 = vadd.f32 %v793, %v794
      %v796 = vtanh.pop %v795
      %v797 = vmul.f32 %v792, %v796
      %v798 = vld [vmem:[#allocation5] sm:$0xff]
      %v799 = vmul.f32 %v775, 0.5
      %v800 = vtanh.pop %v799
      %v801 = vadd.f32 %v800, 1.0
      %v802 = vmul.f32 %v801, 0.5
      %v803 = vmul.f32 %v776, 0.5
      %v804 = vtanh.pop %v803
      %v805 = vadd.f32 %v804, 1.0
      %v806 = vmul.f32 %v805, 0.5
      %v807 = vtanh.pop %v777
      %v808 = vmul.f32 %v778, 0.5
      %v809 = vtanh.pop %v808
      %v810 = vadd.f32 %v809, 1.0
      %v811 = vmul.f32 %v810, 0.5
      %v812 = vmul.f32 %v806, %v798
      %v813 = vmul.f32 %v802, %v807
      %v814 = vadd.f32 %v812, %v813
      %v815 = vtanh.pop %v814
      %v816 = vmul.f32 %v811, %v815
      %v817 = vpack.c.bf16 %v797, %v797
      %818 = vst [vmem:[#allocation2] sm:$0xf] %v817
      %819 = vst [vmem:[#allocation3] sm:$0xff] %v795
      %v820 = vpack.c.bf16 %v816, %v816
      %821 = vst [vmem:[#allocation4] sm:$0xf] %v820
      %822 = vst [vmem:[#allocation5] sm:$0xff] %v814
      %823 = vst [vmem:[%s248] sm:$0xff] %v797
      %s824 = scalar_lea.vmem %s255, 56
      %825 = vst [vmem:[%s824] sm:$0xff] %v816
      %s826 = scalar_lea.vmem %s232, 16
      %v827 = vld [vmem:[%s826] sm:$0xff]
      %v828 = vld [vmem:[%s826 + $0x8] sm:$0xff]
      %v829 = vunpack.c.l.bf16 %v827
      %v830 = vunpack.c.h.bf16 %v827
      %v831 = vunpack.c.l.bf16 %v828
      %v832 = vunpack.c.h.bf16 %v828
      %v833 = vld [vmem:[#allocation2] sm:$0xf]
      %834 = vmatpush.bf16.msra.mxu0 %v463
      %835 = vmatpush.bf16.msra.mxu0 %v459
      %836 = vmatpush.bf16.msra.mxu0 %v455
      %837 = vmatpush.bf16.msra.mxu0 %v451
      %838 = vmatpush.bf16.msra.mxu0 %v447
      %839 = vmatpush.bf16.msra.mxu0 %v443
      %840 = vmatpush.bf16.msra.mxu0 %v439
      %841 = vmatpush.bf16.msra.mxu0 %v435
      %842 = vmatmul.bf16.gmra.mxu0 %v833
      %v843 = vpop.f32.mrf.mxu0
      %v844 = vadd.f32 0.0, %v843
      %v845 = vpop.f32.mrf.mxu0
      %846 = vdwg.mxu0
      %847 = vmatpush.bf16.msra.mxu0 %v464
      %848 = vmatpush.bf16.msra.mxu0 %v460
      %849 = vmatpush.bf16.msra.mxu0 %v456
      %850 = vmatpush.bf16.msra.mxu0 %v452
      %851 = vmatpush.bf16.msra.mxu0 %v448
      %852 = vmatpush.bf16.msra.mxu0 %v444
      %853 = vmatpush.bf16.msra.mxu0 %v440
      %854 = vmatpush.bf16.msra.mxu0 %v436
      %855 = vmatmul.bf16.gmra.mxu0 %v833
      %v856 = vpop.f32.mrf.mxu0
      %v857 = vadd.f32 0.0, %v856
      %v858 = vpop.f32.mrf.mxu0
      %859 = vdwg.mxu0
      %860 = vmatpush.bf16.msra.mxu0 %v465
      %861 = vmatpush.bf16.msra.mxu0 %v461
      %862 = vmatpush.bf16.msra.mxu0 %v457
      %863 = vmatpush.bf16.msra.mxu0 %v453
      %864 = vmatpush.bf16.msra.mxu0 %v449
      %865 = vmatpush.bf16.msra.mxu0 %v445
      %866 = vmatpush.bf16.msra.mxu0 %v441
      %867 = vmatpush.bf16.msra.mxu0 %v437
      %868 = vmatmul.bf16.gmra.mxu0 %v833
      %v869 = vpop.f32.mrf.mxu0
      %v870 = vadd.f32 0.0, %v869
      %v871 = vpop.f32.mrf.mxu0
      %872 = vdwg.mxu0
      %873 = vmatpush.bf16.msra.mxu0 %v466
      %874 = vmatpush.bf16.msra.mxu0 %v462
      %875 = vmatpush.bf16.msra.mxu0 %v458
      %876 = vmatpush.bf16.msra.mxu0 %v454
      %877 = vmatpush.bf16.msra.mxu0 %v450
      %878 = vmatpush.bf16.msra.mxu0 %v446
      %879 = vmatpush.bf16.msra.mxu0 %v442
      %880 = vmatpush.bf16.msra.mxu0 %v438
      %881 = vmatmul.bf16.gmra.mxu0 %v833
      %v882 = vpop.f32.mrf.mxu0
      %v883 = vadd.f32 0.0, %v882
      %v884 = vpop.f32.mrf.mxu0
      %885 = vdwg.mxu0
      %v886 = vadd.f32 %v829, %v844
      %v887 = vadd.f32 %v830, %v857
      %v888 = vadd.f32 %v831, %v870
      %v889 = vadd.f32 %v832, %v883
      %s890 = scalar_lea.vmem %s241, 96
      %v891 = vld [vmem:[%s890] sm:$0xff]
      %v892 = vld [vmem:[%s890 + $0x8] sm:$0xff]
      %v893 = vunpack.c.l.bf16 %v891
      %v894 = vunpack.c.h.bf16 %v891
      %v895 = vunpack.c.l.bf16 %v892
      %v896 = vunpack.c.h.bf16 %v892
      %v897 = vld [vmem:[#allocation4] sm:$0xf]
      %898 = vmatpush.bf16.msra.mxu0 %v687
      %899 = vmatpush.bf16.msra.mxu0 %v683
      %900 = vmatpush.bf16.msra.mxu0 %v679
      %901 = vmatpush.bf16.msra.mxu0 %v675
      %902 = vmatpush.bf16.msra.mxu0 %v671
      %903 = vmatpush.bf16.msra.mxu0 %v667
      %904 = vmatpush.bf16.msra.mxu0 %v663
      %905 = vmatpush.bf16.msra.mxu0 %v659
      %906 = vmatmul.bf16.gmra.mxu0 %v897
      %v907 = vpop.f32.mrf.mxu0
      %v908 = vadd.f32 0.0, %v907
      %v909 = vpop.f32.mrf.mxu0
      %910 = vdwg.mxu0
      %911 = vmatpush.bf16.msra.mxu0 %v688
      %912 = vmatpush.bf16.msra.mxu0 %v684
      %913 = vmatpush.bf16.msra.mxu0 %v680
      %914 = vmatpush.bf16.msra.mxu0 %v676
      %915 = vmatpush.bf16.msra.mxu0 %v672
      %916 = vmatpush.bf16.msra.mxu0 %v668
      %917 = vmatpush.bf16.msra.mxu0 %v664
      %918 = vmatpush.bf16.msra.mxu0 %v660
      %919 = vmatmul.bf16.gmra.mxu0 %v897
      %v920 = vpop.f32.mrf.mxu0
      %v921 = vadd.f32 0.0, %v920
      %v922 = vpop.f32.mrf.mxu0
      %923 = vdwg.mxu0
      %924 = vmatpush.bf16.msra.mxu0 %v689
      %925 = vmatpush.bf16.msra.mxu0 %v685
      %926 = vmatpush.bf16.msra.mxu0 %v681
      %927 = vmatpush.bf16.msra.mxu0 %v677
      %928 = vmatpush.bf16.msra.mxu0 %v673
      %929 = vmatpush.bf16.msra.mxu0 %v669
      %930 = vmatpush.bf16.msra.mxu0 %v665
      %931 = vmatpush.bf16.msra.mxu0 %v661
      %932 = vmatmul.bf16.gmra.mxu0 %v897
      %v933 = vpop.f32.mrf.mxu0
      %v934 = vadd.f32 0.0, %v933
      %v935 = vpop.f32.mrf.mxu0
      %936 = vdwg.mxu0
      %937 = vmatpush.bf16.msra.mxu0 %v690
      %938 = vmatpush.bf16.msra.mxu0 %v686
      %939 = vmatpush.bf16.msra.mxu0 %v682
      %940 = vmatpush.bf16.msra.mxu0 %v678
      %941 = vmatpush.bf16.msra.mxu0 %v674
      %942 = vmatpush.bf16.msra.mxu0 %v670
      %943 = vmatpush.bf16.msra.mxu0 %v666
      %944 = vmatpush.bf16.msra.mxu0 %v662
      %945 = vmatmul.bf16.gmra.mxu0 %v897
      %v946 = vpop.f32.mrf.mxu0
      %v947 = vadd.f32 0.0, %v946
      %v948 = vpop.f32.mrf.mxu0
      %949 = vdwg.mxu0
      %v950 = vadd.f32 %v893, %v908
      %v951 = vadd.f32 %v894, %v921
      %v952 = vadd.f32 %v895, %v934
      %v953 = vadd.f32 %v896, %v947
      %v954 = vld [vmem:[#allocation3] sm:$0xff]
      %v955 = vmul.f32 %v886, 0.5
      %v956 = vtanh.pop %v955
      %v957 = vadd.f32 %v956, 1.0
      %v958 = vmul.f32 %v957, 0.5
      %v959 = vmul.f32 %v887, 0.5
      %v960 = vtanh.pop %v959
      %v961 = vadd.f32 %v960, 1.0
      %v962 = vmul.f32 %v961, 0.5
      %v963 = vtanh.pop %v888
      %v964 = vmul.f32 %v889, 0.5
      %v965 = vtanh.pop %v964
      %v966 = vadd.f32 %v965, 1.0
      %v967 = vmul.f32 %v966, 0.5
      %v968 = vmul.f32 %v962, %v954
      %v969 = vmul.f32 %v958, %v963
      %v970 = vadd.f32 %v968, %v969
      %v971 = vtanh.pop %v970
      %v972 = vmul.f32 %v967, %v971
      %v973 = vld [vmem:[#allocation5] sm:$0xff]
      %v974 = vmul.f32 %v950, 0.5
      %v975 = vtanh.pop %v974
      %v976 = vadd.f32 %v975, 1.0
      %v977 = vmul.f32 %v976, 0.5
      %v978 = vmul.f32 %v951, 0.5
      %v979 = vtanh.pop %v978
      %v980 = vadd.f32 %v979, 1.0
      %v981 = vmul.f32 %v980, 0.5
      %v982 = vtanh.pop %v952
      %v983 = vmul.f32 %v953, 0.5
      %v984 = vtanh.pop %v983
      %v985 = vadd.f32 %v984, 1.0
      %v986 = vmul.f32 %v985, 0.5
      %v987 = vmul.f32 %v981, %v973
      %v988 = vmul.f32 %v977, %v982
      %v989 = vadd.f32 %v987, %v988
      %v990 = vtanh.pop %v989
      %v991 = vmul.f32 %v986, %v990
      %v992 = vpack.c.bf16 %v972, %v972
      %993 = vst [vmem:[#allocation2] sm:$0xf] %v992
      %994 = vst [vmem:[#allocation3] sm:$0xff] %v970
      %v995 = vpack.c.bf16 %v991, %v991
      %996 = vst [vmem:[#allocation4] sm:$0xf] %v995
      %997 = vst [vmem:[#allocation5] sm:$0xff] %v989
      %s998 = scalar_lea.vmem %s248, 8
      %999 = vst [vmem:[%s998] sm:$0xff] %v972
      %s1000 = scalar_lea.vmem %s255, 48
      %1001 = vst [vmem:[%s1000] sm:$0xff] %v991
      %s1002 = scalar_lea.vmem %s232, 32
      %v1003 = vld [vmem:[%s1002] sm:$0xff]
      %v1004 = vld [vmem:[%s1002 + $0x8] sm:$0xff]
      %v1005 = vunpack.c.l.bf16 %v1003
      %v1006 = vunpack.c.h.bf16 %v1003
      %v1007 = vunpack.c.l.bf16 %v1004
      %v1008 = vunpack.c.h.bf16 %v1004
      %v1009 = vld [vmem:[#allocation2] sm:$0xf]
      %1010 = vmatpush.bf16.msra.mxu0 %v463
      %1011 = vmatpush.bf16.msra.mxu0 %v459
      %1012 = vmatpush.bf16.msra.mxu0 %v455
      %1013 = vmatpush.bf16.msra.mxu0 %v451
      %1014 = vmatpush.bf16.msra.mxu0 %v447
      %1015 = vmatpush.bf16.msra.mxu0 %v443
      %1016 = vmatpush.bf16.msra.mxu0 %v439
      %1017 = vmatpush.bf16.msra.mxu0 %v435
      %1018 = vmatmul.bf16.gmra.mxu0 %v1009
      %v1019 = vpop.f32.mrf.mxu0
      %v1020 = vadd.f32 0.0, %v1019
      %v1021 = vpop.f32.mrf.mxu0
      %1022 = vdwg.mxu0
      %1023 = vmatpush.bf16.msra.mxu0 %v464
      %1024 = vmatpush.bf16.msra.mxu0 %v460
      %1025 = vmatpush.bf16.msra.mxu0 %v456
      %1026 = vmatpush.bf16.msra.mxu0 %v452
      %1027 = vmatpush.bf16.msra.mxu0 %v448
      %1028 = vmatpush.bf16.msra.mxu0 %v444
      %1029 = vmatpush.bf16.msra.mxu0 %v440
      %1030 = vmatpush.bf16.msra.mxu0 %v436
      %1031 = vmatmul.bf16.gmra.mxu0 %v1009
      %v1032 = vpop.f32.mrf.mxu0
      %v1033 = vadd.f32 0.0, %v1032
      %v1034 = vpop.f32.mrf.mxu0
      %1035 = vdwg.mxu0
      %1036 = vmatpush.bf16.msra.mxu0 %v465
      %1037 = vmatpush.bf16.msra.mxu0 %v461
      %1038 = vmatpush.bf16.msra.mxu0 %v457
      %1039 = vmatpush.bf16.msra.mxu0 %v453
      %1040 = vmatpush.bf16.msra.mxu0 %v449
      %1041 = vmatpush.bf16.msra.mxu0 %v445
      %1042 = vmatpush.bf16.msra.mxu0 %v441
      %1043 = vmatpush.bf16.msra.mxu0 %v437
      %1044 = vmatmul.bf16.gmra.mxu0 %v1009
      %v1045 = vpop.f32.mrf.mxu0
      %v1046 = vadd.f32 0.0, %v1045
      %v1047 = vpop.f32.mrf.mxu0
      %1048 = vdwg.mxu0
      %1049 = vmatpush.bf16.msra.mxu0 %v466
      %1050 = vmatpush.bf16.msra.mxu0 %v462
      %1051 = vmatpush.bf16.msra.mxu0 %v458
      %1052 = vmatpush.bf16.msra.mxu0 %v454
      %1053 = vmatpush.bf16.msra.mxu0 %v450
      %1054 = vmatpush.bf16.msra.mxu0 %v446
      %1055 = vmatpush.bf16.msra.mxu0 %v442
      %1056 = vmatpush.bf16.msra.mxu0 %v438
      %1057 = vmatmul.bf16.gmra.mxu0 %v1009
      %v1058 = vpop.f32.mrf.mxu0
      %v1059 = vadd.f32 0.0, %v1058
      %v1060 = vpop.f32.mrf.mxu0
      %1061 = vdwg.mxu0
      %v1062 = vadd.f32 %v1005, %v1020
      %v1063 = vadd.f32 %v1006, %v1033
      %v1064 = vadd.f32 %v1007, %v1046
      %v1065 = vadd.f32 %v1008, %v1059
      %s1066 = scalar_lea.vmem %s241, 80
      %v1067 = vld [vmem:[%s1066] sm:$0xff]
      %v1068 = vld [vmem:[%s1066 + $0x8] sm:$0xff]
      %v1069 = vunpack.c.l.bf16 %v1067
      %v1070 = vunpack.c.h.bf16 %v1067
      %v1071 = vunpack.c.l.bf16 %v1068
      %v1072 = vunpack.c.h.bf16 %v1068
      %v1073 = vld [vmem:[#allocation4] sm:$0xf]
      %1074 = vmatpush.bf16.msra.mxu0 %v687
      %1075 = vmatpush.bf16.msra.mxu0 %v683
      %1076 = vmatpush.bf16.msra.mxu0 %v679
      %1077 = vmatpush.bf16.msra.mxu0 %v675
      %1078 = vmatpush.bf16.msra.mxu0 %v671
      %1079 = vmatpush.bf16.msra.mxu0 %v667
      %1080 = vmatpush.bf16.msra.mxu0 %v663
      %1081 = vmatpush.bf16.msra.mxu0 %v659
      %1082 = vmatmul.bf16.gmra.mxu0 %v1073
      %v1083 = vpop.f32.mrf.mxu0
      %v1084 = vadd.f32 0.0, %v1083
      %v1085 = vpop.f32.mrf.mxu0
      %1086 = vdwg.mxu0
      %1087 = vmatpush.bf16.msra.mxu0 %v688
      %1088 = vmatpush.bf16.msra.mxu0 %v684
      %1089 = vmatpush.bf16.msra.mxu0 %v680
      %1090 = vmatpush.bf16.msra.mxu0 %v676
      %1091 = vmatpush.bf16.msra.mxu0 %v672
      %1092 = vmatpush.bf16.msra.mxu0 %v668
      %1093 = vmatpush.bf16.msra.mxu0 %v664
      %1094 = vmatpush.bf16.msra.mxu0 %v660
      %1095 = vmatmul.bf16.gmra.mxu0 %v1073
      %v1096 = vpop.f32.mrf.mxu0
      %v1097 = vadd.f32 0.0, %v1096
      %v1098 = vpop.f32.mrf.mxu0
      %1099 = vdwg.mxu0
      %1100 = vmatpush.bf16.msra.mxu0 %v689
      %1101 = vmatpush.bf16.msra.mxu0 %v685
      %1102 = vmatpush.bf16.msra.mxu0 %v681
      %1103 = vmatpush.bf16.msra.mxu0 %v677
      %1104 = vmatpush.bf16.msra.mxu0 %v673
      %1105 = vmatpush.bf16.msra.mxu0 %v669
      %1106 = vmatpush.bf16.msra.mxu0 %v665
      %1107 = vmatpush.bf16.msra.mxu0 %v661
      %1108 = vmatmul.bf16.gmra.mxu0 %v1073
      %v1109 = vpop.f32.mrf.mxu0
      %v1110 = vadd.f32 0.0, %v1109
      %v1111 = vpop.f32.mrf.mxu0
      %1112 = vdwg.mxu0
      %1113 = vmatpush.bf16.msra.mxu0 %v690
      %1114 = vmatpush.bf16.msra.mxu0 %v686
      %1115 = vmatpush.bf16.msra.mxu0 %v682
      %1116 = vmatpush.bf16.msra.mxu0 %v678
      %1117 = vmatpush.bf16.msra.mxu0 %v674
      %1118 = vmatpush.bf16.msra.mxu0 %v670
      %1119 = vmatpush.bf16.msra.mxu0 %v666
      %1120 = vmatpush.bf16.msra.mxu0 %v662
      %1121 = vmatmul.bf16.gmra.mxu0 %v1073
      %v1122 = vpop.f32.mrf.mxu0
      %v1123 = vadd.f32 0.0, %v1122
      %v1124 = vpop.f32.mrf.mxu0
      %1125 = vdwg.mxu0
      %v1126 = vadd.f32 %v1069, %v1084
      %v1127 = vadd.f32 %v1070, %v1097
      %v1128 = vadd.f32 %v1071, %v1110
      %v1129 = vadd.f32 %v1072, %v1123
      %v1130 = vld [vmem:[#allocation3] sm:$0xff]
      %v1131 = vmul.f32 %v1062, 0.5
      %v1132 = vtanh.pop %v1131
      %v1133 = vadd.f32 %v1132, 1.0
      %v1134 = vmul.f32 %v1133, 0.5
      %v1135 = vmul.f32 %v1063, 0.5
      %v1136 = vtanh.pop %v1135
      %v1137 = vadd.f32 %v1136, 1.0
      %v1138 = vmul.f32 %v1137, 0.5
      %v1139 = vtanh.pop %v1064
      %v1140 = vmul.f32 %v1065, 0.5
      %v1141 = vtanh.pop %v1140
      %v1142 = vadd.f32 %v1141, 1.0
      %v1143 = vmul.f32 %v1142, 0.5
      %v1144 = vmul.f32 %v1138, %v1130
      %v1145 = vmul.f32 %v1134, %v1139
      %v1146 = vadd.f32 %v1144, %v1145
      %v1147 = vtanh.pop %v1146
      %v1148 = vmul.f32 %v1143, %v1147
      %v1149 = vld [vmem:[#allocation5] sm:$0xff]
      %v1150 = vmul.f32 %v1126, 0.5
      %v1151 = vtanh.pop %v1150
      %v1152 = vadd.f32 %v1151, 1.0
      %v1153 = vmul.f32 %v1152, 0.5
      %v1154 = vmul.f32 %v1127, 0.5
      %v1155 = vtanh.pop %v1154
      %v1156 = vadd.f32 %v1155, 1.0
      %v1157 = vmul.f32 %v1156, 0.5
      %v1158 = vtanh.pop %v1128
      %v1159 = vmul.f32 %v1129, 0.5
      %v1160 = vtanh.pop %v1159
      %v1161 = vadd.f32 %v1160, 1.0
      %v1162 = vmul.f32 %v1161, 0.5
      %v1163 = vmul.f32 %v1157, %v1149
      %v1164 = vmul.f32 %v1153, %v1158
      %v1165 = vadd.f32 %v1163, %v1164
      %v1166 = vtanh.pop %v1165
      %v1167 = vmul.f32 %v1162, %v1166
      %v1168 = vpack.c.bf16 %v1148, %v1148
      %1169 = vst [vmem:[#allocation2] sm:$0xf] %v1168
      %1170 = vst [vmem:[#allocation3] sm:$0xff] %v1146
      %v1171 = vpack.c.bf16 %v1167, %v1167
      %1172 = vst [vmem:[#allocation4] sm:$0xf] %v1171
      %1173 = vst [vmem:[#allocation5] sm:$0xff] %v1165
      %s1174 = scalar_lea.vmem %s248, 16
      %1175 = vst [vmem:[%s1174] sm:$0xff] %v1148
      %s1176 = scalar_lea.vmem %s255, 40
      %1177 = vst [vmem:[%s1176] sm:$0xff] %v1167
      %s1178 = scalar_lea.vmem %s232, 48
      %v1179 = vld [vmem:[%s1178] sm:$0xff]
      %v1180 = vld [vmem:[%s1178 + $0x8] sm:$0xff]
      %v1181 = vunpack.c.l.bf16 %v1179
      %v1182 = vunpack.c.h.bf16 %v1179
      %v1183 = vunpack.c.l.bf16 %v1180
      %v1184 = vunpack.c.h.bf16 %v1180
      %v1185 = vld [vmem:[#allocation2] sm:$0xf]
      %1186 = vmatpush.bf16.msra.mxu0 %v463
      %1187 = vmatpush.bf16.msra.mxu0 %v459
      %1188 = vmatpush.bf16.msra.mxu0 %v455
      %1189 = vmatpush.bf16.msra.mxu0 %v451
      %1190 = vmatpush.bf16.msra.mxu0 %v447
      %1191 = vmatpush.bf16.msra.mxu0 %v443
      %1192 = vmatpush.bf16.msra.mxu0 %v439
      %1193 = vmatpush.bf16.msra.mxu0 %v435
      %1194 = vmatmul.bf16.gmra.mxu0 %v1185
      %v1195 = vpop.f32.mrf.mxu0
      %v1196 = vadd.f32 0.0, %v1195
      %v1197 = vpop.f32.mrf.mxu0
      %1198 = vdwg.mxu0
      %1199 = vmatpush.bf16.msra.mxu0 %v464
      %1200 = vmatpush.bf16.msra.mxu0 %v460
      %1201 = vmatpush.bf16.msra.mxu0 %v456
      %1202 = vmatpush.bf16.msra.mxu0 %v452
      %1203 = vmatpush.bf16.msra.mxu0 %v448
      %1204 = vmatpush.bf16.msra.mxu0 %v444
      %1205 = vmatpush.bf16.msra.mxu0 %v440
      %1206 = vmatpush.bf16.msra.mxu0 %v436
      %1207 = vmatmul.bf16.gmra.mxu0 %v1185
      %v1208 = vpop.f32.mrf.mxu0
      %v1209 = vadd.f32 0.0, %v1208
      %v1210 = vpop.f32.mrf.mxu0
      %1211 = vdwg.mxu0
      %1212 = vmatpush.bf16.msra.mxu0 %v465
      %1213 = vmatpush.bf16.msra.mxu0 %v461
      %1214 = vmatpush.bf16.msra.mxu0 %v457
      %1215 = vmatpush.bf16.msra.mxu0 %v453
      %1216 = vmatpush.bf16.msra.mxu0 %v449
      %1217 = vmatpush.bf16.msra.mxu0 %v445
      %1218 = vmatpush.bf16.msra.mxu0 %v441
      %1219 = vmatpush.bf16.msra.mxu0 %v437
      %1220 = vmatmul.bf16.gmra.mxu0 %v1185
      %v1221 = vpop.f32.mrf.mxu0
      %v1222 = vadd.f32 0.0, %v1221
      %v1223 = vpop.f32.mrf.mxu0
      %1224 = vdwg.mxu0
      %1225 = vmatpush.bf16.msra.mxu0 %v466
      %1226 = vmatpush.bf16.msra.mxu0 %v462
      %1227 = vmatpush.bf16.msra.mxu0 %v458
      %1228 = vmatpush.bf16.msra.mxu0 %v454
      %1229 = vmatpush.bf16.msra.mxu0 %v450
      %1230 = vmatpush.bf16.msra.mxu0 %v446
      %1231 = vmatpush.bf16.msra.mxu0 %v442
      %1232 = vmatpush.bf16.msra.mxu0 %v438
      %1233 = vmatmul.bf16.gmra.mxu0 %v1185
      %v1234 = vpop.f32.mrf.mxu0
      %v1235 = vadd.f32 0.0, %v1234
      %v1236 = vpop.f32.mrf.mxu0
      %1237 = vdwg.mxu0
      %v1238 = vadd.f32 %v1181, %v1196
      %v1239 = vadd.f32 %v1182, %v1209
      %v1240 = vadd.f32 %v1183, %v1222
      %v1241 = vadd.f32 %v1184, %v1235
      %s1242 = scalar_lea.vmem %s241, 64
      %v1243 = vld [vmem:[%s1242] sm:$0xff]
      %v1244 = vld [vmem:[%s1242 + $0x8] sm:$0xff]
      %v1245 = vunpack.c.l.bf16 %v1243
      %v1246 = vunpack.c.h.bf16 %v1243
      %v1247 = vunpack.c.l.bf16 %v1244
      %v1248 = vunpack.c.h.bf16 %v1244
      %v1249 = vld [vmem:[#allocation4] sm:$0xf]
      %1250 = vmatpush.bf16.msra.mxu0 %v687
      %1251 = vmatpush.bf16.msra.mxu0 %v683
      %1252 = vmatpush.bf16.msra.mxu0 %v679
      %1253 = vmatpush.bf16.msra.mxu0 %v675
      %1254 = vmatpush.bf16.msra.mxu0 %v671
      %1255 = vmatpush.bf16.msra.mxu0 %v667
      %1256 = vmatpush.bf16.msra.mxu0 %v663
      %1257 = vmatpush.bf16.msra.mxu0 %v659
      %1258 = vmatmul.bf16.gmra.mxu0 %v1249
      %v1259 = vpop.f32.mrf.mxu0
      %v1260 = vadd.f32 0.0, %v1259
      %v1261 = vpop.f32.mrf.mxu0
      %1262 = vdwg.mxu0
      %1263 = vmatpush.bf16.msra.mxu0 %v688
      %1264 = vmatpush.bf16.msra.mxu0 %v684
      %1265 = vmatpush.bf16.msra.mxu0 %v680
      %1266 = vmatpush.bf16.msra.mxu0 %v676
      %1267 = vmatpush.bf16.msra.mxu0 %v672
      %1268 = vmatpush.bf16.msra.mxu0 %v668
      %1269 = vmatpush.bf16.msra.mxu0 %v664
      %1270 = vmatpush.bf16.msra.mxu0 %v660
      %1271 = vmatmul.bf16.gmra.mxu0 %v1249
      %v1272 = vpop.f32.mrf.mxu0
      %v1273 = vadd.f32 0.0, %v1272
      %v1274 = vpop.f32.mrf.mxu0
      %1275 = vdwg.mxu0
      %1276 = vmatpush.bf16.msra.mxu0 %v689
      %1277 = vmatpush.bf16.msra.mxu0 %v685
      %1278 = vmatpush.bf16.msra.mxu0 %v681
      %1279 = vmatpush.bf16.msra.mxu0 %v677
      %1280 = vmatpush.bf16.msra.mxu0 %v673
      %1281 = vmatpush.bf16.msra.mxu0 %v669
      %1282 = vmatpush.bf16.msra.mxu0 %v665
      %1283 = vmatpush.bf16.msra.mxu0 %v661
      %1284 = vmatmul.bf16.gmra.mxu0 %v1249
      %v1285 = vpop.f32.mrf.mxu0
      %v1286 = vadd.f32 0.0, %v1285
      %v1287 = vpop.f32.mrf.mxu0
      %1288 = vdwg.mxu0
      %1289 = vmatpush.bf16.msra.mxu0 %v690
      %1290 = vmatpush.bf16.msra.mxu0 %v686
      %1291 = vmatpush.bf16.msra.mxu0 %v682
      %1292 = vmatpush.bf16.msra.mxu0 %v678
      %1293 = vmatpush.bf16.msra.mxu0 %v674
      %1294 = vmatpush.bf16.msra.mxu0 %v670
      %1295 = vmatpush.bf16.msra.mxu0 %v666
      %1296 = vmatpush.bf16.msra.mxu0 %v662
      %1297 = vmatmul.bf16.gmra.mxu0 %v1249
      %v1298 = vpop.f32.mrf.mxu0
      %v1299 = vadd.f32 0.0, %v1298
      %v1300 = vpop.f32.mrf.mxu0
      %1301 = vdwg.mxu0
      %v1302 = vadd.f32 %v1245, %v1260
      %v1303 = vadd.f32 %v1246, %v1273
      %v1304 = vadd.f32 %v1247, %v1286
      %v1305 = vadd.f32 %v1248, %v1299
      %v1306 = vld [vmem:[#allocation3] sm:$0xff]
      %v1307 = vmul.f32 %v1238, 0.5
      %v1308 = vtanh.pop %v1307
      %v1309 = vadd.f32 %v1308, 1.0
      %v1310 = vmul.f32 %v1309, 0.5
      %v1311 = vmul.f32 %v1239, 0.5
      %v1312 = vtanh.pop %v1311
      %v1313 = vadd.f32 %v1312, 1.0
      %v1314 = vmul.f32 %v1313, 0.5
      %v1315 = vtanh.pop %v1240
      %v1316 = vmul.f32 %v1241, 0.5
      %v1317 = vtanh.pop %v1316
      %v1318 = vadd.f32 %v1317, 1.0
      %v1319 = vmul.f32 %v1318, 0.5
      %v1320 = vmul.f32 %v1314, %v1306
      %v1321 = vmul.f32 %v1310, %v1315
      %v1322 = vadd.f32 %v1320, %v1321
      %v1323 = vtanh.pop %v1322
      %v1324 = vmul.f32 %v1319, %v1323
      %v1325 = vld [vmem:[#allocation5] sm:$0xff]
      %v1326 = vmul.f32 %v1302, 0.5
      %v1327 = vtanh.pop %v1326
      %v1328 = vadd.f32 %v1327, 1.0
      %v1329 = vmul.f32 %v1328, 0.5
      %v1330 = vmul.f32 %v1303, 0.5
      %v1331 = vtanh.pop %v1330
      %v1332 = vadd.f32 %v1331, 1.0
      %v1333 = vmul.f32 %v1332, 0.5
      %v1334 = vtanh.pop %v1304
      %v1335 = vmul.f32 %v1305, 0.5
      %v1336 = vtanh.pop %v1335
      %v1337 = vadd.f32 %v1336, 1.0
      %v1338 = vmul.f32 %v1337, 0.5
      %v1339 = vmul.f32 %v1333, %v1325
      %v1340 = vmul.f32 %v1329, %v1334
      %v1341 = vadd.f32 %v1339, %v1340
      %v1342 = vtanh.pop %v1341
      %v1343 = vmul.f32 %v1338, %v1342
      %v1344 = vpack.c.bf16 %v1324, %v1324
      %1345 = vst [vmem:[#allocation2] sm:$0xf] %v1344
      %1346 = vst [vmem:[#allocation3] sm:$0xff] %v1322
      %v1347 = vpack.c.bf16 %v1343, %v1343
      %1348 = vst [vmem:[#allocation4] sm:$0xf] %v1347
      %1349 = vst [vmem:[#allocation5] sm:$0xff] %v1341
      %s1350 = scalar_lea.vmem %s248, 24
      %1351 = vst [vmem:[%s1350] sm:$0xff] %v1324
      %s1352 = scalar_lea.vmem %s255, 32
      %1353 = vst [vmem:[%s1352] sm:$0xff] %v1343
      %s1354 = scalar_lea.vmem %s232, 64
      %v1355 = vld [vmem:[%s1354] sm:$0xff]
      %v1356 = vld [vmem:[%s1354 + $0x8] sm:$0xff]
      %v1357 = vunpack.c.l.bf16 %v1355
      %v1358 = vunpack.c.h.bf16 %v1355
      %v1359 = vunpack.c.l.bf16 %v1356
      %v1360 = vunpack.c.h.bf16 %v1356
      %v1361 = vld [vmem:[#allocation2] sm:$0xf]
      %1362 = vmatpush.bf16.msra.mxu0 %v463
      %1363 = vmatpush.bf16.msra.mxu0 %v459
      %1364 = vmatpush.bf16.msra.mxu0 %v455
      %1365 = vmatpush.bf16.msra.mxu0 %v451
      %1366 = vmatpush.bf16.msra.mxu0 %v447
      %1367 = vmatpush.bf16.msra.mxu0 %v443
      %1368 = vmatpush.bf16.msra.mxu0 %v439
      %1369 = vmatpush.bf16.msra.mxu0 %v435
      %1370 = vmatmul.bf16.gmra.mxu0 %v1361
      %v1371 = vpop.f32.mrf.mxu0
      %v1372 = vadd.f32 0.0, %v1371
      %v1373 = vpop.f32.mrf.mxu0
      %1374 = vdwg.mxu0
      %1375 = vmatpush.bf16.msra.mxu0 %v464
      %1376 = vmatpush.bf16.msra.mxu0 %v460
      %1377 = vmatpush.bf16.msra.mxu0 %v456
      %1378 = vmatpush.bf16.msra.mxu0 %v452
      %1379 = vmatpush.bf16.msra.mxu0 %v448
      %1380 = vmatpush.bf16.msra.mxu0 %v444
      %1381 = vmatpush.bf16.msra.mxu0 %v440
      %1382 = vmatpush.bf16.msra.mxu0 %v436
      %1383 = vmatmul.bf16.gmra.mxu0 %v1361
      %v1384 = vpop.f32.mrf.mxu0
      %v1385 = vadd.f32 0.0, %v1384
      %v1386 = vpop.f32.mrf.mxu0
      %1387 = vdwg.mxu0
      %1388 = vmatpush.bf16.msra.mxu0 %v465
      %1389 = vmatpush.bf16.msra.mxu0 %v461
      %1390 = vmatpush.bf16.msra.mxu0 %v457
      %1391 = vmatpush.bf16.msra.mxu0 %v453
      %1392 = vmatpush.bf16.msra.mxu0 %v449
      %1393 = vmatpush.bf16.msra.mxu0 %v445
      %1394 = vmatpush.bf16.msra.mxu0 %v441
      %1395 = vmatpush.bf16.msra.mxu0 %v437
      %1396 = vmatmul.bf16.gmra.mxu0 %v1361
      %v1397 = vpop.f32.mrf.mxu0
      %v1398 = vadd.f32 0.0, %v1397
      %v1399 = vpop.f32.mrf.mxu0
      %1400 = vdwg.mxu0
      %1401 = vmatpush.bf16.msra.mxu0 %v466
      %1402 = vmatpush.bf16.msra.mxu0 %v462
      %1403 = vmatpush.bf16.msra.mxu0 %v458
      %1404 = vmatpush.bf16.msra.mxu0 %v454
      %1405 = vmatpush.bf16.msra.mxu0 %v450
      %1406 = vmatpush.bf16.msra.mxu0 %v446
      %1407 = vmatpush.bf16.msra.mxu0 %v442
      %1408 = vmatpush.bf16.msra.mxu0 %v438
      %1409 = vmatmul.bf16.gmra.mxu0 %v1361
      %v1410 = vpop.f32.mrf.mxu0
      %v1411 = vadd.f32 0.0, %v1410
      %v1412 = vpop.f32.mrf.mxu0
      %1413 = vdwg.mxu0
      %v1414 = vadd.f32 %v1357, %v1372
      %v1415 = vadd.f32 %v1358, %v1385
      %v1416 = vadd.f32 %v1359, %v1398
      %v1417 = vadd.f32 %v1360, %v1411
      %s1418 = scalar_lea.vmem %s241, 48
      %v1419 = vld [vmem:[%s1418] sm:$0xff]
      %v1420 = vld [vmem:[%s1418 + $0x8] sm:$0xff]
      %v1421 = vunpack.c.l.bf16 %v1419
      %v1422 = vunpack.c.h.bf16 %v1419
      %v1423 = vunpack.c.l.bf16 %v1420
      %v1424 = vunpack.c.h.bf16 %v1420
      %v1425 = vld [vmem:[#allocation4] sm:$0xf]
      %1426 = vmatpush.bf16.msra.mxu0 %v687
      %1427 = vmatpush.bf16.msra.mxu0 %v683
      %1428 = vmatpush.bf16.msra.mxu0 %v679
      %1429 = vmatpush.bf16.msra.mxu0 %v675
      %1430 = vmatpush.bf16.msra.mxu0 %v671
      %1431 = vmatpush.bf16.msra.mxu0 %v667
      %1432 = vmatpush.bf16.msra.mxu0 %v663
      %1433 = vmatpush.bf16.msra.mxu0 %v659
      %1434 = vmatmul.bf16.gmra.mxu0 %v1425
      %v1435 = vpop.f32.mrf.mxu0
      %v1436 = vadd.f32 0.0, %v1435
      %v1437 = vpop.f32.mrf.mxu0
      %1438 = vdwg.mxu0
      %1439 = vmatpush.bf16.msra.mxu0 %v688
      %1440 = vmatpush.bf16.msra.mxu0 %v684
      %1441 = vmatpush.bf16.msra.mxu0 %v680
      %1442 = vmatpush.bf16.msra.mxu0 %v676
      %1443 = vmatpush.bf16.msra.mxu0 %v672
      %1444 = vmatpush.bf16.msra.mxu0 %v668
      %1445 = vmatpush.bf16.msra.mxu0 %v664
      %1446 = vmatpush.bf16.msra.mxu0 %v660
      %1447 = vmatmul.bf16.gmra.mxu0 %v1425
      %v1448 = vpop.f32.mrf.mxu0
      %v1449 = vadd.f32 0.0, %v1448
      %v1450 = vpop.f32.mrf.mxu0
      %1451 = vdwg.mxu0
      %1452 = vmatpush.bf16.msra.mxu0 %v689
      %1453 = vmatpush.bf16.msra.mxu0 %v685
      %1454 = vmatpush.bf16.msra.mxu0 %v681
      %1455 = vmatpush.bf16.msra.mxu0 %v677
      %1456 = vmatpush.bf16.msra.mxu0 %v673
      %1457 = vmatpush.bf16.msra.mxu0 %v669
      %1458 = vmatpush.bf16.msra.mxu0 %v665
      %1459 = vmatpush.bf16.msra.mxu0 %v661
      %1460 = vmatmul.bf16.gmra.mxu0 %v1425
      %v1461 = vpop.f32.mrf.mxu0
      %v1462 = vadd.f32 0.0, %v1461
      %v1463 = vpop.f32.mrf.mxu0
      %1464 = vdwg.mxu0
      %1465 = vmatpush.bf16.msra.mxu0 %v690
      %1466 = vmatpush.bf16.msra.mxu0 %v686
      %1467 = vmatpush.bf16.msra.mxu0 %v682
      %1468 = vmatpush.bf16.msra.mxu0 %v678
      %1469 = vmatpush.bf16.msra.mxu0 %v674
      %1470 = vmatpush.bf16.msra.mxu0 %v670
      %1471 = vmatpush.bf16.msra.mxu0 %v666
      %1472 = vmatpush.bf16.msra.mxu0 %v662
      %1473 = vmatmul.bf16.gmra.mxu0 %v1425
      %v1474 = vpop.f32.mrf.mxu0
      %v1475 = vadd.f32 0.0, %v1474
      %v1476 = vpop.f32.mrf.mxu0
      %1477 = vdwg.mxu0
      %v1478 = vadd.f32 %v1421, %v1436
      %v1479 = vadd.f32 %v1422, %v1449
      %v1480 = vadd.f32 %v1423, %v1462
      %v1481 = vadd.f32 %v1424, %v1475
      %v1482 = vld [vmem:[#allocation3] sm:$0xff]
      %v1483 = vmul.f32 %v1414, 0.5
      %v1484 = vtanh.pop %v1483
      %v1485 = vadd.f32 %v1484, 1.0
      %v1486 = vmul.f32 %v1485, 0.5
      %v1487 = vmul.f32 %v1415, 0.5
      %v1488 = vtanh.pop %v1487
      %v1489 = vadd.f32 %v1488, 1.0
      %v1490 = vmul.f32 %v1489, 0.5
      %v1491 = vtanh.pop %v1416
      %v1492 = vmul.f32 %v1417, 0.5
      %v1493 = vtanh.pop %v1492
      %v1494 = vadd.f32 %v1493, 1.0
      %v1495 = vmul.f32 %v1494, 0.5
      %v1496 = vmul.f32 %v1490, %v1482
      %v1497 = vmul.f32 %v1486, %v1491
      %v1498 = vadd.f32 %v1496, %v1497
      %v1499 = vtanh.pop %v1498
      %v1500 = vmul.f32 %v1495, %v1499
      %v1501 = vld [vmem:[#allocation5] sm:$0xff]
      %v1502 = vmul.f32 %v1478, 0.5
      %v1503 = vtanh.pop %v1502
      %v1504 = vadd.f32 %v1503, 1.0
      %v1505 = vmul.f32 %v1504, 0.5
      %v1506 = vmul.f32 %v1479, 0.5
      %v1507 = vtanh.pop %v1506
      %v1508 = vadd.f32 %v1507, 1.0
      %v1509 = vmul.f32 %v1508, 0.5
      %v1510 = vtanh.pop %v1480
      %v1511 = vmul.f32 %v1481, 0.5
      %v1512 = vtanh.pop %v1511
      %v1513 = vadd.f32 %v1512, 1.0
      %v1514 = vmul.f32 %v1513, 0.5
      %v1515 = vmul.f32 %v1509, %v1501
      %v1516 = vmul.f32 %v1505, %v1510
      %v1517 = vadd.f32 %v1515, %v1516
      %v1518 = vtanh.pop %v1517
      %v1519 = vmul.f32 %v1514, %v1518
      %v1520 = vpack.c.bf16 %v1500, %v1500
      %1521 = vst [vmem:[#allocation2] sm:$0xf] %v1520
      %1522 = vst [vmem:[#allocation3] sm:$0xff] %v1498
      %v1523 = vpack.c.bf16 %v1519, %v1519
      %1524 = vst [vmem:[#allocation4] sm:$0xf] %v1523
      %1525 = vst [vmem:[#allocation5] sm:$0xff] %v1517
      %s1526 = scalar_lea.vmem %s248, 32
      %1527 = vst [vmem:[%s1526] sm:$0xff] %v1500
      %s1528 = scalar_lea.vmem %s255, 24
      %1529 = vst [vmem:[%s1528] sm:$0xff] %v1519
      %s1530 = scalar_lea.vmem %s232, 80
      %v1531 = vld [vmem:[%s1530] sm:$0xff]
      %v1532 = vld [vmem:[%s1530 + $0x8] sm:$0xff]
      %v1533 = vunpack.c.l.bf16 %v1531
      %v1534 = vunpack.c.h.bf16 %v1531
      %v1535 = vunpack.c.l.bf16 %v1532
      %v1536 = vunpack.c.h.bf16 %v1532
      %v1537 = vld [vmem:[#allocation2] sm:$0xf]
      %1538 = vmatpush.bf16.msra.mxu0 %v463
      %1539 = vmatpush.bf16.msra.mxu0 %v459
      %1540 = vmatpush.bf16.msra.mxu0 %v455
      %1541 = vmatpush.bf16.msra.mxu0 %v451
      %1542 = vmatpush.bf16.msra.mxu0 %v447
      %1543 = vmatpush.bf16.msra.mxu0 %v443
      %1544 = vmatpush.bf16.msra.mxu0 %v439
      %1545 = vmatpush.bf16.msra.mxu0 %v435
      %1546 = vmatmul.bf16.gmra.mxu0 %v1537
      %v1547 = vpop.f32.mrf.mxu0
      %v1548 = vadd.f32 0.0, %v1547
      %v1549 = vpop.f32.mrf.mxu0
      %1550 = vdwg.mxu0
      %1551 = vmatpush.bf16.msra.mxu0 %v464
      %1552 = vmatpush.bf16.msra.mxu0 %v460
      %1553 = vmatpush.bf16.msra.mxu0 %v456
      %1554 = vmatpush.bf16.msra.mxu0 %v452
      %1555 = vmatpush.bf16.msra.mxu0 %v448
      %1556 = vmatpush.bf16.msra.mxu0 %v444
      %1557 = vmatpush.bf16.msra.mxu0 %v440
      %1558 = vmatpush.bf16.msra.mxu0 %v436
      %1559 = vmatmul.bf16.gmra.mxu0 %v1537
      %v1560 = vpop.f32.mrf.mxu0
      %v1561 = vadd.f32 0.0, %v1560
      %v1562 = vpop.f32.mrf.mxu0
      %1563 = vdwg.mxu0
      %1564 = vmatpush.bf16.msra.mxu0 %v465
      %1565 = vmatpush.bf16.msra.mxu0 %v461
      %1566 = vmatpush.bf16.msra.mxu0 %v457
      %1567 = vmatpush.bf16.msra.mxu0 %v453
      %1568 = vmatpush.bf16.msra.mxu0 %v449
      %1569 = vmatpush.bf16.msra.mxu0 %v445
      %1570 = vmatpush.bf16.msra.mxu0 %v441
      %1571 = vmatpush.bf16.msra.mxu0 %v437
      %1572 = vmatmul.bf16.gmra.mxu0 %v1537
      %v1573 = vpop.f32.mrf.mxu0
      %v1574 = vadd.f32 0.0, %v1573
      %v1575 = vpop.f32.mrf.mxu0
      %1576 = vdwg.mxu0
      %1577 = vmatpush.bf16.msra.mxu0 %v466
      %1578 = vmatpush.bf16.msra.mxu0 %v462
      %1579 = vmatpush.bf16.msra.mxu0 %v458
      %1580 = vmatpush.bf16.msra.mxu0 %v454
      %1581 = vmatpush.bf16.msra.mxu0 %v450
      %1582 = vmatpush.bf16.msra.mxu0 %v446
      %1583 = vmatpush.bf16.msra.mxu0 %v442
      %1584 = vmatpush.bf16.msra.mxu0 %v438
      %1585 = vmatmul.bf16.gmra.mxu0 %v1537
      %v1586 = vpop.f32.mrf.mxu0
      %v1587 = vadd.f32 0.0, %v1586
      %v1588 = vpop.f32.mrf.mxu0
      %1589 = vdwg.mxu0
      %v1590 = vadd.f32 %v1533, %v1548
      %v1591 = vadd.f32 %v1534, %v1561
      %v1592 = vadd.f32 %v1535, %v1574
      %v1593 = vadd.f32 %v1536, %v1587
      %s1594 = scalar_lea.vmem %s241, 32
      %v1595 = vld [vmem:[%s1594] sm:$0xff]
      %v1596 = vld [vmem:[%s1594 + $0x8] sm:$0xff]
      %v1597 = vunpack.c.l.bf16 %v1595
      %v1598 = vunpack.c.h.bf16 %v1595
      %v1599 = vunpack.c.l.bf16 %v1596
      %v1600 = vunpack.c.h.bf16 %v1596
      %v1601 = vld [vmem:[#allocation4] sm:$0xf]
      %1602 = vmatpush.bf16.msra.mxu0 %v687
      %1603 = vmatpush.bf16.msra.mxu0 %v683
      %1604 = vmatpush.bf16.msra.mxu0 %v679
      %1605 = vmatpush.bf16.msra.mxu0 %v675
      %1606 = vmatpush.bf16.msra.mxu0 %v671
      %1607 = vmatpush.bf16.msra.mxu0 %v667
      %1608 = vmatpush.bf16.msra.mxu0 %v663
      %1609 = vmatpush.bf16.msra.mxu0 %v659
      %1610 = vmatmul.bf16.gmra.mxu0 %v1601
      %v1611 = vpop.f32.mrf.mxu0
      %v1612 = vadd.f32 0.0, %v1611
      %v1613 = vpop.f32.mrf.mxu0
      %1614 = vdwg.mxu0
      %1615 = vmatpush.bf16.msra.mxu0 %v688
      %1616 = vmatpush.bf16.msra.mxu0 %v684
      %1617 = vmatpush.bf16.msra.mxu0 %v680
      %1618 = vmatpush.bf16.msra.mxu0 %v676
      %1619 = vmatpush.bf16.msra.mxu0 %v672
      %1620 = vmatpush.bf16.msra.mxu0 %v668
      %1621 = vmatpush.bf16.msra.mxu0 %v664
      %1622 = vmatpush.bf16.msra.mxu0 %v660
      %1623 = vmatmul.bf16.gmra.mxu0 %v1601
      %v1624 = vpop.f32.mrf.mxu0
      %v1625 = vadd.f32 0.0, %v1624
      %v1626 = vpop.f32.mrf.mxu0
      %1627 = vdwg.mxu0
      %1628 = vmatpush.bf16.msra.mxu0 %v689
      %1629 = vmatpush.bf16.msra.mxu0 %v685
      %1630 = vmatpush.bf16.msra.mxu0 %v681
      %1631 = vmatpush.bf16.msra.mxu0 %v677
      %1632 = vmatpush.bf16.msra.mxu0 %v673
      %1633 = vmatpush.bf16.msra.mxu0 %v669
      %1634 = vmatpush.bf16.msra.mxu0 %v665
      %1635 = vmatpush.bf16.msra.mxu0 %v661
      %1636 = vmatmul.bf16.gmra.mxu0 %v1601
      %v1637 = vpop.f32.mrf.mxu0
      %v1638 = vadd.f32 0.0, %v1637
      %v1639 = vpop.f32.mrf.mxu0
      %1640 = vdwg.mxu0
      %1641 = vmatpush.bf16.msra.mxu0 %v690
      %1642 = vmatpush.bf16.msra.mxu0 %v686
      %1643 = vmatpush.bf16.msra.mxu0 %v682
      %1644 = vmatpush.bf16.msra.mxu0 %v678
      %1645 = vmatpush.bf16.msra.mxu0 %v674
      %1646 = vmatpush.bf16.msra.mxu0 %v670
      %1647 = vmatpush.bf16.msra.mxu0 %v666
      %1648 = vmatpush.bf16.msra.mxu0 %v662
      %1649 = vmatmul.bf16.gmra.mxu0 %v1601
      %v1650 = vpop.f32.mrf.mxu0
      %v1651 = vadd.f32 0.0, %v1650
      %v1652 = vpop.f32.mrf.mxu0
      %1653 = vdwg.mxu0
      %v1654 = vadd.f32 %v1597, %v1612
      %v1655 = vadd.f32 %v1598, %v1625
      %v1656 = vadd.f32 %v1599, %v1638
      %v1657 = vadd.f32 %v1600, %v1651
      %v1658 = vld [vmem:[#allocation3] sm:$0xff]
      %v1659 = vmul.f32 %v1590, 0.5
      %v1660 = vtanh.pop %v1659
      %v1661 = vadd.f32 %v1660, 1.0
      %v1662 = vmul.f32 %v1661, 0.5
      %v1663 = vmul.f32 %v1591, 0.5
      %v1664 = vtanh.pop %v1663
      %v1665 = vadd.f32 %v1664, 1.0
      %v1666 = vmul.f32 %v1665, 0.5
      %v1667 = vtanh.pop %v1592
      %v1668 = vmul.f32 %v1593, 0.5
      %v1669 = vtanh.pop %v1668
      %v1670 = vadd.f32 %v1669, 1.0
      %v1671 = vmul.f32 %v1670, 0.5
      %v1672 = vmul.f32 %v1666, %v1658
      %v1673 = vmul.f32 %v1662, %v1667
      %v1674 = vadd.f32 %v1672, %v1673
      %v1675 = vtanh.pop %v1674
      %v1676 = vmul.f32 %v1671, %v1675
      %v1677 = vld [vmem:[#allocation5] sm:$0xff]
      %v1678 = vmul.f32 %v1654, 0.5
      %v1679 = vtanh.pop %v1678
      %v1680 = vadd.f32 %v1679, 1.0
      %v1681 = vmul.f32 %v1680, 0.5
      %v1682 = vmul.f32 %v1655, 0.5
      %v1683 = vtanh.pop %v1682
      %v1684 = vadd.f32 %v1683, 1.0
      %v1685 = vmul.f32 %v1684, 0.5
      %v1686 = vtanh.pop %v1656
      %v1687 = vmul.f32 %v1657, 0.5
      %v1688 = vtanh.pop %v1687
      %v1689 = vadd.f32 %v1688, 1.0
      %v1690 = vmul.f32 %v1689, 0.5
      %v1691 = vmul.f32 %v1685, %v1677
      %v1692 = vmul.f32 %v1681, %v1686
      %v1693 = vadd.f32 %v1691, %v1692
      %v1694 = vtanh.pop %v1693
      %v1695 = vmul.f32 %v1690, %v1694
      %v1696 = vpack.c.bf16 %v1676, %v1676
      %1697 = vst [vmem:[#allocation2] sm:$0xf] %v1696
      %1698 = vst [vmem:[#allocation3] sm:$0xff] %v1674
      %v1699 = vpack.c.bf16 %v1695, %v1695
      %1700 = vst [vmem:[#allocation4] sm:$0xf] %v1699
      %1701 = vst [vmem:[#allocation5] sm:$0xff] %v1693
      %s1702 = scalar_lea.vmem %s248, 40
      %1703 = vst [vmem:[%s1702] sm:$0xff] %v1676
      %s1704 = scalar_lea.vmem %s255, 16
      %1705 = vst [vmem:[%s1704] sm:$0xff] %v1695
      %s1706 = scalar_lea.vmem %s232, 96
      %v1707 = vld [vmem:[%s1706] sm:$0xff]
      %v1708 = vld [vmem:[%s1706 + $0x8] sm:$0xff]
      %v1709 = vunpack.c.l.bf16 %v1707
      %v1710 = vunpack.c.h.bf16 %v1707
      %v1711 = vunpack.c.l.bf16 %v1708
      %v1712 = vunpack.c.h.bf16 %v1708
      %v1713 = vld [vmem:[#allocation2] sm:$0xf]
      %1714 = vmatpush.bf16.msra.mxu0 %v463
      %1715 = vmatpush.bf16.msra.mxu0 %v459
      %1716 = vmatpush.bf16.msra.mxu0 %v455
      %1717 = vmatpush.bf16.msra.mxu0 %v451
      %1718 = vmatpush.bf16.msra.mxu0 %v447
      %1719 = vmatpush.bf16.msra.mxu0 %v443
      %1720 = vmatpush.bf16.msra.mxu0 %v439
      %1721 = vmatpush.bf16.msra.mxu0 %v435
      %1722 = vmatmul.bf16.gmra.mxu0 %v1713
      %v1723 = vpop.f32.mrf.mxu0
      %v1724 = vadd.f32 0.0, %v1723
      %v1725 = vpop.f32.mrf.mxu0
      %1726 = vdwg.mxu0
      %1727 = vmatpush.bf16.msra.mxu0 %v464
      %1728 = vmatpush.bf16.msra.mxu0 %v460
      %1729 = vmatpush.bf16.msra.mxu0 %v456
      %1730 = vmatpush.bf16.msra.mxu0 %v452
      %1731 = vmatpush.bf16.msra.mxu0 %v448
      %1732 = vmatpush.bf16.msra.mxu0 %v444
      %1733 = vmatpush.bf16.msra.mxu0 %v440
      %1734 = vmatpush.bf16.msra.mxu0 %v436
      %1735 = vmatmul.bf16.gmra.mxu0 %v1713
      %v1736 = vpop.f32.mrf.mxu0
      %v1737 = vadd.f32 0.0, %v1736
      %v1738 = vpop.f32.mrf.mxu0
      %1739 = vdwg.mxu0
      %1740 = vmatpush.bf16.msra.mxu0 %v465
      %1741 = vmatpush.bf16.msra.mxu0 %v461
      %1742 = vmatpush.bf16.msra.mxu0 %v457
      %1743 = vmatpush.bf16.msra.mxu0 %v453
      %1744 = vmatpush.bf16.msra.mxu0 %v449
      %1745 = vmatpush.bf16.msra.mxu0 %v445
      %1746 = vmatpush.bf16.msra.mxu0 %v441
      %1747 = vmatpush.bf16.msra.mxu0 %v437
      %1748 = vmatmul.bf16.gmra.mxu0 %v1713
      %v1749 = vpop.f32.mrf.mxu0
      %v1750 = vadd.f32 0.0, %v1749
      %v1751 = vpop.f32.mrf.mxu0
      %1752 = vdwg.mxu0
      %1753 = vmatpush.bf16.msra.mxu0 %v466
      %1754 = vmatpush.bf16.msra.mxu0 %v462
      %1755 = vmatpush.bf16.msra.mxu0 %v458
      %1756 = vmatpush.bf16.msra.mxu0 %v454
      %1757 = vmatpush.bf16.msra.mxu0 %v450
      %1758 = vmatpush.bf16.msra.mxu0 %v446
      %1759 = vmatpush.bf16.msra.mxu0 %v442
      %1760 = vmatpush.bf16.msra.mxu0 %v438
      %1761 = vmatmul.bf16.gmra.mxu0 %v1713
      %v1762 = vpop.f32.mrf.mxu0
      %v1763 = vadd.f32 0.0, %v1762
      %v1764 = vpop.f32.mrf.mxu0
      %1765 = vdwg.mxu0
      %v1766 = vadd.f32 %v1709, %v1724
      %v1767 = vadd.f32 %v1710, %v1737
      %v1768 = vadd.f32 %v1711, %v1750
      %v1769 = vadd.f32 %v1712, %v1763
      %s1770 = scalar_lea.vmem %s241, 16
      %v1771 = vld [vmem:[%s1770] sm:$0xff]
      %v1772 = vld [vmem:[%s1770 + $0x8] sm:$0xff]
      %v1773 = vunpack.c.l.bf16 %v1771
      %v1774 = vunpack.c.h.bf16 %v1771
      %v1775 = vunpack.c.l.bf16 %v1772
      %v1776 = vunpack.c.h.bf16 %v1772
      %v1777 = vld [vmem:[#allocation4] sm:$0xf]
      %1778 = vmatpush.bf16.msra.mxu0 %v687
      %1779 = vmatpush.bf16.msra.mxu0 %v683
      %1780 = vmatpush.bf16.msra.mxu0 %v679
      %1781 = vmatpush.bf16.msra.mxu0 %v675
      %1782 = vmatpush.bf16.msra.mxu0 %v671
      %1783 = vmatpush.bf16.msra.mxu0 %v667
      %1784 = vmatpush.bf16.msra.mxu0 %v663
      %1785 = vmatpush.bf16.msra.mxu0 %v659
      %1786 = vmatmul.bf16.gmra.mxu0 %v1777
      %v1787 = vpop.f32.mrf.mxu0
      %v1788 = vadd.f32 0.0, %v1787
      %v1789 = vpop.f32.mrf.mxu0
      %1790 = vdwg.mxu0
      %1791 = vmatpush.bf16.msra.mxu0 %v688
      %1792 = vmatpush.bf16.msra.mxu0 %v684
      %1793 = vmatpush.bf16.msra.mxu0 %v680
      %1794 = vmatpush.bf16.msra.mxu0 %v676
      %1795 = vmatpush.bf16.msra.mxu0 %v672
      %1796 = vmatpush.bf16.msra.mxu0 %v668
      %1797 = vmatpush.bf16.msra.mxu0 %v664
      %1798 = vmatpush.bf16.msra.mxu0 %v660
      %1799 = vmatmul.bf16.gmra.mxu0 %v1777
      %v1800 = vpop.f32.mrf.mxu0
      %v1801 = vadd.f32 0.0, %v1800
      %v1802 = vpop.f32.mrf.mxu0
      %1803 = vdwg.mxu0
      %1804 = vmatpush.bf16.msra.mxu0 %v689
      %1805 = vmatpush.bf16.msra.mxu0 %v685
      %1806 = vmatpush.bf16.msra.mxu0 %v681
      %1807 = vmatpush.bf16.msra.mxu0 %v677
      %1808 = vmatpush.bf16.msra.mxu0 %v673
      %1809 = vmatpush.bf16.msra.mxu0 %v669
      %1810 = vmatpush.bf16.msra.mxu0 %v665
      %1811 = vmatpush.bf16.msra.mxu0 %v661
      %1812 = vmatmul.bf16.gmra.mxu0 %v1777
      %v1813 = vpop.f32.mrf.mxu0
      %v1814 = vadd.f32 0.0, %v1813
      %v1815 = vpop.f32.mrf.mxu0
      %1816 = vdwg.mxu0
      %1817 = vmatpush.bf16.msra.mxu0 %v690
      %1818 = vmatpush.bf16.msra.mxu0 %v686
      %1819 = vmatpush.bf16.msra.mxu0 %v682
      %1820 = vmatpush.bf16.msra.mxu0 %v678
      %1821 = vmatpush.bf16.msra.mxu0 %v674
      %1822 = vmatpush.bf16.msra.mxu0 %v670
      %1823 = vmatpush.bf16.msra.mxu0 %v666
      %1824 = vmatpush.bf16.msra.mxu0 %v662
      %1825 = vmatmul.bf16.gmra.mxu0 %v1777
      %v1826 = vpop.f32.mrf.mxu0
      %v1827 = vadd.f32 0.0, %v1826
      %v1828 = vpop.f32.mrf.mxu0
      %1829 = vdwg.mxu0
      %v1830 = vadd.f32 %v1773, %v1788
      %v1831 = vadd.f32 %v1774, %v1801
      %v1832 = vadd.f32 %v1775, %v1814
      %v1833 = vadd.f32 %v1776, %v1827
      %v1834 = vld [vmem:[#allocation3] sm:$0xff]
      %v1835 = vmul.f32 %v1766, 0.5
      %v1836 = vtanh.pop %v1835
      %v1837 = vadd.f32 %v1836, 1.0
      %v1838 = vmul.f32 %v1837, 0.5
      %v1839 = vmul.f32 %v1767, 0.5
      %v1840 = vtanh.pop %v1839
      %v1841 = vadd.f32 %v1840, 1.0
      %v1842 = vmul.f32 %v1841, 0.5
      %v1843 = vtanh.pop %v1768
      %v1844 = vmul.f32 %v1769, 0.5
      %v1845 = vtanh.pop %v1844
      %v1846 = vadd.f32 %v1845, 1.0
      %v1847 = vmul.f32 %v1846, 0.5
      %v1848 = vmul.f32 %v1842, %v1834
      %v1849 = vmul.f32 %v1838, %v1843
      %v1850 = vadd.f32 %v1848, %v1849
      %v1851 = vtanh.pop %v1850
      %v1852 = vmul.f32 %v1847, %v1851
      %v1853 = vld [vmem:[#allocation5] sm:$0xff]
      %v1854 = vmul.f32 %v1830, 0.5
      %v1855 = vtanh.pop %v1854
      %v1856 = vadd.f32 %v1855, 1.0
      %v1857 = vmul.f32 %v1856, 0.5
      %v1858 = vmul.f32 %v1831, 0.5
      %v1859 = vtanh.pop %v1858
      %v1860 = vadd.f32 %v1859, 1.0
      %v1861 = vmul.f32 %v1860, 0.5
      %v1862 = vtanh.pop %v1832
      %v1863 = vmul.f32 %v1833, 0.5
      %v1864 = vtanh.pop %v1863
      %v1865 = vadd.f32 %v1864, 1.0
      %v1866 = vmul.f32 %v1865, 0.5
      %v1867 = vmul.f32 %v1861, %v1853
      %v1868 = vmul.f32 %v1857, %v1862
      %v1869 = vadd.f32 %v1867, %v1868
      %v1870 = vtanh.pop %v1869
      %v1871 = vmul.f32 %v1866, %v1870
      %v1872 = vpack.c.bf16 %v1852, %v1852
      %1873 = vst [vmem:[#allocation2] sm:$0xf] %v1872
      %1874 = vst [vmem:[#allocation3] sm:$0xff] %v1850
      %v1875 = vpack.c.bf16 %v1871, %v1871
      %1876 = vst [vmem:[#allocation4] sm:$0xf] %v1875
      %1877 = vst [vmem:[#allocation5] sm:$0xff] %v1869
      %s1878 = scalar_lea.vmem %s248, 48
      %1879 = vst [vmem:[%s1878] sm:$0xff] %v1852
      %s1880 = scalar_lea.vmem %s255, 8
      %1881 = vst [vmem:[%s1880] sm:$0xff] %v1871
      %s1882 = scalar_lea.vmem %s232, 112
      %v1883 = vld [vmem:[%s1882] sm:$0xff]
      %v1884 = vld [vmem:[%s1882 + $0x8] sm:$0xff]
      %v1885 = vunpack.c.l.bf16 %v1883
      %v1886 = vunpack.c.h.bf16 %v1883
      %v1887 = vunpack.c.l.bf16 %v1884
      %v1888 = vunpack.c.h.bf16 %v1884
      %v1889 = vld [vmem:[#allocation2] sm:$0xf]
      %1890 = vmatpush.bf16.msra.mxu0 %v463
      %1891 = vmatpush.bf16.msra.mxu0 %v459
      %1892 = vmatpush.bf16.msra.mxu0 %v455
      %1893 = vmatpush.bf16.msra.mxu0 %v451
      %1894 = vmatpush.bf16.msra.mxu0 %v447
      %1895 = vmatpush.bf16.msra.mxu0 %v443
      %1896 = vmatpush.bf16.msra.mxu0 %v439
      %1897 = vmatpush.bf16.msra.mxu0 %v435
      %1898 = vmatmul.bf16.gmra.mxu0 %v1889
      %v1899 = vpop.f32.mrf.mxu0
      %v1900 = vadd.f32 0.0, %v1899
      %v1901 = vpop.f32.mrf.mxu0
      %1902 = vdwg.mxu0
      %1903 = vmatpush.bf16.msra.mxu0 %v464
      %1904 = vmatpush.bf16.msra.mxu0 %v460
      %1905 = vmatpush.bf16.msra.mxu0 %v456
      %1906 = vmatpush.bf16.msra.mxu0 %v452
      %1907 = vmatpush.bf16.msra.mxu0 %v448
      %1908 = vmatpush.bf16.msra.mxu0 %v444
      %1909 = vmatpush.bf16.msra.mxu0 %v440
      %1910 = vmatpush.bf16.msra.mxu0 %v436
      %1911 = vmatmul.bf16.gmra.mxu0 %v1889
      %v1912 = vpop.f32.mrf.mxu0
      %v1913 = vadd.f32 0.0, %v1912
      %v1914 = vpop.f32.mrf.mxu0
      %1915 = vdwg.mxu0
      %1916 = vmatpush.bf16.msra.mxu0 %v465
      %1917 = vmatpush.bf16.msra.mxu0 %v461
      %1918 = vmatpush.bf16.msra.mxu0 %v457
      %1919 = vmatpush.bf16.msra.mxu0 %v453
      %1920 = vmatpush.bf16.msra.mxu0 %v449
      %1921 = vmatpush.bf16.msra.mxu0 %v445
      %1922 = vmatpush.bf16.msra.mxu0 %v441
      %1923 = vmatpush.bf16.msra.mxu0 %v437
      %1924 = vmatmul.bf16.gmra.mxu0 %v1889
      %v1925 = vpop.f32.mrf.mxu0
      %v1926 = vadd.f32 0.0, %v1925
      %v1927 = vpop.f32.mrf.mxu0
      %1928 = vdwg.mxu0
      %1929 = vmatpush.bf16.msra.mxu0 %v466
      %1930 = vmatpush.bf16.msra.mxu0 %v462
      %1931 = vmatpush.bf16.msra.mxu0 %v458
      %1932 = vmatpush.bf16.msra.mxu0 %v454
      %1933 = vmatpush.bf16.msra.mxu0 %v450
      %1934 = vmatpush.bf16.msra.mxu0 %v446
      %1935 = vmatpush.bf16.msra.mxu0 %v442
      %1936 = vmatpush.bf16.msra.mxu0 %v438
      %1937 = vmatmul.bf16.gmra.mxu0 %v1889
      %v1938 = vpop.f32.mrf.mxu0
      %v1939 = vadd.f32 0.0, %v1938
      %v1940 = vpop.f32.mrf.mxu0
      %1941 = vdwg.mxu0
      %v1942 = vadd.f32 %v1885, %v1900
      %v1943 = vadd.f32 %v1886, %v1913
      %v1944 = vadd.f32 %v1887, %v1926
      %v1945 = vadd.f32 %v1888, %v1939
      %v1946 = vld [vmem:[%s241] sm:$0xff]
      %v1947 = vld [vmem:[%s241 + $0x8] sm:$0xff]
      %v1948 = vunpack.c.l.bf16 %v1946
      %v1949 = vunpack.c.h.bf16 %v1946
      %v1950 = vunpack.c.l.bf16 %v1947
      %v1951 = vunpack.c.h.bf16 %v1947
      %v1952 = vld [vmem:[#allocation4] sm:$0xf]
      %1953 = vmatpush.bf16.msra.mxu0 %v687
      %1954 = vmatpush.bf16.msra.mxu0 %v683
      %1955 = vmatpush.bf16.msra.mxu0 %v679
      %1956 = vmatpush.bf16.msra.mxu0 %v675
      %1957 = vmatpush.bf16.msra.mxu0 %v671
      %1958 = vmatpush.bf16.msra.mxu0 %v667
      %1959 = vmatpush.bf16.msra.mxu0 %v663
      %1960 = vmatpush.bf16.msra.mxu0 %v659
      %1961 = vmatmul.bf16.gmra.mxu0 %v1952
      %v1962 = vpop.f32.mrf.mxu0
      %v1963 = vadd.f32 0.0, %v1962
      %v1964 = vpop.f32.mrf.mxu0
      %1965 = vdwg.mxu0
      %1966 = vmatpush.bf16.msra.mxu0 %v688
      %1967 = vmatpush.bf16.msra.mxu0 %v684
      %1968 = vmatpush.bf16.msra.mxu0 %v680
      %1969 = vmatpush.bf16.msra.mxu0 %v676
      %1970 = vmatpush.bf16.msra.mxu0 %v672
      %1971 = vmatpush.bf16.msra.mxu0 %v668
      %1972 = vmatpush.bf16.msra.mxu0 %v664
      %1973 = vmatpush.bf16.msra.mxu0 %v660
      %1974 = vmatmul.bf16.gmra.mxu0 %v1952
      %v1975 = vpop.f32.mrf.mxu0
      %v1976 = vadd.f32 0.0, %v1975
      %v1977 = vpop.f32.mrf.mxu0
      %1978 = vdwg.mxu0
      %1979 = vmatpush.bf16.msra.mxu0 %v689
      %1980 = vmatpush.bf16.msra.mxu0 %v685
      %1981 = vmatpush.bf16.msra.mxu0 %v681
      %1982 = vmatpush.bf16.msra.mxu0 %v677
      %1983 = vmatpush.bf16.msra.mxu0 %v673
      %1984 = vmatpush.bf16.msra.mxu0 %v669
      %1985 = vmatpush.bf16.msra.mxu0 %v665
      %1986 = vmatpush.bf16.msra.mxu0 %v661
      %1987 = vmatmul.bf16.gmra.mxu0 %v1952
      %v1988 = vpop.f32.mrf.mxu0
      %v1989 = vadd.f32 0.0, %v1988
      %v1990 = vpop.f32.mrf.mxu0
      %1991 = vdwg.mxu0
      %1992 = vmatpush.bf16.msra.mxu0 %v690
      %1993 = vmatpush.bf16.msra.mxu0 %v686
      %1994 = vmatpush.bf16.msra.mxu0 %v682
      %1995 = vmatpush.bf16.msra.mxu0 %v678
      %1996 = vmatpush.bf16.msra.mxu0 %v674
      %1997 = vmatpush.bf16.msra.mxu0 %v670
      %1998 = vmatpush.bf16.msra.mxu0 %v666
      %1999 = vmatpush.bf16.msra.mxu0 %v662
      %2000 = vmatmul.bf16.gmra.mxu0 %v1952
      %v2001 = vpop.f32.mrf.mxu0
      %v2002 = vadd.f32 0.0, %v2001
      %v2003 = vpop.f32.mrf.mxu0
      %2004 = vdwg.mxu0
      %v2005 = vadd.f32 %v1948, %v1963
      %v2006 = vadd.f32 %v1949, %v1976
      %v2007 = vadd.f32 %v1950, %v1989
      %v2008 = vadd.f32 %v1951, %v2002
      %v2009 = vld [vmem:[#allocation3] sm:$0xff]
      %v2010 = vmul.f32 %v1942, 0.5
      %v2011 = vtanh.pop %v2010
      %v2012 = vadd.f32 %v2011, 1.0
      %v2013 = vmul.f32 %v2012, 0.5
      %v2014 = vmul.f32 %v1943, 0.5
      %v2015 = vtanh.pop %v2014
      %v2016 = vadd.f32 %v2015, 1.0
      %v2017 = vmul.f32 %v2016, 0.5
      %v2018 = vtanh.pop %v1944
      %v2019 = vmul.f32 %v1945, 0.5
      %v2020 = vtanh.pop %v2019
      %v2021 = vadd.f32 %v2020, 1.0
      %v2022 = vmul.f32 %v2021, 0.5
      %v2023 = vmul.f32 %v2017, %v2009
      %v2024 = vmul.f32 %v2013, %v2018
      %v2025 = vadd.f32 %v2023, %v2024
      %v2026 = vtanh.pop %v2025
      %v2027 = vmul.f32 %v2022, %v2026
      %v2028 = vld [vmem:[#allocation5] sm:$0xff]
      %v2029 = vmul.f32 %v2005, 0.5
      %v2030 = vtanh.pop %v2029
      %v2031 = vadd.f32 %v2030, 1.0
      %v2032 = vmul.f32 %v2031, 0.5
      %v2033 = vmul.f32 %v2006, 0.5
      %v2034 = vtanh.pop %v2033
      %v2035 = vadd.f32 %v2034, 1.0
      %v2036 = vmul.f32 %v2035, 0.5
      %v2037 = vtanh.pop %v2007
      %v2038 = vmul.f32 %v2008, 0.5
      %v2039 = vtanh.pop %v2038
      %v2040 = vadd.f32 %v2039, 1.0
      %v2041 = vmul.f32 %v2040, 0.5
      %v2042 = vmul.f32 %v2036, %v2028
      %v2043 = vmul.f32 %v2032, %v2037
      %v2044 = vadd.f32 %v2042, %v2043
      %v2045 = vtanh.pop %v2044
      %v2046 = vmul.f32 %v2041, %v2045
      %v2047 = vpack.c.bf16 %v2027, %v2027
      %2048 = vst [vmem:[#allocation2] sm:$0xf] %v2047
      %2049 = vst [vmem:[#allocation3] sm:$0xff] %v2025
      %v2050 = vpack.c.bf16 %v2046, %v2046
      %2051 = vst [vmem:[#allocation4] sm:$0xf] %v2050
      %2052 = vst [vmem:[#allocation5] sm:$0xff] %v2044
      %s2053 = scalar_lea.vmem %s248, 56
      %2054 = vst [vmem:[%s2053] sm:$0xff] %v2027
      %2055 = vst [vmem:[%s255] sm:$0xff] %v2046
      %s2056 = smul.u32 8, %s16
      %p2057 = scmp.lt.s32.totalorder %s2056, 15
      %s2058 = scalar_select %p2057, %s2056, 15
      %s2059 = smul.addr %s2058, 8
      %s2060 = scalar_lea.vmem %s3, %s2059
      %s2061 = ssub.s32 1, %s16
      %s2062 = smul.u32 8, %s2061
      %p2063 = scmp.lt.s32.totalorder %s2062, 15
      %s2064 = scalar_select %p2063, %s2062, 15
      %s2065 = smul.addr %s2064, 8
      %s2066 = scalar_lea.vmem %s4, %s2065
      // Predicated region
      $region37: #{rnn_decoder_forward.3} parent=31 // pred_check
        %p2067 = pneg %p109
      $region38: #{rnn_decoder_forward.3} parent=31 // pred_check_branch
        %2069 = sbr.rel (%p2067) target = $region40
      $region39: #{rnn_decoder_forward.3} parent=31 // pred_region
        %s2070 = smul.u32 8, %s16
      $region40: #{rnn_decoder_forward.3} parent=31 // pred_fallthru
        _
      // Predicated region
      $region41: #{rnn_decoder_forward.3} parent=31 // pred_check
        %p2071 = pneg %p137
      $region42: #{rnn_decoder_forward.3} parent=31 // pred_check_branch
        %2073 = sbr.rel (%p2071) target = $region44
      $region43: #{rnn_decoder_forward.3} parent=31 // pred_region
        %s2074 = ssub.s32 1, %s16
        %s2075 = smul.u32 8, %s2074
      $region44: #{rnn_decoder_forward.3} parent=31 // pred_fallthru
        _
    $region32: #{rnn_decoder_forward.3} parent=5 // pred_fallthru
      _
    %p2076 = scmp.le.s32.totalorder 2, %s11
    // Predicated region
    $region45: #{rnn_decoder_forward.3} parent=5 // pred_check
      %p2077 = pneg %p2076
    $region46: #{rnn_decoder_forward.3} parent=5 // pred_check_branch
      %2079 = sbr.rel (%p2077) target = $region48
    $region47: #{rnn_decoder_forward.3} parent=5 // pred_region
      %s2080 = ssub.s32 %s11, 2
      // Predicated region
      $region49: #{rnn_decoder_forward.3} parent=47 // pred_check
        %p2081 = pneg %p115
      $region50: #{rnn_decoder_forward.3} parent=47 // pred_check_branch
        %2083 = sbr.rel (%p2081) target = $region52
      $region51: #{rnn_decoder_forward.3} parent=47 // pred_region
        %s2084 = smul.u32 8, %s17
        %p2085 = scmp.lt.s32.totalorder %s2084, 15
        %s2086 = scalar_select %p2085, %s2084, 15
        %s2087 = smul.addr %s2086, 8
        %s2088 = scalar_lea.vmem %s3, %s2087
      $region52: #{rnn_decoder_forward.3} parent=47 // pred_fallthru
        _
      // Predicated region
      $region53: #{rnn_decoder_forward.3} parent=47 // pred_check
        %p2089 = pneg %p143
      $region54: #{rnn_decoder_forward.3} parent=47 // pred_check_branch
        %2091 = sbr.rel (%p2089) target = $region56
      $region55: #{rnn_decoder_forward.3} parent=47 // pred_region
        %s2092 = ssub.s32 1, %s17
        %s2093 = smul.u32 8, %s2092
        %p2094 = scmp.lt.s32.totalorder %s2093, 15
        %s2095 = scalar_select %p2094, %s2093, 15
        %s2096 = smul.addr %s2095, 8
        %s2097 = scalar_lea.vmem %s4, %s2096
      $region56: #{rnn_decoder_forward.3} parent=47 // pred_fallthru
        _
    $region48: #{rnn_decoder_forward.3} parent=5 // pred_fallthru
      _
  $region6: #{rnn_decoder_forward.3} parent=0 // loop_footer
    %s15 = sadd.s32 1, %s11
  $region7: #{rnn_decoder_forward.3} parent=0 // loop_footer_branch
    %10 = sbr.rel target = $region3
  $region8: #{rnn_decoder_forward.3} parent=0 // loop_exit
    _

// kernel: rnn_decoder_forward.2
$region0: #{rnn_decoder_forward.2}
  #allocation0 [shape = 'u32[]', space=smem, size = 0x4, offset = 0x4, fixed_abs, tag = 'smem constant byte address 0x4 - core index']
  #allocation1 [shape = 'u32[72,128]{1,0:T(1,128)}', space=vmem, size = 0x9000, scoped, tag = 'internal scratch']
  #allocation2 [shape = 'bf16[8,128]{1,0:T(8,128)(2,1)}', space=vmem, size = 0x800, scoped, tag = 'scratch operand']
  #allocation3 [shape = 'f32[8,128]{1,0:T(8,128)}', space=vmem, size = 0x1000, scoped, tag = 'scratch operand']
  #allocation4 [shape = 'bf16[8,128]{1,0:T(8,128)(2,1)}', space=vmem, size = 0x800, scoped, tag = 'scratch operand']
  #allocation5 [shape = 'f32[8,128]{1,0:T(8,128)}', space=vmem, size = 0x1000, scoped, tag = 'scratch operand']
  %s0 = inlined_call_operand.vmem [shape: bf16[2,16,8,512], index: 0, kind: input, shape index: {}, may-alias: {0,1}]
  %s1 = inlined_call_operand.vmem [shape: bf16[2,16,8,512], index: 1, kind: input, shape index: {}, may-alias: {0,1}]
  %s2 = inlined_call_operand.vmem [shape: bf16[2,128,512], index: 2, kind: input, shape index: {}]
  %s3 = inlined_call_operand.vmem [shape: bf16[16,8,128], index: 3, kind: output, shape index: {0}]
  %s4 = inlined_call_operand.vmem [shape: bf16[16,8,128], index: 4, kind: output, shape index: {1}]
  %5 = xla_tuple %s3, %s4
  %s6 = sld [smem:[#allocation0]]
  $region57: #{rnn_decoder_forward.2} parent=0
    _
  %s8 = ssub.s32 1, %s6
  %s9 = scalar_select 0, %s8, %s6
  loop: start=0, step=1, limit=4
  $region2: #{rnn_decoder_forward.2} parent=0 // loop_pre_header
    _
  $region3: #{rnn_decoder_forward.2} parent=0 // loop_header
    %s11 = sphi 0, %s15
    %p12 = scmp.ge.s32.totalorder %s11, 4
    %s21 = sphi 0, %s23
    %s24 = sphi 0, %s21
    %s25 = sphi 0, %s24
    %s41 = sphi 0, %s25
    %s49 = sphi 0, %s51
    %s52 = sphi 0, %s49
    %s53 = sphi 0, %s52
    %s69 = sphi 0, %s53
    %s73 = sphi 0, %s73
    %s75 = sphi 0, %s73
    %s76 = sphi 0, %s75
    %s90 = sphi 0, %s76
    %s96 = sphi 0, %s98
    %s99 = sphi 0, %s96
    %s100 = sphi 0, %s99
    %s116 = sphi 0, %s100
    %s124 = sphi 0, %s126
    %s127 = sphi 0, %s124
    %s128 = sphi 0, %s127
    %s144 = sphi 0, %s128
  $region4: #{rnn_decoder_forward.2} parent=0 // loop_header_branch
    %14 = sbr.rel (%p12) target = $region8
  $region5: #{rnn_decoder_forward.2} parent=0 // loop_body
    %s16 = ssub.s32 %s11, 1
    %s17 = ssub.s32 %s11, 2
    %s18 = sadd.s32 %s11, 1
    %s19 = ssub.s32 %s11, %s18
    %p20 = scmp.eq.s32.totalorder %s19, 0
    %s22 = sadd.s32 %s21, 1
    %s23 = scalar_select %p20, %s21, %s22
    %p26 = pneg %p20
    %p27 = scmp.eq.s32.totalorder %s11, 1
    %p28 = por %p26, %p27
    %p29 = scmp.ne.s32.totalorder %s21, %s24
    %p30 = scmp.eq.s32.totalorder %s11, 0
    %p31 = por %p29, %p30
    %p32 = scmp.ne.s32.totalorder %s21, %s24
    %p33 = scmp.eq.s32.totalorder %s16, 1
    %p34 = por %p32, %p33
    %p35 = scmp.ne.s32.totalorder %s24, %s25
    %p36 = scmp.eq.s32.totalorder %s16, 0
    %p37 = por %p35, %p36
    %p38 = scmp.ne.s32.totalorder %s24, %s25
    %p39 = scmp.eq.s32.totalorder %s17, 1
    %p40 = por %p38, %p39
    %p42 = scmp.ne.s32.totalorder %s25, %s41
    %p43 = scmp.eq.s32.totalorder %s17, 0
    %p44 = por %p42, %p43
    %s45 = ssub.s32 1, %s11
    %s46 = ssub.s32 1, %s18
    %s47 = ssub.s32 %s45, %s46
    %p48 = scmp.eq.s32.totalorder %s47, 0
    %s50 = sadd.s32 %s49, 1
    %s51 = scalar_select %p48, %s49, %s50
    %p54 = pneg %p48
    %p55 = scmp.eq.s32.totalorder %s11, 1
    %p56 = por %p54, %p55
    %p57 = scmp.ne.s32.totalorder %s49, %s52
    %p58 = scmp.eq.s32.totalorder %s11, 0
    %p59 = por %p57, %p58
    %p60 = scmp.ne.s32.totalorder %s49, %s52
    %p61 = scmp.eq.s32.totalorder %s16, 1
    %p62 = por %p60, %p61
    %p63 = scmp.ne.s32.totalorder %s52, %s53
    %p64 = scmp.eq.s32.totalorder %s16, 0
    %p65 = por %p63, %p64
    %p66 = scmp.ne.s32.totalorder %s52, %s53
    %p67 = scmp.eq.s32.totalorder %s17, 1
    %p68 = por %p66, %p67
    %p70 = scmp.ne.s32.totalorder %s53, %s69
    %p71 = scmp.eq.s32.totalorder %s17, 0
    %p72 = por %p70, %p71
    %s74 = sadd.s32 %s73, 1
    %p77 = scmp.eq.s32.totalorder %s11, 1
    %p78 = scmp.ne.s32.totalorder %s73, %s75
    %p79 = scmp.eq.s32.totalorder %s11, 0
    %p80 = por %p78, %p79
    %p81 = scmp.ne.s32.totalorder %s73, %s75
    %p82 = scmp.eq.s32.totalorder %s16, 1
    %p83 = por %p81, %p82
    %p84 = scmp.ne.s32.totalorder %s75, %s76
    %p85 = scmp.eq.s32.totalorder %s16, 0
    %p86 = por %p84, %p85
    %p87 = scmp.ne.s32.totalorder %s75, %s76
    %p88 = scmp.eq.s32.totalorder %s17, 1
    %p89 = por %p87, %p88
    %p91 = scmp.ne.s32.totalorder %s76, %s90
    %p92 = scmp.eq.s32.totalorder %s17, 0
    %p93 = por %p91, %p92
    %s94 = ssub.s32 %s11, %s18
    %p95 = scmp.eq.s32.totalorder %s94, 0
    %s97 = sadd.s32 %s96, 1
    %s98 = scalar_select %p95, %s96, %s97
    %p101 = pneg %p95
    %p102 = scmp.eq.s32.totalorder %s11, 1
    %p103 = por %p101, %p102
    %p104 = scmp.ne.s32.totalorder %s96, %s99
    %p105 = scmp.eq.s32.totalorder %s11, 0
    %p106 = por %p104, %p105
    %p107 = scmp.ne.s32.totalorder %s96, %s99
    %p108 = scmp.eq.s32.totalorder %s16, 1
    %p109 = por %p107, %p108
    %p110 = scmp.ne.s32.totalorder %s99, %s100
    %p111 = scmp.eq.s32.totalorder %s16, 0
    %p112 = por %p110, %p111
    %p113 = scmp.ne.s32.totalorder %s99, %s100
    %p114 = scmp.eq.s32.totalorder %s17, 1
    %p115 = por %p113, %p114
    %p117 = scmp.ne.s32.totalorder %s100, %s116
    %p118 = scmp.eq.s32.totalorder %s17, 0
    %p119 = por %p117, %p118
    %s120 = ssub.s32 1, %s11
    %s121 = ssub.s32 1, %s18
    %s122 = ssub.s32 %s120, %s121
    %p123 = scmp.eq.s32.totalorder %s122, 0
    %s125 = sadd.s32 %s124, 1
    %s126 = scalar_select %p123, %s124, %s125
    %p129 = pneg %p123
    %p130 = scmp.eq.s32.totalorder %s11, 1
    %p131 = por %p129, %p130
    %p132 = scmp.ne.s32.totalorder %s124, %s127
    %p133 = scmp.eq.s32.totalorder %s11, 0
    %p134 = por %p132, %p133
    %p135 = scmp.ne.s32.totalorder %s124, %s127
    %p136 = scmp.eq.s32.totalorder %s16, 1
    %p137 = por %p135, %p136
    %p138 = scmp.ne.s32.totalorder %s127, %s128
    %p139 = scmp.eq.s32.totalorder %s16, 0
    %p140 = por %p138, %p139
    %p141 = scmp.ne.s32.totalorder %s127, %s128
    %p142 = scmp.eq.s32.totalorder %s17, 1
    %p143 = por %p141, %p142
    %p145 = scmp.ne.s32.totalorder %s128, %s144
    %p146 = scmp.eq.s32.totalorder %s17, 0
    %p147 = por %p145, %p146
    %p148 = scmp.le.s32.totalorder 1, %s11
    %p149 = scmp.lt.s32.totalorder %s11, 3
    %p150 = pnand %p148, %p149
    %p151 = pneg %p150
    // Predicated region
    $region9: #{rnn_decoder_forward.2} parent=5 // pred_check
      _
    $region10: #{rnn_decoder_forward.2} parent=5 // pred_check_branch
      %153 = sbr.rel (%p150) target = $region12
    $region11: #{rnn_decoder_forward.2} parent=5 // pred_region
      %s154 = ssub.s32 %s11, 1
      // Predicated region
      $region13: #{rnn_decoder_forward.2} parent=11 // pred_check
        %p155 = pneg %p86
      $region14: #{rnn_decoder_forward.2} parent=11 // pred_check_branch
        %157 = sbr.rel (%p155) target = $region16
      $region15: #{rnn_decoder_forward.2} parent=11 // pred_region
        _
      $region16: #{rnn_decoder_forward.2} parent=11 // pred_fallthru
        _
    $region12: #{rnn_decoder_forward.2} parent=5 // pred_fallthru
      _
    %p158 = scmp.lt.s32.totalorder %s11, 2
    // Predicated region
    $region17: #{rnn_decoder_forward.2} parent=5 // pred_check
      %p159 = pneg %p158
    $region18: #{rnn_decoder_forward.2} parent=5 // pred_check_branch
      %161 = sbr.rel (%p159) target = $region20
    $region19: #{rnn_decoder_forward.2} parent=5 // pred_region
      // Predicated region
      $region21: #{rnn_decoder_forward.2} parent=19 // pred_check
        %p162 = pneg %p31
      $region22: #{rnn_decoder_forward.2} parent=19 // pred_check_branch
        %164 = sbr.rel (%p162) target = $region24
      $region23: #{rnn_decoder_forward.2} parent=19 // pred_region
        %s165 = smul.u32 8, %s11
        %p166 = scmp.lt.s32.totalorder %s165, 15
        %s167 = scalar_select %p166, %s165, 15
        %s168 = smul.addr %s167, 4
        %s169 = smul.addr %s168, 4
        %s170 = scalar_lea.vmem %s0, %s169
        %s171 = smul.u32 8, %s11
      $region24: #{rnn_decoder_forward.2} parent=19 // pred_fallthru
        _
      // Predicated region
      $region25: #{rnn_decoder_forward.2} parent=19 // pred_check
        %p172 = pneg %p59
      $region26: #{rnn_decoder_forward.2} parent=19 // pred_check_branch
        %174 = sbr.rel (%p172) target = $region28
      $region27: #{rnn_decoder_forward.2} parent=19 // pred_region
        %s175 = ssub.s32 1, %s11
        %s176 = smul.u32 8, %s175
        %p177 = scmp.lt.s32.totalorder %s176, 15
        %s178 = scalar_select %p177, %s176, 15
        %s179 = smul.addr %s178, 4
        %s180 = sadd.s32 %s179, 64
        %s181 = smul.addr %s180, 4
        %s182 = scalar_lea.vmem %s1, %s181
        %s183 = ssub.s32 1, %s11
        %s184 = smul.u32 8, %s183
      $region28: #{rnn_decoder_forward.2} parent=19 // pred_fallthru
        _
    $region20: #{rnn_decoder_forward.2} parent=5 // pred_fallthru
      _
    %p185 = scmp.le.s32.totalorder 1, %s11
    %p186 = scmp.lt.s32.totalorder %s11, 3
    %p187 = pnand %p185, %p186
    %p188 = pneg %p187
    // Predicated region
    $region29: #{rnn_decoder_forward.2} parent=5 // pred_check
      _
    $region30: #{rnn_decoder_forward.2} parent=5 // pred_check_branch
      %190 = sbr.rel (%p187) target = $region32
    $region31: #{rnn_decoder_forward.2} parent=5 // pred_region
      %s191 = ssub.s32 %s11, 1
      %s192 = smul.u32 8, %s16
      %p193 = scmp.lt.s32.totalorder %s192, 15
      %s194 = scalar_select %p193, %s192, 15
      %s195 = smul.addr %s194, 4
      %s196 = smul.addr %s195, 4
      %s197 = scalar_lea.vmem %s0, %s196
      %p198 = pneg %p37
      %p199 = pneg %p34
      %s200 = ssub.s32 1, %s16
      %s201 = smul.u32 8, %s200
      %p202 = scmp.lt.s32.totalorder %s201, 15
      %s203 = scalar_select %p202, %s201, 15
      %s204 = smul.addr %s203, 4
      %s205 = sadd.s32 %s204, 64
      %s206 = smul.addr %s205, 4
      %s207 = scalar_lea.vmem %s1, %s206
      %p208 = pneg %p65
      %p209 = pneg %p62
      %p210 = pneg %p86
      %p211 = pneg %p83
      %p212 = pneg %p112
      %p213 = pneg %p109
      %s214 = smul.u32 8, %s16
      %p215 = scmp.lt.s32.totalorder %s214, 15
      %s216 = scalar_select %p215, %s214, 15
      %s217 = smul.addr %s216, 4
      %s218 = scalar_lea.vmem %s3, %s217
      %p219 = pneg %p140
      %p220 = pneg %p137
      %s221 = ssub.s32 1, %s16
      %s222 = smul.u32 8, %s221
      %p223 = scmp.lt.s32.totalorder %s222, 15
      %s224 = scalar_select %p223, %s222, 15
      %s225 = smul.addr %s224, 4
      %s226 = scalar_lea.vmem %s4, %s225
      %s227 = smul.u32 8, %s16
      %p228 = scmp.lt.s32.totalorder %s227, 15
      %s229 = scalar_select %p228, %s227, 15
      %s230 = smul.addr %s229, 4
      %s231 = smul.addr %s230, 4
      %s232 = scalar_lea.vmem %s0, %s231
      %s233 = smul.u32 8, %s16
      %s234 = ssub.s32 1, %s16
      %s235 = smul.u32 8, %s234
      %p236 = scmp.lt.s32.totalorder %s235, 15
      %s237 = scalar_select %p236, %s235, 15
      %s238 = smul.addr %s237, 4
      %s239 = sadd.s32 %s238, 64
      %s240 = smul.addr %s239, 4
      %s241 = scalar_lea.vmem %s1, %s240
      %s242 = ssub.s32 1, %s16
      %s243 = smul.u32 8, %s242
      %s244 = smul.u32 8, %s16
      %p245 = scmp.lt.s32.totalorder %s244, 15
      %s246 = scalar_select %p245, %s244, 15
      %s247 = smul.addr %s246, 4
      %s248 = scalar_lea.vmem %s3, %s247
      %s249 = smul.u32 8, %s16
      %s250 = ssub.s32 1, %s16
      %s251 = smul.u32 8, %s250
      %p252 = scmp.lt.s32.totalorder %s251, 15
      %s253 = scalar_select %p252, %s251, 15
      %s254 = smul.addr %s253, 4
      %s255 = scalar_lea.vmem %s4, %s254
      %s256 = ssub.s32 1, %s16
      %s257 = smul.u32 8, %s256
      %p259 = scmp.eq.s32.totalorder %s16, 0
      // Predicated region
      $region33: #{rnn_decoder_forward.2} parent=31 // pred_check
        %p260 = pneg %p259
      $region34: #{rnn_decoder_forward.2} parent=31 // pred_check_branch
        %262 = sbr.rel (%p260) target = $region36
      $region35: #{rnn_decoder_forward.2} parent=31 // pred_region
        %263 = vst [vmem:[#allocation2] sm:$0xf] 0
        %264 = vst [vmem:[#allocation3] sm:$0xff] 0.0
        %265 = vst [vmem:[#allocation4] sm:$0xf] 0
        %266 = vst [vmem:[#allocation5] sm:$0xff] 0.0
      $region36: #{rnn_decoder_forward.2} parent=31 // pred_fallthru
        _
      %v267 = vld [vmem:[%s2] sm:$0xff]
      %v268 = vld [vmem:[%s2 + $0x8] sm:$0xff]
      %v269 = vld [vmem:[%s2 + $0x10] sm:$0xff]
      %v270 = vld [vmem:[%s2 + $0x18] sm:$0xff]
      %v271 = vld [vmem:[%s2 + $0x20] sm:$0xff]
      %v272 = vld [vmem:[%s2 + $0x28] sm:$0xff]
      %v273 = vld [vmem:[%s2 + $0x30] sm:$0xff]
      %v274 = vld [vmem:[%s2 + $0x38] sm:$0xff]
      %v275 = vld [vmem:[%s2 + $0x40] sm:$0xff]
      %v276 = vld [vmem:[%s2 + $0x48] sm:$0xff]
      %v277 = vld [vmem:[%s2 + $0x50] sm:$0xff]
      %v278 = vld [vmem:[%s2 + $0x58] sm:$0xff]
      %v279 = vld [vmem:[%s2 + $0x60] sm:$0xff]
      %v280 = vld [vmem:[%s2 + $0x68] sm:$0xff]
      %v281 = vld [vmem:[%s2 + $0x70] sm:$0xff]
      %v282 = vld [vmem:[%s2 + $0x78] sm:$0xff]
      %v283 = vld [vmem:[%s2 + $0x80] sm:$0xff]
      %v284 = vld [vmem:[%s2 + $0x88] sm:$0xff]
      %v285 = vld [vmem:[%s2 + $0x90] sm:$0xff]
      %v286 = vld [vmem:[%s2 + $0x98] sm:$0xff]
      %v287 = vld [vmem:[%s2 + $0xa0] sm:$0xff]
      %v288 = vld [vmem:[%s2 + $0xa8] sm:$0xff]
      %v289 = vld [vmem:[%s2 + $0xb0] sm:$0xff]
      %v290 = vld [vmem:[%s2 + $0xb8] sm:$0xff]
      %v291 = vld [vmem:[%s2 + $0xc0] sm:$0xff]
      %v292 = vld [vmem:[%s2 + $0xc8] sm:$0xff]
      %v293 = vld [vmem:[%s2 + $0xd0] sm:$0xff]
      %v294 = vld [vmem:[%s2 + $0xd8] sm:$0xff]
      %v295 = vld [vmem:[%s2 + $0xe0] sm:$0xff]
      %v296 = vld [vmem:[%s2 + $0xe8] sm:$0xff]
      %v297 = vld [vmem:[%s2 + $0xf0] sm:$0xff]
      %v298 = vld [vmem:[%s2 + $0xf8] sm:$0xff]
      %s299 = scalar_lea.vmem %s2, 256
      %v300 = vld [vmem:[%s299] sm:$0xff]
      %v301 = vld [vmem:[%s299 + $0x8] sm:$0xff]
      %v302 = vld [vmem:[%s299 + $0x10] sm:$0xff]
      %v303 = vld [vmem:[%s299 + $0x18] sm:$0xff]
      %v304 = vld [vmem:[%s299 + $0x20] sm:$0xff]
      %v305 = vld [vmem:[%s299 + $0x28] sm:$0xff]
      %v306 = vld [vmem:[%s299 + $0x30] sm:$0xff]
      %v307 = vld [vmem:[%s299 + $0x38] sm:$0xff]
      %v308 = vld [vmem:[%s299 + $0x40] sm:$0xff]
      %v309 = vld [vmem:[%s299 + $0x48] sm:$0xff]
      %v310 = vld [vmem:[%s299 + $0x50] sm:$0xff]
      %v311 = vld [vmem:[%s299 + $0x58] sm:$0xff]
      %v312 = vld [vmem:[%s299 + $0x60] sm:$0xff]
      %v313 = vld [vmem:[%s299 + $0x68] sm:$0xff]
      %v314 = vld [vmem:[%s299 + $0x70] sm:$0xff]
      %v315 = vld [vmem:[%s299 + $0x78] sm:$0xff]
      %v316 = vld [vmem:[%s299 + $0x80] sm:$0xff]
      %v317 = vld [vmem:[%s299 + $0x88] sm:$0xff]
      %v318 = vld [vmem:[%s299 + $0x90] sm:$0xff]
      %v319 = vld [vmem:[%s299 + $0x98] sm:$0xff]
      %v320 = vld [vmem:[%s299 + $0xa0] sm:$0xff]
      %v321 = vld [vmem:[%s299 + $0xa8] sm:$0xff]
      %v322 = vld [vmem:[%s299 + $0xb0] sm:$0xff]
      %v323 = vld [vmem:[%s299 + $0xb8] sm:$0xff]
      %v324 = vld [vmem:[%s299 + $0xc0] sm:$0xff]
      %v325 = vld [vmem:[%s299 + $0xc8] sm:$0xff]
      %v326 = vld [vmem:[%s299 + $0xd0] sm:$0xff]
      %v327 = vld [vmem:[%s299 + $0xd8] sm:$0xff]
      %v328 = vld [vmem:[%s299 + $0xe0] sm:$0xff]
      %v329 = vld [vmem:[%s299 + $0xe8] sm:$0xff]
      %v330 = vld [vmem:[%s299 + $0xf0] sm:$0xff]
      %v331 = vld [vmem:[%s299 + $0xf8] sm:$0xff]
      %v332 = vld [vmem:[%s232] sm:$0xff]
      %v333 = vld [vmem:[%s232 + $0x8] sm:$0xff]
      %v334 = vunpack.c.l.bf16 %v332
      %v335 = vunpack.c.h.bf16 %v332
      %v336 = vunpack.c.l.bf16 %v333
      %v337 = vunpack.c.h.bf16 %v333
      %v338 = vld [vmem:[#allocation2] sm:$0xf]
      %v371 = vunpack.c.l.b16 %v267
      %v372 = vunpack.c.h.b16 %v267
      %v373 = vunpack.c.l.b16 %v268
      %v374 = vunpack.c.h.b16 %v268
      %v375 = vunpack.c.l.b16 %v269
      %v376 = vunpack.c.h.b16 %v269
      %v377 = vunpack.c.l.b16 %v270
      %v378 = vunpack.c.h.b16 %v270
      %v379 = vunpack.c.l.b16 %v271
      %v380 = vunpack.c.h.b16 %v271
      %v381 = vunpack.c.l.b16 %v272
      %v382 = vunpack.c.h.b16 %v272
      %v383 = vunpack.c.l.b16 %v273
      %v384 = vunpack.c.h.b16 %v273
      %v385 = vunpack.c.l.b16 %v274
      %v386 = vunpack.c.h.b16 %v274
      %v387 = vunpack.c.l.b16 %v275
      %v388 = vunpack.c.h.b16 %v275
      %v389 = vunpack.c.l.b16 %v276
      %v390 = vunpack.c.h.b16 %v276
      %v391 = vunpack.c.l.b16 %v277
      %v392 = vunpack.c.h.b16 %v277
      %v393 = vunpack.c.l.b16 %v278
      %v394 = vunpack.c.h.b16 %v278
      %v395 = vunpack.c.l.b16 %v279
      %v396 = vunpack.c.h.b16 %v279
      %v397 = vunpack.c.l.b16 %v280
      %v398 = vunpack.c.h.b16 %v280
      %v399 = vunpack.c.l.b16 %v281
      %v400 = vunpack.c.h.b16 %v281
      %v401 = vunpack.c.l.b16 %v282
      %v402 = vunpack.c.h.b16 %v282
      %v403 = vunpack.c.l.b16 %v283
      %v404 = vunpack.c.h.b16 %v283
      %v405 = vunpack.c.l.b16 %v284
      %v406 = vunpack.c.h.b16 %v284
      %v407 = vunpack.c.l.b16 %v285
      %v408 = vunpack.c.h.b16 %v285
      %v409 = vunpack.c.l.b16 %v286
      %v410 = vunpack.c.h.b16 %v286
      %v411 = vunpack.c.l.b16 %v287
      %v412 = vunpack.c.h.b16 %v287
      %v413 = vunpack.c.l.b16 %v288
      %v414 = vunpack.c.h.b16 %v288
      %v415 = vunpack.c.l.b16 %v289
      %v416 = vunpack.c.h.b16 %v289
      %v417 = vunpack.c.l.b16 %v290
      %v418 = vunpack.c.h.b16 %v290
      %v419 = vunpack.c.l.b16 %v291
      %v420 = vunpack.c.h.b16 %v291
      %v421 = vunpack.c.l.b16 %v292
      %v422 = vunpack.c.h.b16 %v292
      %v423 = vunpack.c.l.b16 %v293
      %v424 = vunpack.c.h.b16 %v293
      %v425 = vunpack.c.l.b16 %v294
      %v426 = vunpack.c.h.b16 %v294
      %v427 = vunpack.c.l.b16 %v295
      %v428 = vunpack.c.h.b16 %v295
      %v429 = vunpack.c.l.b16 %v296
      %v430 = vunpack.c.h.b16 %v296
      %v431 = vunpack.c.l.b16 %v297
      %v432 = vunpack.c.h.b16 %v297
      %v433 = vunpack.c.l.b16 %v298
      %v434 = vunpack.c.h.b16 %v298
      %v435 = vpack.c.b16 %v375, %v371
      %v436 = vpack.c.b16 %v376, %v372
      %v437 = vpack.c.b16 %v377, %v373
      %v438 = vpack.c.b16 %v378, %v374
      %v439 = vpack.c.b16 %v383, %v379
      %v440 = vpack.c.b16 %v384, %v380
      %v441 = vpack.c.b16 %v385, %v381
      %v442 = vpack.c.b16 %v386, %v382
      %v443 = vpack.c.b16 %v391, %v387
      %v444 = vpack.c.b16 %v392, %v388
      %v445 = vpack.c.b16 %v393, %v389
      %v446 = vpack.c.b16 %v394, %v390
      %v447 = vpack.c.b16 %v399, %v395
      %v448 = vpack.c.b16 %v400, %v396
      %v449 = vpack.c.b16 %v401, %v397
      %v450 = vpack.c.b16 %v402, %v398
      %v451 = vpack.c.b16 %v407, %v403
      %v452 = vpack.c.b16 %v408, %v404
      %v453 = vpack.c.b16 %v409, %v405
      %v454 = vpack.c.b16 %v410, %v406
      %v455 = vpack.c.b16 %v415, %v411
      %v456 = vpack.c.b16 %v416, %v412
      %v457 = vpack.c.b16 %v417, %v413
      %v458 = vpack.c.b16 %v418, %v414
      %v459 = vpack.c.b16 %v423, %v419
      %v460 = vpack.c.b16 %v424, %v420
      %v461 = vpack.c.b16 %v425, %v421
      %v462 = vpack.c.b16 %v426, %v422
      %v463 = vpack.c.b16 %v431, %v427
      %v464 = vpack.c.b16 %v432, %v428
      %v465 = vpack.c.b16 %v433, %v429
      %v466 = vpack.c.b16 %v434, %v430
      %499 = vmatpush.bf16.msra.mxu0 %v463
      %500 = vmatpush.bf16.msra.mxu0 %v459
      %501 = vmatpush.bf16.msra.mxu0 %v455
      %502 = vmatpush.bf16.msra.mxu0 %v451
      %503 = vmatpush.bf16.msra.mxu0 %v447
      %504 = vmatpush.bf16.msra.mxu0 %v443
      %505 = vmatpush.bf16.msra.mxu0 %v439
      %506 = vmatpush.bf16.msra.mxu0 %v435
      %507 = vmatmul.bf16.gmra.mxu0 %v338
      %v508 = vpop.f32.mrf.mxu0
      %v509 = vadd.f32 0.0, %v508
      %v510 = vpop.f32.mrf.mxu0
      %511 = vdwg.mxu0
      %512 = vmatpush.bf16.msra.mxu0 %v464
      %513 = vmatpush.bf16.msra.mxu0 %v460
      %514 = vmatpush.bf16.msra.mxu0 %v456
      %515 = vmatpush.bf16.msra.mxu0 %v452
      %516 = vmatpush.bf16.msra.mxu0 %v448
      %517 = vmatpush.bf16.msra.mxu0 %v444
      %518 = vmatpush.bf16.msra.mxu0 %v440
      %519 = vmatpush.bf16.msra.mxu0 %v436
      %520 = vmatmul.bf16.gmra.mxu0 %v338
      %v521 = vpop.f32.mrf.mxu0
      %v522 = vadd.f32 0.0, %v521
      %v523 = vpop.f32.mrf.mxu0
      %524 = vdwg.mxu0
      %525 = vmatpush.bf16.msra.mxu0 %v465
      %526 = vmatpush.bf16.msra.mxu0 %v461
      %527 = vmatpush.bf16.msra.mxu0 %v457
      %528 = vmatpush.bf16.msra.mxu0 %v453
      %529 = vmatpush.bf16.msra.mxu0 %v449
      %530 = vmatpush.bf16.msra.mxu0 %v445
      %531 = vmatpush.bf16.msra.mxu0 %v441
      %532 = vmatpush.bf16.msra.mxu0 %v437
      %533 = vmatmul.bf16.gmra.mxu0 %v338
      %v534 = vpop.f32.mrf.mxu0
      %v535 = vadd.f32 0.0, %v534
      %v536 = vpop.f32.mrf.mxu0
      %537 = vdwg.mxu0
      %538 = vmatpush.bf16.msra.mxu0 %v466
      %539 = vmatpush.bf16.msra.mxu0 %v462
      %540 = vmatpush.bf16.msra.mxu0 %v458
      %541 = vmatpush.bf16.msra.mxu0 %v454
      %542 = vmatpush.bf16.msra.mxu0 %v450
      %543 = vmatpush.bf16.msra.mxu0 %v446
      %544 = vmatpush.bf16.msra.mxu0 %v442
      %545 = vmatpush.bf16.msra.mxu0 %v438
      %546 = vmatmul.bf16.gmra.mxu0 %v338
      %v547 = vpop.f32.mrf.mxu0
      %v548 = vadd.f32 0.0, %v547
      %v549 = vpop.f32.mrf.mxu0
      %550 = vdwg.mxu0
      %v551 = vadd.f32 %v334, %v509
      %v552 = vadd.f32 %v335, %v522
      %v553 = vadd.f32 %v336, %v535
      %v554 = vadd.f32 %v337, %v548
      %s555 = scalar_lea.vmem %s241, 112
      %v556 = vld [vmem:[%s555] sm:$0xff]
      %v557 = vld [vmem:[%s555 + $0x8] sm:$0xff]
      %v558 = vunpack.c.l.bf16 %v556
      %v559 = vunpack.c.h.bf16 %v556
      %v560 = vunpack.c.l.bf16 %v557
      %v561 = vunpack.c.h.bf16 %v557
      %v562 = vld [vmem:[#allocation4] sm:$0xf]
      %v595 = vunpack.c.l.b16 %v300
      %v596 = vunpack.c.h.b16 %v300
      %v597 = vunpack.c.l.b16 %v301
      %v598 = vunpack.c.h.b16 %v301
      %v599 = vunpack.c.l.b16 %v302
      %v600 = vunpack.c.h.b16 %v302
      %v601 = vunpack.c.l.b16 %v303
      %v602 = vunpack.c.h.b16 %v303
      %v603 = vunpack.c.l.b16 %v304
      %v604 = vunpack.c.h.b16 %v304
      %v605 = vunpack.c.l.b16 %v305
      %v606 = vunpack.c.h.b16 %v305
      %v607 = vunpack.c.l.b16 %v306
      %v608 = vunpack.c.h.b16 %v306
      %v609 = vunpack.c.l.b16 %v307
      %v610 = vunpack.c.h.b16 %v307
      %v611 = vunpack.c.l.b16 %v308
      %v612 = vunpack.c.h.b16 %v308
      %v613 = vunpack.c.l.b16 %v309
      %v614 = vunpack.c.h.b16 %v309
      %v615 = vunpack.c.l.b16 %v310
      %v616 = vunpack.c.h.b16 %v310
      %v617 = vunpack.c.l.b16 %v311
      %v618 = vunpack.c.h.b16 %v311
      %v619 = vunpack.c.l.b16 %v312
      %v620 = vunpack.c.h.b16 %v312
      %v621 = vunpack.c.l.b16 %v313
      %v622 = vunpack.c.h.b16 %v313
      %v623 = vunpack.c.l.b16 %v314
      %v624 = vunpack.c.h.b16 %v314
      %v625 = vunpack.c.l.b16 %v315
      %v626 = vunpack.c.h.b16 %v315
      %v627 = vunpack.c.l.b16 %v316
      %v628 = vunpack.c.h.b16 %v316
      %v629 = vunpack.c.l.b16 %v317
      %v630 = vunpack.c.h.b16 %v317
      %v631 = vunpack.c.l.b16 %v318
      %v632 = vunpack.c.h.b16 %v318
      %v633 = vunpack.c.l.b16 %v319
      %v634 = vunpack.c.h.b16 %v319
      %v635 = vunpack.c.l.b16 %v320
      %v636 = vunpack.c.h.b16 %v320
      %v637 = vunpack.c.l.b16 %v321
      %v638 = vunpack.c.h.b16 %v321
      %v639 = vunpack.c.l.b16 %v322
      %v640 = vunpack.c.h.b16 %v322
      %v641 = vunpack.c.l.b16 %v323
      %v642 = vunpack.c.h.b16 %v323
      %v643 = vunpack.c.l.b16 %v324
      %v644 = vunpack.c.h.b16 %v324
      %v645 = vunpack.c.l.b16 %v325
      %v646 = vunpack.c.h.b16 %v325
      %v647 = vunpack.c.l.b16 %v326
      %v648 = vunpack.c.h.b16 %v326
      %v649 = vunpack.c.l.b16 %v327
      %v650 = vunpack.c.h.b16 %v327
      %v651 = vunpack.c.l.b16 %v328
      %v652 = vunpack.c.h.b16 %v328
      %v653 = vunpack.c.l.b16 %v329
      %v654 = vunpack.c.h.b16 %v329
      %v655 = vunpack.c.l.b16 %v330
      %v656 = vunpack.c.h.b16 %v330
      %v657 = vunpack.c.l.b16 %v331
      %v658 = vunpack.c.h.b16 %v331
      %v659 = vpack.c.b16 %v599, %v595
      %v660 = vpack.c.b16 %v600, %v596
      %v661 = vpack.c.b16 %v601, %v597
      %v662 = vpack.c.b16 %v602, %v598
      %v663 = vpack.c.b16 %v607, %v603
      %v664 = vpack.c.b16 %v608, %v604
      %v665 = vpack.c.b16 %v609, %v605
      %v666 = vpack.c.b16 %v610, %v606
      %v667 = vpack.c.b16 %v615, %v611
      %v668 = vpack.c.b16 %v616, %v612
      %v669 = vpack.c.b16 %v617, %v613
      %v670 = vpack.c.b16 %v618, %v614
      %v671 = vpack.c.b16 %v623, %v619
      %v672 = vpack.c.b16 %v624, %v620
      %v673 = vpack.c.b16 %v625, %v621
      %v674 = vpack.c.b16 %v626, %v622
      %v675 = vpack.c.b16 %v631, %v627
      %v676 = vpack.c.b16 %v632, %v628
      %v677 = vpack.c.b16 %v633, %v629
      %v678 = vpack.c.b16 %v634, %v630
      %v679 = vpack.c.b16 %v639, %v635
      %v680 = vpack.c.b16 %v640, %v636
      %v681 = vpack.c.b16 %v641, %v637
      %v682 = vpack.c.b16 %v642, %v638
      %v683 = vpack.c.b16 %v647, %v643
      %v684 = vpack.c.b16 %v648, %v644
      %v685 = vpack.c.b16 %v649, %v645
      %v686 = vpack.c.b16 %v650, %v646
      %v687 = vpack.c.b16 %v655, %v651
      %v688 = vpack.c.b16 %v656, %v652
      %v689 = vpack.c.b16 %v657, %v653
      %v690 = vpack.c.b16 %v658, %v654
      %723 = vmatpush.bf16.msra.mxu0 %v687
      %724 = vmatpush.bf16.msra.mxu0 %v683
      %725 = vmatpush.bf16.msra.mxu0 %v679
      %726 = vmatpush.bf16.msra.mxu0 %v675
      %727 = vmatpush.bf16.msra.mxu0 %v671
      %728 = vmatpush.bf16.msra.mxu0 %v667
      %729 = vmatpush.bf16.msra.mxu0 %v663
      %730 = vmatpush.bf16.msra.mxu0 %v659
      %731 = vmatmul.bf16.gmra.mxu0 %v562
      %v732 = vpop.f32.mrf.mxu0
      %v733 = vadd.f32 0.0, %v732
      %v734 = vpop.f32.mrf.mxu0
      %735 = vdwg.mxu0
      %736 = vmatpush.bf16.msra.mxu0 %v688
      %737 = vmatpush.bf16.msra.mxu0 %v684
      %738 = vmatpush.bf16.msra.mxu0 %v680
      %739 = vmatpush.bf16.msra.mxu0 %v676
      %740 = vmatpush.bf16.msra.mxu0 %v672
      %741 = vmatpush.bf16.msra.mxu0 %v668
      %742 = vmatpush.bf16.msra.mxu0 %v664
      %743 = vmatpush.bf16.msra.mxu0 %v660
      %744 = vmatmul.bf16.gmra.mxu0 %v562
      %v745 = vpop.f32.mrf.mxu0
      %v746 = vadd.f32 0.0, %v745
      %v747 = vpop.f32.mrf.mxu0
      %748 = vdwg.mxu0
      %749 = vmatpush.bf16.msra.mxu0 %v689
      %750 = vmatpush.bf16.msra.mxu0 %v685
      %751 = vmatpush.bf16.msra.mxu0 %v681
      %752 = vmatpush.bf16.msra.mxu0 %v677
      %753 = vmatpush.bf16.msra.mxu0 %v673
      %754 = vmatpush.bf16.msra.mxu0 %v669
      %755 = vmatpush.bf16.msra.mxu0 %v665
      %756 = vmatpush.bf16.msra.mxu0 %v661
      %757 = vmatmul.bf16.gmra.mxu0 %v562
      %v758 = vpop.f32.mrf.mxu0
      %v759 = vadd.f32 0.0, %v758
      %v760 = vpop.f32.mrf.mxu0
      %761 = vdwg.mxu0
      %762 = vmatpush.bf16.msra.mxu0 %v690
      %763 = vmatpush.bf16.msra.mxu0 %v686
      %764 = vmatpush.bf16.msra.mxu0 %v682
      %765 = vmatpush.bf16.msra.mxu0 %v678
      %766 = vmatpush.bf16.msra.mxu0 %v674
      %767 = vmatpush.bf16.msra.mxu0 %v670
      %768 = vmatpush.bf16.msra.mxu0 %v666
      %769 = vmatpush.bf16.msra.mxu0 %v662
      %770 = vmatmul.bf16.gmra.mxu0 %v562
      %v771 = vpop.f32.mrf.mxu0
      %v772 = vadd.f32 0.0, %v771
      %v773 = vpop.f32.mrf.mxu0
      %774 = vdwg.mxu0
      %v775 = vadd.f32 %v558, %v733
      %v776 = vadd.f32 %v559, %v746
      %v777 = vadd.f32 %v560, %v759
      %v778 = vadd.f32 %v561, %v772
      %v779 = vld [vmem:[#allocation3] sm:$0xff]
      %v780 = vmul.f32 %v551, 0.5
      %v781 = vtanh.pop %v780
      %v782 = vadd.f32 %v781, 1.0
      %v783 = vmul.f32 %v782, 0.5
      %v784 = vmul.f32 %v552, 0.5
      %v785 = vtanh.pop %v784
      %v786 = vadd.f32 %v785, 1.0
      %v787 = vmul.f32 %v786, 0.5
      %v788 = vtanh.pop %v553
      %v789 = vmul.f32 %v554, 0.5
      %v790 = vtanh.pop %v789
      %v791 = vadd.f32 %v790, 1.0
      %v792 = vmul.f32 %v791, 0.5
      %v793 = vmul.f32 %v787, %v779
      %v794 = vmul.f32 %v783, %v788
      %v795 = vadd.f32 %v793, %v794
      %v796 = vtanh.pop %v795
      %v797 = vmul.f32 %v792, %v796
      %v798 = vld [vmem:[#allocation5] sm:$0xff]
      %v799 = vmul.f32 %v775, 0.5
      %v800 = vtanh.pop %v799
      %v801 = vadd.f32 %v800, 1.0
      %v802 = vmul.f32 %v801, 0.5
      %v803 = vmul.f32 %v776, 0.5
      %v804 = vtanh.pop %v803
      %v805 = vadd.f32 %v804, 1.0
      %v806 = vmul.f32 %v805, 0.5
      %v807 = vtanh.pop %v777
      %v808 = vmul.f32 %v778, 0.5
      %v809 = vtanh.pop %v808
      %v810 = vadd.f32 %v809, 1.0
      %v811 = vmul.f32 %v810, 0.5
      %v812 = vmul.f32 %v806, %v798
      %v813 = vmul.f32 %v802, %v807
      %v814 = vadd.f32 %v812, %v813
      %v815 = vtanh.pop %v814
      %v816 = vmul.f32 %v811, %v815
      %v817 = vpack.c.bf16 %v797, %v797
      %818 = vst [vmem:[#allocation2] sm:$0xf] %v817
      %819 = vst [vmem:[#allocation3] sm:$0xff] %v795
      %v820 = vpack.c.bf16 %v816, %v816
      %821 = vst [vmem:[#allocation4] sm:$0xf] %v820
      %822 = vst [vmem:[#allocation5] sm:$0xff] %v814
      %823 = vst [vmem:[%s248] sm:$0xf] %v817
      %s824 = scalar_lea.vmem %s255, 28
      %825 = vst [vmem:[%s824] sm:$0xf] %v820
      %s826 = scalar_lea.vmem %s232, 16
      %v827 = vld [vmem:[%s826] sm:$0xff]
      %v828 = vld [vmem:[%s826 + $0x8] sm:$0xff]
      %v829 = vunpack.c.l.bf16 %v827
      %v830 = vunpack.c.h.bf16 %v827
      %v831 = vunpack.c.l.bf16 %v828
      %v832 = vunpack.c.h.bf16 %v828
      %v833 = vld [vmem:[#allocation2] sm:$0xf]
      %834 = vmatpush.bf16.msra.mxu0 %v463
      %835 = vmatpush.bf16.msra.mxu0 %v459
      %836 = vmatpush.bf16.msra.mxu0 %v455
      %837 = vmatpush.bf16.msra.mxu0 %v451
      %838 = vmatpush.bf16.msra.mxu0 %v447
      %839 = vmatpush.bf16.msra.mxu0 %v443
      %840 = vmatpush.bf16.msra.mxu0 %v439
      %841 = vmatpush.bf16.msra.mxu0 %v435
      %842 = vmatmul.bf16.gmra.mxu0 %v833
      %v843 = vpop.f32.mrf.mxu0
      %v844 = vadd.f32 0.0, %v843
      %v845 = vpop.f32.mrf.mxu0
      %846 = vdwg.mxu0
      %847 = vmatpush.bf16.msra.mxu0 %v464
      %848 = vmatpush.bf16.msra.mxu0 %v460
      %849 = vmatpush.bf16.msra.mxu0 %v456
      %850 = vmatpush.bf16.msra.mxu0 %v452
      %851 = vmatpush.bf16.msra.mxu0 %v448
      %852 = vmatpush.bf16.msra.mxu0 %v444
      %853 = vmatpush.bf16.msra.mxu0 %v440
      %854 = vmatpush.bf16.msra.mxu0 %v436
      %855 = vmatmul.bf16.gmra.mxu0 %v833
      %v856 = vpop.f32.mrf.mxu0
      %v857 = vadd.f32 0.0, %v856
      %v858 = vpop.f32.mrf.mxu0
      %859 = vdwg.mxu0
      %860 = vmatpush.bf16.msra.mxu0 %v465
      %861 = vmatpush.bf16.msra.mxu0 %v461
      %862 = vmatpush.bf16.msra.mxu0 %v457
      %863 = vmatpush.bf16.msra.mxu0 %v453
      %864 = vmatpush.bf16.msra.mxu0 %v449
      %865 = vmatpush.bf16.msra.mxu0 %v445
      %866 = vmatpush.bf16.msra.mxu0 %v441
      %867 = vmatpush.bf16.msra.mxu0 %v437
      %868 = vmatmul.bf16.gmra.mxu0 %v833
      %v869 = vpop.f32.mrf.mxu0
      %v870 = vadd.f32 0.0, %v869
      %v871 = vpop.f32.mrf.mxu0
      %872 = vdwg.mxu0
      %873 = vmatpush.bf16.msra.mxu0 %v466
      %874 = vmatpush.bf16.msra.mxu0 %v462
      %875 = vmatpush.bf16.msra.mxu0 %v458
      %876 = vmatpush.bf16.msra.mxu0 %v454
      %877 = vmatpush.bf16.msra.mxu0 %v450
      %878 = vmatpush.bf16.msra.mxu0 %v446
      %879 = vmatpush.bf16.msra.mxu0 %v442
      %880 = vmatpush.bf16.msra.mxu0 %v438
      %881 = vmatmul.bf16.gmra.mxu0 %v833
      %v882 = vpop.f32.mrf.mxu0
      %v883 = vadd.f32 0.0, %v882
      %v884 = vpop.f32.mrf.mxu0
      %885 = vdwg.mxu0
      %v886 = vadd.f32 %v829, %v844
      %v887 = vadd.f32 %v830, %v857
      %v888 = vadd.f32 %v831, %v870
      %v889 = vadd.f32 %v832, %v883
      %s890 = scalar_lea.vmem %s241, 96
      %v891 = vld [vmem:[%s890] sm:$0xff]
      %v892 = vld [vmem:[%s890 + $0x8] sm:$0xff]
      %v893 = vunpack.c.l.bf16 %v891
      %v894 = vunpack.c.h.bf16 %v891
      %v895 = vunpack.c.l.bf16 %v892
      %v896 = vunpack.c.h.bf16 %v892
      %v897 = vld [vmem:[#allocation4] sm:$0xf]
      %898 = vmatpush.bf16.msra.mxu0 %v687
      %899 = vmatpush.bf16.msra.mxu0 %v683
      %900 = vmatpush.bf16.msra.mxu0 %v679
      %901 = vmatpush.bf16.msra.mxu0 %v675
      %902 = vmatpush.bf16.msra.mxu0 %v671
      %903 = vmatpush.bf16.msra.mxu0 %v667
      %904 = vmatpush.bf16.msra.mxu0 %v663
      %905 = vmatpush.bf16.msra.mxu0 %v659
      %906 = vmatmul.bf16.gmra.mxu0 %v897
      %v907 = vpop.f32.mrf.mxu0
      %v908 = vadd.f32 0.0, %v907
      %v909 = vpop.f32.mrf.mxu0
      %910 = vdwg.mxu0
      %911 = vmatpush.bf16.msra.mxu0 %v688
      %912 = vmatpush.bf16.msra.mxu0 %v684
      %913 = vmatpush.bf16.msra.mxu0 %v680
      %914 = vmatpush.bf16.msra.mxu0 %v676
      %915 = vmatpush.bf16.msra.mxu0 %v672
      %916 = vmatpush.bf16.msra.mxu0 %v668
      %917 = vmatpush.bf16.msra.mxu0 %v664
      %918 = vmatpush.bf16.msra.mxu0 %v660
      %919 = vmatmul.bf16.gmra.mxu0 %v897
      %v920 = vpop.f32.mrf.mxu0
      %v921 = vadd.f32 0.0, %v920
      %v922 = vpop.f32.mrf.mxu0
      %923 = vdwg.mxu0
      %924 = vmatpush.bf16.msra.mxu0 %v689
      %925 = vmatpush.bf16.msra.mxu0 %v685
      %926 = vmatpush.bf16.msra.mxu0 %v681
      %927 = vmatpush.bf16.msra.mxu0 %v677
      %928 = vmatpush.bf16.msra.mxu0 %v673
      %929 = vmatpush.bf16.msra.mxu0 %v669
      %930 = vmatpush.bf16.msra.mxu0 %v665
      %931 = vmatpush.bf16.msra.mxu0 %v661
      %932 = vmatmul.bf16.gmra.mxu0 %v897
      %v933 = vpop.f32.mrf.mxu0
      %v934 = vadd.f32 0.0, %v933
      %v935 = vpop.f32.mrf.mxu0
      %936 = vdwg.mxu0
      %937 = vmatpush.bf16.msra.mxu0 %v690
      %938 = vmatpush.bf16.msra.mxu0 %v686
      %939 = vmatpush.bf16.msra.mxu0 %v682
      %940 = vmatpush.bf16.msra.mxu0 %v678
      %941 = vmatpush.bf16.msra.mxu0 %v674
      %942 = vmatpush.bf16.msra.mxu0 %v670
      %943 = vmatpush.bf16.msra.mxu0 %v666
      %944 = vmatpush.bf16.msra.mxu0 %v662
      %945 = vmatmul.bf16.gmra.mxu0 %v897
      %v946 = vpop.f32.mrf.mxu0
      %v947 = vadd.f32 0.0, %v946
      %v948 = vpop.f32.mrf.mxu0
      %949 = vdwg.mxu0
      %v950 = vadd.f32 %v893, %v908
      %v951 = vadd.f32 %v894, %v921
      %v952 = vadd.f32 %v895, %v934
      %v953 = vadd.f32 %v896, %v947
      %v954 = vld [vmem:[#allocation3] sm:$0xff]
      %v955 = vmul.f32 %v886, 0.5
      %v956 = vtanh.pop %v955
      %v957 = vadd.f32 %v956, 1.0
      %v958 = vmul.f32 %v957, 0.5
      %v959 = vmul.f32 %v887, 0.5
      %v960 = vtanh.pop %v959
      %v961 = vadd.f32 %v960, 1.0
      %v962 = vmul.f32 %v961, 0.5
      %v963 = vtanh.pop %v888
      %v964 = vmul.f32 %v889, 0.5
      %v965 = vtanh.pop %v964
      %v966 = vadd.f32 %v965, 1.0
      %v967 = vmul.f32 %v966, 0.5
      %v968 = vmul.f32 %v962, %v954
      %v969 = vmul.f32 %v958, %v963
      %v970 = vadd.f32 %v968, %v969
      %v971 = vtanh.pop %v970
      %v972 = vmul.f32 %v967, %v971
      %v973 = vld [vmem:[#allocation5] sm:$0xff]
      %v974 = vmul.f32 %v950, 0.5
      %v975 = vtanh.pop %v974
      %v976 = vadd.f32 %v975, 1.0
      %v977 = vmul.f32 %v976, 0.5
      %v978 = vmul.f32 %v951, 0.5
      %v979 = vtanh.pop %v978
      %v980 = vadd.f32 %v979, 1.0
      %v981 = vmul.f32 %v980, 0.5
      %v982 = vtanh.pop %v952
      %v983 = vmul.f32 %v953, 0.5
      %v984 = vtanh.pop %v983
      %v985 = vadd.f32 %v984, 1.0
      %v986 = vmul.f32 %v985, 0.5
      %v987 = vmul.f32 %v981, %v973
      %v988 = vmul.f32 %v977, %v982
      %v989 = vadd.f32 %v987, %v988
      %v990 = vtanh.pop %v989
      %v991 = vmul.f32 %v986, %v990
      %v992 = vpack.c.bf16 %v972, %v972
      %993 = vst [vmem:[#allocation2] sm:$0xf] %v992
      %994 = vst [vmem:[#allocation3] sm:$0xff] %v970
      %v995 = vpack.c.bf16 %v991, %v991
      %996 = vst [vmem:[#allocation4] sm:$0xf] %v995
      %997 = vst [vmem:[#allocation5] sm:$0xff] %v989
      %s998 = scalar_lea.vmem %s248, 4
      %999 = vst [vmem:[%s998] sm:$0xf] %v992
      %s1000 = scalar_lea.vmem %s255, 24
      %1001 = vst [vmem:[%s1000] sm:$0xf] %v995
      %s1002 = scalar_lea.vmem %s232, 32
      %v1003 = vld [vmem:[%s1002] sm:$0xff]
      %v1004 = vld [vmem:[%s1002 + $0x8] sm:$0xff]
      %v1005 = vunpack.c.l.bf16 %v1003
      %v1006 = vunpack.c.h.bf16 %v1003
      %v1007 = vunpack.c.l.bf16 %v1004
      %v1008 = vunpack.c.h.bf16 %v1004
      %v1009 = vld [vmem:[#allocation2] sm:$0xf]
      %1010 = vmatpush.bf16.msra.mxu0 %v463
      %1011 = vmatpush.bf16.msra.mxu0 %v459
      %1012 = vmatpush.bf16.msra.mxu0 %v455
      %1013 = vmatpush.bf16.msra.mxu0 %v451
      %1014 = vmatpush.bf16.msra.mxu0 %v447
      %1015 = vmatpush.bf16.msra.mxu0 %v443
      %1016 = vmatpush.bf16.msra.mxu0 %v439
      %1017 = vmatpush.bf16.msra.mxu0 %v435
      %1018 = vmatmul.bf16.gmra.mxu0 %v1009
      %v1019 = vpop.f32.mrf.mxu0
      %v1020 = vadd.f32 0.0, %v1019
      %v1021 = vpop.f32.mrf.mxu0
      %1022 = vdwg.mxu0
      %1023 = vmatpush.bf16.msra.mxu0 %v464
      %1024 = vmatpush.bf16.msra.mxu0 %v460
      %1025 = vmatpush.bf16.msra.mxu0 %v456
      %1026 = vmatpush.bf16.msra.mxu0 %v452
      %1027 = vmatpush.bf16.msra.mxu0 %v448
      %1028 = vmatpush.bf16.msra.mxu0 %v444
      %1029 = vmatpush.bf16.msra.mxu0 %v440
      %1030 = vmatpush.bf16.msra.mxu0 %v436
      %1031 = vmatmul.bf16.gmra.mxu0 %v1009
      %v1032 = vpop.f32.mrf.mxu0
      %v1033 = vadd.f32 0.0, %v1032
      %v1034 = vpop.f32.mrf.mxu0
      %1035 = vdwg.mxu0
      %1036 = vmatpush.bf16.msra.mxu0 %v465
      %1037 = vmatpush.bf16.msra.mxu0 %v461
      %1038 = vmatpush.bf16.msra.mxu0 %v457
      %1039 = vmatpush.bf16.msra.mxu0 %v453
      %1040 = vmatpush.bf16.msra.mxu0 %v449
      %1041 = vmatpush.bf16.msra.mxu0 %v445
      %1042 = vmatpush.bf16.msra.mxu0 %v441
      %1043 = vmatpush.bf16.msra.mxu0 %v437
      %1044 = vmatmul.bf16.gmra.mxu0 %v1009
      %v1045 = vpop.f32.mrf.mxu0
      %v1046 = vadd.f32 0.0, %v1045
      %v1047 = vpop.f32.mrf.mxu0
      %1048 = vdwg.mxu0
      %1049 = vmatpush.bf16.msra.mxu0 %v466
      %1050 = vmatpush.bf16.msra.mxu0 %v462
      %1051 = vmatpush.bf16.msra.mxu0 %v458
      %1052 = vmatpush.bf16.msra.mxu0 %v454
      %1053 = vmatpush.bf16.msra.mxu0 %v450
      %1054 = vmatpush.bf16.msra.mxu0 %v446
      %1055 = vmatpush.bf16.msra.mxu0 %v442
      %1056 = vmatpush.bf16.msra.mxu0 %v438
      %1057 = vmatmul.bf16.gmra.mxu0 %v1009
      %v1058 = vpop.f32.mrf.mxu0
      %v1059 = vadd.f32 0.0, %v1058
      %v1060 = vpop.f32.mrf.mxu0
      %1061 = vdwg.mxu0
      %v1062 = vadd.f32 %v1005, %v1020
      %v1063 = vadd.f32 %v1006, %v1033
      %v1064 = vadd.f32 %v1007, %v1046
      %v1065 = vadd.f32 %v1008, %v1059
      %s1066 = scalar_lea.vmem %s241, 80
      %v1067 = vld [vmem:[%s1066] sm:$0xff]
      %v1068 = vld [vmem:[%s1066 + $0x8] sm:$0xff]
      %v1069 = vunpack.c.l.bf16 %v1067
      %v1070 = vunpack.c.h.bf16 %v1067
      %v1071 = vunpack.c.l.bf16 %v1068
      %v1072 = vunpack.c.h.bf16 %v1068
      %v1073 = vld [vmem:[#allocation4] sm:$0xf]
      %1074 = vmatpush.bf16.msra.mxu0 %v687
      %1075 = vmatpush.bf16.msra.mxu0 %v683
      %1076 = vmatpush.bf16.msra.mxu0 %v679
      %1077 = vmatpush.bf16.msra.mxu0 %v675
      %1078 = vmatpush.bf16.msra.mxu0 %v671
      %1079 = vmatpush.bf16.msra.mxu0 %v667
      %1080 = vmatpush.bf16.msra.mxu0 %v663
      %1081 = vmatpush.bf16.msra.mxu0 %v659
      %1082 = vmatmul.bf16.gmra.mxu0 %v1073
      %v1083 = vpop.f32.mrf.mxu0
      %v1084 = vadd.f32 0.0, %v1083
      %v1085 = vpop.f32.mrf.mxu0
      %1086 = vdwg.mxu0
      %1087 = vmatpush.bf16.msra.mxu0 %v688
      %1088 = vmatpush.bf16.msra.mxu0 %v684
      %1089 = vmatpush.bf16.msra.mxu0 %v680
      %1090 = vmatpush.bf16.msra.mxu0 %v676
      %1091 = vmatpush.bf16.msra.mxu0 %v672
      %1092 = vmatpush.bf16.msra.mxu0 %v668
      %1093 = vmatpush.bf16.msra.mxu0 %v664
      %1094 = vmatpush.bf16.msra.mxu0 %v660
      %1095 = vmatmul.bf16.gmra.mxu0 %v1073
      %v1096 = vpop.f32.mrf.mxu0
      %v1097 = vadd.f32 0.0, %v1096
      %v1098 = vpop.f32.mrf.mxu0
      %1099 = vdwg.mxu0
      %1100 = vmatpush.bf16.msra.mxu0 %v689
      %1101 = vmatpush.bf16.msra.mxu0 %v685
      %1102 = vmatpush.bf16.msra.mxu0 %v681
      %1103 = vmatpush.bf16.msra.mxu0 %v677
      %1104 = vmatpush.bf16.msra.mxu0 %v673
      %1105 = vmatpush.bf16.msra.mxu0 %v669
      %1106 = vmatpush.bf16.msra.mxu0 %v665
      %1107 = vmatpush.bf16.msra.mxu0 %v661
      %1108 = vmatmul.bf16.gmra.mxu0 %v1073
      %v1109 = vpop.f32.mrf.mxu0
      %v1110 = vadd.f32 0.0, %v1109
      %v1111 = vpop.f32.mrf.mxu0
      %1112 = vdwg.mxu0
      %1113 = vmatpush.bf16.msra.mxu0 %v690
      %1114 = vmatpush.bf16.msra.mxu0 %v686
      %1115 = vmatpush.bf16.msra.mxu0 %v682
      %1116 = vmatpush.bf16.msra.mxu0 %v678
      %1117 = vmatpush.bf16.msra.mxu0 %v674
      %1118 = vmatpush.bf16.msra.mxu0 %v670
      %1119 = vmatpush.bf16.msra.mxu0 %v666
      %1120 = vmatpush.bf16.msra.mxu0 %v662
      %1121 = vmatmul.bf16.gmra.mxu0 %v1073
      %v1122 = vpop.f32.mrf.mxu0
      %v1123 = vadd.f32 0.0, %v1122
      %v1124 = vpop.f32.mrf.mxu0
      %1125 = vdwg.mxu0
      %v1126 = vadd.f32 %v1069, %v1084
      %v1127 = vadd.f32 %v1070, %v1097
      %v1128 = vadd.f32 %v1071, %v1110
      %v1129 = vadd.f32 %v1072, %v1123
      %v1130 = vld [vmem:[#allocation3] sm:$0xff]
      %v1131 = vmul.f32 %v1062, 0.5
      %v1132 = vtanh.pop %v1131
      %v1133 = vadd.f32 %v1132, 1.0
      %v1134 = vmul.f32 %v1133, 0.5
      %v1135 = vmul.f32 %v1063, 0.5
      %v1136 = vtanh.pop %v1135
      %v1137 = vadd.f32 %v1136, 1.0
      %v1138 = vmul.f32 %v1137, 0.5
      %v1139 = vtanh.pop %v1064
      %v1140 = vmul.f32 %v1065, 0.5
      %v1141 = vtanh.pop %v1140
      %v1142 = vadd.f32 %v1141, 1.0
      %v1143 = vmul.f32 %v1142, 0.5
      %v1144 = vmul.f32 %v1138, %v1130
      %v1145 = vmul.f32 %v1134, %v1139
      %v1146 = vadd.f32 %v1144, %v1145
      %v1147 = vtanh.pop %v1146
      %v1148 = vmul.f32 %v1143, %v1147
      %v1149 = vld [vmem:[#allocation5] sm:$0xff]
      %v1150 = vmul.f32 %v1126, 0.5
      %v1151 = vtanh.pop %v1150
      %v1152 = vadd.f32 %v1151, 1.0
      %v1153 = vmul.f32 %v1152, 0.5
      %v1154 = vmul.f32 %v1127, 0.5
      %v1155 = vtanh.pop %v1154
      %v1156 = vadd.f32 %v1155, 1.0
      %v1157 = vmul.f32 %v1156, 0.5
      %v1158 = vtanh.pop %v1128
      %v1159 = vmul.f32 %v1129, 0.5
      %v1160 = vtanh.pop %v1159
      %v1161 = vadd.f32 %v1160, 1.0
      %v1162 = vmul.f32 %v1161, 0.5
      %v1163 = vmul.f32 %v1157, %v1149
      %v1164 = vmul.f32 %v1153, %v1158
      %v1165 = vadd.f32 %v1163, %v1164
      %v1166 = vtanh.pop %v1165
      %v1167 = vmul.f32 %v1162, %v1166
      %v1168 = vpack.c.bf16 %v1148, %v1148
      %1169 = vst [vmem:[#allocation2] sm:$0xf] %v1168
      %1170 = vst [vmem:[#allocation3] sm:$0xff] %v1146
      %v1171 = vpack.c.bf16 %v1167, %v1167
      %1172 = vst [vmem:[#allocation4] sm:$0xf] %v1171
      %1173 = vst [vmem:[#allocation5] sm:$0xff] %v1165
      %s1174 = scalar_lea.vmem %s248, 8
      %1175 = vst [vmem:[%s1174] sm:$0xf] %v1168
      %s1176 = scalar_lea.vmem %s255, 20
      %1177 = vst [vmem:[%s1176] sm:$0xf] %v1171
      %s1178 = scalar_lea.vmem %s232, 48
      %v1179 = vld [vmem:[%s1178] sm:$0xff]
      %v1180 = vld [vmem:[%s1178 + $0x8] sm:$0xff]
      %v1181 = vunpack.c.l.bf16 %v1179
      %v1182 = vunpack.c.h.bf16 %v1179
      %v1183 = vunpack.c.l.bf16 %v1180
      %v1184 = vunpack.c.h.bf16 %v1180
      %v1185 = vld [vmem:[#allocation2] sm:$0xf]
      %1186 = vmatpush.bf16.msra.mxu0 %v463
      %1187 = vmatpush.bf16.msra.mxu0 %v459
      %1188 = vmatpush.bf16.msra.mxu0 %v455
      %1189 = vmatpush.bf16.msra.mxu0 %v451
      %1190 = vmatpush.bf16.msra.mxu0 %v447
      %1191 = vmatpush.bf16.msra.mxu0 %v443
      %1192 = vmatpush.bf16.msra.mxu0 %v439
      %1193 = vmatpush.bf16.msra.mxu0 %v435
      %1194 = vmatmul.bf16.gmra.mxu0 %v1185
      %v1195 = vpop.f32.mrf.mxu0
      %v1196 = vadd.f32 0.0, %v1195
      %v1197 = vpop.f32.mrf.mxu0
      %1198 = vdwg.mxu0
      %1199 = vmatpush.bf16.msra.mxu0 %v464
      %1200 = vmatpush.bf16.msra.mxu0 %v460
      %1201 = vmatpush.bf16.msra.mxu0 %v456
      %1202 = vmatpush.bf16.msra.mxu0 %v452
      %1203 = vmatpush.bf16.msra.mxu0 %v448
      %1204 = vmatpush.bf16.msra.mxu0 %v444
      %1205 = vmatpush.bf16.msra.mxu0 %v440
      %1206 = vmatpush.bf16.msra.mxu0 %v436
      %1207 = vmatmul.bf16.gmra.mxu0 %v1185
      %v1208 = vpop.f32.mrf.mxu0
      %v1209 = vadd.f32 0.0, %v1208
      %v1210 = vpop.f32.mrf.mxu0
      %1211 = vdwg.mxu0
      %1212 = vmatpush.bf16.msra.mxu0 %v465
      %1213 = vmatpush.bf16.msra.mxu0 %v461
      %1214 = vmatpush.bf16.msra.mxu0 %v457
      %1215 = vmatpush.bf16.msra.mxu0 %v453
      %1216 = vmatpush.bf16.msra.mxu0 %v449
      %1217 = vmatpush.bf16.msra.mxu0 %v445
      %1218 = vmatpush.bf16.msra.mxu0 %v441
      %1219 = vmatpush.bf16.msra.mxu0 %v437
      %1220 = vmatmul.bf16.gmra.mxu0 %v1185
      %v1221 = vpop.f32.mrf.mxu0
      %v1222 = vadd.f32 0.0, %v1221
      %v1223 = vpop.f32.mrf.mxu0
      %1224 = vdwg.mxu0
      %1225 = vmatpush.bf16.msra.mxu0 %v466
      %1226 = vmatpush.bf16.msra.mxu0 %v462
      %1227 = vmatpush.bf16.msra.mxu0 %v458
      %1228 = vmatpush.bf16.msra.mxu0 %v454
      %1229 = vmatpush.bf16.msra.mxu0 %v450
      %1230 = vmatpush.bf16.msra.mxu0 %v446
      %1231 = vmatpush.bf16.msra.mxu0 %v442
      %1232 = vmatpush.bf16.msra.mxu0 %v438
      %1233 = vmatmul.bf16.gmra.mxu0 %v1185
      %v1234 = vpop.f32.mrf.mxu0
      %v1235 = vadd.f32 0.0, %v1234
      %v1236 = vpop.f32.mrf.mxu0
      %1237 = vdwg.mxu0
      %v1238 = vadd.f32 %v1181, %v1196
      %v1239 = vadd.f32 %v1182, %v1209
      %v1240 = vadd.f32 %v1183, %v1222
      %v1241 = vadd.f32 %v1184, %v1235
      %s1242 = scalar_lea.vmem %s241, 64
      %v1243 = vld [vmem:[%s1242] sm:$0xff]
      %v1244 = vld [vmem:[%s1242 + $0x8] sm:$0xff]
      %v1245 = vunpack.c.l.bf16 %v1243
      %v1246 = vunpack.c.h.bf16 %v1243
      %v1247 = vunpack.c.l.bf16 %v1244
      %v1248 = vunpack.c.h.bf16 %v1244
      %v1249 = vld [vmem:[#allocation4] sm:$0xf]
      %1250 = vmatpush.bf16.msra.mxu0 %v687
      %1251 = vmatpush.bf16.msra.mxu0 %v683
      %1252 = vmatpush.bf16.msra.mxu0 %v679
      %1253 = vmatpush.bf16.msra.mxu0 %v675
      %1254 = vmatpush.bf16.msra.mxu0 %v671
      %1255 = vmatpush.bf16.msra.mxu0 %v667
      %1256 = vmatpush.bf16.msra.mxu0 %v663
      %1257 = vmatpush.bf16.msra.mxu0 %v659
      %1258 = vmatmul.bf16.gmra.mxu0 %v1249
      %v1259 = vpop.f32.mrf.mxu0
      %v1260 = vadd.f32 0.0, %v1259
      %v1261 = vpop.f32.mrf.mxu0
      %1262 = vdwg.mxu0
      %1263 = vmatpush.bf16.msra.mxu0 %v688
      %1264 = vmatpush.bf16.msra.mxu0 %v684
      %1265 = vmatpush.bf16.msra.mxu0 %v680
      %1266 = vmatpush.bf16.msra.mxu0 %v676
      %1267 = vmatpush.bf16.msra.mxu0 %v672
      %1268 = vmatpush.bf16.msra.mxu0 %v668
      %1269 = vmatpush.bf16.msra.mxu0 %v664
      %1270 = vmatpush.bf16.msra.mxu0 %v660
      %1271 = vmatmul.bf16.gmra.mxu0 %v1249
      %v1272 = vpop.f32.mrf.mxu0
      %v1273 = vadd.f32 0.0, %v1272
      %v1274 = vpop.f32.mrf.mxu0
      %1275 = vdwg.mxu0
      %1276 = vmatpush.bf16.msra.mxu0 %v689
      %1277 = vmatpush.bf16.msra.mxu0 %v685
      %1278 = vmatpush.bf16.msra.mxu0 %v681
      %1279 = vmatpush.bf16.msra.mxu0 %v677
      %1280 = vmatpush.bf16.msra.mxu0 %v673
      %1281 = vmatpush.bf16.msra.mxu0 %v669
      %1282 = vmatpush.bf16.msra.mxu0 %v665
      %1283 = vmatpush.bf16.msra.mxu0 %v661
      %1284 = vmatmul.bf16.gmra.mxu0 %v1249
      %v1285 = vpop.f32.mrf.mxu0
      %v1286 = vadd.f32 0.0, %v1285
      %v1287 = vpop.f32.mrf.mxu0
      %1288 = vdwg.mxu0
      %1289 = vmatpush.bf16.msra.mxu0 %v690
      %1290 = vmatpush.bf16.msra.mxu0 %v686
      %1291 = vmatpush.bf16.msra.mxu0 %v682
      %1292 = vmatpush.bf16.msra.mxu0 %v678
      %1293 = vmatpush.bf16.msra.mxu0 %v674
      %1294 = vmatpush.bf16.msra.mxu0 %v670
      %1295 = vmatpush.bf16.msra.mxu0 %v666
      %1296 = vmatpush.bf16.msra.mxu0 %v662
      %1297 = vmatmul.bf16.gmra.mxu0 %v1249
      %v1298 = vpop.f32.mrf.mxu0
      %v1299 = vadd.f32 0.0, %v1298
      %v1300 = vpop.f32.mrf.mxu0
      %1301 = vdwg.mxu0
      %v1302 = vadd.f32 %v1245, %v1260
      %v1303 = vadd.f32 %v1246, %v1273
      %v1304 = vadd.f32 %v1247, %v1286
      %v1305 = vadd.f32 %v1248, %v1299
      %v1306 = vld [vmem:[#allocation3] sm:$0xff]
      %v1307 = vmul.f32 %v1238, 0.5
      %v1308 = vtanh.pop %v1307
      %v1309 = vadd.f32 %v1308, 1.0
      %v1310 = vmul.f32 %v1309, 0.5
      %v1311 = vmul.f32 %v1239, 0.5
      %v1312 = vtanh.pop %v1311
      %v1313 = vadd.f32 %v1312, 1.0
      %v1314 = vmul.f32 %v1313, 0.5
      %v1315 = vtanh.pop %v1240
      %v1316 = vmul.f32 %v1241, 0.5
      %v1317 = vtanh.pop %v1316
      %v1318 = vadd.f32 %v1317, 1.0
      %v1319 = vmul.f32 %v1318, 0.5
      %v1320 = vmul.f32 %v1314, %v1306
      %v1321 = vmul.f32 %v1310, %v1315
      %v1322 = vadd.f32 %v1320, %v1321
      %v1323 = vtanh.pop %v1322
      %v1324 = vmul.f32 %v1319, %v1323
      %v1325 = vld [vmem:[#allocation5] sm:$0xff]
      %v1326 = vmul.f32 %v1302, 0.5
      %v1327 = vtanh.pop %v1326
      %v1328 = vadd.f32 %v1327, 1.0
      %v1329 = vmul.f32 %v1328, 0.5
      %v1330 = vmul.f32 %v1303, 0.5
      %v1331 = vtanh.pop %v1330
      %v1332 = vadd.f32 %v1331, 1.0
      %v1333 = vmul.f32 %v1332, 0.5
      %v1334 = vtanh.pop %v1304
      %v1335 = vmul.f32 %v1305, 0.5
      %v1336 = vtanh.pop %v1335
      %v1337 = vadd.f32 %v1336, 1.0
      %v1338 = vmul.f32 %v1337, 0.5
      %v1339 = vmul.f32 %v1333, %v1325
      %v1340 = vmul.f32 %v1329, %v1334
      %v1341 = vadd.f32 %v1339, %v1340
      %v1342 = vtanh.pop %v1341
      %v1343 = vmul.f32 %v1338, %v1342
      %v1344 = vpack.c.bf16 %v1324, %v1324
      %1345 = vst [vmem:[#allocation2] sm:$0xf] %v1344
      %1346 = vst [vmem:[#allocation3] sm:$0xff] %v1322
      %v1347 = vpack.c.bf16 %v1343, %v1343
      %1348 = vst [vmem:[#allocation4] sm:$0xf] %v1347
      %1349 = vst [vmem:[#allocation5] sm:$0xff] %v1341
      %s1350 = scalar_lea.vmem %s248, 12
      %1351 = vst [vmem:[%s1350] sm:$0xf] %v1344
      %s1352 = scalar_lea.vmem %s255, 16
      %1353 = vst [vmem:[%s1352] sm:$0xf] %v1347
      %s1354 = scalar_lea.vmem %s232, 64
      %v1355 = vld [vmem:[%s1354] sm:$0xff]
      %v1356 = vld [vmem:[%s1354 + $0x8] sm:$0xff]
      %v1357 = vunpack.c.l.bf16 %v1355
      %v1358 = vunpack.c.h.bf16 %v1355
      %v1359 = vunpack.c.l.bf16 %v1356
      %v1360 = vunpack.c.h.bf16 %v1356
      %v1361 = vld [vmem:[#allocation2] sm:$0xf]
      %1362 = vmatpush.bf16.msra.mxu0 %v463
      %1363 = vmatpush.bf16.msra.mxu0 %v459
      %1364 = vmatpush.bf16.msra.mxu0 %v455
      %1365 = vmatpush.bf16.msra.mxu0 %v451
      %1366 = vmatpush.bf16.msra.mxu0 %v447
      %1367 = vmatpush.bf16.msra.mxu0 %v443
      %1368 = vmatpush.bf16.msra.mxu0 %v439
      %1369 = vmatpush.bf16.msra.mxu0 %v435
      %1370 = vmatmul.bf16.gmra.mxu0 %v1361
      %v1371 = vpop.f32.mrf.mxu0
      %v1372 = vadd.f32 0.0, %v1371
      %v1373 = vpop.f32.mrf.mxu0
      %1374 = vdwg.mxu0
      %1375 = vmatpush.bf16.msra.mxu0 %v464
      %1376 = vmatpush.bf16.msra.mxu0 %v460
      %1377 = vmatpush.bf16.msra.mxu0 %v456
      %1378 = vmatpush.bf16.msra.mxu0 %v452
      %1379 = vmatpush.bf16.msra.mxu0 %v448
      %1380 = vmatpush.bf16.msra.mxu0 %v444
      %1381 = vmatpush.bf16.msra.mxu0 %v440
      %1382 = vmatpush.bf16.msra.mxu0 %v436
      %1383 = vmatmul.bf16.gmra.mxu0 %v1361
      %v1384 = vpop.f32.mrf.mxu0
      %v1385 = vadd.f32 0.0, %v1384
      %v1386 = vpop.f32.mrf.mxu0
      %1387 = vdwg.mxu0
      %1388 = vmatpush.bf16.msra.mxu0 %v465
      %1389 = vmatpush.bf16.msra.mxu0 %v461
      %1390 = vmatpush.bf16.msra.mxu0 %v457
      %1391 = vmatpush.bf16.msra.mxu0 %v453
      %1392 = vmatpush.bf16.msra.mxu0 %v449
      %1393 = vmatpush.bf16.msra.mxu0 %v445
      %1394 = vmatpush.bf16.msra.mxu0 %v441
      %1395 = vmatpush.bf16.msra.mxu0 %v437
      %1396 = vmatmul.bf16.gmra.mxu0 %v1361
      %v1397 = vpop.f32.mrf.mxu0
      %v1398 = vadd.f32 0.0, %v1397
      %v1399 = vpop.f32.mrf.mxu0
      %1400 = vdwg.mxu0
      %1401 = vmatpush.bf16.msra.mxu0 %v466
      %1402 = vmatpush.bf16.msra.mxu0 %v462
      %1403 = vmatpush.bf16.msra.mxu0 %v458
      %1404 = vmatpush.bf16.msra.mxu0 %v454
      %1405 = vmatpush.bf16.msra.mxu0 %v450
      %1406 = vmatpush.bf16.msra.mxu0 %v446
      %1407 = vmatpush.bf16.msra.mxu0 %v442
      %1408 = vmatpush.bf16.msra.mxu0 %v438
      %1409 = vmatmul.bf16.gmra.mxu0 %v1361
      %v1410 = vpop.f32.mrf.mxu0
      %v1411 = vadd.f32 0.0, %v1410
      %v1412 = vpop.f32.mrf.mxu0
      %1413 = vdwg.mxu0
      %v1414 = vadd.f32 %v1357, %v1372
      %v1415 = vadd.f32 %v1358, %v1385
      %v1416 = vadd.f32 %v1359, %v1398
      %v1417 = vadd.f32 %v1360, %v1411
      %s1418 = scalar_lea.vmem %s241, 48
      %v1419 = vld [vmem:[%s1418] sm:$0xff]
      %v1420 = vld [vmem:[%s1418 + $0x8] sm:$0xff]
      %v1421 = vunpack.c.l.bf16 %v1419
      %v1422 = vunpack.c.h.bf16 %v1419
      %v1423 = vunpack.c.l.bf16 %v1420
      %v1424 = vunpack.c.h.bf16 %v1420
      %v1425 = vld [vmem:[#allocation4] sm:$0xf]
      %1426 = vmatpush.bf16.msra.mxu0 %v687
      %1427 = vmatpush.bf16.msra.mxu0 %v683
      %1428 = vmatpush.bf16.msra.mxu0 %v679
      %1429 = vmatpush.bf16.msra.mxu0 %v675
      %1430 = vmatpush.bf16.msra.mxu0 %v671
      %1431 = vmatpush.bf16.msra.mxu0 %v667
      %1432 = vmatpush.bf16.msra.mxu0 %v663
      %1433 = vmatpush.bf16.msra.mxu0 %v659
      %1434 = vmatmul.bf16.gmra.mxu0 %v1425
      %v1435 = vpop.f32.mrf.mxu0
      %v1436 = vadd.f32 0.0, %v1435
      %v1437 = vpop.f32.mrf.mxu0
      %1438 = vdwg.mxu0
      %1439 = vmatpush.bf16.msra.mxu0 %v688
      %1440 = vmatpush.bf16.msra.mxu0 %v684
      %1441 = vmatpush.bf16.msra.mxu0 %v680
      %1442 = vmatpush.bf16.msra.mxu0 %v676
      %1443 = vmatpush.bf16.msra.mxu0 %v672
      %1444 = vmatpush.bf16.msra.mxu0 %v668
      %1445 = vmatpush.bf16.msra.mxu0 %v664
      %1446 = vmatpush.bf16.msra.mxu0 %v660
      %1447 = vmatmul.bf16.gmra.mxu0 %v1425
      %v1448 = vpop.f32.mrf.mxu0
      %v1449 = vadd.f32 0.0, %v1448
      %v1450 = vpop.f32.mrf.mxu0
      %1451 = vdwg.mxu0
      %1452 = vmatpush.bf16.msra.mxu0 %v689
      %1453 = vmatpush.bf16.msra.mxu0 %v685
      %1454 = vmatpush.bf16.msra.mxu0 %v681
      %1455 = vmatpush.bf16.msra.mxu0 %v677
      %1456 = vmatpush.bf16.msra.mxu0 %v673
      %1457 = vmatpush.bf16.msra.mxu0 %v669
      %1458 = vmatpush.bf16.msra.mxu0 %v665
      %1459 = vmatpush.bf16.msra.mxu0 %v661
      %1460 = vmatmul.bf16.gmra.mxu0 %v1425
      %v1461 = vpop.f32.mrf.mxu0
      %v1462 = vadd.f32 0.0, %v1461
      %v1463 = vpop.f32.mrf.mxu0
      %1464 = vdwg.mxu0
      %1465 = vmatpush.bf16.msra.mxu0 %v690
      %1466 = vmatpush.bf16.msra.mxu0 %v686
      %1467 = vmatpush.bf16.msra.mxu0 %v682
      %1468 = vmatpush.bf16.msra.mxu0 %v678
      %1469 = vmatpush.bf16.msra.mxu0 %v674
      %1470 = vmatpush.bf16.msra.mxu0 %v670
      %1471 = vmatpush.bf16.msra.mxu0 %v666
      %1472 = vmatpush.bf16.msra.mxu0 %v662
      %1473 = vmatmul.bf16.gmra.mxu0 %v1425
      %v1474 = vpop.f32.mrf.mxu0
      %v1475 = vadd.f32 0.0, %v1474
      %v1476 = vpop.f32.mrf.mxu0
      %1477 = vdwg.mxu0
      %v1478 = vadd.f32 %v1421, %v1436
      %v1479 = vadd.f32 %v1422, %v1449
      %v1480 = vadd.f32 %v1423, %v1462
      %v1481 = vadd.f32 %v1424, %v1475
      %v1482 = vld [vmem:[#allocation3] sm:$0xff]
      %v1483 = vmul.f32 %v1414, 0.5
      %v1484 = vtanh.pop %v1483
      %v1485 = vadd.f32 %v1484, 1.0
      %v1486 = vmul.f32 %v1485, 0.5
      %v1487 = vmul.f32 %v1415, 0.5
      %v1488 = vtanh.pop %v1487
      %v1489 = vadd.f32 %v1488, 1.0
      %v1490 = vmul.f32 %v1489, 0.5
      %v1491 = vtanh.pop %v1416
      %v1492 = vmul.f32 %v1417, 0.5
      %v1493 = vtanh.pop %v1492
      %v1494 = vadd.f32 %v1493, 1.0
      %v1495 = vmul.f32 %v1494, 0.5
      %v1496 = vmul.f32 %v1490, %v1482
      %v1497 = vmul.f32 %v1486, %v1491
      %v1498 = vadd.f32 %v1496, %v1497
      %v1499 = vtanh.pop %v1498
      %v1500 = vmul.f32 %v1495, %v1499
      %v1501 = vld [vmem:[#allocation5] sm:$0xff]
      %v1502 = vmul.f32 %v1478, 0.5
      %v1503 = vtanh.pop %v1502
      %v1504 = vadd.f32 %v1503, 1.0
      %v1505 = vmul.f32 %v1504, 0.5
      %v1506 = vmul.f32 %v1479, 0.5
      %v1507 = vtanh.pop %v1506
      %v1508 = vadd.f32 %v1507, 1.0
      %v1509 = vmul.f32 %v1508, 0.5
      %v1510 = vtanh.pop %v1480
      %v1511 = vmul.f32 %v1481, 0.5
      %v1512 = vtanh.pop %v1511
      %v1513 = vadd.f32 %v1512, 1.0
      %v1514 = vmul.f32 %v1513, 0.5
      %v1515 = vmul.f32 %v1509, %v1501
      %v1516 = vmul.f32 %v1505, %v1510
      %v1517 = vadd.f32 %v1515, %v1516
      %v1518 = vtanh.pop %v1517
      %v1519 = vmul.f32 %v1514, %v1518
      %v1520 = vpack.c.bf16 %v1500, %v1500
      %1521 = vst [vmem:[#allocation2] sm:$0xf] %v1520
      %1522 = vst [vmem:[#allocation3] sm:$0xff] %v1498
      %v1523 = vpack.c.bf16 %v1519, %v1519
      %1524 = vst [vmem:[#allocation4] sm:$0xf] %v1523
      %1525 = vst [vmem:[#allocation5] sm:$0xff] %v1517
      %s1526 = scalar_lea.vmem %s248, 16
      %1527 = vst [vmem:[%s1526] sm:$0xf] %v1520
      %s1528 = scalar_lea.vmem %s255, 12
      %1529 = vst [vmem:[%s1528] sm:$0xf] %v1523
      %s1530 = scalar_lea.vmem %s232, 80
      %v1531 = vld [vmem:[%s1530] sm:$0xff]
      %v1532 = vld [vmem:[%s1530 + $0x8] sm:$0xff]
      %v1533 = vunpack.c.l.bf16 %v1531
      %v1534 = vunpack.c.h.bf16 %v1531
      %v1535 = vunpack.c.l.bf16 %v1532
      %v1536 = vunpack.c.h.bf16 %v1532
      %v1537 = vld [vmem:[#allocation2] sm:$0xf]
      %1538 = vmatpush.bf16.msra.mxu0 %v463
      %1539 = vmatpush.bf16.msra.mxu0 %v459
      %1540 = vmatpush.bf16.msra.mxu0 %v455
      %1541 = vmatpush.bf16.msra.mxu0 %v451
      %1542 = vmatpush.bf16.msra.mxu0 %v447
      %1543 = vmatpush.bf16.msra.mxu0 %v443
      %1544 = vmatpush.bf16.msra.mxu0 %v439
      %1545 = vmatpush.bf16.msra.mxu0 %v435
      %1546 = vmatmul.bf16.gmra.mxu0 %v1537
      %v1547 = vpop.f32.mrf.mxu0
      %v1548 = vadd.f32 0.0, %v1547
      %v1549 = vpop.f32.mrf.mxu0
      %1550 = vdwg.mxu0
      %1551 = vmatpush.bf16.msra.mxu0 %v464
      %1552 = vmatpush.bf16.msra.mxu0 %v460
      %1553 = vmatpush.bf16.msra.mxu0 %v456
      %1554 = vmatpush.bf16.msra.mxu0 %v452
      %1555 = vmatpush.bf16.msra.mxu0 %v448
      %1556 = vmatpush.bf16.msra.mxu0 %v444
      %1557 = vmatpush.bf16.msra.mxu0 %v440
      %1558 = vmatpush.bf16.msra.mxu0 %v436
      %1559 = vmatmul.bf16.gmra.mxu0 %v1537
      %v1560 = vpop.f32.mrf.mxu0
      %v1561 = vadd.f32 0.0, %v1560
      %v1562 = vpop.f32.mrf.mxu0
      %1563 = vdwg.mxu0
      %1564 = vmatpush.bf16.msra.mxu0 %v465
      %1565 = vmatpush.bf16.msra.mxu0 %v461
      %1566 = vmatpush.bf16.msra.mxu0 %v457
      %1567 = vmatpush.bf16.msra.mxu0 %v453
      %1568 = vmatpush.bf16.msra.mxu0 %v449
      %1569 = vmatpush.bf16.msra.mxu0 %v445
      %1570 = vmatpush.bf16.msra.mxu0 %v441
      %1571 = vmatpush.bf16.msra.mxu0 %v437
      %1572 = vmatmul.bf16.gmra.mxu0 %v1537
      %v1573 = vpop.f32.mrf.mxu0
      %v1574 = vadd.f32 0.0, %v1573
      %v1575 = vpop.f32.mrf.mxu0
      %1576 = vdwg.mxu0
      %1577 = vmatpush.bf16.msra.mxu0 %v466
      %1578 = vmatpush.bf16.msra.mxu0 %v462
      %1579 = vmatpush.bf16.msra.mxu0 %v458
      %1580 = vmatpush.bf16.msra.mxu0 %v454
      %1581 = vmatpush.bf16.msra.mxu0 %v450
      %1582 = vmatpush.bf16.msra.mxu0 %v446
      %1583 = vmatpush.bf16.msra.mxu0 %v442
      %1584 = vmatpush.bf16.msra.mxu0 %v438
      %1585 = vmatmul.bf16.gmra.mxu0 %v1537
      %v1586 = vpop.f32.mrf.mxu0
      %v1587 = vadd.f32 0.0, %v1586
      %v1588 = vpop.f32.mrf.mxu0
      %1589 = vdwg.mxu0
      %v1590 = vadd.f32 %v1533, %v1548
      %v1591 = vadd.f32 %v1534, %v1561
      %v1592 = vadd.f32 %v1535, %v1574
      %v1593 = vadd.f32 %v1536, %v1587
      %s1594 = scalar_lea.vmem %s241, 32
      %v1595 = vld [vmem:[%s1594] sm:$0xff]
      %v1596 = vld [vmem:[%s1594 + $0x8] sm:$0xff]
      %v1597 = vunpack.c.l.bf16 %v1595
      %v1598 = vunpack.c.h.bf16 %v1595
      %v1599 = vunpack.c.l.bf16 %v1596
      %v1600 = vunpack.c.h.bf16 %v1596
      %v1601 = vld [vmem:[#allocation4] sm:$0xf]
      %1602 = vmatpush.bf16.msra.mxu0 %v687
      %1603 = vmatpush.bf16.msra.mxu0 %v683
      %1604 = vmatpush.bf16.msra.mxu0 %v679
      %1605 = vmatpush.bf16.msra.mxu0 %v675
      %1606 = vmatpush.bf16.msra.mxu0 %v671
      %1607 = vmatpush.bf16.msra.mxu0 %v667
      %1608 = vmatpush.bf16.msra.mxu0 %v663
      %1609 = vmatpush.bf16.msra.mxu0 %v659
      %1610 = vmatmul.bf16.gmra.mxu0 %v1601
      %v1611 = vpop.f32.mrf.mxu0
      %v1612 = vadd.f32 0.0, %v1611
      %v1613 = vpop.f32.mrf.mxu0
      %1614 = vdwg.mxu0
      %1615 = vmatpush.bf16.msra.mxu0 %v688
      %1616 = vmatpush.bf16.msra.mxu0 %v684
      %1617 = vmatpush.bf16.msra.mxu0 %v680
      %1618 = vmatpush.bf16.msra.mxu0 %v676
      %1619 = vmatpush.bf16.msra.mxu0 %v672
      %1620 = vmatpush.bf16.msra.mxu0 %v668
      %1621 = vmatpush.bf16.msra.mxu0 %v664
      %1622 = vmatpush.bf16.msra.mxu0 %v660
      %1623 = vmatmul.bf16.gmra.mxu0 %v1601
      %v1624 = vpop.f32.mrf.mxu0
      %v1625 = vadd.f32 0.0, %v1624
      %v1626 = vpop.f32.mrf.mxu0
      %1627 = vdwg.mxu0
      %1628 = vmatpush.bf16.msra.mxu0 %v689
      %1629 = vmatpush.bf16.msra.mxu0 %v685
      %1630 = vmatpush.bf16.msra.mxu0 %v681
      %1631 = vmatpush.bf16.msra.mxu0 %v677
      %1632 = vmatpush.bf16.msra.mxu0 %v673
      %1633 = vmatpush.bf16.msra.mxu0 %v669
      %1634 = vmatpush.bf16.msra.mxu0 %v665
      %1635 = vmatpush.bf16.msra.mxu0 %v661
      %1636 = vmatmul.bf16.gmra.mxu0 %v1601
      %v1637 = vpop.f32.mrf.mxu0
      %v1638 = vadd.f32 0.0, %v1637
      %v1639 = vpop.f32.mrf.mxu0
      %1640 = vdwg.mxu0
      %1641 = vmatpush.bf16.msra.mxu0 %v690
      %1642 = vmatpush.bf16.msra.mxu0 %v686
      %1643 = vmatpush.bf16.msra.mxu0 %v682
      %1644 = vmatpush.bf16.msra.mxu0 %v678
      %1645 = vmatpush.bf16.msra.mxu0 %v674
      %1646 = vmatpush.bf16.msra.mxu0 %v670
      %1647 = vmatpush.bf16.msra.mxu0 %v666
      %1648 = vmatpush.bf16.msra.mxu0 %v662
      %1649 = vmatmul.bf16.gmra.mxu0 %v1601
      %v1650 = vpop.f32.mrf.mxu0
      %v1651 = vadd.f32 0.0, %v1650
      %v1652 = vpop.f32.mrf.mxu0
      %1653 = vdwg.mxu0
      %v1654 = vadd.f32 %v1597, %v1612
      %v1655 = vadd.f32 %v1598, %v1625
      %v1656 = vadd.f32 %v1599, %v1638
      %v1657 = vadd.f32 %v1600, %v1651
      %v1658 = vld [vmem:[#allocation3] sm:$0xff]
      %v1659 = vmul.f32 %v1590, 0.5
      %v1660 = vtanh.pop %v1659
      %v1661 = vadd.f32 %v1660, 1.0
      %v1662 = vmul.f32 %v1661, 0.5
      %v1663 = vmul.f32 %v1591, 0.5
      %v1664 = vtanh.pop %v1663
      %v1665 = vadd.f32 %v1664, 1.0
      %v1666 = vmul.f32 %v1665, 0.5
      %v1667 = vtanh.pop %v1592
      %v1668 = vmul.f32 %v1593, 0.5
      %v1669 = vtanh.pop %v1668
      %v1670 = vadd.f32 %v1669, 1.0
      %v1671 = vmul.f32 %v1670, 0.5
      %v1672 = vmul.f32 %v1666, %v1658
      %v1673 = vmul.f32 %v1662, %v1667
      %v1674 = vadd.f32 %v1672, %v1673
      %v1675 = vtanh.pop %v1674
      %v1676 = vmul.f32 %v1671, %v1675
      %v1677 = vld [vmem:[#allocation5] sm:$0xff]
      %v1678 = vmul.f32 %v1654, 0.5
      %v1679 = vtanh.pop %v1678
      %v1680 = vadd.f32 %v1679, 1.0
      %v1681 = vmul.f32 %v1680, 0.5
      %v1682 = vmul.f32 %v1655, 0.5
      %v1683 = vtanh.pop %v1682
      %v1684 = vadd.f32 %v1683, 1.0
      %v1685 = vmul.f32 %v1684, 0.5
      %v1686 = vtanh.pop %v1656
      %v1687 = vmul.f32 %v1657, 0.5
      %v1688 = vtanh.pop %v1687
      %v1689 = vadd.f32 %v1688, 1.0
      %v1690 = vmul.f32 %v1689, 0.5
      %v1691 = vmul.f32 %v1685, %v1677
      %v1692 = vmul.f32 %v1681, %v1686
      %v1693 = vadd.f32 %v1691, %v1692
      %v1694 = vtanh.pop %v1693
      %v1695 = vmul.f32 %v1690, %v1694
      %v1696 = vpack.c.bf16 %v1676, %v1676
      %1697 = vst [vmem:[#allocation2] sm:$0xf] %v1696
      %1698 = vst [vmem:[#allocation3] sm:$0xff] %v1674
      %v1699 = vpack.c.bf16 %v1695, %v1695
      %1700 = vst [vmem:[#allocation4] sm:$0xf] %v1699
      %1701 = vst [vmem:[#allocation5] sm:$0xff] %v1693
      %s1702 = scalar_lea.vmem %s248, 20
      %1703 = vst [vmem:[%s1702] sm:$0xf] %v1696
      %s1704 = scalar_lea.vmem %s255, 8
      %1705 = vst [vmem:[%s1704] sm:$0xf] %v1699
      %s1706 = scalar_lea.vmem %s232, 96
      %v1707 = vld [vmem:[%s1706] sm:$0xff]
      %v1708 = vld [vmem:[%s1706 + $0x8] sm:$0xff]
      %v1709 = vunpack.c.l.bf16 %v1707
      %v1710 = vunpack.c.h.bf16 %v1707
      %v1711 = vunpack.c.l.bf16 %v1708
      %v1712 = vunpack.c.h.bf16 %v1708
      %v1713 = vld [vmem:[#allocation2] sm:$0xf]
      %1714 = vmatpush.bf16.msra.mxu0 %v463
      %1715 = vmatpush.bf16.msra.mxu0 %v459
      %1716 = vmatpush.bf16.msra.mxu0 %v455
      %1717 = vmatpush.bf16.msra.mxu0 %v451
      %1718 = vmatpush.bf16.msra.mxu0 %v447
      %1719 = vmatpush.bf16.msra.mxu0 %v443
      %1720 = vmatpush.bf16.msra.mxu0 %v439
      %1721 = vmatpush.bf16.msra.mxu0 %v435
      %1722 = vmatmul.bf16.gmra.mxu0 %v1713
      %v1723 = vpop.f32.mrf.mxu0
      %v1724 = vadd.f32 0.0, %v1723
      %v1725 = vpop.f32.mrf.mxu0
      %1726 = vdwg.mxu0
      %1727 = vmatpush.bf16.msra.mxu0 %v464
      %1728 = vmatpush.bf16.msra.mxu0 %v460
      %1729 = vmatpush.bf16.msra.mxu0 %v456
      %1730 = vmatpush.bf16.msra.mxu0 %v452
      %1731 = vmatpush.bf16.msra.mxu0 %v448
      %1732 = vmatpush.bf16.msra.mxu0 %v444
      %1733 = vmatpush.bf16.msra.mxu0 %v440
      %1734 = vmatpush.bf16.msra.mxu0 %v436
      %1735 = vmatmul.bf16.gmra.mxu0 %v1713
      %v1736 = vpop.f32.mrf.mxu0
      %v1737 = vadd.f32 0.0, %v1736
      %v1738 = vpop.f32.mrf.mxu0
      %1739 = vdwg.mxu0
      %1740 = vmatpush.bf16.msra.mxu0 %v465
      %1741 = vmatpush.bf16.msra.mxu0 %v461
      %1742 = vmatpush.bf16.msra.mxu0 %v457
      %1743 = vmatpush.bf16.msra.mxu0 %v453
      %1744 = vmatpush.bf16.msra.mxu0 %v449
      %1745 = vmatpush.bf16.msra.mxu0 %v445
      %1746 = vmatpush.bf16.msra.mxu0 %v441
      %1747 = vmatpush.bf16.msra.mxu0 %v437
      %1748 = vmatmul.bf16.gmra.mxu0 %v1713
      %v1749 = vpop.f32.mrf.mxu0
      %v1750 = vadd.f32 0.0, %v1749
      %v1751 = vpop.f32.mrf.mxu0
      %1752 = vdwg.mxu0
      %1753 = vmatpush.bf16.msra.mxu0 %v466
      %1754 = vmatpush.bf16.msra.mxu0 %v462
      %1755 = vmatpush.bf16.msra.mxu0 %v458
      %1756 = vmatpush.bf16.msra.mxu0 %v454
      %1757 = vmatpush.bf16.msra.mxu0 %v450
      %1758 = vmatpush.bf16.msra.mxu0 %v446
      %1759 = vmatpush.bf16.msra.mxu0 %v442
      %1760 = vmatpush.bf16.msra.mxu0 %v438
      %1761 = vmatmul.bf16.gmra.mxu0 %v1713
      %v1762 = vpop.f32.mrf.mxu0
      %v1763 = vadd.f32 0.0, %v1762
      %v1764 = vpop.f32.mrf.mxu0
      %1765 = vdwg.mxu0
      %v1766 = vadd.f32 %v1709, %v1724
      %v1767 = vadd.f32 %v1710, %v1737
      %v1768 = vadd.f32 %v1711, %v1750
      %v1769 = vadd.f32 %v1712, %v1763
      %s1770 = scalar_lea.vmem %s241, 16
      %v1771 = vld [vmem:[%s1770] sm:$0xff]
      %v1772 = vld [vmem:[%s1770 + $0x8] sm:$0xff]
      %v1773 = vunpack.c.l.bf16 %v1771
      %v1774 = vunpack.c.h.bf16 %v1771
      %v1775 = vunpack.c.l.bf16 %v1772
      %v1776 = vunpack.c.h.bf16 %v1772
      %v1777 = vld [vmem:[#allocation4] sm:$0xf]
      %1778 = vmatpush.bf16.msra.mxu0 %v687
      %1779 = vmatpush.bf16.msra.mxu0 %v683
      %1780 = vmatpush.bf16.msra.mxu0 %v679
      %1781 = vmatpush.bf16.msra.mxu0 %v675
      %1782 = vmatpush.bf16.msra.mxu0 %v671
      %1783 = vmatpush.bf16.msra.mxu0 %v667
      %1784 = vmatpush.bf16.msra.mxu0 %v663
      %1785 = vmatpush.bf16.msra.mxu0 %v659
      %1786 = vmatmul.bf16.gmra.mxu0 %v1777
      %v1787 = vpop.f32.mrf.mxu0
      %v1788 = vadd.f32 0.0, %v1787
      %v1789 = vpop.f32.mrf.mxu0
      %1790 = vdwg.mxu0
      %1791 = vmatpush.bf16.msra.mxu0 %v688
      %1792 = vmatpush.bf16.msra.mxu0 %v684
      %1793 = vmatpush.bf16.msra.mxu0 %v680
      %1794 = vmatpush.bf16.msra.mxu0 %v676
      %1795 = vmatpush.bf16.msra.mxu0 %v672
      %1796 = vmatpush.bf16.msra.mxu0 %v668
      %1797 = vmatpush.bf16.msra.mxu0 %v664
      %1798 = vmatpush.bf16.msra.mxu0 %v660
      %1799 = vmatmul.bf16.gmra.mxu0 %v1777
      %v1800 = vpop.f32.mrf.mxu0
      %v1801 = vadd.f32 0.0, %v1800
      %v1802 = vpop.f32.mrf.mxu0
      %1803 = vdwg.mxu0
      %1804 = vmatpush.bf16.msra.mxu0 %v689
      %1805 = vmatpush.bf16.msra.mxu0 %v685
      %1806 = vmatpush.bf16.msra.mxu0 %v681
      %1807 = vmatpush.bf16.msra.mxu0 %v677
      %1808 = vmatpush.bf16.msra.mxu0 %v673
      %1809 = vmatpush.bf16.msra.mxu0 %v669
      %1810 = vmatpush.bf16.msra.mxu0 %v665
      %1811 = vmatpush.bf16.msra.mxu0 %v661
      %1812 = vmatmul.bf16.gmra.mxu0 %v1777
      %v1813 = vpop.f32.mrf.mxu0
      %v1814 = vadd.f32 0.0, %v1813
      %v1815 = vpop.f32.mrf.mxu0
      %1816 = vdwg.mxu0
      %1817 = vmatpush.bf16.msra.mxu0 %v690
      %1818 = vmatpush.bf16.msra.mxu0 %v686
      %1819 = vmatpush.bf16.msra.mxu0 %v682
      %1820 = vmatpush.bf16.msra.mxu0 %v678
      %1821 = vmatpush.bf16.msra.mxu0 %v674
      %1822 = vmatpush.bf16.msra.mxu0 %v670
      %1823 = vmatpush.bf16.msra.mxu0 %v666
      %1824 = vmatpush.bf16.msra.mxu0 %v662
      %1825 = vmatmul.bf16.gmra.mxu0 %v1777
      %v1826 = vpop.f32.mrf.mxu0
      %v1827 = vadd.f32 0.0, %v1826
      %v1828 = vpop.f32.mrf.mxu0
      %1829 = vdwg.mxu0
      %v1830 = vadd.f32 %v1773, %v1788
      %v1831 = vadd.f32 %v1774, %v1801
      %v1832 = vadd.f32 %v1775, %v1814
      %v1833 = vadd.f32 %v1776, %v1827
      %v1834 = vld [vmem:[#allocation3] sm:$0xff]
      %v1835 = vmul.f32 %v1766, 0.5
      %v1836 = vtanh.pop %v1835
      %v1837 = vadd.f32 %v1836, 1.0
      %v1838 = vmul.f32 %v1837, 0.5
      %v1839 = vmul.f32 %v1767, 0.5
      %v1840 = vtanh.pop %v1839
      %v1841 = vadd.f32 %v1840, 1.0
      %v1842 = vmul.f32 %v1841, 0.5
      %v1843 = vtanh.pop %v1768
      %v1844 = vmul.f32 %v1769, 0.5
      %v1845 = vtanh.pop %v1844
      %v1846 = vadd.f32 %v1845, 1.0
      %v1847 = vmul.f32 %v1846, 0.5
      %v1848 = vmul.f32 %v1842, %v1834
      %v1849 = vmul.f32 %v1838, %v1843
      %v1850 = vadd.f32 %v1848, %v1849
      %v1851 = vtanh.pop %v1850
      %v1852 = vmul.f32 %v1847, %v1851
      %v1853 = vld [vmem:[#allocation5] sm:$0xff]
      %v1854 = vmul.f32 %v1830, 0.5
      %v1855 = vtanh.pop %v1854
      %v1856 = vadd.f32 %v1855, 1.0
      %v1857 = vmul.f32 %v1856, 0.5
      %v1858 = vmul.f32 %v1831, 0.5
      %v1859 = vtanh.pop %v1858
      %v1860 = vadd.f32 %v1859, 1.0
      %v1861 = vmul.f32 %v1860, 0.5
      %v1862 = vtanh.pop %v1832
      %v1863 = vmul.f32 %v1833, 0.5
      %v1864 = vtanh.pop %v1863
      %v1865 = vadd.f32 %v1864, 1.0
      %v1866 = vmul.f32 %v1865, 0.5
      %v1867 = vmul.f32 %v1861, %v1853
      %v1868 = vmul.f32 %v1857, %v1862
      %v1869 = vadd.f32 %v1867, %v1868
      %v1870 = vtanh.pop %v1869
      %v1871 = vmul.f32 %v1866, %v1870
      %v1872 = vpack.c.bf16 %v1852, %v1852
      %1873 = vst [vmem:[#allocation2] sm:$0xf] %v1872
      %1874 = vst [vmem:[#allocation3] sm:$0xff] %v1850
      %v1875 = vpack.c.bf16 %v1871, %v1871
      %1876 = vst [vmem:[#allocation4] sm:$0xf] %v1875
      %1877 = vst [vmem:[#allocation5] sm:$0xff] %v1869
      %s1878 = scalar_lea.vmem %s248, 24
      %1879 = vst [vmem:[%s1878] sm:$0xf] %v1872
      %s1880 = scalar_lea.vmem %s255, 4
      %1881 = vst [vmem:[%s1880] sm:$0xf] %v1875
      %s1882 = scalar_lea.vmem %s232, 112
      %v1883 = vld [vmem:[%s1882] sm:$0xff]
      %v1884 = vld [vmem:[%s1882 + $0x8] sm:$0xff]
      %v1885 = vunpack.c.l.bf16 %v1883
      %v1886 = vunpack.c.h.bf16 %v1883
      %v1887 = vunpack.c.l.bf16 %v1884
      %v1888 = vunpack.c.h.bf16 %v1884
      %v1889 = vld [vmem:[#allocation2] sm:$0xf]
      %1890 = vmatpush.bf16.msra.mxu0 %v463
      %1891 = vmatpush.bf16.msra.mxu0 %v459
      %1892 = vmatpush.bf16.msra.mxu0 %v455
      %1893 = vmatpush.bf16.msra.mxu0 %v451
      %1894 = vmatpush.bf16.msra.mxu0 %v447
      %1895 = vmatpush.bf16.msra.mxu0 %v443
      %1896 = vmatpush.bf16.msra.mxu0 %v439
      %1897 = vmatpush.bf16.msra.mxu0 %v435
      %1898 = vmatmul.bf16.gmra.mxu0 %v1889
      %v1899 = vpop.f32.mrf.mxu0
      %v1900 = vadd.f32 0.0, %v1899
      %v1901 = vpop.f32.mrf.mxu0
      %1902 = vdwg.mxu0
      %1903 = vmatpush.bf16.msra.mxu0 %v464
      %1904 = vmatpush.bf16.msra.mxu0 %v460
      %1905 = vmatpush.bf16.msra.mxu0 %v456
      %1906 = vmatpush.bf16.msra.mxu0 %v452
      %1907 = vmatpush.bf16.msra.mxu0 %v448
      %1908 = vmatpush.bf16.msra.mxu0 %v444
      %1909 = vmatpush.bf16.msra.mxu0 %v440
      %1910 = vmatpush.bf16.msra.mxu0 %v436
      %1911 = vmatmul.bf16.gmra.mxu0 %v1889
      %v1912 = vpop.f32.mrf.mxu0
      %v1913 = vadd.f32 0.0, %v1912
      %v1914 = vpop.f32.mrf.mxu0
      %1915 = vdwg.mxu0
      %1916 = vmatpush.bf16.msra.mxu0 %v465
      %1917 = vmatpush.bf16.msra.mxu0 %v461
      %1918 = vmatpush.bf16.msra.mxu0 %v457
      %1919 = vmatpush.bf16.msra.mxu0 %v453
      %1920 = vmatpush.bf16.msra.mxu0 %v449
      %1921 = vmatpush.bf16.msra.mxu0 %v445
      %1922 = vmatpush.bf16.msra.mxu0 %v441
      %1923 = vmatpush.bf16.msra.mxu0 %v437
      %1924 = vmatmul.bf16.gmra.mxu0 %v1889
      %v1925 = vpop.f32.mrf.mxu0
      %v1926 = vadd.f32 0.0, %v1925
      %v1927 = vpop.f32.mrf.mxu0
      %1928 = vdwg.mxu0
      %1929 = vmatpush.bf16.msra.mxu0 %v466
      %1930 = vmatpush.bf16.msra.mxu0 %v462
      %1931 = vmatpush.bf16.msra.mxu0 %v458
      %1932 = vmatpush.bf16.msra.mxu0 %v454
      %1933 = vmatpush.bf16.msra.mxu0 %v450
      %1934 = vmatpush.bf16.msra.mxu0 %v446
      %1935 = vmatpush.bf16.msra.mxu0 %v442
      %1936 = vmatpush.bf16.msra.mxu0 %v438
      %1937 = vmatmul.bf16.gmra.mxu0 %v1889
      %v1938 = vpop.f32.mrf.mxu0
      %v1939 = vadd.f32 0.0, %v1938
      %v1940 = vpop.f32.mrf.mxu0
      %1941 = vdwg.mxu0
      %v1942 = vadd.f32 %v1885, %v1900
      %v1943 = vadd.f32 %v1886, %v1913
      %v1944 = vadd.f32 %v1887, %v1926
      %v1945 = vadd.f32 %v1888, %v1939
      %v1946 = vld [vmem:[%s241] sm:$0xff]
      %v1947 = vld [vmem:[%s241 + $0x8] sm:$0xff]
      %v1948 = vunpack.c.l.bf16 %v1946
      %v1949 = vunpack.c.h.bf16 %v1946
      %v1950 = vunpack.c.l.bf16 %v1947
      %v1951 = vunpack.c.h.bf16 %v1947
      %v1952 = vld [vmem:[#allocation4] sm:$0xf]
      %1953 = vmatpush.bf16.msra.mxu0 %v687
      %1954 = vmatpush.bf16.msra.mxu0 %v683
      %1955 = vmatpush.bf16.msra.mxu0 %v679
      %1956 = vmatpush.bf16.msra.mxu0 %v675
      %1957 = vmatpush.bf16.msra.mxu0 %v671
      %1958 = vmatpush.bf16.msra.mxu0 %v667
      %1959 = vmatpush.bf16.msra.mxu0 %v663
      %1960 = vmatpush.bf16.msra.mxu0 %v659
      %1961 = vmatmul.bf16.gmra.mxu0 %v1952
      %v1962 = vpop.f32.mrf.mxu0
      %v1963 = vadd.f32 0.0, %v1962
      %v1964 = vpop.f32.mrf.mxu0
      %1965 = vdwg.mxu0
      %1966 = vmatpush.bf16.msra.mxu0 %v688
      %1967 = vmatpush.bf16.msra.mxu0 %v684
      %1968 = vmatpush.bf16.msra.mxu0 %v680
      %1969 = vmatpush.bf16.msra.mxu0 %v676
      %1970 = vmatpush.bf16.msra.mxu0 %v672
      %1971 = vmatpush.bf16.msra.mxu0 %v668
      %1972 = vmatpush.bf16.msra.mxu0 %v664
      %1973 = vmatpush.bf16.msra.mxu0 %v660
      %1974 = vmatmul.bf16.gmra.mxu0 %v1952
      %v1975 = vpop.f32.mrf.mxu0
      %v1976 = vadd.f32 0.0, %v1975
      %v1977 = vpop.f32.mrf.mxu0
      %1978 = vdwg.mxu0
      %1979 = vmatpush.bf16.msra.mxu0 %v689
      %1980 = vmatpush.bf16.msra.mxu0 %v685
      %1981 = vmatpush.bf16.msra.mxu0 %v681
      %1982 = vmatpush.bf16.msra.mxu0 %v677
      %1983 = vmatpush.bf16.msra.mxu0 %v673
      %1984 = vmatpush.bf16.msra.mxu0 %v669
      %1985 = vmatpush.bf16.msra.mxu0 %v665
      %1986 = vmatpush.bf16.msra.mxu0 %v661
      %1987 = vmatmul.bf16.gmra.mxu0 %v1952
      %v1988 = vpop.f32.mrf.mxu0
      %v1989 = vadd.f32 0.0, %v1988
      %v1990 = vpop.f32.mrf.mxu0
      %1991 = vdwg.mxu0
      %1992 = vmatpush.bf16.msra.mxu0 %v690
      %1993 = vmatpush.bf16.msra.mxu0 %v686
      %1994 = vmatpush.bf16.msra.mxu0 %v682
      %1995 = vmatpush.bf16.msra.mxu0 %v678
      %1996 = vmatpush.bf16.msra.mxu0 %v674
      %1997 = vmatpush.bf16.msra.mxu0 %v670
      %1998 = vmatpush.bf16.msra.mxu0 %v666
      %1999 = vmatpush.bf16.msra.mxu0 %v662
      %2000 = vmatmul.bf16.gmra.mxu0 %v1952
      %v2001 = vpop.f32.mrf.mxu0
      %v2002 = vadd.f32 0.0, %v2001
      %v2003 = vpop.f32.mrf.mxu0
      %2004 = vdwg.mxu0
      %v2005 = vadd.f32 %v1948, %v1963
      %v2006 = vadd.f32 %v1949, %v1976
      %v2007 = vadd.f32 %v1950, %v1989
      %v2008 = vadd.f32 %v1951, %v2002
      %v2009 = vld [vmem:[#allocation3] sm:$0xff]
      %v2010 = vmul.f32 %v1942, 0.5
      %v2011 = vtanh.pop %v2010
      %v2012 = vadd.f32 %v2011, 1.0
      %v2013 = vmul.f32 %v2012, 0.5
      %v2014 = vmul.f32 %v1943, 0.5
      %v2015 = vtanh.pop %v2014
      %v2016 = vadd.f32 %v2015, 1.0
      %v2017 = vmul.f32 %v2016, 0.5
      %v2018 = vtanh.pop %v1944
      %v2019 = vmul.f32 %v1945, 0.5
      %v2020 = vtanh.pop %v2019
      %v2021 = vadd.f32 %v2020, 1.0
      %v2022 = vmul.f32 %v2021, 0.5
      %v2023 = vmul.f32 %v2017, %v2009
      %v2024 = vmul.f32 %v2013, %v2018
      %v2025 = vadd.f32 %v2023, %v2024
      %v2026 = vtanh.pop %v2025
      %v2027 = vmul.f32 %v2022, %v2026
      %v2028 = vld [vmem:[#allocation5] sm:$0xff]
      %v2029 = vmul.f32 %v2005, 0.5
      %v2030 = vtanh.pop %v2029
      %v2031 = vadd.f32 %v2030, 1.0
      %v2032 = vmul.f32 %v2031, 0.5
      %v2033 = vmul.f32 %v2006, 0.5
      %v2034 = vtanh.pop %v2033
      %v2035 = vadd.f32 %v2034, 1.0
      %v2036 = vmul.f32 %v2035, 0.5
      %v2037 = vtanh.pop %v2007
      %v2038 = vmul.f32 %v2008, 0.5
      %v2039 = vtanh.pop %v2038
      %v2040 = vadd.f32 %v2039, 1.0
      %v2041 = vmul.f32 %v2040, 0.5
      %v2042 = vmul.f32 %v2036, %v2028
      %v2043 = vmul.f32 %v2032, %v2037
      %v2044 = vadd.f32 %v2042, %v2043
      %v2045 = vtanh.pop %v2044
      %v2046 = vmul.f32 %v2041, %v2045
      %v2047 = vpack.c.bf16 %v2027, %v2027
      %2048 = vst [vmem:[#allocation2] sm:$0xf] %v2047
      %2049 = vst [vmem:[#allocation3] sm:$0xff] %v2025
      %v2050 = vpack.c.bf16 %v2046, %v2046
      %2051 = vst [vmem:[#allocation4] sm:$0xf] %v2050
      %2052 = vst [vmem:[#allocation5] sm:$0xff] %v2044
      %s2053 = scalar_lea.vmem %s248, 28
      %2054 = vst [vmem:[%s2053] sm:$0xf] %v2047
      %2055 = vst [vmem:[%s255] sm:$0xf] %v2050
      %s2056 = smul.u32 8, %s16
      %p2057 = scmp.lt.s32.totalorder %s2056, 15
      %s2058 = scalar_select %p2057, %s2056, 15
      %s2059 = smul.addr %s2058, 4
      %s2060 = scalar_lea.vmem %s3, %s2059
      %s2061 = ssub.s32 1, %s16
      %s2062 = smul.u32 8, %s2061
      %p2063 = scmp.lt.s32.totalorder %s2062, 15
      %s2064 = scalar_select %p2063, %s2062, 15
      %s2065 = smul.addr %s2064, 4
      %s2066 = scalar_lea.vmem %s4, %s2065
      // Predicated region
      $region37: #{rnn_decoder_forward.2} parent=31 // pred_check
        %p2067 = pneg %p109
      $region38: #{rnn_decoder_forward.2} parent=31 // pred_check_branch
        %2069 = sbr.rel (%p2067) target = $region40
      $region39: #{rnn_decoder_forward.2} parent=31 // pred_region
        %s2070 = smul.u32 8, %s16
      $region40: #{rnn_decoder_forward.2} parent=31 // pred_fallthru
        _
      // Predicated region
      $region41: #{rnn_decoder_forward.2} parent=31 // pred_check
        %p2071 = pneg %p137
      $region42: #{rnn_decoder_forward.2} parent=31 // pred_check_branch
        %2073 = sbr.rel (%p2071) target = $region44
      $region43: #{rnn_decoder_forward.2} parent=31 // pred_region
        %s2074 = ssub.s32 1, %s16
        %s2075 = smul.u32 8, %s2074
      $region44: #{rnn_decoder_forward.2} parent=31 // pred_fallthru
        _
    $region32: #{rnn_decoder_forward.2} parent=5 // pred_fallthru
      _
    %p2076 = scmp.le.s32.totalorder 2, %s11
    // Predicated region
    $region45: #{rnn_decoder_forward.2} parent=5 // pred_check
      %p2077 = pneg %p2076
    $region46: #{rnn_decoder_forward.2} parent=5 // pred_check_branch
      %2079 = sbr.rel (%p2077) target = $region48
    $region47: #{rnn_decoder_forward.2} parent=5 // pred_region
      %s2080 = ssub.s32 %s11, 2
      // Predicated region
      $region49: #{rnn_decoder_forward.2} parent=47 // pred_check
        %p2081 = pneg %p115
      $region50: #{rnn_decoder_forward.2} parent=47 // pred_check_branch
        %2083 = sbr.rel (%p2081) target = $region52
      $region51: #{rnn_decoder_forward.2} parent=47 // pred_region
        %s2084 = smul.u32 8, %s17
        %p2085 = scmp.lt.s32.totalorder %s2084, 15
        %s2086 = scalar_select %p2085, %s2084, 15
        %s2087 = smul.addr %s2086, 4
        %s2088 = scalar_lea.vmem %s3, %s2087
      $region52: #{rnn_decoder_forward.2} parent=47 // pred_fallthru
        _
      // Predicated region
      $region53: #{rnn_decoder_forward.2} parent=47 // pred_check
        %p2089 = pneg %p143
      $region54: #{rnn_decoder_forward.2} parent=47 // pred_check_branch
        %2091 = sbr.rel (%p2089) target = $region56
      $region55: #{rnn_decoder_forward.2} parent=47 // pred_region
        %s2092 = ssub.s32 1, %s17
        %s2093 = smul.u32 8, %s2092
        %p2094 = scmp.lt.s32.totalorder %s2093, 15
        %s2095 = scalar_select %p2094, %s2093, 15
        %s2096 = smul.addr %s2095, 4
        %s2097 = scalar_lea.vmem %s4, %s2096
      $region56: #{rnn_decoder_forward.2} parent=47 // pred_fallthru
        _
    $region48: #{rnn_decoder_forward.2} parent=5 // pred_fallthru
      _
  $region6: #{rnn_decoder_forward.2} parent=0 // loop_footer
    %s15 = sadd.s32 1, %s11
  $region7: #{rnn_decoder_forward.2} parent=0 // loop_footer_branch
    %10 = sbr.rel target = $region3
  $region8: #{rnn_decoder_forward.2} parent=0 // loop_exit
    _

</llo_original>
